<compile_context>
chip_gen: v7x
topology: tpu7x:2x2x1
jax: 0.10.0
libtpu: 0.0.40
codegen_flags: <defaults>
</compile_context>

<pallas_src>
import jax
import jax.numpy as jnp
from jax.experimental import pallas as pl
from jax.experimental.pallas import tpu as pltpu

BN_EPS = 1e-5


# ----------------------------------------------------------------------------
# Pallas kernel
# ----------------------------------------------------------------------------
def _make_enc_block_kernel(N, H, W, Cin, Cmid, Cout):
    Ho, Wo = H // 2, W // 2
    Cpad = max(Cin, Cmid)          # single shared halo scratch serves all blocks

    def kernel(x_ref,
               dw1_w, pw1_w, bn1_g, bn1_b,
               dw2_w, pw2_w, bn2_g, bn2_b,
               dw3_w, pw3_w, bn3_g, bn3_b,
               id_w, id_b,
               out_ref,
               pad):
        f32 = jnp.float32

        # ---- zero only the 1-pixel border of the shared halo scratch, once ----
        pad[:, 0:1, :, :] = jnp.zeros((N, 1, W + 2, Cpad), f32)
        pad[:, H + 1:H + 2, :, :] = jnp.zeros((N, 1, W + 2, Cpad), f32)
        pad[:, :, 0:1, :] = jnp.zeros((N, H + 2, 1, Cpad), f32)
        pad[:, :, W + 1:W + 2, :] = jnp.zeros((N, H + 2, 1, Cpad), f32)

        def depthwise_s1(w_ref, C):
            # 3x3, stride 1, pad 1 depthwise conv from the shared halo scratch.
            # Weights loaded once; accumulator initialized from tap 0.
            # Depthwise bias dropped: constant per channel, cancelled by BN.
            w = w_ref[...]                                     # (9, C)
            acc = pad[:, 0:H, 0:W, :C] * w[0:1, :]
            for k in range(1, 9):
                dy, dx = k // 3, k % 3
                acc = acc + pad[:, dy:dy + H, dx:dx + W, :C] * w[k:k + 1, :]
            return acc                                         # (N, H, W, C)

        def pw_bn_relu6(y4, w_ref, g_ref, beta_ref):
            # 1x1 conv (MXU) -> training-mode BN (single pass over z: sum and
            # sum-of-squares, biased variance) -> fused scale/shift -> ReLU6.
            # Pointwise bias dropped: cancelled exactly by the BN mean.
            n, h, w, _ = y4.shape
            m = n * h * w
            z = jnp.dot(y4.reshape(m, y4.shape[-1]), w_ref[...],
                        preferred_element_type=jnp.float32)    # (m, Cout_blk)
            s1 = jnp.sum(z, axis=0, keepdims=True)             # (1, C)
            s2 = jnp.sum(z * z, axis=0, keepdims=True)         # (1, C)
            mean = s1 * (1.0 / m)
            var = jnp.maximum(s2 * (1.0 / m) - mean * mean, 0.0)
            scale = jax.lax.rsqrt(var + BN_EPS) * g_ref[...]   # EUP rsqrt
            shift = beta_ref[...] - mean * scale
            z = jnp.clip(z * scale + shift, 0.0, 6.0)          # ReLU6
            return z.reshape(n, h, w, z.shape[-1])

        # ---- block1: SepConv2d(3x3, s=1, p=1) + BN + ReLU6 ----
        pad[:, 1:H + 1, 1:W + 1, :Cin] = x_ref[...]
        out1 = pw_bn_relu6(depthwise_s1(dw1_w, Cin), pw1_w, bn1_g, bn1_b)

        # ---- block2: SepConv2d(3x3, s=1, p=1) + BN + ReLU6 ----
        pad[:, 1:H + 1, 1:W + 1, :Cmid] = out1
        out2 = pw_bn_relu6(depthwise_s1(dw2_w, Cmid), pw2_w, bn2_g, bn2_b)

        # ---- block3: SepConv2d(3x3, s=2, p=1) + BN + ReLU6 ----
        pad[:, 1:H + 1, 1:W + 1, :Cmid] = out2      # borders stay zero
        w3 = dw3_w[...]                              # (9, Cmid), loaded once
        acc = (pad[:, pl.ds(0, Ho, stride=2), pl.ds(0, Wo, stride=2), :Cmid]
               * w3[0:1, :])
        for k in range(1, 9):
            dy, dx = k // 3, k % 3
            acc = acc + (pad[:, pl.ds(dy, Ho, stride=2),
                             pl.ds(dx, Wo, stride=2), :Cmid] * w3[k:k + 1, :])
        out3 = pw_bn_relu6(acc, pw3_w, bn3_g, bn3_b)            # (N,Ho,Wo,Cout)

        # ---- identity: Conv2d(1x1, stride 2) — bias kept (no BN after it) ----
        x_sub = x_ref[:, pl.ds(0, Ho, stride=2), pl.ds(0, Wo, stride=2), :]
        ident = jnp.dot(x_sub.reshape(N * Ho * Wo, Cin), id_w[...],
                        preferred_element_type=jnp.float32) + id_b[...]

        out_ref[...] = out3 + ident.reshape(N, Ho, Wo, Cout)

    return kernel, Ho, Wo, Cpad


# ----------------------------------------------------------------------------
# Wrapper (NCHW in / NCHW out, PyTorch-shaped parameters)
# ----------------------------------------------------------------------------
def enc_block_forward(x_nchw, p):
    N, Cin, H, W = x_nchw.shape
    Cmid = p["pw1_w"].shape[0]
    Cout = p["id_w"].shape[0]
    kernel, Ho, Wo, Cpad = _make_enc_block_kernel(N, H, W, Cin, Cmid, Cout)

    def dw2k(w):   # depthwise (C,1,3,3) -> (9, C)
        c = w.shape[0]
        return jnp.transpose(w.reshape(c, 9), (1, 0))

    def pw2k(w):   # pointwise / 1x1 (Cout, Cin, 1, 1) -> (Cin, Cout)
        return jnp.transpose(w[:, :, 0, 0], (1, 0))

    def row(v):    # (C,) -> (1, C)
        return v.reshape(1, -1)

    # NOTE: dw*_b / pw*_b are intentionally not passed — they are exactly
    # cancelled by training-mode BatchNorm's mean subtraction.
    flat_in = [
        jnp.transpose(x_nchw, (0, 2, 3, 1)).astype(jnp.float32),   # NHWC
        dw2k(p["dw1_w"]), pw2k(p["pw1_w"]), row(p["bn1_g"]), row(p["bn1_b"]),
        dw2k(p["dw2_w"]), pw2k(p["pw2_w"]), row(p["bn2_g"]), row(p["bn2_b"]),
        dw2k(p["dw3_w"]), pw2k(p["pw3_w"]), row(p["bn3_g"]), row(p["bn3_b"]),
        pw2k(p["id_w"]), row(p["id_b"]),
    ]

    # Explicit VMEM budget: input + shared halo scratch + output + headroom for
    # the compiler-managed value slabs (out1 / out2 / matmul results).
    f32b = 4
    est = f32b * (N * H * W * Cin
                  + N * (H + 2) * (W + 2) * Cpad
                  + 6 * N * H * W * max(Cmid, Cout)
                  + N * Ho * Wo * Cout) + (8 << 20)
    vmem_limit = max(int(est), 32 << 20)   # never below the platform default

    out_nhwc = pl.pallas_call(
        kernel,
        out_shape=jax.ShapeDtypeStruct((N, Ho, Wo, Cout), jnp.float32),
        in_specs=[pl.BlockSpec(memory_space=pltpu.MemorySpace.VMEM)] * len(flat_in),
        out_specs=pl.BlockSpec(memory_space=pltpu.MemorySpace.VMEM),
        scratch_shapes=[
            pltpu.VMEM((N, H + 2, W + 2, Cpad), jnp.float32),  # shared halo buf
        ],
        compiler_params=pltpu.CompilerParams(vmem_limit_bytes=vmem_limit),
    )(*flat_in)

    return jnp.transpose(out_nhwc, (0, 3, 1, 2))   # back to NCHW


# ----------------------------------------------------------------------------
# Deterministic parameter init (PyTorch shapes) + pure-JAX reference
# ----------------------------------------------------------------------------
def init_params(key, cin, cmid, cout):
    ks = iter(jax.random.split(key, 24))

    def nrm(shape, scale=0.2):
        return (scale * jax.random.normal(next(ks), shape)).astype(jnp.float32)

    return {
        "id_w": nrm((cout, cin, 1, 1)),  "id_b": nrm((cout,)),
        "dw1_w": nrm((cin, 1, 3, 3)),    "dw1_b": nrm((cin,)),
        "pw1_w": nrm((cmid, cin, 1, 1)), "pw1_b": nrm((cmid,)),
        "bn1_g": 1.0 + nrm((cmid,), 0.1), "bn1_b": nrm((cmid,), 0.1),
        "dw2_w": nrm((cmid, 1, 3, 3)),   "dw2_b": nrm((cmid,)),
        "pw2_w": nrm((cmid, cmid, 1, 1)), "pw2_b": nrm((cmid,)),
        "bn2_g": 1.0 + nrm((cmid,), 0.1), "bn2_b": nrm((cmid,), 0.1),
        "dw3_w": nrm((cmid, 1, 3, 3)),   "dw3_b": nrm((cmid,)),
        "pw3_w": nrm((cout, cmid, 1, 1)), "pw3_b": nrm((cout,)),
        "bn3_g": 1.0 + nrm((cout,), 0.1), "bn3_b": nrm((cout,), 0.1),
    }


def _conv(x, w, b, stride, padding, groups=1):
    y = jax.lax.conv_general_dilated(
        x, w, window_strides=(stride, stride),
        padding=[(padding, padding), (padding, padding)],
        dimension_numbers=("NCHW", "OIHW", "NCHW"),
        feature_group_count=groups,
        precision=jax.lax.Precision.HIGHEST)
    return y + b[None, :, None, None]


def _bn_relu6(x, g, b):
    mean = jnp.mean(x, axis=(0, 2, 3), keepdims=True)
    var = jnp.mean((x - mean) ** 2, axis=(0, 2, 3), keepdims=True)
    y = (x - mean) / jnp.sqrt(var + BN_EPS) * g[None, :, None, None] + b[None, :, None, None]
    return jnp.clip(y, 0.0, 6.0)


def enc_block_reference(x, p):
    cin = x.shape[1]
    cmid = p["pw1_w"].shape[0]
    ident = _conv(x, p["id_w"], p["id_b"], 2, 0)
    y = _conv(x, p["dw1_w"], p["dw1_b"], 1, 1, groups=cin)
    y = _conv(y, p["pw1_w"], p["pw1_b"], 1, 0)
    y = _bn_relu6(y, p["bn1_g"], p["bn1_b"])
    y = _conv(y, p["dw2_w"], p["dw2_b"], 1, 1, groups=cmid)
    y = _conv(y, p["pw2_w"], p["pw2_b"], 1, 0)
    y = _bn_relu6(y, p["bn2_g"], p["bn2_b"])
    y = _conv(y, p["dw3_w"], p["dw3_b"], 2, 1, groups=cmid)
    y = _conv(y, p["pw3_w"], p["pw3_b"], 1, 0)
    y = _bn_relu6(y, p["bn3_g"], p["bn3_b"])
    return y + ident


# ----------------------------------------------------------------------------
if __name__ == "__main__":
    key = jax.random.PRNGKey(0)
    N, Cin, Cmid, Cout, H, W = 2, 4, 8, 8, 16, 16

    kx, kp = jax.random.split(key)
    x = jax.random.normal(kx, (N, Cin, H, W), dtype=jnp.float32)
    params = init_params(kp, Cin, Cmid, Cout)

    out = jax.block_until_ready(enc_block_forward(x, params))
    ref = jax.block_until_ready(enc_block_reference(x, params))

    assert out.shape == (N, Cout, H // 2, W // 2), out.shape
    max_err = float(jnp.max(jnp.abs(out - ref)))
    if max_err > 2e-2:
        raise AssertionError(f"kernel/reference mismatch: max_err={max_err}")

    print("KERNEL_OK")
</pallas_src>

<mosaic_0001>
module attributes {stable_mosaic.version = 11 : i64} {
  func.func @kernel(%arg0: memref<2x16x16x4xf32, #tpu.memory_space<vmem>>, %arg1: memref<9x4xf32, #tpu.memory_space<vmem>>, %arg2: memref<4x8xf32, #tpu.memory_space<vmem>>, %arg3: memref<1x8xf32, #tpu.memory_space<vmem>>, %arg4: memref<1x8xf32, #tpu.memory_space<vmem>>, %arg5: memref<9x8xf32, #tpu.memory_space<vmem>>, %arg6: memref<8x8xf32, #tpu.memory_space<vmem>>, %arg7: memref<1x8xf32, #tpu.memory_space<vmem>>, %arg8: memref<1x8xf32, #tpu.memory_space<vmem>>, %arg9: memref<9x8xf32, #tpu.memory_space<vmem>>, %arg10: memref<8x8xf32, #tpu.memory_space<vmem>>, %arg11: memref<1x8xf32, #tpu.memory_space<vmem>>, %arg12: memref<1x8xf32, #tpu.memory_space<vmem>>, %arg13: memref<4x8xf32, #tpu.memory_space<vmem>>, %arg14: memref<1x8xf32, #tpu.memory_space<vmem>>, %arg15: memref<2x8x8x8xf32, #tpu.memory_space<vmem>>, %arg16: memref<2x18x18x8xf32, #tpu.memory_space<vmem>>) attributes {dimension_semantics = [], scalar_prefetch = 0 : i64, scratch_operands = 1 : i64, tpu.core_type = #tpu.core_type<tc>} {
    %cst = arith.constant 0.000000e+00 : f32
    %0 = vector.broadcast %cst : f32 to vector<2x1x18x8xf32>
    %c0 = arith.constant 0 : index
    %c0_0 = arith.constant 0 : index
    %c0_1 = arith.constant 0 : index
    %c0_2 = arith.constant 0 : index
    %1 = vector.load %arg16[%c0, %c0_0, %c0_1, %c0_2] : memref<2x18x18x8xf32, #tpu.memory_space<vmem>>, vector<2x1x18x8xf32>
    tpu.vector_store %arg16[%c0, %c0_0, %c0_1, %c0_2], %0 {strides = array<i32>} : memref<2x18x18x8xf32, #tpu.memory_space<vmem>>, vector<2x1x18x8xf32>,
    %cst_3 = arith.constant 0.000000e+00 : f32
    %2 = vector.broadcast %cst_3 : f32 to vector<2x1x18x8xf32>
    %c0_4 = arith.constant 0 : index
    %c17 = arith.constant 17 : index
    %c0_5 = arith.constant 0 : index
    %c0_6 = arith.constant 0 : index
    %3 = vector.load %arg16[%c0_4, %c17, %c0_5, %c0_6] : memref<2x18x18x8xf32, #tpu.memory_space<vmem>>, vector<2x1x18x8xf32>
    tpu.vector_store %arg16[%c0_4, %c17, %c0_5, %c0_6], %2 {strides = array<i32>} : memref<2x18x18x8xf32, #tpu.memory_space<vmem>>, vector<2x1x18x8xf32>,
    %cst_7 = arith.constant 0.000000e+00 : f32
    %4 = vector.broadcast %cst_7 : f32 to vector<2x18x1x8xf32>
    %c0_8 = arith.constant 0 : index
    %c0_9 = arith.constant 0 : index
    %c0_10 = arith.constant 0 : index
    %c0_11 = arith.constant 0 : index
    %5 = vector.load %arg16[%c0_8, %c0_9, %c0_10, %c0_11] : memref<2x18x18x8xf32, #tpu.memory_space<vmem>>, vector<2x18x1x8xf32>
    tpu.vector_store %arg16[%c0_8, %c0_9, %c0_10, %c0_11], %4 {strides = array<i32>} : memref<2x18x18x8xf32, #tpu.memory_space<vmem>>, vector<2x18x1x8xf32>,
    %cst_12 = arith.constant 0.000000e+00 : f32
    %6 = vector.broadcast %cst_12 : f32 to vector<2x18x1x8xf32>
    %c0_13 = arith.constant 0 : index
    %c0_14 = arith.constant 0 : index
    %c17_15 = arith.constant 17 : index
    %c0_16 = arith.constant 0 : index
    %7 = vector.load %arg16[%c0_13, %c0_14, %c17_15, %c0_16] : memref<2x18x18x8xf32, #tpu.memory_space<vmem>>, vector<2x18x1x8xf32>
    tpu.vector_store %arg16[%c0_13, %c0_14, %c17_15, %c0_16], %6 {strides = array<i32>} : memref<2x18x18x8xf32, #tpu.memory_space<vmem>>, vector<2x18x1x8xf32>,
    %c0_17 = arith.constant 0 : index
    %c0_18 = arith.constant 0 : index
    %c0_19 = arith.constant 0 : index
    %c0_20 = arith.constant 0 : index
    %8 = vector.load %arg0[%c0_17, %c0_18, %c0_19, %c0_20] : memref<2x16x16x4xf32, #tpu.memory_space<vmem>>, vector<2x16x16x4xf32>
    %c0_21 = arith.constant 0 : index
    %c1 = arith.constant 1 : index
    %c1_22 = arith.constant 1 : index
    %c0_23 = arith.constant 0 : index
    %9 = vector.load %arg16[%c0_21, %c1, %c1_22, %c0_23] : memref<2x18x18x8xf32, #tpu.memory_space<vmem>>, vector<2x16x16x4xf32>
    tpu.vector_store %arg16[%c0_21, %c1, %c1_22, %c0_23], %8 {strides = array<i32>} : memref<2x18x18x8xf32, #tpu.memory_space<vmem>>, vector<2x16x16x4xf32>,
    %c0_24 = arith.constant 0 : index
    %c0_25 = arith.constant 0 : index
    %10 = vector.load %arg1[%c0_24, %c0_25] : memref<9x4xf32, #tpu.memory_space<vmem>>, vector<9x4xf32>
    %c0_26 = arith.constant 0 : index
    %c0_27 = arith.constant 0 : index
    %c0_28 = arith.constant 0 : index
    %c0_29 = arith.constant 0 : index
    %11 = vector.load %arg16[%c0_26, %c0_27, %c0_28, %c0_29] : memref<2x18x18x8xf32, #tpu.memory_space<vmem>>, vector<2x16x16x4xf32>
    %12 = vector.extract_strided_slice %10 {offsets = [0, 0], sizes = [1, 4], strides = [1, 1]} : vector<9x4xf32> to vector<1x4xf32>
    %13 = vector.shape_cast %12 : vector<1x4xf32> to vector<1x1x1x4xf32>
    %14 = vector.broadcast %13 : vector<1x1x1x4xf32> to vector<2x16x16x4xf32>
    %15 = arith.mulf %11, %14 : vector<2x16x16x4xf32>
    %c0_30 = arith.constant 0 : index
    %c0_31 = arith.constant 0 : index
    %c1_32 = arith.constant 1 : index
    %c0_33 = arith.constant 0 : index
    %16 = vector.load %arg16[%c0_30, %c0_31, %c1_32, %c0_33] : memref<2x18x18x8xf32, #tpu.memory_space<vmem>>, vector<2x16x16x4xf32>
    %17 = vector.extract_strided_slice %10 {offsets = [1, 0], sizes = [1, 4], strides = [1, 1]} : vector<9x4xf32> to vector<1x4xf32>
    %18 = vector.shape_cast %17 : vector<1x4xf32> to vector<1x1x1x4xf32>
    %19 = vector.broadcast %18 : vector<1x1x1x4xf32> to vector<2x16x16x4xf32>
    %20 = arith.mulf %16, %19 : vector<2x16x16x4xf32>
    %21 = arith.addf %15, %20 : vector<2x16x16x4xf32>
    %c0_34 = arith.constant 0 : index
    %c0_35 = arith.constant 0 : index
    %c2 = arith.constant 2 : index
    %c0_36 = arith.constant 0 : index
    %22 = vector.load %arg16[%c0_34, %c0_35, %c2, %c0_36] : memref<2x18x18x8xf32, #tpu.memory_space<vmem>>, vector<2x16x16x4xf32>
    %23 = vector.extract_strided_slice %10 {offsets = [2, 0], sizes = [1, 4], strides = [1, 1]} : vector<9x4xf32> to vector<1x4xf32>
    %24 = vector.shape_cast %23 : vector<1x4xf32> to vector<1x1x1x4xf32>
    %25 = vector.broadcast %24 : vector<1x1x1x4xf32> to vector<2x16x16x4xf32>
    %26 = arith.mulf %22, %25 : vector<2x16x16x4xf32>
    %27 = arith.addf %21, %26 : vector<2x16x16x4xf32>
    %c0_37 = arith.constant 0 : index
    %c1_38 = arith.constant 1 : index
    %c0_39 = arith.constant 0 : index
    %c0_40 = arith.constant 0 : index
    %28 = vector.load %arg16[%c0_37, %c1_38, %c0_39, %c0_40] : memref<2x18x18x8xf32, #tpu.memory_space<vmem>>, vector<2x16x16x4xf32>
    %29 = vector.extract_strided_slice %10 {offsets = [3, 0], sizes = [1, 4], strides = [1, 1]} : vector<9x4xf32> to vector<1x4xf32>
    %30 = vector.shape_cast %29 : vector<1x4xf32> to vector<1x1x1x4xf32>
    %31 = vector.broadcast %30 : vector<1x1x1x4xf32> to vector<2x16x16x4xf32>
    %32 = arith.mulf %28, %31 : vector<2x16x16x4xf32>
    %33 = arith.addf %27, %32 : vector<2x16x16x4xf32>
    %c0_41 = arith.constant 0 : index
    %c1_42 = arith.constant 1 : index
    %c1_43 = arith.constant 1 : index
    %c0_44 = arith.constant 0 : index
    %34 = vector.load %arg16[%c0_41, %c1_42, %c1_43, %c0_44] : memref<2x18x18x8xf32, #tpu.memory_space<vmem>>, vector<2x16x16x4xf32>
    %35 = vector.extract_strided_slice %10 {offsets = [4, 0], sizes = [1, 4], strides = [1, 1]} : vector<9x4xf32> to vector<1x4xf32>
    %36 = vector.shape_cast %35 : vector<1x4xf32> to vector<1x1x1x4xf32>
    %37 = vector.broadcast %36 : vector<1x1x1x4xf32> to vector<2x16x16x4xf32>
    %38 = arith.mulf %34, %37 : vector<2x16x16x4xf32>
    %39 = arith.addf %33, %38 : vector<2x16x16x4xf32>
    %c0_45 = arith.constant 0 : index
    %c1_46 = arith.constant 1 : index
    %c2_47 = arith.constant 2 : index
    %c0_48 = arith.constant 0 : index
    %40 = vector.load %arg16[%c0_45, %c1_46, %c2_47, %c0_48] : memref<2x18x18x8xf32, #tpu.memory_space<vmem>>, vector<2x16x16x4xf32>
    %41 = vector.extract_strided_slice %10 {offsets = [5, 0], sizes = [1, 4], strides = [1, 1]} : vector<9x4xf32> to vector<1x4xf32>
    %42 = vector.shape_cast %41 : vector<1x4xf32> to vector<1x1x1x4xf32>
    %43 = vector.broadcast %42 : vector<1x1x1x4xf32> to vector<2x16x16x4xf32>
    %44 = arith.mulf %40, %43 : vector<2x16x16x4xf32>
    %45 = arith.addf %39, %44 : vector<2x16x16x4xf32>
    %c0_49 = arith.constant 0 : index
    %c2_50 = arith.constant 2 : index
    %c0_51 = arith.constant 0 : index
    %c0_52 = arith.constant 0 : index
    %46 = vector.load %arg16[%c0_49, %c2_50, %c0_51, %c0_52] : memref<2x18x18x8xf32, #tpu.memory_space<vmem>>, vector<2x16x16x4xf32>
    %47 = vector.extract_strided_slice %10 {offsets = [6, 0], sizes = [1, 4], strides = [1, 1]} : vector<9x4xf32> to vector<1x4xf32>
    %48 = vector.shape_cast %47 : vector<1x4xf32> to vector<1x1x1x4xf32>
    %49 = vector.broadcast %48 : vector<1x1x1x4xf32> to vector<2x16x16x4xf32>
    %50 = arith.mulf %46, %49 : vector<2x16x16x4xf32>
    %51 = arith.addf %45, %50 : vector<2x16x16x4xf32>
    %c0_53 = arith.constant 0 : index
    %c2_54 = arith.constant 2 : index
    %c1_55 = arith.constant 1 : index
    %c0_56 = arith.constant 0 : index
    %52 = vector.load %arg16[%c0_53, %c2_54, %c1_55, %c0_56] : memref<2x18x18x8xf32, #tpu.memory_space<vmem>>, vector<2x16x16x4xf32>
    %53 = vector.extract_strided_slice %10 {offsets = [7, 0], sizes = [1, 4], strides = [1, 1]} : vector<9x4xf32> to vector<1x4xf32>
    %54 = vector.shape_cast %53 : vector<1x4xf32> to vector<1x1x1x4xf32>
    %55 = vector.broadcast %54 : vector<1x1x1x4xf32> to vector<2x16x16x4xf32>
    %56 = arith.mulf %52, %55 : vector<2x16x16x4xf32>
    %57 = arith.addf %51, %56 : vector<2x16x16x4xf32>
    %c0_57 = arith.constant 0 : index
    %c2_58 = arith.constant 2 : index
    %c2_59 = arith.constant 2 : index
    %c0_60 = arith.constant 0 : index
    %58 = vector.load %arg16[%c0_57, %c2_58, %c2_59, %c0_60] : memref<2x18x18x8xf32, #tpu.memory_space<vmem>>, vector<2x16x16x4xf32>
    %59 = vector.extract_strided_slice %10 {offsets = [8, 0], sizes = [1, 4], strides = [1, 1]} : vector<9x4xf32> to vector<1x4xf32>
    %60 = vector.shape_cast %59 : vector<1x4xf32> to vector<1x1x1x4xf32>
    %61 = vector.broadcast %60 : vector<1x1x1x4xf32> to vector<2x16x16x4xf32>
    %62 = arith.mulf %58, %61 : vector<2x16x16x4xf32>
    %63 = arith.addf %57, %62 : vector<2x16x16x4xf32>
    %64 = vector.shape_cast %63 : vector<2x16x16x4xf32> to vector<512x4xf32>
    %c0_61 = arith.constant 0 : index
    %c0_62 = arith.constant 0 : index
    %65 = vector.load %arg2[%c0_61, %c0_62] : memref<4x8xf32, #tpu.memory_space<vmem>>, vector<4x8xf32>
    %cst_63 = arith.constant dense<0.000000e+00> : vector<512x8xf32>
    %66 = tpu.matmul %64, %65, %cst_63 {dimension_numbers = #tpu.dot_dimension_numbers<[1], [0], [0], [1], [0, 0, 1, 1], [], []>} : vector<512x4xf32>, vector<4x8xf32>, vector<512x8xf32> -> vector<512x8xf32>
    %cst_64 = arith.constant dense<0.000000e+00> : vector<8xf32>
    %67 = vector.multi_reduction <add>, %66, %cst_64 [0] : vector<512x8xf32> to vector<8xf32>
    %68 = vector.shape_cast %67 : vector<8xf32> to vector<1x8xf32>
    %69 = arith.mulf %66, %66 : vector<512x8xf32>
    %cst_65 = arith.constant dense<0.000000e+00> : vector<8xf32>
    %70 = vector.multi_reduction <add>, %69, %cst_65 [0] : vector<512x8xf32> to vector<8xf32>
    %71 = vector.shape_cast %70 : vector<8xf32> to vector<1x8xf32>
    %cst_66 = arith.constant 0.001953125 : f32
    %72 = vector.broadcast %cst_66 : f32 to vector<1x8xf32>
    %73 = arith.mulf %68, %72 : vector<1x8xf32>
    %cst_67 = arith.constant 0.001953125 : f32
    %74 = vector.broadcast %cst_67 : f32 to vector<1x8xf32>
    %75 = arith.mulf %71, %74 : vector<1x8xf32>
    %76 = arith.mulf %73, %73 : vector<1x8xf32>
    %77 = arith.subf %75, %76 : vector<1x8xf32>
    %cst_68 = arith.constant 0.000000e+00 : f32
    %78 = vector.broadcast %cst_68 : f32 to vector<1x8xf32>
    %79 = arith.maximumf %77, %78 : vector<1x8xf32>
    %cst_69 = arith.constant 9.99999974E-6 : f32
    %80 = vector.broadcast %cst_69 : f32 to vector<1x8xf32>
    %81 = arith.addf %79, %80 : vector<1x8xf32>
    %82 = math.rsqrt %81 : vector<1x8xf32>
    %c0_70 = arith.constant 0 : index
    %c0_71 = arith.constant 0 : index
    %83 = vector.load %arg3[%c0_70, %c0_71] : memref<1x8xf32, #tpu.memory_space<vmem>>, vector<1x8xf32>
    %84 = arith.mulf %82, %83 : vector<1x8xf32>
    %c0_72 = arith.constant 0 : index
    %c0_73 = arith.constant 0 : index
    %85 = vector.load %arg4[%c0_72, %c0_73] : memref<1x8xf32, #tpu.memory_space<vmem>>, vector<1x8xf32>
    %86 = arith.mulf %73, %84 : vector<1x8xf32>
    %87 = arith.subf %85, %86 : vector<1x8xf32>
    %88 = vector.broadcast %84 : vector<1x8xf32> to vector<512x8xf32>
    %89 = arith.mulf %66, %88 : vector<512x8xf32>
    %90 = vector.broadcast %87 : vector<1x8xf32> to vector<512x8xf32>
    %91 = arith.addf %89, %90 : vector<512x8xf32>
    %cst_74 = arith.constant 0.000000e+00 : f32
    %cst_75 = arith.constant 6.000000e+00 : f32
    %92 = vector.broadcast %cst_74 : f32 to vector<512x8xf32>
    %93 = arith.maximumf %92, %91 : vector<512x8xf32>
    %94 = vector.broadcast %cst_75 : f32 to vector<512x8xf32>
    %95 = arith.minimumf %94, %93 : vector<512x8xf32>
    %96 = vector.shape_cast %95 : vector<512x8xf32> to vector<2x16x16x8xf32>
    %c0_76 = arith.constant 0 : index
    %c1_77 = arith.constant 1 : index
    %c1_78 = arith.constant 1 : index
    %c0_79 = arith.constant 0 : index
    %97 = vector.load %arg16[%c0_76, %c1_77, %c1_78, %c0_79] : memref<2x18x18x8xf32, #tpu.memory_space<vmem>>, vector<2x16x16x8xf32>
    tpu.vector_store %arg16[%c0_76, %c1_77, %c1_78, %c0_79], %96 {strides = array<i32>} : memref<2x18x18x8xf32, #tpu.memory_space<vmem>>, vector<2x16x16x8xf32>,
    %c0_80 = arith.constant 0 : index
    %c0_81 = arith.constant 0 : index
    %98 = vector.load %arg5[%c0_80, %c0_81] : memref<9x8xf32, #tpu.memory_space<vmem>>, vector<9x8xf32>
    %c0_82 = arith.constant 0 : index
    %c0_83 = arith.constant 0 : index
    %c0_84 = arith.constant 0 : index
    %c0_85 = arith.constant 0 : index
    %99 = vector.load %arg16[%c0_82, %c0_83, %c0_84, %c0_85] : memref<2x18x18x8xf32, #tpu.memory_space<vmem>>, vector<2x16x16x8xf32>
    %100 = vector.extract_strided_slice %98 {offsets = [0, 0], sizes = [1, 8], strides = [1, 1]} : vector<9x8xf32> to vector<1x8xf32>
    %101 = vector.shape_cast %100 : vector<1x8xf32> to vector<1x1x1x8xf32>
    %102 = vector.broadcast %101 : vector<1x1x1x8xf32> to vector<2x16x16x8xf32>
    %103 = arith.mulf %99, %102 : vector<2x16x16x8xf32>
    %c0_86 = arith.constant 0 : index
    %c0_87 = arith.constant 0 : index
    %c1_88 = arith.constant 1 : index
    %c0_89 = arith.constant 0 : index
    %104 = vector.load %arg16[%c0_86, %c0_87, %c1_88, %c0_89] : memref<2x18x18x8xf32, #tpu.memory_space<vmem>>, vector<2x16x16x8xf32>
    %105 = vector.extract_strided_slice %98 {offsets = [1, 0], sizes = [1, 8], strides = [1, 1]} : vector<9x8xf32> to vector<1x8xf32>
    %106 = vector.shape_cast %105 : vector<1x8xf32> to vector<1x1x1x8xf32>
    %107 = vector.broadcast %106 : vector<1x1x1x8xf32> to vector<2x16x16x8xf32>
    %108 = arith.mulf %104, %107 : vector<2x16x16x8xf32>
    %109 = arith.addf %103, %108 : vector<2x16x16x8xf32>
    %c0_90 = arith.constant 0 : index
    %c0_91 = arith.constant 0 : index
    %c2_92 = arith.constant 2 : index
    %c0_93 = arith.constant 0 : index
    %110 = vector.load %arg16[%c0_90, %c0_91, %c2_92, %c0_93] : memref<2x18x18x8xf32, #tpu.memory_space<vmem>>, vector<2x16x16x8xf32>
    %111 = vector.extract_strided_slice %98 {offsets = [2, 0], sizes = [1, 8], strides = [1, 1]} : vector<9x8xf32> to vector<1x8xf32>
    %112 = vector.shape_cast %111 : vector<1x8xf32> to vector<1x1x1x8xf32>
    %113 = vector.broadcast %112 : vector<1x1x1x8xf32> to vector<2x16x16x8xf32>
    %114 = arith.mulf %110, %113 : vector<2x16x16x8xf32>
    %115 = arith.addf %109, %114 : vector<2x16x16x8xf32>
    %c0_94 = arith.constant 0 : index
    %c1_95 = arith.constant 1 : index
    %c0_96 = arith.constant 0 : index
    %c0_97 = arith.constant 0 : index
    %116 = vector.load %arg16[%c0_94, %c1_95, %c0_96, %c0_97] : memref<2x18x18x8xf32, #tpu.memory_space<vmem>>, vector<2x16x16x8xf32>
    %117 = vector.extract_strided_slice %98 {offsets = [3, 0], sizes = [1, 8], strides = [1, 1]} : vector<9x8xf32> to vector<1x8xf32>
    %118 = vector.shape_cast %117 : vector<1x8xf32> to vector<1x1x1x8xf32>
    %119 = vector.broadcast %118 : vector<1x1x1x8xf32> to vector<2x16x16x8xf32>
    %120 = arith.mulf %116, %119 : vector<2x16x16x8xf32>
    %121 = arith.addf %115, %120 : vector<2x16x16x8xf32>
    %c0_98 = arith.constant 0 : index
    %c1_99 = arith.constant 1 : index
    %c1_100 = arith.constant 1 : index
    %c0_101 = arith.constant 0 : index
    %122 = vector.load %arg16[%c0_98, %c1_99, %c1_100, %c0_101] : memref<2x18x18x8xf32, #tpu.memory_space<vmem>>, vector<2x16x16x8xf32>
    %123 = vector.extract_strided_slice %98 {offsets = [4, 0], sizes = [1, 8], strides = [1, 1]} : vector<9x8xf32> to vector<1x8xf32>
    %124 = vector.shape_cast %123 : vector<1x8xf32> to vector<1x1x1x8xf32>
    %125 = vector.broadcast %124 : vector<1x1x1x8xf32> to vector<2x16x16x8xf32>
    %126 = arith.mulf %122, %125 : vector<2x16x16x8xf32>
    %127 = arith.addf %121, %126 : vector<2x16x16x8xf32>
    %c0_102 = arith.constant 0 : index
    %c1_103 = arith.constant 1 : index
    %c2_104 = arith.constant 2 : index
    %c0_105 = arith.constant 0 : index
    %128 = vector.load %arg16[%c0_102, %c1_103, %c2_104, %c0_105] : memref<2x18x18x8xf32, #tpu.memory_space<vmem>>, vector<2x16x16x8xf32>
    %129 = vector.extract_strided_slice %98 {offsets = [5, 0], sizes = [1, 8], strides = [1, 1]} : vector<9x8xf32> to vector<1x8xf32>
    %130 = vector.shape_cast %129 : vector<1x8xf32> to vector<1x1x1x8xf32>
    %131 = vector.broadcast %130 : vector<1x1x1x8xf32> to vector<2x16x16x8xf32>
    %132 = arith.mulf %128, %131 : vector<2x16x16x8xf32>
    %133 = arith.addf %127, %132 : vector<2x16x16x8xf32>
    %c0_106 = arith.constant 0 : index
    %c2_107 = arith.constant 2 : index
    %c0_108 = arith.constant 0 : index
    %c0_109 = arith.constant 0 : index
    %134 = vector.load %arg16[%c0_106, %c2_107, %c0_108, %c0_109] : memref<2x18x18x8xf32, #tpu.memory_space<vmem>>, vector<2x16x16x8xf32>
    %135 = vector.extract_strided_slice %98 {offsets = [6, 0], sizes = [1, 8], strides = [1, 1]} : vector<9x8xf32> to vector<1x8xf32>
    %136 = vector.shape_cast %135 : vector<1x8xf32> to vector<1x1x1x8xf32>
    %137 = vector.broadcast %136 : vector<1x1x1x8xf32> to vector<2x16x16x8xf32>
    %138 = arith.mulf %134, %137 : vector<2x16x16x8xf32>
    %139 = arith.addf %133, %138 : vector<2x16x16x8xf32>
    %c0_110 = arith.constant 0 : index
    %c2_111 = arith.constant 2 : index
    %c1_112 = arith.constant 1 : index
    %c0_113 = arith.constant 0 : index
    %140 = vector.load %arg16[%c0_110, %c2_111, %c1_112, %c0_113] : memref<2x18x18x8xf32, #tpu.memory_space<vmem>>, vector<2x16x16x8xf32>
    %141 = vector.extract_strided_slice %98 {offsets = [7, 0], sizes = [1, 8], strides = [1, 1]} : vector<9x8xf32> to vector<1x8xf32>
    %142 = vector.shape_cast %141 : vector<1x8xf32> to vector<1x1x1x8xf32>
    %143 = vector.broadcast %142 : vector<1x1x1x8xf32> to vector<2x16x16x8xf32>
    %144 = arith.mulf %140, %143 : vector<2x16x16x8xf32>
    %145 = arith.addf %139, %144 : vector<2x16x16x8xf32>
    %c0_114 = arith.constant 0 : index
    %c2_115 = arith.constant 2 : index
    %c2_116 = arith.constant 2 : index
    %c0_117 = arith.constant 0 : index
    %146 = vector.load %arg16[%c0_114, %c2_115, %c2_116, %c0_117] : memref<2x18x18x8xf32, #tpu.memory_space<vmem>>, vector<2x16x16x8xf32>
    %147 = vector.extract_strided_slice %98 {offsets = [8, 0], sizes = [1, 8], strides = [1, 1]} : vector<9x8xf32> to vector<1x8xf32>
    %148 = vector.shape_cast %147 : vector<1x8xf32> to vector<1x1x1x8xf32>
    %149 = vector.broadcast %148 : vector<1x1x1x8xf32> to vector<2x16x16x8xf32>
    %150 = arith.mulf %146, %149 : vector<2x16x16x8xf32>
    %151 = arith.addf %145, %150 : vector<2x16x16x8xf32>
    %152 = vector.shape_cast %151 : vector<2x16x16x8xf32> to vector<512x8xf32>
    %c0_118 = arith.constant 0 : index
    %c0_119 = arith.constant 0 : index
    %153 = vector.load %arg6[%c0_118, %c0_119] : memref<8x8xf32, #tpu.memory_space<vmem>>, vector<8x8xf32>
    %cst_120 = arith.constant dense<0.000000e+00> : vector<512x8xf32>
    %154 = tpu.matmul %152, %153, %cst_120 {dimension_numbers = #tpu.dot_dimension_numbers<[1], [0], [0], [1], [0, 0, 1, 1], [], []>} : vector<512x8xf32>, vector<8x8xf32>, vector<512x8xf32> -> vector<512x8xf32>
    %cst_121 = arith.constant dense<0.000000e+00> : vector<8xf32>
    %155 = vector.multi_reduction <add>, %154, %cst_121 [0] : vector<512x8xf32> to vector<8xf32>
    %156 = vector.shape_cast %155 : vector<8xf32> to vector<1x8xf32>
    %157 = arith.mulf %154, %154 : vector<512x8xf32>
    %cst_122 = arith.constant dense<0.000000e+00> : vector<8xf32>
    %158 = vector.multi_reduction <add>, %157, %cst_122 [0] : vector<512x8xf32> to vector<8xf32>
    %159 = vector.shape_cast %158 : vector<8xf32> to vector<1x8xf32>
    %cst_123 = arith.constant 0.001953125 : f32
    %160 = vector.broadcast %cst_123 : f32 to vector<1x8xf32>
    %161 = arith.mulf %156, %160 : vector<1x8xf32>
    %cst_124 = arith.constant 0.001953125 : f32
    %162 = vector.broadcast %cst_124 : f32 to vector<1x8xf32>
    %163 = arith.mulf %159, %162 : vector<1x8xf32>
    %164 = arith.mulf %161, %161 : vector<1x8xf32>
    %165 = arith.subf %163, %164 : vector<1x8xf32>
    %cst_125 = arith.constant 0.000000e+00 : f32
    %166 = vector.broadcast %cst_125 : f32 to vector<1x8xf32>
    %167 = arith.maximumf %165, %166 : vector<1x8xf32>
    %cst_126 = arith.constant 9.99999974E-6 : f32
    %168 = vector.broadcast %cst_126 : f32 to vector<1x8xf32>
    %169 = arith.addf %167, %168 : vector<1x8xf32>
    %170 = math.rsqrt %169 : vector<1x8xf32>
    %c0_127 = arith.constant 0 : index
    %c0_128 = arith.constant 0 : index
    %171 = vector.load %arg7[%c0_127, %c0_128] : memref<1x8xf32, #tpu.memory_space<vmem>>, vector<1x8xf32>
    %172 = arith.mulf %170, %171 : vector<1x8xf32>
    %c0_129 = arith.constant 0 : index
    %c0_130 = arith.constant 0 : index
    %173 = vector.load %arg8[%c0_129, %c0_130] : memref<1x8xf32, #tpu.memory_space<vmem>>, vector<1x8xf32>
    %174 = arith.mulf %161, %172 : vector<1x8xf32>
    %175 = arith.subf %173, %174 : vector<1x8xf32>
    %176 = vector.broadcast %172 : vector<1x8xf32> to vector<512x8xf32>
    %177 = arith.mulf %154, %176 : vector<512x8xf32>
    %178 = vector.broadcast %175 : vector<1x8xf32> to vector<512x8xf32>
    %179 = arith.addf %177, %178 : vector<512x8xf32>
    %cst_131 = arith.constant 0.000000e+00 : f32
    %cst_132 = arith.constant 6.000000e+00 : f32
    %180 = vector.broadcast %cst_131 : f32 to vector<512x8xf32>
    %181 = arith.maximumf %180, %179 : vector<512x8xf32>
    %182 = vector.broadcast %cst_132 : f32 to vector<512x8xf32>
    %183 = arith.minimumf %182, %181 : vector<512x8xf32>
    %184 = vector.shape_cast %183 : vector<512x8xf32> to vector<2x16x16x8xf32>
    %c0_133 = arith.constant 0 : index
    %c1_134 = arith.constant 1 : index
    %c1_135 = arith.constant 1 : index
    %c0_136 = arith.constant 0 : index
    %185 = vector.load %arg16[%c0_133, %c1_134, %c1_135, %c0_136] : memref<2x18x18x8xf32, #tpu.memory_space<vmem>>, vector<2x16x16x8xf32>
    tpu.vector_store %arg16[%c0_133, %c1_134, %c1_135, %c0_136], %184 {strides = array<i32>} : memref<2x18x18x8xf32, #tpu.memory_space<vmem>>, vector<2x16x16x8xf32>,
    %c0_137 = arith.constant 0 : index
    %c0_138 = arith.constant 0 : index
    %186 = vector.load %arg9[%c0_137, %c0_138] : memref<9x8xf32, #tpu.memory_space<vmem>>, vector<9x8xf32>
    %c0_139 = arith.constant 0 : index
    %c0_140 = arith.constant 0 : index
    %c0_141 = arith.constant 0 : index
    %c0_142 = arith.constant 0 : index
    %187 = tpu.strided_load %arg16[%c0_139, %c0_140, %c0_141, %c0_142] {strides = array<i32: 1, 2, 2, 1>} : memref<2x18x18x8xf32, #tpu.memory_space<vmem>>, vector<2x8x8x8xf32>
    %188 = vector.extract_strided_slice %186 {offsets = [0, 0], sizes = [1, 8], strides = [1, 1]} : vector<9x8xf32> to vector<1x8xf32>
    %189 = vector.shape_cast %188 : vector<1x8xf32> to vector<1x1x1x8xf32>
    %190 = vector.broadcast %189 : vector<1x1x1x8xf32> to vector<2x8x8x8xf32>
    %191 = arith.mulf %187, %190 : vector<2x8x8x8xf32>
    %c0_143 = arith.constant 0 : index
    %c0_144 = arith.constant 0 : index
    %c1_145 = arith.constant 1 : index
    %c0_146 = arith.constant 0 : index
    %192 = tpu.strided_load %arg16[%c0_143, %c0_144, %c1_145, %c0_146] {strides = array<i32: 1, 2, 2, 1>} : memref<2x18x18x8xf32, #tpu.memory_space<vmem>>, vector<2x8x8x8xf32>
    %193 = vector.extract_strided_slice %186 {offsets = [1, 0], sizes = [1, 8], strides = [1, 1]} : vector<9x8xf32> to vector<1x8xf32>
    %194 = vector.shape_cast %193 : vector<1x8xf32> to vector<1x1x1x8xf32>
    %195 = vector.broadcast %194 : vector<1x1x1x8xf32> to vector<2x8x8x8xf32>
    %196 = arith.mulf %192, %195 : vector<2x8x8x8xf32>
    %197 = arith.addf %191, %196 : vector<2x8x8x8xf32>
    %c0_147 = arith.constant 0 : index
    %c0_148 = arith.constant 0 : index
    %c2_149 = arith.constant 2 : index
    %c0_150 = arith.constant 0 : index
    %198 = tpu.strided_load %arg16[%c0_147, %c0_148, %c2_149, %c0_150] {strides = array<i32: 1, 2, 2, 1>} : memref<2x18x18x8xf32, #tpu.memory_space<vmem>>, vector<2x8x8x8xf32>
    %199 = vector.extract_strided_slice %186 {offsets = [2, 0], sizes = [1, 8], strides = [1, 1]} : vector<9x8xf32> to vector<1x8xf32>
    %200 = vector.shape_cast %199 : vector<1x8xf32> to vector<1x1x1x8xf32>
    %201 = vector.broadcast %200 : vector<1x1x1x8xf32> to vector<2x8x8x8xf32>
    %202 = arith.mulf %198, %201 : vector<2x8x8x8xf32>
    %203 = arith.addf %197, %202 : vector<2x8x8x8xf32>
    %c0_151 = arith.constant 0 : index
    %c1_152 = arith.constant 1 : index
    %c0_153 = arith.constant 0 : index
    %c0_154 = arith.constant 0 : index
    %204 = tpu.strided_load %arg16[%c0_151, %c1_152, %c0_153, %c0_154] {strides = array<i32: 1, 2, 2, 1>} : memref<2x18x18x8xf32, #tpu.memory_space<vmem>>, vector<2x8x8x8xf32>
    %205 = vector.extract_strided_slice %186 {offsets = [3, 0], sizes = [1, 8], strides = [1, 1]} : vector<9x8xf32> to vector<1x8xf32>
    %206 = vector.shape_cast %205 : vector<1x8xf32> to vector<1x1x1x8xf32>
    %207 = vector.broadcast %206 : vector<1x1x1x8xf32> to vector<2x8x8x8xf32>
    %208 = arith.mulf %204, %207 : vector<2x8x8x8xf32>
    %209 = arith.addf %203, %208 : vector<2x8x8x8xf32>
    %c0_155 = arith.constant 0 : index
    %c1_156 = arith.constant 1 : index
    %c1_157 = arith.constant 1 : index
    %c0_158 = arith.constant 0 : index
    %210 = tpu.strided_load %arg16[%c0_155, %c1_156, %c1_157, %c0_158] {strides = array<i32: 1, 2, 2, 1>} : memref<2x18x18x8xf32, #tpu.memory_space<vmem>>, vector<2x8x8x8xf32>
    %211 = vector.extract_strided_slice %186 {offsets = [4, 0], sizes = [1, 8], strides = [1, 1]} : vector<9x8xf32> to vector<1x8xf32>
    %212 = vector.shape_cast %211 : vector<1x8xf32> to vector<1x1x1x8xf32>
    %213 = vector.broadcast %212 : vector<1x1x1x8xf32> to vector<2x8x8x8xf32>
    %214 = arith.mulf %210, %213 : vector<2x8x8x8xf32>
    %215 = arith.addf %209, %214 : vector<2x8x8x8xf32>
    %c0_159 = arith.constant 0 : index
    %c1_160 = arith.constant 1 : index
    %c2_161 = arith.constant 2 : index
    %c0_162 = arith.constant 0 : index
    %216 = tpu.strided_load %arg16[%c0_159, %c1_160, %c2_161, %c0_162] {strides = array<i32: 1, 2, 2, 1>} : memref<2x18x18x8xf32, #tpu.memory_space<vmem>>, vector<2x8x8x8xf32>
    %217 = vector.extract_strided_slice %186 {offsets = [5, 0], sizes = [1, 8], strides = [1, 1]} : vector<9x8xf32> to vector<1x8xf32>
    %218 = vector.shape_cast %217 : vector<1x8xf32> to vector<1x1x1x8xf32>
    %219 = vector.broadcast %218 : vector<1x1x1x8xf32> to vector<2x8x8x8xf32>
    %220 = arith.mulf %216, %219 : vector<2x8x8x8xf32>
    %221 = arith.addf %215, %220 : vector<2x8x8x8xf32>
    %c0_163 = arith.constant 0 : index
    %c2_164 = arith.constant 2 : index
    %c0_165 = arith.constant 0 : index
    %c0_166 = arith.constant 0 : index
    %222 = tpu.strided_load %arg16[%c0_163, %c2_164, %c0_165, %c0_166] {strides = array<i32: 1, 2, 2, 1>} : memref<2x18x18x8xf32, #tpu.memory_space<vmem>>, vector<2x8x8x8xf32>
    %223 = vector.extract_strided_slice %186 {offsets = [6, 0], sizes = [1, 8], strides = [1, 1]} : vector<9x8xf32> to vector<1x8xf32>
    %224 = vector.shape_cast %223 : vector<1x8xf32> to vector<1x1x1x8xf32>
    %225 = vector.broadcast %224 : vector<1x1x1x8xf32> to vector<2x8x8x8xf32>
    %226 = arith.mulf %222, %225 : vector<2x8x8x8xf32>
    %227 = arith.addf %221, %226 : vector<2x8x8x8xf32>
    %c0_167 = arith.constant 0 : index
    %c2_168 = arith.constant 2 : index
    %c1_169 = arith.constant 1 : index
    %c0_170 = arith.constant 0 : index
    %228 = tpu.strided_load %arg16[%c0_167, %c2_168, %c1_169, %c0_170] {strides = array<i32: 1, 2, 2, 1>} : memref<2x18x18x8xf32, #tpu.memory_space<vmem>>, vector<2x8x8x8xf32>
    %229 = vector.extract_strided_slice %186 {offsets = [7, 0], sizes = [1, 8], strides = [1, 1]} : vector<9x8xf32> to vector<1x8xf32>
    %230 = vector.shape_cast %229 : vector<1x8xf32> to vector<1x1x1x8xf32>
    %231 = vector.broadcast %230 : vector<1x1x1x8xf32> to vector<2x8x8x8xf32>
    %232 = arith.mulf %228, %231 : vector<2x8x8x8xf32>
    %233 = arith.addf %227, %232 : vector<2x8x8x8xf32>
    %c0_171 = arith.constant 0 : index
    %c2_172 = arith.constant 2 : index
    %c2_173 = arith.constant 2 : index
    %c0_174 = arith.constant 0 : index
    %234 = tpu.strided_load %arg16[%c0_171, %c2_172, %c2_173, %c0_174] {strides = array<i32: 1, 2, 2, 1>} : memref<2x18x18x8xf32, #tpu.memory_space<vmem>>, vector<2x8x8x8xf32>
    %235 = vector.extract_strided_slice %186 {offsets = [8, 0], sizes = [1, 8], strides = [1, 1]} : vector<9x8xf32> to vector<1x8xf32>
    %236 = vector.shape_cast %235 : vector<1x8xf32> to vector<1x1x1x8xf32>
    %237 = vector.broadcast %236 : vector<1x1x1x8xf32> to vector<2x8x8x8xf32>
    %238 = arith.mulf %234, %237 : vector<2x8x8x8xf32>
    %239 = arith.addf %233, %238 : vector<2x8x8x8xf32>
    %240 = vector.shape_cast %239 : vector<2x8x8x8xf32> to vector<128x8xf32>
    %c0_175 = arith.constant 0 : index
    %c0_176 = arith.constant 0 : index
    %241 = vector.load %arg10[%c0_175, %c0_176] : memref<8x8xf32, #tpu.memory_space<vmem>>, vector<8x8xf32>
    %cst_177 = arith.constant dense<0.000000e+00> : vector<128x8xf32>
    %242 = tpu.matmul %240, %241, %cst_177 {dimension_numbers = #tpu.dot_dimension_numbers<[1], [0], [0], [1], [0, 0, 1, 1], [], []>} : vector<128x8xf32>, vector<8x8xf32>, vector<128x8xf32> -> vector<128x8xf32>
    %cst_178 = arith.constant dense<0.000000e+00> : vector<8xf32>
    %243 = vector.multi_reduction <add>, %242, %cst_178 [0] : vector<128x8xf32> to vector<8xf32>
    %244 = vector.shape_cast %243 : vector<8xf32> to vector<1x8xf32>
    %245 = arith.mulf %242, %242 : vector<128x8xf32>
    %cst_179 = arith.constant dense<0.000000e+00> : vector<8xf32>
    %246 = vector.multi_reduction <add>, %245, %cst_179 [0] : vector<128x8xf32> to vector<8xf32>
    %247 = vector.shape_cast %246 : vector<8xf32> to vector<1x8xf32>
    %cst_180 = arith.constant 7.812500e-03 : f32
    %248 = vector.broadcast %cst_180 : f32 to vector<1x8xf32>
    %249 = arith.mulf %244, %248 : vector<1x8xf32>
    %cst_181 = arith.constant 7.812500e-03 : f32
    %250 = vector.broadcast %cst_181 : f32 to vector<1x8xf32>
    %251 = arith.mulf %247, %250 : vector<1x8xf32>
    %252 = arith.mulf %249, %249 : vector<1x8xf32>
    %253 = arith.subf %251, %252 : vector<1x8xf32>
    %cst_182 = arith.constant 0.000000e+00 : f32
    %254 = vector.broadcast %cst_182 : f32 to vector<1x8xf32>
    %255 = arith.maximumf %253, %254 : vector<1x8xf32>
    %cst_183 = arith.constant 9.99999974E-6 : f32
    %256 = vector.broadcast %cst_183 : f32 to vector<1x8xf32>
    %257 = arith.addf %255, %256 : vector<1x8xf32>
    %258 = math.rsqrt %257 : vector<1x8xf32>
    %c0_184 = arith.constant 0 : index
    %c0_185 = arith.constant 0 : index
    %259 = vector.load %arg11[%c0_184, %c0_185] : memref<1x8xf32, #tpu.memory_space<vmem>>, vector<1x8xf32>
    %260 = arith.mulf %258, %259 : vector<1x8xf32>
    %c0_186 = arith.constant 0 : index
    %c0_187 = arith.constant 0 : index
    %261 = vector.load %arg12[%c0_186, %c0_187] : memref<1x8xf32, #tpu.memory_space<vmem>>, vector<1x8xf32>
    %262 = arith.mulf %249, %260 : vector<1x8xf32>
    %263 = arith.subf %261, %262 : vector<1x8xf32>
    %264 = vector.broadcast %260 : vector<1x8xf32> to vector<128x8xf32>
    %265 = arith.mulf %242, %264 : vector<128x8xf32>
    %266 = vector.broadcast %263 : vector<1x8xf32> to vector<128x8xf32>
    %267 = arith.addf %265, %266 : vector<128x8xf32>
    %cst_188 = arith.constant 0.000000e+00 : f32
    %cst_189 = arith.constant 6.000000e+00 : f32
    %268 = vector.broadcast %cst_188 : f32 to vector<128x8xf32>
    %269 = arith.maximumf %268, %267 : vector<128x8xf32>
    %270 = vector.broadcast %cst_189 : f32 to vector<128x8xf32>
    %271 = arith.minimumf %270, %269 : vector<128x8xf32>
    %272 = vector.shape_cast %271 : vector<128x8xf32> to vector<2x8x8x8xf32>
    %c0_190 = arith.constant 0 : index
    %c0_191 = arith.constant 0 : index
    %c0_192 = arith.constant 0 : index
    %c0_193 = arith.constant 0 : index
    %273 = tpu.strided_load %arg0[%c0_190, %c0_191, %c0_192, %c0_193] {strides = array<i32: 1, 2, 2, 1>} : memref<2x16x16x4xf32, #tpu.memory_space<vmem>>, vector<2x8x8x4xf32>
    %274 = vector.shape_cast %273 : vector<2x8x8x4xf32> to vector<128x4xf32>
    %c0_194 = arith.constant 0 : index
    %c0_195 = arith.constant 0 : index
    %275 = vector.load %arg13[%c0_194, %c0_195] : memref<4x8xf32, #tpu.memory_space<vmem>>, vector<4x8xf32>
    %cst_196 = arith.constant dense<0.000000e+00> : vector<128x8xf32>
    %276 = tpu.matmul %274, %275, %cst_196 {dimension_numbers = #tpu.dot_dimension_numbers<[1], [0], [0], [1], [0, 0, 1, 1], [], []>} : vector<128x4xf32>, vector<4x8xf32>, vector<128x8xf32> -> vector<128x8xf32>
    %c0_197 = arith.constant 0 : index
    %c0_198 = arith.constant 0 : index
    %277 = vector.load %arg14[%c0_197, %c0_198] : memref<1x8xf32, #tpu.memory_space<vmem>>, vector<1x8xf32>
    %278 = vector.broadcast %277 : vector<1x8xf32> to vector<128x8xf32>
    %279 = arith.addf %276, %278 : vector<128x8xf32>
    %280 = vector.shape_cast %279 : vector<128x8xf32> to vector<2x8x8x8xf32>
    %281 = arith.addf %272, %280 : vector<2x8x8x8xf32>
    %c0_199 = arith.constant 0 : index
    %c0_200 = arith.constant 0 : index
    %c0_201 = arith.constant 0 : index
    %c0_202 = arith.constant 0 : index
    %282 = vector.load %arg15[%c0_199, %c0_200, %c0_201, %c0_202] : memref<2x8x8x8xf32, #tpu.memory_space<vmem>>, vector<2x8x8x8xf32>
    tpu.vector_store %arg15[%c0_199, %c0_200, %c0_201, %c0_202], %281 {strides = array<i32>} : memref<2x8x8x8xf32, #tpu.memory_space<vmem>>, vector<2x8x8x8xf32>,
    return
  }
}

</mosaic_0001>

<llo_original>
// kernel: tpu_custom_call.1
$region0: #{tpu_custom_call.1}
  #allocation0 [shape = 'u32[]', space=smem, size = 0x4, offset = 0x4, fixed_abs, tag = 'smem constant byte address 0x4 - core index']
  #allocation1 [shape = 'u32[144,128]{1,0:T(1,128)}', space=vmem, size = 0x12000, scoped, tag = 'internal scratch']
  #allocation2 [shape = 'f32[2,18,18,8]{3,2,1,0:T(8,128)}', space=vmem, size = 0x6c000, scoped, tag = 'scratch operand']
  %s0 = inlined_call_operand.vmem [shape: f32[2,16,16,4], index: 0, kind: input, shape index: {}]
  %s1 = inlined_call_operand.vmem [shape: f32[9,4], index: 1, kind: input, shape index: {}]
  %s2 = inlined_call_operand.vmem [shape: f32[4,8], index: 2, kind: input, shape index: {}]
  %s3 = inlined_call_operand.vmem [shape: f32[1,8], index: 3, kind: input, shape index: {}]
  %s4 = inlined_call_operand.vmem [shape: f32[1,8], index: 4, kind: input, shape index: {}]
  %s5 = inlined_call_operand.vmem [shape: f32[9,8], index: 5, kind: input, shape index: {}]
  %s6 = inlined_call_operand.vmem [shape: f32[8,8], index: 6, kind: input, shape index: {}]
  %s7 = inlined_call_operand.vmem [shape: f32[1,8], index: 7, kind: input, shape index: {}]
  %s8 = inlined_call_operand.vmem [shape: f32[1,8], index: 8, kind: input, shape index: {}]
  %s9 = inlined_call_operand.vmem [shape: f32[9,8], index: 9, kind: input, shape index: {}]
  %s10 = inlined_call_operand.vmem [shape: f32[8,8], index: 10, kind: input, shape index: {}]
  %s11 = inlined_call_operand.vmem [shape: f32[1,8], index: 11, kind: input, shape index: {}]
  %s12 = inlined_call_operand.vmem [shape: f32[1,8], index: 12, kind: input, shape index: {}]
  %s13 = inlined_call_operand.vmem [shape: f32[4,8], index: 13, kind: input, shape index: {}]
  %s14 = inlined_call_operand.vmem [shape: f32[1,8], index: 14, kind: input, shape index: {}]
  %s15 = inlined_call_operand.hbm [shape: f32[2,8,8,8], index: 15, kind: output, shape index: {}]
  %s16 = sld [smem:[#allocation0]]
  $region70: #{tpu_custom_call.1} parent=0
    _
  %s18 = ssub.s32 1, %s16
  %s19 = scalar_select 0, %s18, %s16
  $region1: #{tpu_custom_call.1} parent=0
    #allocation3 [shape = 'u8[65536]{0}', space=vmem, size = 0x10000, scoped, tag = 'output window, operand 0, single buffered']
    #allocation4 [shape = 's32[1]{0}', space=sflag, size = 0x4, scoped, tag = 'scoped memory for tpu_custom_call.1']
    %20 = vsyncpa [#allocation4], 0
    // Predicated region
    $region2: #{tpu_custom_call.1} parent=1 // pred_check
      _
    $region3: #{tpu_custom_call.1} parent=1 // pred_check_branch
      %22 = sbr.rel (0) target = $region5
    $region4: #{tpu_custom_call.1} parent=1 // pred_region
      _
    $region5: #{tpu_custom_call.1} parent=1 // pred_fallthru
      _
    // Predicated region
    $region6: #{tpu_custom_call.1} parent=1 // pred_check
      _
    $region7: #{tpu_custom_call.1} parent=1 // pred_check_branch
      %24 = sbr.rel (0) target = $region9
    $region8: #{tpu_custom_call.1} parent=1 // pred_region
      _
    $region9: #{tpu_custom_call.1} parent=1 // pred_fallthru
      _
    // Predicated region
    $region10: #{tpu_custom_call.1} parent=1 // pred_check
      _
    $region11: #{tpu_custom_call.1} parent=1 // pred_check_branch
      %26 = sbr.rel (0) target = $region13
    $region12: #{tpu_custom_call.1} parent=1 // pred_region
      _
    $region13: #{tpu_custom_call.1} parent=1 // pred_fallthru
      _
    // Predicated region
    $region14: #{tpu_custom_call.1} parent=1 // pred_check
      _
    $region15: #{tpu_custom_call.1} parent=1 // pred_check_branch
      %28 = sbr.rel (0) target = $region17
    $region16: #{tpu_custom_call.1} parent=1 // pred_region
      _
    $region17: #{tpu_custom_call.1} parent=1 // pred_fallthru
      _
    // Predicated region
    $region18: #{tpu_custom_call.1} parent=1 // pred_check
      _
    $region19: #{tpu_custom_call.1} parent=1 // pred_check_branch
      %30 = sbr.rel (0) target = $region21
    $region20: #{tpu_custom_call.1} parent=1 // pred_region
      _
    $region21: #{tpu_custom_call.1} parent=1 // pred_fallthru
      _
    // Predicated region
    $region22: #{tpu_custom_call.1} parent=1 // pred_check
      _
    $region23: #{tpu_custom_call.1} parent=1 // pred_check_branch
      %32 = sbr.rel (0) target = $region25
    $region24: #{tpu_custom_call.1} parent=1 // pred_region
      _
    $region25: #{tpu_custom_call.1} parent=1 // pred_fallthru
      _
    // Predicated region
    $region26: #{tpu_custom_call.1} parent=1 // pred_check
      _
    $region27: #{tpu_custom_call.1} parent=1 // pred_check_branch
      %34 = sbr.rel (0) target = $region29
    $region28: #{tpu_custom_call.1} parent=1 // pred_region
      _
    $region29: #{tpu_custom_call.1} parent=1 // pred_fallthru
      _
    // Predicated region
    $region30: #{tpu_custom_call.1} parent=1 // pred_check
      _
    $region31: #{tpu_custom_call.1} parent=1 // pred_check_branch
      %36 = sbr.rel (0) target = $region33
    $region32: #{tpu_custom_call.1} parent=1 // pred_region
      _
    $region33: #{tpu_custom_call.1} parent=1 // pred_fallthru
      _
    // Predicated region
    $region34: #{tpu_custom_call.1} parent=1 // pred_check
      _
    $region35: #{tpu_custom_call.1} parent=1 // pred_check_branch
      %38 = sbr.rel (0) target = $region37
    $region36: #{tpu_custom_call.1} parent=1 // pred_region
      _
    $region37: #{tpu_custom_call.1} parent=1 // pred_fallthru
      _
    // Predicated region
    $region38: #{tpu_custom_call.1} parent=1 // pred_check
      _
    $region39: #{tpu_custom_call.1} parent=1 // pred_check_branch
      %40 = sbr.rel (0) target = $region41
    $region40: #{tpu_custom_call.1} parent=1 // pred_region
      _
    $region41: #{tpu_custom_call.1} parent=1 // pred_fallthru
      _
    // Predicated region
    $region42: #{tpu_custom_call.1} parent=1 // pred_check
      _
    $region43: #{tpu_custom_call.1} parent=1 // pred_check_branch
      %42 = sbr.rel (0) target = $region45
    $region44: #{tpu_custom_call.1} parent=1 // pred_region
      _
    $region45: #{tpu_custom_call.1} parent=1 // pred_fallthru
      _
    // Predicated region
    $region46: #{tpu_custom_call.1} parent=1 // pred_check
      _
    $region47: #{tpu_custom_call.1} parent=1 // pred_check_branch
      %44 = sbr.rel (0) target = $region49
    $region48: #{tpu_custom_call.1} parent=1 // pred_region
      _
    $region49: #{tpu_custom_call.1} parent=1 // pred_fallthru
      _
    // Predicated region
    $region50: #{tpu_custom_call.1} parent=1 // pred_check
      _
    $region51: #{tpu_custom_call.1} parent=1 // pred_check_branch
      %46 = sbr.rel (0) target = $region53
    $region52: #{tpu_custom_call.1} parent=1 // pred_region
      _
    $region53: #{tpu_custom_call.1} parent=1 // pred_fallthru
      _
    // Predicated region
    $region54: #{tpu_custom_call.1} parent=1 // pred_check
      _
    $region55: #{tpu_custom_call.1} parent=1 // pred_check_branch
      %48 = sbr.rel (0) target = $region57
    $region56: #{tpu_custom_call.1} parent=1 // pred_region
      _
    $region57: #{tpu_custom_call.1} parent=1 // pred_fallthru
      _
    // Predicated region
    $region58: #{tpu_custom_call.1} parent=1 // pred_check
      _
    $region59: #{tpu_custom_call.1} parent=1 // pred_check_branch
      %50 = sbr.rel (0) target = $region61
    $region60: #{tpu_custom_call.1} parent=1 // pred_region
      _
    $region61: #{tpu_custom_call.1} parent=1 // pred_fallthru
      _
    %vm51 = vcmask 64512
    %52 = vst.msk [vmem:[#allocation2] sm:$0xff] %vm51, 0.0
    %53 = vst.msk [vmem:[#allocation2 + $0x8] sm:$0xff] %vm51, 0.0
    %vm54 = vcmask 58368
    %55 = vst.msk [vmem:[#allocation2 + $0x10] sm:$0x3] %vm54, 0.0
    %56 = vst.msk [vmem:[#allocation2 + $0x1b0] sm:$0xff] %vm51, 0.0
    %57 = vst.msk [vmem:[#allocation2 + $0x1b8] sm:$0xff] %vm51, 0.0
    %58 = vst.msk [vmem:[#allocation2 + $0x1c0] sm:$0x3] %vm54, 0.0
    %s59 = scalar_lea.vmem [#allocation2], 408
    %60 = vst.msk [vmem:[%s59] sm:$0xff] %vm51, 0.0
    %61 = vst.msk [vmem:[%s59 + $0x8] sm:$0xff] %vm51, 0.0
    %62 = vst.msk [vmem:[%s59 + $0x10] sm:$0x3] %vm54, 0.0
    %63 = vst.msk [vmem:[%s59 + $0x1b0] sm:$0xff] %vm51, 0.0
    %64 = vst.msk [vmem:[%s59 + $0x1b8] sm:$0xff] %vm51, 0.0
    %65 = vst.msk [vmem:[%s59 + $0x1c0] sm:$0x3] %vm54, 0.0
    %vm66 = vcmask 57344
    %67 = vst.msk [vmem:[#allocation2] sm:$0x1] %vm66, 0.0
    %68 = vst.msk [vmem:[#allocation2 + $0x18] sm:$0x1] %vm66, 0.0
    %69 = vst.msk [vmem:[#allocation2 + $0x30] sm:$0x1] %vm66, 0.0
    %70 = vst.msk [vmem:[#allocation2 + $0x48] sm:$0x1] %vm66, 0.0
    %71 = vst.msk [vmem:[#allocation2 + $0x60] sm:$0x1] %vm66, 0.0
    %72 = vst.msk [vmem:[#allocation2 + $0x78] sm:$0x1] %vm66, 0.0
    %73 = vst.msk [vmem:[#allocation2 + $0x90] sm:$0x1] %vm66, 0.0
    %74 = vst.msk [vmem:[#allocation2 + $0xa8] sm:$0x1] %vm66, 0.0
    %75 = vst.msk [vmem:[#allocation2 + $0xc0] sm:$0x1] %vm66, 0.0
    %76 = vst.msk [vmem:[#allocation2 + $0xd8] sm:$0x1] %vm66, 0.0
    %77 = vst.msk [vmem:[#allocation2 + $0xf0] sm:$0x1] %vm66, 0.0
    %78 = vst.msk [vmem:[#allocation2 + $0x108] sm:$0x1] %vm66, 0.0
    %79 = vst.msk [vmem:[#allocation2 + $0x120] sm:$0x1] %vm66, 0.0
    %80 = vst.msk [vmem:[#allocation2 + $0x138] sm:$0x1] %vm66, 0.0
    %81 = vst.msk [vmem:[#allocation2 + $0x150] sm:$0x1] %vm66, 0.0
    %82 = vst.msk [vmem:[#allocation2 + $0x168] sm:$0x1] %vm66, 0.0
    %83 = vst.msk [vmem:[#allocation2 + $0x180] sm:$0x1] %vm66, 0.0
    %84 = vst.msk [vmem:[#allocation2 + $0x198] sm:$0x1] %vm66, 0.0
    %85 = vst.msk [vmem:[#allocation2 + $0x1b0] sm:$0x1] %vm66, 0.0
    %86 = vst.msk [vmem:[#allocation2 + $0x1c8] sm:$0x1] %vm66, 0.0
    %87 = vst.msk [vmem:[#allocation2 + $0x1e0] sm:$0x1] %vm66, 0.0
    %88 = vst.msk [vmem:[#allocation2 + $0x1f8] sm:$0x1] %vm66, 0.0
    %89 = vst.msk [vmem:[#allocation2 + $0x210] sm:$0x1] %vm66, 0.0
    %90 = vst.msk [vmem:[#allocation2 + $0x228] sm:$0x1] %vm66, 0.0
    %91 = vst.msk [vmem:[#allocation2 + $0x240] sm:$0x1] %vm66, 0.0
    %92 = vst.msk [vmem:[#allocation2 + $0x258] sm:$0x1] %vm66, 0.0
    %93 = vst.msk [vmem:[#allocation2 + $0x270] sm:$0x1] %vm66, 0.0
    %94 = vst.msk [vmem:[#allocation2 + $0x288] sm:$0x1] %vm66, 0.0
    %95 = vst.msk [vmem:[#allocation2 + $0x2a0] sm:$0x1] %vm66, 0.0
    %96 = vst.msk [vmem:[#allocation2 + $0x2b8] sm:$0x1] %vm66, 0.0
    %97 = vst.msk [vmem:[#allocation2 + $0x2d0] sm:$0x1] %vm66, 0.0
    %98 = vst.msk [vmem:[#allocation2 + $0x2e8] sm:$0x1] %vm66, 0.0
    %99 = vst.msk [vmem:[#allocation2 + $0x300] sm:$0x1] %vm66, 0.0
    %100 = vst.msk [vmem:[#allocation2 + $0x318] sm:$0x1] %vm66, 0.0
    %101 = vst.msk [vmem:[#allocation2 + $0x330] sm:$0x1] %vm66, 0.0
    %102 = vst.msk [vmem:[#allocation2 + $0x348] sm:$0x1] %vm66, 0.0
    %103 = vst.msk [vmem:[#allocation2 + $0x11] sm:$0x1] %vm66, 0.0
    %104 = vst.msk [vmem:[#allocation2 + $0x29] sm:$0x1] %vm66, 0.0
    %105 = vst.msk [vmem:[#allocation2 + $0x41] sm:$0x1] %vm66, 0.0
    %106 = vst.msk [vmem:[#allocation2 + $0x59] sm:$0x1] %vm66, 0.0
    %107 = vst.msk [vmem:[#allocation2 + $0x71] sm:$0x1] %vm66, 0.0
    %108 = vst.msk [vmem:[#allocation2 + $0x89] sm:$0x1] %vm66, 0.0
    %109 = vst.msk [vmem:[#allocation2 + $0xa1] sm:$0x1] %vm66, 0.0
    %110 = vst.msk [vmem:[#allocation2 + $0xb9] sm:$0x1] %vm66, 0.0
    %111 = vst.msk [vmem:[#allocation2 + $0xd1] sm:$0x1] %vm66, 0.0
    %112 = vst.msk [vmem:[#allocation2 + $0xe9] sm:$0x1] %vm66, 0.0
    %113 = vst.msk [vmem:[#allocation2 + $0x101] sm:$0x1] %vm66, 0.0
    %114 = vst.msk [vmem:[#allocation2 + $0x119] sm:$0x1] %vm66, 0.0
    %115 = vst.msk [vmem:[#allocation2 + $0x131] sm:$0x1] %vm66, 0.0
    %116 = vst.msk [vmem:[#allocation2 + $0x149] sm:$0x1] %vm66, 0.0
    %117 = vst.msk [vmem:[#allocation2 + $0x161] sm:$0x1] %vm66, 0.0
    %118 = vst.msk [vmem:[#allocation2 + $0x179] sm:$0x1] %vm66, 0.0
    %119 = vst.msk [vmem:[#allocation2 + $0x191] sm:$0x1] %vm66, 0.0
    %120 = vst.msk [vmem:[#allocation2 + $0x1a9] sm:$0x1] %vm66, 0.0
    %121 = vst.msk [vmem:[#allocation2 + $0x1c1] sm:$0x1] %vm66, 0.0
    %122 = vst.msk [vmem:[#allocation2 + $0x1d9] sm:$0x1] %vm66, 0.0
    %123 = vst.msk [vmem:[#allocation2 + $0x1f1] sm:$0x1] %vm66, 0.0
    %124 = vst.msk [vmem:[#allocation2 + $0x209] sm:$0x1] %vm66, 0.0
    %125 = vst.msk [vmem:[#allocation2 + $0x221] sm:$0x1] %vm66, 0.0
    %126 = vst.msk [vmem:[#allocation2 + $0x239] sm:$0x1] %vm66, 0.0
    %127 = vst.msk [vmem:[#allocation2 + $0x251] sm:$0x1] %vm66, 0.0
    %128 = vst.msk [vmem:[#allocation2 + $0x269] sm:$0x1] %vm66, 0.0
    %129 = vst.msk [vmem:[#allocation2 + $0x281] sm:$0x1] %vm66, 0.0
    %130 = vst.msk [vmem:[#allocation2 + $0x299] sm:$0x1] %vm66, 0.0
    %131 = vst.msk [vmem:[#allocation2 + $0x2b1] sm:$0x1] %vm66, 0.0
    %132 = vst.msk [vmem:[#allocation2 + $0x2c9] sm:$0x1] %vm66, 0.0
    %133 = vst.msk [vmem:[#allocation2 + $0x2e1] sm:$0x1] %vm66, 0.0
    %134 = vst.msk [vmem:[#allocation2 + $0x2f9] sm:$0x1] %vm66, 0.0
    %135 = vst.msk [vmem:[#allocation2 + $0x311] sm:$0x1] %vm66, 0.0
    %136 = vst.msk [vmem:[#allocation2 + $0x329] sm:$0x1] %vm66, 0.0
    %137 = vst.msk [vmem:[#allocation2 + $0x341] sm:$0x1] %vm66, 0.0
    %138 = vst.msk [vmem:[#allocation2 + $0x359] sm:$0x1] %vm66, 0.0
    %v139 = vld [vmem:[%s0] sm:$0xff]
    %v140 = vld [vmem:[%s0 + $0x8] sm:$0xff]
    %v141 = vld [vmem:[%s0 + $0x10] sm:$0xff]
    %v142 = vld [vmem:[%s0 + $0x18] sm:$0xff]
    %v143 = vld [vmem:[%s0 + $0x20] sm:$0xff]
    %v144 = vld [vmem:[%s0 + $0x28] sm:$0xff]
    %v145 = vld [vmem:[%s0 + $0x30] sm:$0xff]
    %v146 = vld [vmem:[%s0 + $0x38] sm:$0xff]
    %v147 = vld [vmem:[%s0 + $0x40] sm:$0xff]
    %v148 = vld [vmem:[%s0 + $0x48] sm:$0xff]
    %v149 = vld [vmem:[%s0 + $0x50] sm:$0xff]
    %v150 = vld [vmem:[%s0 + $0x58] sm:$0xff]
    %v151 = vld [vmem:[%s0 + $0x60] sm:$0xff]
    %v152 = vld [vmem:[%s0 + $0x68] sm:$0xff]
    %v153 = vld [vmem:[%s0 + $0x70] sm:$0xff]
    %v154 = vld [vmem:[%s0 + $0x78] sm:$0xff]
    %v155 = vld [vmem:[%s0 + $0x80] sm:$0xff]
    %v156 = vld [vmem:[%s0 + $0x88] sm:$0xff]
    %v157 = vld [vmem:[%s0 + $0x90] sm:$0xff]
    %v158 = vld [vmem:[%s0 + $0x98] sm:$0xff]
    %v159 = vld [vmem:[%s0 + $0xa0] sm:$0xff]
    %v160 = vld [vmem:[%s0 + $0xa8] sm:$0xff]
    %v161 = vld [vmem:[%s0 + $0xb0] sm:$0xff]
    %v162 = vld [vmem:[%s0 + $0xb8] sm:$0xff]
    %v163 = vld [vmem:[%s0 + $0xc0] sm:$0xff]
    %v164 = vld [vmem:[%s0 + $0xc8] sm:$0xff]
    %v165 = vld [vmem:[%s0 + $0xd0] sm:$0xff]
    %v166 = vld [vmem:[%s0 + $0xd8] sm:$0xff]
    %v167 = vld [vmem:[%s0 + $0xe0] sm:$0xff]
    %v168 = vld [vmem:[%s0 + $0xe8] sm:$0xff]
    %v169 = vld [vmem:[%s0 + $0xf0] sm:$0xff]
    %v170 = vld [vmem:[%s0 + $0xf8] sm:$0xff]
    %v171 = vld [vmem:[%s0 + $0x100] sm:$0xff]
    %v172 = vld [vmem:[%s0 + $0x108] sm:$0xff]
    %v173 = vld [vmem:[%s0 + $0x110] sm:$0xff]
    %v174 = vld [vmem:[%s0 + $0x118] sm:$0xff]
    %v175 = vld [vmem:[%s0 + $0x120] sm:$0xff]
    %v176 = vld [vmem:[%s0 + $0x128] sm:$0xff]
    %v177 = vld [vmem:[%s0 + $0x130] sm:$0xff]
    %v178 = vld [vmem:[%s0 + $0x138] sm:$0xff]
    %v179 = vld [vmem:[%s0 + $0x140] sm:$0xff]
    %v180 = vld [vmem:[%s0 + $0x148] sm:$0xff]
    %v181 = vld [vmem:[%s0 + $0x150] sm:$0xff]
    %v182 = vld [vmem:[%s0 + $0x158] sm:$0xff]
    %v183 = vld [vmem:[%s0 + $0x160] sm:$0xff]
    %v184 = vld [vmem:[%s0 + $0x168] sm:$0xff]
    %v185 = vld [vmem:[%s0 + $0x170] sm:$0xff]
    %v186 = vld [vmem:[%s0 + $0x178] sm:$0xff]
    %v187 = vld [vmem:[%s0 + $0x180] sm:$0xff]
    %v188 = vld [vmem:[%s0 + $0x188] sm:$0xff]
    %v189 = vld [vmem:[%s0 + $0x190] sm:$0xff]
    %v190 = vld [vmem:[%s0 + $0x198] sm:$0xff]
    %v191 = vld [vmem:[%s0 + $0x1a0] sm:$0xff]
    %v192 = vld [vmem:[%s0 + $0x1a8] sm:$0xff]
    %v193 = vld [vmem:[%s0 + $0x1b0] sm:$0xff]
    %v194 = vld [vmem:[%s0 + $0x1b8] sm:$0xff]
    %v195 = vld [vmem:[%s0 + $0x1c0] sm:$0xff]
    %v196 = vld [vmem:[%s0 + $0x1c8] sm:$0xff]
    %v197 = vld [vmem:[%s0 + $0x1d0] sm:$0xff]
    %v198 = vld [vmem:[%s0 + $0x1d8] sm:$0xff]
    %v199 = vld [vmem:[%s0 + $0x1e0] sm:$0xff]
    %v200 = vld [vmem:[%s0 + $0x1e8] sm:$0xff]
    %v201 = vld [vmem:[%s0 + $0x1f0] sm:$0xff]
    %v202 = vld [vmem:[%s0 + $0x1f8] sm:$0xff]
    %s203 = scalar_lea.vmem [#allocation2], 24
    %vm204 = vcmask 31744
    %205 = vst.msk [vmem:[%s203 + $0x1] sm:$0xff] %vm204, %v139
    %206 = vst.msk [vmem:[%s203 + $0x9] sm:$0xff] %vm204, %v140
    %207 = vst.msk [vmem:[%s203 + $0x19] sm:$0xff] %vm204, %v141
    %208 = vst.msk [vmem:[%s203 + $0x21] sm:$0xff] %vm204, %v142
    %209 = vst.msk [vmem:[%s203 + $0x31] sm:$0xff] %vm204, %v143
    %210 = vst.msk [vmem:[%s203 + $0x39] sm:$0xff] %vm204, %v144
    %211 = vst.msk [vmem:[%s203 + $0x49] sm:$0xff] %vm204, %v145
    %212 = vst.msk [vmem:[%s203 + $0x51] sm:$0xff] %vm204, %v146
    %213 = vst.msk [vmem:[%s203 + $0x61] sm:$0xff] %vm204, %v147
    %214 = vst.msk [vmem:[%s203 + $0x69] sm:$0xff] %vm204, %v148
    %215 = vst.msk [vmem:[%s203 + $0x79] sm:$0xff] %vm204, %v149
    %216 = vst.msk [vmem:[%s203 + $0x81] sm:$0xff] %vm204, %v150
    %217 = vst.msk [vmem:[%s203 + $0x91] sm:$0xff] %vm204, %v151
    %218 = vst.msk [vmem:[%s203 + $0x99] sm:$0xff] %vm204, %v152
    %219 = vst.msk [vmem:[%s203 + $0xa9] sm:$0xff] %vm204, %v153
    %220 = vst.msk [vmem:[%s203 + $0xb1] sm:$0xff] %vm204, %v154
    %221 = vst.msk [vmem:[%s203 + $0xc1] sm:$0xff] %vm204, %v155
    %222 = vst.msk [vmem:[%s203 + $0xc9] sm:$0xff] %vm204, %v156
    %223 = vst.msk [vmem:[%s203 + $0xd9] sm:$0xff] %vm204, %v157
    %224 = vst.msk [vmem:[%s203 + $0xe1] sm:$0xff] %vm204, %v158
    %225 = vst.msk [vmem:[%s203 + $0xf1] sm:$0xff] %vm204, %v159
    %226 = vst.msk [vmem:[%s203 + $0xf9] sm:$0xff] %vm204, %v160
    %227 = vst.msk [vmem:[%s203 + $0x109] sm:$0xff] %vm204, %v161
    %228 = vst.msk [vmem:[%s203 + $0x111] sm:$0xff] %vm204, %v162
    %229 = vst.msk [vmem:[%s203 + $0x121] sm:$0xff] %vm204, %v163
    %230 = vst.msk [vmem:[%s203 + $0x129] sm:$0xff] %vm204, %v164
    %231 = vst.msk [vmem:[%s203 + $0x139] sm:$0xff] %vm204, %v165
    %232 = vst.msk [vmem:[%s203 + $0x141] sm:$0xff] %vm204, %v166
    %233 = vst.msk [vmem:[%s203 + $0x151] sm:$0xff] %vm204, %v167
    %234 = vst.msk [vmem:[%s203 + $0x159] sm:$0xff] %vm204, %v168
    %235 = vst.msk [vmem:[%s203 + $0x169] sm:$0xff] %vm204, %v169
    %236 = vst.msk [vmem:[%s203 + $0x171] sm:$0xff] %vm204, %v170
    %237 = vst.msk [vmem:[%s203 + $0x1b1] sm:$0xff] %vm204, %v171
    %238 = vst.msk [vmem:[%s203 + $0x1b9] sm:$0xff] %vm204, %v172
    %239 = vst.msk [vmem:[%s203 + $0x1c9] sm:$0xff] %vm204, %v173
    %240 = vst.msk [vmem:[%s203 + $0x1d1] sm:$0xff] %vm204, %v174
    %241 = vst.msk [vmem:[%s203 + $0x1e1] sm:$0xff] %vm204, %v175
    %242 = vst.msk [vmem:[%s203 + $0x1e9] sm:$0xff] %vm204, %v176
    %243 = vst.msk [vmem:[%s203 + $0x1f9] sm:$0xff] %vm204, %v177
    %244 = vst.msk [vmem:[%s203 + $0x201] sm:$0xff] %vm204, %v178
    %245 = vst.msk [vmem:[%s203 + $0x211] sm:$0xff] %vm204, %v179
    %246 = vst.msk [vmem:[%s203 + $0x219] sm:$0xff] %vm204, %v180
    %247 = vst.msk [vmem:[%s203 + $0x229] sm:$0xff] %vm204, %v181
    %248 = vst.msk [vmem:[%s203 + $0x231] sm:$0xff] %vm204, %v182
    %249 = vst.msk [vmem:[%s203 + $0x241] sm:$0xff] %vm204, %v183
    %250 = vst.msk [vmem:[%s203 + $0x249] sm:$0xff] %vm204, %v184
    %251 = vst.msk [vmem:[%s203 + $0x259] sm:$0xff] %vm204, %v185
    %252 = vst.msk [vmem:[%s203 + $0x261] sm:$0xff] %vm204, %v186
    %253 = vst.msk [vmem:[%s203 + $0x271] sm:$0xff] %vm204, %v187
    %254 = vst.msk [vmem:[%s203 + $0x279] sm:$0xff] %vm204, %v188
    %255 = vst.msk [vmem:[%s203 + $0x289] sm:$0xff] %vm204, %v189
    %256 = vst.msk [vmem:[%s203 + $0x291] sm:$0xff] %vm204, %v190
    %257 = vst.msk [vmem:[%s203 + $0x2a1] sm:$0xff] %vm204, %v191
    %258 = vst.msk [vmem:[%s203 + $0x2a9] sm:$0xff] %vm204, %v192
    %259 = vst.msk [vmem:[%s203 + $0x2b9] sm:$0xff] %vm204, %v193
    %260 = vst.msk [vmem:[%s203 + $0x2c1] sm:$0xff] %vm204, %v194
    %261 = vst.msk [vmem:[%s203 + $0x2d1] sm:$0xff] %vm204, %v195
    %262 = vst.msk [vmem:[%s203 + $0x2d9] sm:$0xff] %vm204, %v196
    %263 = vst.msk [vmem:[%s203 + $0x2e9] sm:$0xff] %vm204, %v197
    %264 = vst.msk [vmem:[%s203 + $0x2f1] sm:$0xff] %vm204, %v198
    %265 = vst.msk [vmem:[%s203 + $0x301] sm:$0xff] %vm204, %v199
    %266 = vst.msk [vmem:[%s203 + $0x309] sm:$0xff] %vm204, %v200
    %267 = vst.msk [vmem:[%s203 + $0x319] sm:$0xff] %vm204, %v201
    %268 = vst.msk [vmem:[%s203 + $0x321] sm:$0xff] %vm204, %v202
    %v269 = vld [vmem:[%s1] sm:$0xff]
    %v270 = vld [vmem:[%s1 + $0x8] sm:$0x1]
    %v271 = vld [vmem:[#allocation2] sm:$0xff]
    %v272 = vld [vmem:[#allocation2 + $0x8] sm:$0xff]
    %v273 = vld [vmem:[#allocation2 + $0x18] sm:$0xff]
    %v274 = vld [vmem:[#allocation2 + $0x20] sm:$0xff]
    %v275 = vld [vmem:[#allocation2 + $0x30] sm:$0xff]
    %v276 = vld [vmem:[#allocation2 + $0x38] sm:$0xff]
    %v277 = vld [vmem:[#allocation2 + $0x48] sm:$0xff]
    %v278 = vld [vmem:[#allocation2 + $0x50] sm:$0xff]
    %v279 = vld [vmem:[#allocation2 + $0x60] sm:$0xff]
    %v280 = vld [vmem:[#allocation2 + $0x68] sm:$0xff]
    %v281 = vld [vmem:[#allocation2 + $0x78] sm:$0xff]
    %v282 = vld [vmem:[#allocation2 + $0x80] sm:$0xff]
    %v283 = vld [vmem:[#allocation2 + $0x90] sm:$0xff]
    %v284 = vld [vmem:[#allocation2 + $0x98] sm:$0xff]
    %v285 = vld [vmem:[#allocation2 + $0xa8] sm:$0xff]
    %v286 = vld [vmem:[#allocation2 + $0xb0] sm:$0xff]
    %v287 = vld [vmem:[#allocation2 + $0xc0] sm:$0xff]
    %v288 = vld [vmem:[#allocation2 + $0xc8] sm:$0xff]
    %v289 = vld [vmem:[#allocation2 + $0xd8] sm:$0xff]
    %v290 = vld [vmem:[#allocation2 + $0xe0] sm:$0xff]
    %v291 = vld [vmem:[#allocation2 + $0xf0] sm:$0xff]
    %v292 = vld [vmem:[#allocation2 + $0xf8] sm:$0xff]
    %v293 = vld [vmem:[#allocation2 + $0x108] sm:$0xff]
    %v294 = vld [vmem:[#allocation2 + $0x110] sm:$0xff]
    %v295 = vld [vmem:[#allocation2 + $0x120] sm:$0xff]
    %v296 = vld [vmem:[#allocation2 + $0x128] sm:$0xff]
    %v297 = vld [vmem:[#allocation2 + $0x138] sm:$0xff]
    %v298 = vld [vmem:[#allocation2 + $0x140] sm:$0xff]
    %v299 = vld [vmem:[#allocation2 + $0x150] sm:$0xff]
    %v300 = vld [vmem:[#allocation2 + $0x158] sm:$0xff]
    %v301 = vld [vmem:[#allocation2 + $0x168] sm:$0xff]
    %v302 = vld [vmem:[#allocation2 + $0x170] sm:$0xff]
    %v303 = vld [vmem:[#allocation2 + $0x1b0] sm:$0xff]
    %v304 = vld [vmem:[#allocation2 + $0x1b8] sm:$0xff]
    %v305 = vld [vmem:[#allocation2 + $0x1c8] sm:$0xff]
    %v306 = vld [vmem:[#allocation2 + $0x1d0] sm:$0xff]
    %v307 = vld [vmem:[#allocation2 + $0x1e0] sm:$0xff]
    %v308 = vld [vmem:[#allocation2 + $0x1e8] sm:$0xff]
    %v309 = vld [vmem:[#allocation2 + $0x1f8] sm:$0xff]
    %v310 = vld [vmem:[#allocation2 + $0x200] sm:$0xff]
    %v311 = vld [vmem:[#allocation2 + $0x210] sm:$0xff]
    %v312 = vld [vmem:[#allocation2 + $0x218] sm:$0xff]
    %v313 = vld [vmem:[#allocation2 + $0x228] sm:$0xff]
    %v314 = vld [vmem:[#allocation2 + $0x230] sm:$0xff]
    %v315 = vld [vmem:[#allocation2 + $0x240] sm:$0xff]
    %v316 = vld [vmem:[#allocation2 + $0x248] sm:$0xff]
    %v317 = vld [vmem:[#allocation2 + $0x258] sm:$0xff]
    %v318 = vld [vmem:[#allocation2 + $0x260] sm:$0xff]
    %v319 = vld [vmem:[#allocation2 + $0x270] sm:$0xff]
    %v320 = vld [vmem:[#allocation2 + $0x278] sm:$0xff]
    %v321 = vld [vmem:[#allocation2 + $0x288] sm:$0xff]
    %v322 = vld [vmem:[#allocation2 + $0x290] sm:$0xff]
    %v323 = vld [vmem:[#allocation2 + $0x2a0] sm:$0xff]
    %v324 = vld [vmem:[#allocation2 + $0x2a8] sm:$0xff]
    %v325 = vld [vmem:[#allocation2 + $0x2b8] sm:$0xff]
    %v326 = vld [vmem:[#allocation2 + $0x2c0] sm:$0xff]
    %v327 = vld [vmem:[#allocation2 + $0x2d0] sm:$0xff]
    %v328 = vld [vmem:[#allocation2 + $0x2d8] sm:$0xff]
    %v329 = vld [vmem:[#allocation2 + $0x2e8] sm:$0xff]
    %v330 = vld [vmem:[#allocation2 + $0x2f0] sm:$0xff]
    %v331 = vld [vmem:[#allocation2 + $0x300] sm:$0xff]
    %v332 = vld [vmem:[#allocation2 + $0x308] sm:$0xff]
    %v333 = vld [vmem:[#allocation2 + $0x318] sm:$0xff]
    %v334 = vld [vmem:[#allocation2 + $0x320] sm:$0xff]
    %v335 = vlaneseq
    %v336 = vshrl.u32 %v335, 7
    %v337 = vsub.s32 0, %v336
    %v338 = vrot.slane %v269, %v337
    %v339 = vmul.f32 %v271, %v338
    %v340 = vmul.f32 %v272, %v338
    %v341 = vmul.f32 %v273, %v338
    %v342 = vmul.f32 %v274, %v338
    %v343 = vmul.f32 %v275, %v338
    %v344 = vmul.f32 %v276, %v338
    %v345 = vmul.f32 %v277, %v338
    %v346 = vmul.f32 %v278, %v338
    %v347 = vmul.f32 %v279, %v338
    %v348 = vmul.f32 %v280, %v338
    %v349 = vmul.f32 %v281, %v338
    %v350 = vmul.f32 %v282, %v338
    %v351 = vmul.f32 %v283, %v338
    %v352 = vmul.f32 %v284, %v338
    %v353 = vmul.f32 %v285, %v338
    %v354 = vmul.f32 %v286, %v338
    %v355 = vmul.f32 %v287, %v338
    %v356 = vmul.f32 %v288, %v338
    %v357 = vmul.f32 %v289, %v338
    %v358 = vmul.f32 %v290, %v338
    %v359 = vmul.f32 %v291, %v338
    %v360 = vmul.f32 %v292, %v338
    %v361 = vmul.f32 %v293, %v338
    %v362 = vmul.f32 %v294, %v338
    %v363 = vmul.f32 %v295, %v338
    %v364 = vmul.f32 %v296, %v338
    %v365 = vmul.f32 %v297, %v338
    %v366 = vmul.f32 %v298, %v338
    %v367 = vmul.f32 %v299, %v338
    %v368 = vmul.f32 %v300, %v338
    %v369 = vmul.f32 %v301, %v338
    %v370 = vmul.f32 %v302, %v338
    %v371 = vmul.f32 %v303, %v338
    %v372 = vmul.f32 %v304, %v338
    %v373 = vmul.f32 %v305, %v338
    %v374 = vmul.f32 %v306, %v338
    %v375 = vmul.f32 %v307, %v338
    %v376 = vmul.f32 %v308, %v338
    %v377 = vmul.f32 %v309, %v338
    %v378 = vmul.f32 %v310, %v338
    %v379 = vmul.f32 %v311, %v338
    %v380 = vmul.f32 %v312, %v338
    %v381 = vmul.f32 %v313, %v338
    %v382 = vmul.f32 %v314, %v338
    %v383 = vmul.f32 %v315, %v338
    %v384 = vmul.f32 %v316, %v338
    %v385 = vmul.f32 %v317, %v338
    %v386 = vmul.f32 %v318, %v338
    %v387 = vmul.f32 %v319, %v338
    %v388 = vmul.f32 %v320, %v338
    %v389 = vmul.f32 %v321, %v338
    %v390 = vmul.f32 %v322, %v338
    %v391 = vmul.f32 %v323, %v338
    %v392 = vmul.f32 %v324, %v338
    %v393 = vmul.f32 %v325, %v338
    %v394 = vmul.f32 %v326, %v338
    %v395 = vmul.f32 %v327, %v338
    %v396 = vmul.f32 %v328, %v338
    %v397 = vmul.f32 %v329, %v338
    %v398 = vmul.f32 %v330, %v338
    %v399 = vmul.f32 %v331, %v338
    %v400 = vmul.f32 %v332, %v338
    %v401 = vmul.f32 %v333, %v338
    %v402 = vmul.f32 %v334, %v338
    %v403 = vld [vmem:[#allocation2 + $0x1] sm:$0xff]
    %v404 = vld [vmem:[#allocation2 + $0x9] sm:$0xff]
    %v405 = vld [vmem:[#allocation2 + $0x19] sm:$0xff]
    %v406 = vld [vmem:[#allocation2 + $0x21] sm:$0xff]
    %v407 = vld [vmem:[#allocation2 + $0x31] sm:$0xff]
    %v408 = vld [vmem:[#allocation2 + $0x39] sm:$0xff]
    %v409 = vld [vmem:[#allocation2 + $0x49] sm:$0xff]
    %v410 = vld [vmem:[#allocation2 + $0x51] sm:$0xff]
    %v411 = vld [vmem:[#allocation2 + $0x61] sm:$0xff]
    %v412 = vld [vmem:[#allocation2 + $0x69] sm:$0xff]
    %v413 = vld [vmem:[#allocation2 + $0x79] sm:$0xff]
    %v414 = vld [vmem:[#allocation2 + $0x81] sm:$0xff]
    %v415 = vld [vmem:[#allocation2 + $0x91] sm:$0xff]
    %v416 = vld [vmem:[#allocation2 + $0x99] sm:$0xff]
    %v417 = vld [vmem:[#allocation2 + $0xa9] sm:$0xff]
    %v418 = vld [vmem:[#allocation2 + $0xb1] sm:$0xff]
    %v419 = vld [vmem:[#allocation2 + $0xc1] sm:$0xff]
    %v420 = vld [vmem:[#allocation2 + $0xc9] sm:$0xff]
    %v421 = vld [vmem:[#allocation2 + $0xd9] sm:$0xff]
    %v422 = vld [vmem:[#allocation2 + $0xe1] sm:$0xff]
    %v423 = vld [vmem:[#allocation2 + $0xf1] sm:$0xff]
    %v424 = vld [vmem:[#allocation2 + $0xf9] sm:$0xff]
    %v425 = vld [vmem:[#allocation2 + $0x109] sm:$0xff]
    %v426 = vld [vmem:[#allocation2 + $0x111] sm:$0xff]
    %v427 = vld [vmem:[#allocation2 + $0x121] sm:$0xff]
    %v428 = vld [vmem:[#allocation2 + $0x129] sm:$0xff]
    %v429 = vld [vmem:[#allocation2 + $0x139] sm:$0xff]
    %v430 = vld [vmem:[#allocation2 + $0x141] sm:$0xff]
    %v431 = vld [vmem:[#allocation2 + $0x151] sm:$0xff]
    %v432 = vld [vmem:[#allocation2 + $0x159] sm:$0xff]
    %v433 = vld [vmem:[#allocation2 + $0x169] sm:$0xff]
    %v434 = vld [vmem:[#allocation2 + $0x171] sm:$0xff]
    %v435 = vld [vmem:[#allocation2 + $0x1b1] sm:$0xff]
    %v436 = vld [vmem:[#allocation2 + $0x1b9] sm:$0xff]
    %v437 = vld [vmem:[#allocation2 + $0x1c9] sm:$0xff]
    %v438 = vld [vmem:[#allocation2 + $0x1d1] sm:$0xff]
    %v439 = vld [vmem:[#allocation2 + $0x1e1] sm:$0xff]
    %v440 = vld [vmem:[#allocation2 + $0x1e9] sm:$0xff]
    %v441 = vld [vmem:[#allocation2 + $0x1f9] sm:$0xff]
    %v442 = vld [vmem:[#allocation2 + $0x201] sm:$0xff]
    %v443 = vld [vmem:[#allocation2 + $0x211] sm:$0xff]
    %v444 = vld [vmem:[#allocation2 + $0x219] sm:$0xff]
    %v445 = vld [vmem:[#allocation2 + $0x229] sm:$0xff]
    %v446 = vld [vmem:[#allocation2 + $0x231] sm:$0xff]
    %v447 = vld [vmem:[#allocation2 + $0x241] sm:$0xff]
    %v448 = vld [vmem:[#allocation2 + $0x249] sm:$0xff]
    %v449 = vld [vmem:[#allocation2 + $0x259] sm:$0xff]
    %v450 = vld [vmem:[#allocation2 + $0x261] sm:$0xff]
    %v451 = vld [vmem:[#allocation2 + $0x271] sm:$0xff]
    %v452 = vld [vmem:[#allocation2 + $0x279] sm:$0xff]
    %v453 = vld [vmem:[#allocation2 + $0x289] sm:$0xff]
    %v454 = vld [vmem:[#allocation2 + $0x291] sm:$0xff]
    %v455 = vld [vmem:[#allocation2 + $0x2a1] sm:$0xff]
    %v456 = vld [vmem:[#allocation2 + $0x2a9] sm:$0xff]
    %v457 = vld [vmem:[#allocation2 + $0x2b9] sm:$0xff]
    %v458 = vld [vmem:[#allocation2 + $0x2c1] sm:$0xff]
    %v459 = vld [vmem:[#allocation2 + $0x2d1] sm:$0xff]
    %v460 = vld [vmem:[#allocation2 + $0x2d9] sm:$0xff]
    %v461 = vld [vmem:[#allocation2 + $0x2e9] sm:$0xff]
    %v462 = vld [vmem:[#allocation2 + $0x2f1] sm:$0xff]
    %v463 = vld [vmem:[#allocation2 + $0x301] sm:$0xff]
    %v464 = vld [vmem:[#allocation2 + $0x309] sm:$0xff]
    %v465 = vld [vmem:[#allocation2 + $0x319] sm:$0xff]
    %v466 = vld [vmem:[#allocation2 + $0x321] sm:$0xff]
    %v467 = vlaneseq
    %v468 = vshrl.u32 %v467, 7
    %v469 = vsub.s32 1, %v468
    %v470 = vrot.slane %v269, %v469
    %v471 = vmul.f32 %v403, %v470
    %v472 = vmul.f32 %v404, %v470
    %v473 = vmul.f32 %v405, %v470
    %v474 = vmul.f32 %v406, %v470
    %v475 = vmul.f32 %v407, %v470
    %v476 = vmul.f32 %v408, %v470
    %v477 = vmul.f32 %v409, %v470
    %v478 = vmul.f32 %v410, %v470
    %v479 = vmul.f32 %v411, %v470
    %v480 = vmul.f32 %v412, %v470
    %v481 = vmul.f32 %v413, %v470
    %v482 = vmul.f32 %v414, %v470
    %v483 = vmul.f32 %v415, %v470
    %v484 = vmul.f32 %v416, %v470
    %v485 = vmul.f32 %v417, %v470
    %v486 = vmul.f32 %v418, %v470
    %v487 = vmul.f32 %v419, %v470
    %v488 = vmul.f32 %v420, %v470
    %v489 = vmul.f32 %v421, %v470
    %v490 = vmul.f32 %v422, %v470
    %v491 = vmul.f32 %v423, %v470
    %v492 = vmul.f32 %v424, %v470
    %v493 = vmul.f32 %v425, %v470
    %v494 = vmul.f32 %v426, %v470
    %v495 = vmul.f32 %v427, %v470
    %v496 = vmul.f32 %v428, %v470
    %v497 = vmul.f32 %v429, %v470
    %v498 = vmul.f32 %v430, %v470
    %v499 = vmul.f32 %v431, %v470
    %v500 = vmul.f32 %v432, %v470
    %v501 = vmul.f32 %v433, %v470
    %v502 = vmul.f32 %v434, %v470
    %v503 = vmul.f32 %v435, %v470
    %v504 = vmul.f32 %v436, %v470
    %v505 = vmul.f32 %v437, %v470
    %v506 = vmul.f32 %v438, %v470
    %v507 = vmul.f32 %v439, %v470
    %v508 = vmul.f32 %v440, %v470
    %v509 = vmul.f32 %v441, %v470
    %v510 = vmul.f32 %v442, %v470
    %v511 = vmul.f32 %v443, %v470
    %v512 = vmul.f32 %v444, %v470
    %v513 = vmul.f32 %v445, %v470
    %v514 = vmul.f32 %v446, %v470
    %v515 = vmul.f32 %v447, %v470
    %v516 = vmul.f32 %v448, %v470
    %v517 = vmul.f32 %v449, %v470
    %v518 = vmul.f32 %v450, %v470
    %v519 = vmul.f32 %v451, %v470
    %v520 = vmul.f32 %v452, %v470
    %v521 = vmul.f32 %v453, %v470
    %v522 = vmul.f32 %v454, %v470
    %v523 = vmul.f32 %v455, %v470
    %v524 = vmul.f32 %v456, %v470
    %v525 = vmul.f32 %v457, %v470
    %v526 = vmul.f32 %v458, %v470
    %v527 = vmul.f32 %v459, %v470
    %v528 = vmul.f32 %v460, %v470
    %v529 = vmul.f32 %v461, %v470
    %v530 = vmul.f32 %v462, %v470
    %v531 = vmul.f32 %v463, %v470
    %v532 = vmul.f32 %v464, %v470
    %v533 = vmul.f32 %v465, %v470
    %v534 = vmul.f32 %v466, %v470
    %v535 = vadd.f32 %v339, %v471
    %v536 = vadd.f32 %v340, %v472
    %v537 = vadd.f32 %v341, %v473
    %v538 = vadd.f32 %v342, %v474
    %v539 = vadd.f32 %v343, %v475
    %v540 = vadd.f32 %v344, %v476
    %v541 = vadd.f32 %v345, %v477
    %v542 = vadd.f32 %v346, %v478
    %v543 = vadd.f32 %v347, %v479
    %v544 = vadd.f32 %v348, %v480
    %v545 = vadd.f32 %v349, %v481
    %v546 = vadd.f32 %v350, %v482
    %v547 = vadd.f32 %v351, %v483
    %v548 = vadd.f32 %v352, %v484
    %v549 = vadd.f32 %v353, %v485
    %v550 = vadd.f32 %v354, %v486
    %v551 = vadd.f32 %v355, %v487
    %v552 = vadd.f32 %v356, %v488
    %v553 = vadd.f32 %v357, %v489
    %v554 = vadd.f32 %v358, %v490
    %v555 = vadd.f32 %v359, %v491
    %v556 = vadd.f32 %v360, %v492
    %v557 = vadd.f32 %v361, %v493
    %v558 = vadd.f32 %v362, %v494
    %v559 = vadd.f32 %v363, %v495
    %v560 = vadd.f32 %v364, %v496
    %v561 = vadd.f32 %v365, %v497
    %v562 = vadd.f32 %v366, %v498
    %v563 = vadd.f32 %v367, %v499
    %v564 = vadd.f32 %v368, %v500
    %v565 = vadd.f32 %v369, %v501
    %v566 = vadd.f32 %v370, %v502
    %v567 = vadd.f32 %v371, %v503
    %v568 = vadd.f32 %v372, %v504
    %v569 = vadd.f32 %v373, %v505
    %v570 = vadd.f32 %v374, %v506
    %v571 = vadd.f32 %v375, %v507
    %v572 = vadd.f32 %v376, %v508
    %v573 = vadd.f32 %v377, %v509
    %v574 = vadd.f32 %v378, %v510
    %v575 = vadd.f32 %v379, %v511
    %v576 = vadd.f32 %v380, %v512
    %v577 = vadd.f32 %v381, %v513
    %v578 = vadd.f32 %v382, %v514
    %v579 = vadd.f32 %v383, %v515
    %v580 = vadd.f32 %v384, %v516
    %v581 = vadd.f32 %v385, %v517
    %v582 = vadd.f32 %v386, %v518
    %v583 = vadd.f32 %v387, %v519
    %v584 = vadd.f32 %v388, %v520
    %v585 = vadd.f32 %v389, %v521
    %v586 = vadd.f32 %v390, %v522
    %v587 = vadd.f32 %v391, %v523
    %v588 = vadd.f32 %v392, %v524
    %v589 = vadd.f32 %v393, %v525
    %v590 = vadd.f32 %v394, %v526
    %v591 = vadd.f32 %v395, %v527
    %v592 = vadd.f32 %v396, %v528
    %v593 = vadd.f32 %v397, %v529
    %v594 = vadd.f32 %v398, %v530
    %v595 = vadd.f32 %v399, %v531
    %v596 = vadd.f32 %v400, %v532
    %v597 = vadd.f32 %v401, %v533
    %v598 = vadd.f32 %v402, %v534
    %v599 = vld [vmem:[#allocation2 + $0x2] sm:$0xff]
    %v600 = vld [vmem:[#allocation2 + $0xa] sm:$0xff]
    %v601 = vld [vmem:[#allocation2 + $0x1a] sm:$0xff]
    %v602 = vld [vmem:[#allocation2 + $0x22] sm:$0xff]
    %v603 = vld [vmem:[#allocation2 + $0x32] sm:$0xff]
    %v604 = vld [vmem:[#allocation2 + $0x3a] sm:$0xff]
    %v605 = vld [vmem:[#allocation2 + $0x4a] sm:$0xff]
    %v606 = vld [vmem:[#allocation2 + $0x52] sm:$0xff]
    %v607 = vld [vmem:[#allocation2 + $0x62] sm:$0xff]
    %v608 = vld [vmem:[#allocation2 + $0x6a] sm:$0xff]
    %v609 = vld [vmem:[#allocation2 + $0x7a] sm:$0xff]
    %v610 = vld [vmem:[#allocation2 + $0x82] sm:$0xff]
    %v611 = vld [vmem:[#allocation2 + $0x92] sm:$0xff]
    %v612 = vld [vmem:[#allocation2 + $0x9a] sm:$0xff]
    %v613 = vld [vmem:[#allocation2 + $0xaa] sm:$0xff]
    %v614 = vld [vmem:[#allocation2 + $0xb2] sm:$0xff]
    %v615 = vld [vmem:[#allocation2 + $0xc2] sm:$0xff]
    %v616 = vld [vmem:[#allocation2 + $0xca] sm:$0xff]
    %v617 = vld [vmem:[#allocation2 + $0xda] sm:$0xff]
    %v618 = vld [vmem:[#allocation2 + $0xe2] sm:$0xff]
    %v619 = vld [vmem:[#allocation2 + $0xf2] sm:$0xff]
    %v620 = vld [vmem:[#allocation2 + $0xfa] sm:$0xff]
    %v621 = vld [vmem:[#allocation2 + $0x10a] sm:$0xff]
    %v622 = vld [vmem:[#allocation2 + $0x112] sm:$0xff]
    %v623 = vld [vmem:[#allocation2 + $0x122] sm:$0xff]
    %v624 = vld [vmem:[#allocation2 + $0x12a] sm:$0xff]
    %v625 = vld [vmem:[#allocation2 + $0x13a] sm:$0xff]
    %v626 = vld [vmem:[#allocation2 + $0x142] sm:$0xff]
    %v627 = vld [vmem:[#allocation2 + $0x152] sm:$0xff]
    %v628 = vld [vmem:[#allocation2 + $0x15a] sm:$0xff]
    %v629 = vld [vmem:[#allocation2 + $0x16a] sm:$0xff]
    %v630 = vld [vmem:[#allocation2 + $0x172] sm:$0xff]
    %v631 = vld [vmem:[#allocation2 + $0x1b2] sm:$0xff]
    %v632 = vld [vmem:[#allocation2 + $0x1ba] sm:$0xff]
    %v633 = vld [vmem:[#allocation2 + $0x1ca] sm:$0xff]
    %v634 = vld [vmem:[#allocation2 + $0x1d2] sm:$0xff]
    %v635 = vld [vmem:[#allocation2 + $0x1e2] sm:$0xff]
    %v636 = vld [vmem:[#allocation2 + $0x1ea] sm:$0xff]
    %v637 = vld [vmem:[#allocation2 + $0x1fa] sm:$0xff]
    %v638 = vld [vmem:[#allocation2 + $0x202] sm:$0xff]
    %v639 = vld [vmem:[#allocation2 + $0x212] sm:$0xff]
    %v640 = vld [vmem:[#allocation2 + $0x21a] sm:$0xff]
    %v641 = vld [vmem:[#allocation2 + $0x22a] sm:$0xff]
    %v642 = vld [vmem:[#allocation2 + $0x232] sm:$0xff]
    %v643 = vld [vmem:[#allocation2 + $0x242] sm:$0xff]
    %v644 = vld [vmem:[#allocation2 + $0x24a] sm:$0xff]
    %v645 = vld [vmem:[#allocation2 + $0x25a] sm:$0xff]
    %v646 = vld [vmem:[#allocation2 + $0x262] sm:$0xff]
    %v647 = vld [vmem:[#allocation2 + $0x272] sm:$0xff]
    %v648 = vld [vmem:[#allocation2 + $0x27a] sm:$0xff]
    %v649 = vld [vmem:[#allocation2 + $0x28a] sm:$0xff]
    %v650 = vld [vmem:[#allocation2 + $0x292] sm:$0xff]
    %v651 = vld [vmem:[#allocation2 + $0x2a2] sm:$0xff]
    %v652 = vld [vmem:[#allocation2 + $0x2aa] sm:$0xff]
    %v653 = vld [vmem:[#allocation2 + $0x2ba] sm:$0xff]
    %v654 = vld [vmem:[#allocation2 + $0x2c2] sm:$0xff]
    %v655 = vld [vmem:[#allocation2 + $0x2d2] sm:$0xff]
    %v656 = vld [vmem:[#allocation2 + $0x2da] sm:$0xff]
    %v657 = vld [vmem:[#allocation2 + $0x2ea] sm:$0xff]
    %v658 = vld [vmem:[#allocation2 + $0x2f2] sm:$0xff]
    %v659 = vld [vmem:[#allocation2 + $0x302] sm:$0xff]
    %v660 = vld [vmem:[#allocation2 + $0x30a] sm:$0xff]
    %v661 = vld [vmem:[#allocation2 + $0x31a] sm:$0xff]
    %v662 = vld [vmem:[#allocation2 + $0x322] sm:$0xff]
    %v663 = vlaneseq
    %v664 = vshrl.u32 %v663, 7
    %v665 = vsub.s32 2, %v664
    %v666 = vrot.slane %v269, %v665
    %v667 = vmul.f32 %v599, %v666
    %v668 = vmul.f32 %v600, %v666
    %v669 = vmul.f32 %v601, %v666
    %v670 = vmul.f32 %v602, %v666
    %v671 = vmul.f32 %v603, %v666
    %v672 = vmul.f32 %v604, %v666
    %v673 = vmul.f32 %v605, %v666
    %v674 = vmul.f32 %v606, %v666
    %v675 = vmul.f32 %v607, %v666
    %v676 = vmul.f32 %v608, %v666
    %v677 = vmul.f32 %v609, %v666
    %v678 = vmul.f32 %v610, %v666
    %v679 = vmul.f32 %v611, %v666
    %v680 = vmul.f32 %v612, %v666
    %v681 = vmul.f32 %v613, %v666
    %v682 = vmul.f32 %v614, %v666
    %v683 = vmul.f32 %v615, %v666
    %v684 = vmul.f32 %v616, %v666
    %v685 = vmul.f32 %v617, %v666
    %v686 = vmul.f32 %v618, %v666
    %v687 = vmul.f32 %v619, %v666
    %v688 = vmul.f32 %v620, %v666
    %v689 = vmul.f32 %v621, %v666
    %v690 = vmul.f32 %v622, %v666
    %v691 = vmul.f32 %v623, %v666
    %v692 = vmul.f32 %v624, %v666
    %v693 = vmul.f32 %v625, %v666
    %v694 = vmul.f32 %v626, %v666
    %v695 = vmul.f32 %v627, %v666
    %v696 = vmul.f32 %v628, %v666
    %v697 = vmul.f32 %v629, %v666
    %v698 = vmul.f32 %v630, %v666
    %v699 = vmul.f32 %v631, %v666
    %v700 = vmul.f32 %v632, %v666
    %v701 = vmul.f32 %v633, %v666
    %v702 = vmul.f32 %v634, %v666
    %v703 = vmul.f32 %v635, %v666
    %v704 = vmul.f32 %v636, %v666
    %v705 = vmul.f32 %v637, %v666
    %v706 = vmul.f32 %v638, %v666
    %v707 = vmul.f32 %v639, %v666
    %v708 = vmul.f32 %v640, %v666
    %v709 = vmul.f32 %v641, %v666
    %v710 = vmul.f32 %v642, %v666
    %v711 = vmul.f32 %v643, %v666
    %v712 = vmul.f32 %v644, %v666
    %v713 = vmul.f32 %v645, %v666
    %v714 = vmul.f32 %v646, %v666
    %v715 = vmul.f32 %v647, %v666
    %v716 = vmul.f32 %v648, %v666
    %v717 = vmul.f32 %v649, %v666
    %v718 = vmul.f32 %v650, %v666
    %v719 = vmul.f32 %v651, %v666
    %v720 = vmul.f32 %v652, %v666
    %v721 = vmul.f32 %v653, %v666
    %v722 = vmul.f32 %v654, %v666
    %v723 = vmul.f32 %v655, %v666
    %v724 = vmul.f32 %v656, %v666
    %v725 = vmul.f32 %v657, %v666
    %v726 = vmul.f32 %v658, %v666
    %v727 = vmul.f32 %v659, %v666
    %v728 = vmul.f32 %v660, %v666
    %v729 = vmul.f32 %v661, %v666
    %v730 = vmul.f32 %v662, %v666
    %v731 = vadd.f32 %v535, %v667
    %v732 = vadd.f32 %v536, %v668
    %v733 = vadd.f32 %v537, %v669
    %v734 = vadd.f32 %v538, %v670
    %v735 = vadd.f32 %v539, %v671
    %v736 = vadd.f32 %v540, %v672
    %v737 = vadd.f32 %v541, %v673
    %v738 = vadd.f32 %v542, %v674
    %v739 = vadd.f32 %v543, %v675
    %v740 = vadd.f32 %v544, %v676
    %v741 = vadd.f32 %v545, %v677
    %v742 = vadd.f32 %v546, %v678
    %v743 = vadd.f32 %v547, %v679
    %v744 = vadd.f32 %v548, %v680
    %v745 = vadd.f32 %v549, %v681
    %v746 = vadd.f32 %v550, %v682
    %v747 = vadd.f32 %v551, %v683
    %v748 = vadd.f32 %v552, %v684
    %v749 = vadd.f32 %v553, %v685
    %v750 = vadd.f32 %v554, %v686
    %v751 = vadd.f32 %v555, %v687
    %v752 = vadd.f32 %v556, %v688
    %v753 = vadd.f32 %v557, %v689
    %v754 = vadd.f32 %v558, %v690
    %v755 = vadd.f32 %v559, %v691
    %v756 = vadd.f32 %v560, %v692
    %v757 = vadd.f32 %v561, %v693
    %v758 = vadd.f32 %v562, %v694
    %v759 = vadd.f32 %v563, %v695
    %v760 = vadd.f32 %v564, %v696
    %v761 = vadd.f32 %v565, %v697
    %v762 = vadd.f32 %v566, %v698
    %v763 = vadd.f32 %v567, %v699
    %v764 = vadd.f32 %v568, %v700
    %v765 = vadd.f32 %v569, %v701
    %v766 = vadd.f32 %v570, %v702
    %v767 = vadd.f32 %v571, %v703
    %v768 = vadd.f32 %v572, %v704
    %v769 = vadd.f32 %v573, %v705
    %v770 = vadd.f32 %v574, %v706
    %v771 = vadd.f32 %v575, %v707
    %v772 = vadd.f32 %v576, %v708
    %v773 = vadd.f32 %v577, %v709
    %v774 = vadd.f32 %v578, %v710
    %v775 = vadd.f32 %v579, %v711
    %v776 = vadd.f32 %v580, %v712
    %v777 = vadd.f32 %v581, %v713
    %v778 = vadd.f32 %v582, %v714
    %v779 = vadd.f32 %v583, %v715
    %v780 = vadd.f32 %v584, %v716
    %v781 = vadd.f32 %v585, %v717
    %v782 = vadd.f32 %v586, %v718
    %v783 = vadd.f32 %v587, %v719
    %v784 = vadd.f32 %v588, %v720
    %v785 = vadd.f32 %v589, %v721
    %v786 = vadd.f32 %v590, %v722
    %v787 = vadd.f32 %v591, %v723
    %v788 = vadd.f32 %v592, %v724
    %v789 = vadd.f32 %v593, %v725
    %v790 = vadd.f32 %v594, %v726
    %v791 = vadd.f32 %v595, %v727
    %v792 = vadd.f32 %v596, %v728
    %v793 = vadd.f32 %v597, %v729
    %v794 = vadd.f32 %v598, %v730
    %v795 = vld [vmem:[%s203] sm:$0xff]
    %v796 = vld [vmem:[%s203 + $0x8] sm:$0xff]
    %v797 = vld [vmem:[%s203 + $0x18] sm:$0xff]
    %v798 = vld [vmem:[%s203 + $0x20] sm:$0xff]
    %v799 = vld [vmem:[%s203 + $0x30] sm:$0xff]
    %v800 = vld [vmem:[%s203 + $0x38] sm:$0xff]
    %v801 = vld [vmem:[%s203 + $0x48] sm:$0xff]
    %v802 = vld [vmem:[%s203 + $0x50] sm:$0xff]
    %v803 = vld [vmem:[%s203 + $0x60] sm:$0xff]
    %v804 = vld [vmem:[%s203 + $0x68] sm:$0xff]
    %v805 = vld [vmem:[%s203 + $0x78] sm:$0xff]
    %v806 = vld [vmem:[%s203 + $0x80] sm:$0xff]
    %v807 = vld [vmem:[%s203 + $0x90] sm:$0xff]
    %v808 = vld [vmem:[%s203 + $0x98] sm:$0xff]
    %v809 = vld [vmem:[%s203 + $0xa8] sm:$0xff]
    %v810 = vld [vmem:[%s203 + $0xb0] sm:$0xff]
    %v811 = vld [vmem:[%s203 + $0xc0] sm:$0xff]
    %v812 = vld [vmem:[%s203 + $0xc8] sm:$0xff]
    %v813 = vld [vmem:[%s203 + $0xd8] sm:$0xff]
    %v814 = vld [vmem:[%s203 + $0xe0] sm:$0xff]
    %v815 = vld [vmem:[%s203 + $0xf0] sm:$0xff]
    %v816 = vld [vmem:[%s203 + $0xf8] sm:$0xff]
    %v817 = vld [vmem:[%s203 + $0x108] sm:$0xff]
    %v818 = vld [vmem:[%s203 + $0x110] sm:$0xff]
    %v819 = vld [vmem:[%s203 + $0x120] sm:$0xff]
    %v820 = vld [vmem:[%s203 + $0x128] sm:$0xff]
    %v821 = vld [vmem:[%s203 + $0x138] sm:$0xff]
    %v822 = vld [vmem:[%s203 + $0x140] sm:$0xff]
    %v823 = vld [vmem:[%s203 + $0x150] sm:$0xff]
    %v824 = vld [vmem:[%s203 + $0x158] sm:$0xff]
    %v825 = vld [vmem:[%s203 + $0x168] sm:$0xff]
    %v826 = vld [vmem:[%s203 + $0x170] sm:$0xff]
    %v827 = vld [vmem:[%s203 + $0x1b0] sm:$0xff]
    %v828 = vld [vmem:[%s203 + $0x1b8] sm:$0xff]
    %v829 = vld [vmem:[%s203 + $0x1c8] sm:$0xff]
    %v830 = vld [vmem:[%s203 + $0x1d0] sm:$0xff]
    %v831 = vld [vmem:[%s203 + $0x1e0] sm:$0xff]
    %v832 = vld [vmem:[%s203 + $0x1e8] sm:$0xff]
    %v833 = vld [vmem:[%s203 + $0x1f8] sm:$0xff]
    %v834 = vld [vmem:[%s203 + $0x200] sm:$0xff]
    %v835 = vld [vmem:[%s203 + $0x210] sm:$0xff]
    %v836 = vld [vmem:[%s203 + $0x218] sm:$0xff]
    %v837 = vld [vmem:[%s203 + $0x228] sm:$0xff]
    %v838 = vld [vmem:[%s203 + $0x230] sm:$0xff]
    %v839 = vld [vmem:[%s203 + $0x240] sm:$0xff]
    %v840 = vld [vmem:[%s203 + $0x248] sm:$0xff]
    %v841 = vld [vmem:[%s203 + $0x258] sm:$0xff]
    %v842 = vld [vmem:[%s203 + $0x260] sm:$0xff]
    %v843 = vld [vmem:[%s203 + $0x270] sm:$0xff]
    %v844 = vld [vmem:[%s203 + $0x278] sm:$0xff]
    %v845 = vld [vmem:[%s203 + $0x288] sm:$0xff]
    %v846 = vld [vmem:[%s203 + $0x290] sm:$0xff]
    %v847 = vld [vmem:[%s203 + $0x2a0] sm:$0xff]
    %v848 = vld [vmem:[%s203 + $0x2a8] sm:$0xff]
    %v849 = vld [vmem:[%s203 + $0x2b8] sm:$0xff]
    %v850 = vld [vmem:[%s203 + $0x2c0] sm:$0xff]
    %v851 = vld [vmem:[%s203 + $0x2d0] sm:$0xff]
    %v852 = vld [vmem:[%s203 + $0x2d8] sm:$0xff]
    %v853 = vld [vmem:[%s203 + $0x2e8] sm:$0xff]
    %v854 = vld [vmem:[%s203 + $0x2f0] sm:$0xff]
    %v855 = vld [vmem:[%s203 + $0x300] sm:$0xff]
    %v856 = vld [vmem:[%s203 + $0x308] sm:$0xff]
    %v857 = vld [vmem:[%s203 + $0x318] sm:$0xff]
    %v858 = vld [vmem:[%s203 + $0x320] sm:$0xff]
    %v859 = vlaneseq
    %v860 = vshrl.u32 %v859, 7
    %v861 = vsub.s32 3, %v860
    %v862 = vrot.slane %v269, %v861
    %v863 = vmul.f32 %v795, %v862
    %v864 = vmul.f32 %v796, %v862
    %v865 = vmul.f32 %v797, %v862
    %v866 = vmul.f32 %v798, %v862
    %v867 = vmul.f32 %v799, %v862
    %v868 = vmul.f32 %v800, %v862
    %v869 = vmul.f32 %v801, %v862
    %v870 = vmul.f32 %v802, %v862
    %v871 = vmul.f32 %v803, %v862
    %v872 = vmul.f32 %v804, %v862
    %v873 = vmul.f32 %v805, %v862
    %v874 = vmul.f32 %v806, %v862
    %v875 = vmul.f32 %v807, %v862
    %v876 = vmul.f32 %v808, %v862
    %v877 = vmul.f32 %v809, %v862
    %v878 = vmul.f32 %v810, %v862
    %v879 = vmul.f32 %v811, %v862
    %v880 = vmul.f32 %v812, %v862
    %v881 = vmul.f32 %v813, %v862
    %v882 = vmul.f32 %v814, %v862
    %v883 = vmul.f32 %v815, %v862
    %v884 = vmul.f32 %v816, %v862
    %v885 = vmul.f32 %v817, %v862
    %v886 = vmul.f32 %v818, %v862
    %v887 = vmul.f32 %v819, %v862
    %v888 = vmul.f32 %v820, %v862
    %v889 = vmul.f32 %v821, %v862
    %v890 = vmul.f32 %v822, %v862
    %v891 = vmul.f32 %v823, %v862
    %v892 = vmul.f32 %v824, %v862
    %v893 = vmul.f32 %v825, %v862
    %v894 = vmul.f32 %v826, %v862
    %v895 = vmul.f32 %v827, %v862
    %v896 = vmul.f32 %v828, %v862
    %v897 = vmul.f32 %v829, %v862
    %v898 = vmul.f32 %v830, %v862
    %v899 = vmul.f32 %v831, %v862
    %v900 = vmul.f32 %v832, %v862
    %v901 = vmul.f32 %v833, %v862
    %v902 = vmul.f32 %v834, %v862
    %v903 = vmul.f32 %v835, %v862
    %v904 = vmul.f32 %v836, %v862
    %v905 = vmul.f32 %v837, %v862
    %v906 = vmul.f32 %v838, %v862
    %v907 = vmul.f32 %v839, %v862
    %v908 = vmul.f32 %v840, %v862
    %v909 = vmul.f32 %v841, %v862
    %v910 = vmul.f32 %v842, %v862
    %v911 = vmul.f32 %v843, %v862
    %v912 = vmul.f32 %v844, %v862
    %v913 = vmul.f32 %v845, %v862
    %v914 = vmul.f32 %v846, %v862
    %v915 = vmul.f32 %v847, %v862
    %v916 = vmul.f32 %v848, %v862
    %v917 = vmul.f32 %v849, %v862
    %v918 = vmul.f32 %v850, %v862
    %v919 = vmul.f32 %v851, %v862
    %v920 = vmul.f32 %v852, %v862
    %v921 = vmul.f32 %v853, %v862
    %v922 = vmul.f32 %v854, %v862
    %v923 = vmul.f32 %v855, %v862
    %v924 = vmul.f32 %v856, %v862
    %v925 = vmul.f32 %v857, %v862
    %v926 = vmul.f32 %v858, %v862
    %v927 = vadd.f32 %v731, %v863
    %v928 = vadd.f32 %v732, %v864
    %v929 = vadd.f32 %v733, %v865
    %v930 = vadd.f32 %v734, %v866
    %v931 = vadd.f32 %v735, %v867
    %v932 = vadd.f32 %v736, %v868
    %v933 = vadd.f32 %v737, %v869
    %v934 = vadd.f32 %v738, %v870
    %v935 = vadd.f32 %v739, %v871
    %v936 = vadd.f32 %v740, %v872
    %v937 = vadd.f32 %v741, %v873
    %v938 = vadd.f32 %v742, %v874
    %v939 = vadd.f32 %v743, %v875
    %v940 = vadd.f32 %v744, %v876
    %v941 = vadd.f32 %v745, %v877
    %v942 = vadd.f32 %v746, %v878
    %v943 = vadd.f32 %v747, %v879
    %v944 = vadd.f32 %v748, %v880
    %v945 = vadd.f32 %v749, %v881
    %v946 = vadd.f32 %v750, %v882
    %v947 = vadd.f32 %v751, %v883
    %v948 = vadd.f32 %v752, %v884
    %v949 = vadd.f32 %v753, %v885
    %v950 = vadd.f32 %v754, %v886
    %v951 = vadd.f32 %v755, %v887
    %v952 = vadd.f32 %v756, %v888
    %v953 = vadd.f32 %v757, %v889
    %v954 = vadd.f32 %v758, %v890
    %v955 = vadd.f32 %v759, %v891
    %v956 = vadd.f32 %v760, %v892
    %v957 = vadd.f32 %v761, %v893
    %v958 = vadd.f32 %v762, %v894
    %v959 = vadd.f32 %v763, %v895
    %v960 = vadd.f32 %v764, %v896
    %v961 = vadd.f32 %v765, %v897
    %v962 = vadd.f32 %v766, %v898
    %v963 = vadd.f32 %v767, %v899
    %v964 = vadd.f32 %v768, %v900
    %v965 = vadd.f32 %v769, %v901
    %v966 = vadd.f32 %v770, %v902
    %v967 = vadd.f32 %v771, %v903
    %v968 = vadd.f32 %v772, %v904
    %v969 = vadd.f32 %v773, %v905
    %v970 = vadd.f32 %v774, %v906
    %v971 = vadd.f32 %v775, %v907
    %v972 = vadd.f32 %v776, %v908
    %v973 = vadd.f32 %v777, %v909
    %v974 = vadd.f32 %v778, %v910
    %v975 = vadd.f32 %v779, %v911
    %v976 = vadd.f32 %v780, %v912
    %v977 = vadd.f32 %v781, %v913
    %v978 = vadd.f32 %v782, %v914
    %v979 = vadd.f32 %v783, %v915
    %v980 = vadd.f32 %v784, %v916
    %v981 = vadd.f32 %v785, %v917
    %v982 = vadd.f32 %v786, %v918
    %v983 = vadd.f32 %v787, %v919
    %v984 = vadd.f32 %v788, %v920
    %v985 = vadd.f32 %v789, %v921
    %v986 = vadd.f32 %v790, %v922
    %v987 = vadd.f32 %v791, %v923
    %v988 = vadd.f32 %v792, %v924
    %v989 = vadd.f32 %v793, %v925
    %v990 = vadd.f32 %v794, %v926
    %v991 = vld [vmem:[%s203 + $0x1] sm:$0xff]
    %v992 = vld [vmem:[%s203 + $0x9] sm:$0xff]
    %v993 = vld [vmem:[%s203 + $0x19] sm:$0xff]
    %v994 = vld [vmem:[%s203 + $0x21] sm:$0xff]
    %v995 = vld [vmem:[%s203 + $0x31] sm:$0xff]
    %v996 = vld [vmem:[%s203 + $0x39] sm:$0xff]
    %v997 = vld [vmem:[%s203 + $0x49] sm:$0xff]
    %v998 = vld [vmem:[%s203 + $0x51] sm:$0xff]
    %v999 = vld [vmem:[%s203 + $0x61] sm:$0xff]
    %v1000 = vld [vmem:[%s203 + $0x69] sm:$0xff]
    %v1001 = vld [vmem:[%s203 + $0x79] sm:$0xff]
    %v1002 = vld [vmem:[%s203 + $0x81] sm:$0xff]
    %v1003 = vld [vmem:[%s203 + $0x91] sm:$0xff]
    %v1004 = vld [vmem:[%s203 + $0x99] sm:$0xff]
    %v1005 = vld [vmem:[%s203 + $0xa9] sm:$0xff]
    %v1006 = vld [vmem:[%s203 + $0xb1] sm:$0xff]
    %v1007 = vld [vmem:[%s203 + $0xc1] sm:$0xff]
    %v1008 = vld [vmem:[%s203 + $0xc9] sm:$0xff]
    %v1009 = vld [vmem:[%s203 + $0xd9] sm:$0xff]
    %v1010 = vld [vmem:[%s203 + $0xe1] sm:$0xff]
    %v1011 = vld [vmem:[%s203 + $0xf1] sm:$0xff]
    %v1012 = vld [vmem:[%s203 + $0xf9] sm:$0xff]
    %v1013 = vld [vmem:[%s203 + $0x109] sm:$0xff]
    %v1014 = vld [vmem:[%s203 + $0x111] sm:$0xff]
    %v1015 = vld [vmem:[%s203 + $0x121] sm:$0xff]
    %v1016 = vld [vmem:[%s203 + $0x129] sm:$0xff]
    %v1017 = vld [vmem:[%s203 + $0x139] sm:$0xff]
    %v1018 = vld [vmem:[%s203 + $0x141] sm:$0xff]
    %v1019 = vld [vmem:[%s203 + $0x151] sm:$0xff]
    %v1020 = vld [vmem:[%s203 + $0x159] sm:$0xff]
    %v1021 = vld [vmem:[%s203 + $0x169] sm:$0xff]
    %v1022 = vld [vmem:[%s203 + $0x171] sm:$0xff]
    %v1023 = vld [vmem:[%s203 + $0x1b1] sm:$0xff]
    %v1024 = vld [vmem:[%s203 + $0x1b9] sm:$0xff]
    %v1025 = vld [vmem:[%s203 + $0x1c9] sm:$0xff]
    %v1026 = vld [vmem:[%s203 + $0x1d1] sm:$0xff]
    %v1027 = vld [vmem:[%s203 + $0x1e1] sm:$0xff]
    %v1028 = vld [vmem:[%s203 + $0x1e9] sm:$0xff]
    %v1029 = vld [vmem:[%s203 + $0x1f9] sm:$0xff]
    %v1030 = vld [vmem:[%s203 + $0x201] sm:$0xff]
    %v1031 = vld [vmem:[%s203 + $0x211] sm:$0xff]
    %v1032 = vld [vmem:[%s203 + $0x219] sm:$0xff]
    %v1033 = vld [vmem:[%s203 + $0x229] sm:$0xff]
    %v1034 = vld [vmem:[%s203 + $0x231] sm:$0xff]
    %v1035 = vld [vmem:[%s203 + $0x241] sm:$0xff]
    %v1036 = vld [vmem:[%s203 + $0x249] sm:$0xff]
    %v1037 = vld [vmem:[%s203 + $0x259] sm:$0xff]
    %v1038 = vld [vmem:[%s203 + $0x261] sm:$0xff]
    %v1039 = vld [vmem:[%s203 + $0x271] sm:$0xff]
    %v1040 = vld [vmem:[%s203 + $0x279] sm:$0xff]
    %v1041 = vld [vmem:[%s203 + $0x289] sm:$0xff]
    %v1042 = vld [vmem:[%s203 + $0x291] sm:$0xff]
    %v1043 = vld [vmem:[%s203 + $0x2a1] sm:$0xff]
    %v1044 = vld [vmem:[%s203 + $0x2a9] sm:$0xff]
    %v1045 = vld [vmem:[%s203 + $0x2b9] sm:$0xff]
    %v1046 = vld [vmem:[%s203 + $0x2c1] sm:$0xff]
    %v1047 = vld [vmem:[%s203 + $0x2d1] sm:$0xff]
    %v1048 = vld [vmem:[%s203 + $0x2d9] sm:$0xff]
    %v1049 = vld [vmem:[%s203 + $0x2e9] sm:$0xff]
    %v1050 = vld [vmem:[%s203 + $0x2f1] sm:$0xff]
    %v1051 = vld [vmem:[%s203 + $0x301] sm:$0xff]
    %v1052 = vld [vmem:[%s203 + $0x309] sm:$0xff]
    %v1053 = vld [vmem:[%s203 + $0x319] sm:$0xff]
    %v1054 = vld [vmem:[%s203 + $0x321] sm:$0xff]
    %v1055 = vlaneseq
    %v1056 = vshrl.u32 %v1055, 7
    %v1057 = vsub.s32 4, %v1056
    %v1058 = vrot.slane %v269, %v1057
    %v1059 = vmul.f32 %v991, %v1058
    %v1060 = vmul.f32 %v992, %v1058
    %v1061 = vmul.f32 %v993, %v1058
    %v1062 = vmul.f32 %v994, %v1058
    %v1063 = vmul.f32 %v995, %v1058
    %v1064 = vmul.f32 %v996, %v1058
    %v1065 = vmul.f32 %v997, %v1058
    %v1066 = vmul.f32 %v998, %v1058
    %v1067 = vmul.f32 %v999, %v1058
    %v1068 = vmul.f32 %v1000, %v1058
    %v1069 = vmul.f32 %v1001, %v1058
    %v1070 = vmul.f32 %v1002, %v1058
    %v1071 = vmul.f32 %v1003, %v1058
    %v1072 = vmul.f32 %v1004, %v1058
    %v1073 = vmul.f32 %v1005, %v1058
    %v1074 = vmul.f32 %v1006, %v1058
    %v1075 = vmul.f32 %v1007, %v1058
    %v1076 = vmul.f32 %v1008, %v1058
    %v1077 = vmul.f32 %v1009, %v1058
    %v1078 = vmul.f32 %v1010, %v1058
    %v1079 = vmul.f32 %v1011, %v1058
    %v1080 = vmul.f32 %v1012, %v1058
    %v1081 = vmul.f32 %v1013, %v1058
    %v1082 = vmul.f32 %v1014, %v1058
    %v1083 = vmul.f32 %v1015, %v1058
    %v1084 = vmul.f32 %v1016, %v1058
    %v1085 = vmul.f32 %v1017, %v1058
    %v1086 = vmul.f32 %v1018, %v1058
    %v1087 = vmul.f32 %v1019, %v1058
    %v1088 = vmul.f32 %v1020, %v1058
    %v1089 = vmul.f32 %v1021, %v1058
    %v1090 = vmul.f32 %v1022, %v1058
    %v1091 = vmul.f32 %v1023, %v1058
    %v1092 = vmul.f32 %v1024, %v1058
    %v1093 = vmul.f32 %v1025, %v1058
    %v1094 = vmul.f32 %v1026, %v1058
    %v1095 = vmul.f32 %v1027, %v1058
    %v1096 = vmul.f32 %v1028, %v1058
    %v1097 = vmul.f32 %v1029, %v1058
    %v1098 = vmul.f32 %v1030, %v1058
    %v1099 = vmul.f32 %v1031, %v1058
    %v1100 = vmul.f32 %v1032, %v1058
    %v1101 = vmul.f32 %v1033, %v1058
    %v1102 = vmul.f32 %v1034, %v1058
    %v1103 = vmul.f32 %v1035, %v1058
    %v1104 = vmul.f32 %v1036, %v1058
    %v1105 = vmul.f32 %v1037, %v1058
    %v1106 = vmul.f32 %v1038, %v1058
    %v1107 = vmul.f32 %v1039, %v1058
    %v1108 = vmul.f32 %v1040, %v1058
    %v1109 = vmul.f32 %v1041, %v1058
    %v1110 = vmul.f32 %v1042, %v1058
    %v1111 = vmul.f32 %v1043, %v1058
    %v1112 = vmul.f32 %v1044, %v1058
    %v1113 = vmul.f32 %v1045, %v1058
    %v1114 = vmul.f32 %v1046, %v1058
    %v1115 = vmul.f32 %v1047, %v1058
    %v1116 = vmul.f32 %v1048, %v1058
    %v1117 = vmul.f32 %v1049, %v1058
    %v1118 = vmul.f32 %v1050, %v1058
    %v1119 = vmul.f32 %v1051, %v1058
    %v1120 = vmul.f32 %v1052, %v1058
    %v1121 = vmul.f32 %v1053, %v1058
    %v1122 = vmul.f32 %v1054, %v1058
    %v1123 = vadd.f32 %v927, %v1059
    %v1124 = vadd.f32 %v928, %v1060
    %v1125 = vadd.f32 %v929, %v1061
    %v1126 = vadd.f32 %v930, %v1062
    %v1127 = vadd.f32 %v931, %v1063
    %v1128 = vadd.f32 %v932, %v1064
    %v1129 = vadd.f32 %v933, %v1065
    %v1130 = vadd.f32 %v934, %v1066
    %v1131 = vadd.f32 %v935, %v1067
    %v1132 = vadd.f32 %v936, %v1068
    %v1133 = vadd.f32 %v937, %v1069
    %v1134 = vadd.f32 %v938, %v1070
    %v1135 = vadd.f32 %v939, %v1071
    %v1136 = vadd.f32 %v940, %v1072
    %v1137 = vadd.f32 %v941, %v1073
    %v1138 = vadd.f32 %v942, %v1074
    %v1139 = vadd.f32 %v943, %v1075
    %v1140 = vadd.f32 %v944, %v1076
    %v1141 = vadd.f32 %v945, %v1077
    %v1142 = vadd.f32 %v946, %v1078
    %v1143 = vadd.f32 %v947, %v1079
    %v1144 = vadd.f32 %v948, %v1080
    %v1145 = vadd.f32 %v949, %v1081
    %v1146 = vadd.f32 %v950, %v1082
    %v1147 = vadd.f32 %v951, %v1083
    %v1148 = vadd.f32 %v952, %v1084
    %v1149 = vadd.f32 %v953, %v1085
    %v1150 = vadd.f32 %v954, %v1086
    %v1151 = vadd.f32 %v955, %v1087
    %v1152 = vadd.f32 %v956, %v1088
    %v1153 = vadd.f32 %v957, %v1089
    %v1154 = vadd.f32 %v958, %v1090
    %v1155 = vadd.f32 %v959, %v1091
    %v1156 = vadd.f32 %v960, %v1092
    %v1157 = vadd.f32 %v961, %v1093
    %v1158 = vadd.f32 %v962, %v1094
    %v1159 = vadd.f32 %v963, %v1095
    %v1160 = vadd.f32 %v964, %v1096
    %v1161 = vadd.f32 %v965, %v1097
    %v1162 = vadd.f32 %v966, %v1098
    %v1163 = vadd.f32 %v967, %v1099
    %v1164 = vadd.f32 %v968, %v1100
    %v1165 = vadd.f32 %v969, %v1101
    %v1166 = vadd.f32 %v970, %v1102
    %v1167 = vadd.f32 %v971, %v1103
    %v1168 = vadd.f32 %v972, %v1104
    %v1169 = vadd.f32 %v973, %v1105
    %v1170 = vadd.f32 %v974, %v1106
    %v1171 = vadd.f32 %v975, %v1107
    %v1172 = vadd.f32 %v976, %v1108
    %v1173 = vadd.f32 %v977, %v1109
    %v1174 = vadd.f32 %v978, %v1110
    %v1175 = vadd.f32 %v979, %v1111
    %v1176 = vadd.f32 %v980, %v1112
    %v1177 = vadd.f32 %v981, %v1113
    %v1178 = vadd.f32 %v982, %v1114
    %v1179 = vadd.f32 %v983, %v1115
    %v1180 = vadd.f32 %v984, %v1116
    %v1181 = vadd.f32 %v985, %v1117
    %v1182 = vadd.f32 %v986, %v1118
    %v1183 = vadd.f32 %v987, %v1119
    %v1184 = vadd.f32 %v988, %v1120
    %v1185 = vadd.f32 %v989, %v1121
    %v1186 = vadd.f32 %v990, %v1122
    %v1187 = vld [vmem:[%s203 + $0x2] sm:$0xff]
    %v1188 = vld [vmem:[%s203 + $0xa] sm:$0xff]
    %v1189 = vld [vmem:[%s203 + $0x1a] sm:$0xff]
    %v1190 = vld [vmem:[%s203 + $0x22] sm:$0xff]
    %v1191 = vld [vmem:[%s203 + $0x32] sm:$0xff]
    %v1192 = vld [vmem:[%s203 + $0x3a] sm:$0xff]
    %v1193 = vld [vmem:[%s203 + $0x4a] sm:$0xff]
    %v1194 = vld [vmem:[%s203 + $0x52] sm:$0xff]
    %v1195 = vld [vmem:[%s203 + $0x62] sm:$0xff]
    %v1196 = vld [vmem:[%s203 + $0x6a] sm:$0xff]
    %v1197 = vld [vmem:[%s203 + $0x7a] sm:$0xff]
    %v1198 = vld [vmem:[%s203 + $0x82] sm:$0xff]
    %v1199 = vld [vmem:[%s203 + $0x92] sm:$0xff]
    %v1200 = vld [vmem:[%s203 + $0x9a] sm:$0xff]
    %v1201 = vld [vmem:[%s203 + $0xaa] sm:$0xff]
    %v1202 = vld [vmem:[%s203 + $0xb2] sm:$0xff]
    %v1203 = vld [vmem:[%s203 + $0xc2] sm:$0xff]
    %v1204 = vld [vmem:[%s203 + $0xca] sm:$0xff]
    %v1205 = vld [vmem:[%s203 + $0xda] sm:$0xff]
    %v1206 = vld [vmem:[%s203 + $0xe2] sm:$0xff]
    %v1207 = vld [vmem:[%s203 + $0xf2] sm:$0xff]
    %v1208 = vld [vmem:[%s203 + $0xfa] sm:$0xff]
    %v1209 = vld [vmem:[%s203 + $0x10a] sm:$0xff]
    %v1210 = vld [vmem:[%s203 + $0x112] sm:$0xff]
    %v1211 = vld [vmem:[%s203 + $0x122] sm:$0xff]
    %v1212 = vld [vmem:[%s203 + $0x12a] sm:$0xff]
    %v1213 = vld [vmem:[%s203 + $0x13a] sm:$0xff]
    %v1214 = vld [vmem:[%s203 + $0x142] sm:$0xff]
    %v1215 = vld [vmem:[%s203 + $0x152] sm:$0xff]
    %v1216 = vld [vmem:[%s203 + $0x15a] sm:$0xff]
    %v1217 = vld [vmem:[%s203 + $0x16a] sm:$0xff]
    %v1218 = vld [vmem:[%s203 + $0x172] sm:$0xff]
    %v1219 = vld [vmem:[%s203 + $0x1b2] sm:$0xff]
    %v1220 = vld [vmem:[%s203 + $0x1ba] sm:$0xff]
    %v1221 = vld [vmem:[%s203 + $0x1ca] sm:$0xff]
    %v1222 = vld [vmem:[%s203 + $0x1d2] sm:$0xff]
    %v1223 = vld [vmem:[%s203 + $0x1e2] sm:$0xff]
    %v1224 = vld [vmem:[%s203 + $0x1ea] sm:$0xff]
    %v1225 = vld [vmem:[%s203 + $0x1fa] sm:$0xff]
    %v1226 = vld [vmem:[%s203 + $0x202] sm:$0xff]
    %v1227 = vld [vmem:[%s203 + $0x212] sm:$0xff]
    %v1228 = vld [vmem:[%s203 + $0x21a] sm:$0xff]
    %v1229 = vld [vmem:[%s203 + $0x22a] sm:$0xff]
    %v1230 = vld [vmem:[%s203 + $0x232] sm:$0xff]
    %v1231 = vld [vmem:[%s203 + $0x242] sm:$0xff]
    %v1232 = vld [vmem:[%s203 + $0x24a] sm:$0xff]
    %v1233 = vld [vmem:[%s203 + $0x25a] sm:$0xff]
    %v1234 = vld [vmem:[%s203 + $0x262] sm:$0xff]
    %v1235 = vld [vmem:[%s203 + $0x272] sm:$0xff]
    %v1236 = vld [vmem:[%s203 + $0x27a] sm:$0xff]
    %v1237 = vld [vmem:[%s203 + $0x28a] sm:$0xff]
    %v1238 = vld [vmem:[%s203 + $0x292] sm:$0xff]
    %v1239 = vld [vmem:[%s203 + $0x2a2] sm:$0xff]
    %v1240 = vld [vmem:[%s203 + $0x2aa] sm:$0xff]
    %v1241 = vld [vmem:[%s203 + $0x2ba] sm:$0xff]
    %v1242 = vld [vmem:[%s203 + $0x2c2] sm:$0xff]
    %v1243 = vld [vmem:[%s203 + $0x2d2] sm:$0xff]
    %v1244 = vld [vmem:[%s203 + $0x2da] sm:$0xff]
    %v1245 = vld [vmem:[%s203 + $0x2ea] sm:$0xff]
    %v1246 = vld [vmem:[%s203 + $0x2f2] sm:$0xff]
    %v1247 = vld [vmem:[%s203 + $0x302] sm:$0xff]
    %v1248 = vld [vmem:[%s203 + $0x30a] sm:$0xff]
    %v1249 = vld [vmem:[%s203 + $0x31a] sm:$0xff]
    %v1250 = vld [vmem:[%s203 + $0x322] sm:$0xff]
    %v1251 = vlaneseq
    %v1252 = vshrl.u32 %v1251, 7
    %v1253 = vsub.s32 5, %v1252
    %v1254 = vrot.slane %v269, %v1253
    %v1255 = vmul.f32 %v1187, %v1254
    %v1256 = vmul.f32 %v1188, %v1254
    %v1257 = vmul.f32 %v1189, %v1254
    %v1258 = vmul.f32 %v1190, %v1254
    %v1259 = vmul.f32 %v1191, %v1254
    %v1260 = vmul.f32 %v1192, %v1254
    %v1261 = vmul.f32 %v1193, %v1254
    %v1262 = vmul.f32 %v1194, %v1254
    %v1263 = vmul.f32 %v1195, %v1254
    %v1264 = vmul.f32 %v1196, %v1254
    %v1265 = vmul.f32 %v1197, %v1254
    %v1266 = vmul.f32 %v1198, %v1254
    %v1267 = vmul.f32 %v1199, %v1254
    %v1268 = vmul.f32 %v1200, %v1254
    %v1269 = vmul.f32 %v1201, %v1254
    %v1270 = vmul.f32 %v1202, %v1254
    %v1271 = vmul.f32 %v1203, %v1254
    %v1272 = vmul.f32 %v1204, %v1254
    %v1273 = vmul.f32 %v1205, %v1254
    %v1274 = vmul.f32 %v1206, %v1254
    %v1275 = vmul.f32 %v1207, %v1254
    %v1276 = vmul.f32 %v1208, %v1254
    %v1277 = vmul.f32 %v1209, %v1254
    %v1278 = vmul.f32 %v1210, %v1254
    %v1279 = vmul.f32 %v1211, %v1254
    %v1280 = vmul.f32 %v1212, %v1254
    %v1281 = vmul.f32 %v1213, %v1254
    %v1282 = vmul.f32 %v1214, %v1254
    %v1283 = vmul.f32 %v1215, %v1254
    %v1284 = vmul.f32 %v1216, %v1254
    %v1285 = vmul.f32 %v1217, %v1254
    %v1286 = vmul.f32 %v1218, %v1254
    %v1287 = vmul.f32 %v1219, %v1254
    %v1288 = vmul.f32 %v1220, %v1254
    %v1289 = vmul.f32 %v1221, %v1254
    %v1290 = vmul.f32 %v1222, %v1254
    %v1291 = vmul.f32 %v1223, %v1254
    %v1292 = vmul.f32 %v1224, %v1254
    %v1293 = vmul.f32 %v1225, %v1254
    %v1294 = vmul.f32 %v1226, %v1254
    %v1295 = vmul.f32 %v1227, %v1254
    %v1296 = vmul.f32 %v1228, %v1254
    %v1297 = vmul.f32 %v1229, %v1254
    %v1298 = vmul.f32 %v1230, %v1254
    %v1299 = vmul.f32 %v1231, %v1254
    %v1300 = vmul.f32 %v1232, %v1254
    %v1301 = vmul.f32 %v1233, %v1254
    %v1302 = vmul.f32 %v1234, %v1254
    %v1303 = vmul.f32 %v1235, %v1254
    %v1304 = vmul.f32 %v1236, %v1254
    %v1305 = vmul.f32 %v1237, %v1254
    %v1306 = vmul.f32 %v1238, %v1254
    %v1307 = vmul.f32 %v1239, %v1254
    %v1308 = vmul.f32 %v1240, %v1254
    %v1309 = vmul.f32 %v1241, %v1254
    %v1310 = vmul.f32 %v1242, %v1254
    %v1311 = vmul.f32 %v1243, %v1254
    %v1312 = vmul.f32 %v1244, %v1254
    %v1313 = vmul.f32 %v1245, %v1254
    %v1314 = vmul.f32 %v1246, %v1254
    %v1315 = vmul.f32 %v1247, %v1254
    %v1316 = vmul.f32 %v1248, %v1254
    %v1317 = vmul.f32 %v1249, %v1254
    %v1318 = vmul.f32 %v1250, %v1254
    %v1319 = vadd.f32 %v1123, %v1255
    %v1320 = vadd.f32 %v1124, %v1256
    %v1321 = vadd.f32 %v1125, %v1257
    %v1322 = vadd.f32 %v1126, %v1258
    %v1323 = vadd.f32 %v1127, %v1259
    %v1324 = vadd.f32 %v1128, %v1260
    %v1325 = vadd.f32 %v1129, %v1261
    %v1326 = vadd.f32 %v1130, %v1262
    %v1327 = vadd.f32 %v1131, %v1263
    %v1328 = vadd.f32 %v1132, %v1264
    %v1329 = vadd.f32 %v1133, %v1265
    %v1330 = vadd.f32 %v1134, %v1266
    %v1331 = vadd.f32 %v1135, %v1267
    %v1332 = vadd.f32 %v1136, %v1268
    %v1333 = vadd.f32 %v1137, %v1269
    %v1334 = vadd.f32 %v1138, %v1270
    %v1335 = vadd.f32 %v1139, %v1271
    %v1336 = vadd.f32 %v1140, %v1272
    %v1337 = vadd.f32 %v1141, %v1273
    %v1338 = vadd.f32 %v1142, %v1274
    %v1339 = vadd.f32 %v1143, %v1275
    %v1340 = vadd.f32 %v1144, %v1276
    %v1341 = vadd.f32 %v1145, %v1277
    %v1342 = vadd.f32 %v1146, %v1278
    %v1343 = vadd.f32 %v1147, %v1279
    %v1344 = vadd.f32 %v1148, %v1280
    %v1345 = vadd.f32 %v1149, %v1281
    %v1346 = vadd.f32 %v1150, %v1282
    %v1347 = vadd.f32 %v1151, %v1283
    %v1348 = vadd.f32 %v1152, %v1284
    %v1349 = vadd.f32 %v1153, %v1285
    %v1350 = vadd.f32 %v1154, %v1286
    %v1351 = vadd.f32 %v1155, %v1287
    %v1352 = vadd.f32 %v1156, %v1288
    %v1353 = vadd.f32 %v1157, %v1289
    %v1354 = vadd.f32 %v1158, %v1290
    %v1355 = vadd.f32 %v1159, %v1291
    %v1356 = vadd.f32 %v1160, %v1292
    %v1357 = vadd.f32 %v1161, %v1293
    %v1358 = vadd.f32 %v1162, %v1294
    %v1359 = vadd.f32 %v1163, %v1295
    %v1360 = vadd.f32 %v1164, %v1296
    %v1361 = vadd.f32 %v1165, %v1297
    %v1362 = vadd.f32 %v1166, %v1298
    %v1363 = vadd.f32 %v1167, %v1299
    %v1364 = vadd.f32 %v1168, %v1300
    %v1365 = vadd.f32 %v1169, %v1301
    %v1366 = vadd.f32 %v1170, %v1302
    %v1367 = vadd.f32 %v1171, %v1303
    %v1368 = vadd.f32 %v1172, %v1304
    %v1369 = vadd.f32 %v1173, %v1305
    %v1370 = vadd.f32 %v1174, %v1306
    %v1371 = vadd.f32 %v1175, %v1307
    %v1372 = vadd.f32 %v1176, %v1308
    %v1373 = vadd.f32 %v1177, %v1309
    %v1374 = vadd.f32 %v1178, %v1310
    %v1375 = vadd.f32 %v1179, %v1311
    %v1376 = vadd.f32 %v1180, %v1312
    %v1377 = vadd.f32 %v1181, %v1313
    %v1378 = vadd.f32 %v1182, %v1314
    %v1379 = vadd.f32 %v1183, %v1315
    %v1380 = vadd.f32 %v1184, %v1316
    %v1381 = vadd.f32 %v1185, %v1317
    %v1382 = vadd.f32 %v1186, %v1318
    %s1383 = scalar_lea.vmem [#allocation2], 48
    %v1384 = vld [vmem:[%s1383] sm:$0xff]
    %v1385 = vld [vmem:[%s1383 + $0x8] sm:$0xff]
    %v1386 = vld [vmem:[%s1383 + $0x18] sm:$0xff]
    %v1387 = vld [vmem:[%s1383 + $0x20] sm:$0xff]
    %v1388 = vld [vmem:[%s1383 + $0x30] sm:$0xff]
    %v1389 = vld [vmem:[%s1383 + $0x38] sm:$0xff]
    %v1390 = vld [vmem:[%s1383 + $0x48] sm:$0xff]
    %v1391 = vld [vmem:[%s1383 + $0x50] sm:$0xff]
    %v1392 = vld [vmem:[%s1383 + $0x60] sm:$0xff]
    %v1393 = vld [vmem:[%s1383 + $0x68] sm:$0xff]
    %v1394 = vld [vmem:[%s1383 + $0x78] sm:$0xff]
    %v1395 = vld [vmem:[%s1383 + $0x80] sm:$0xff]
    %v1396 = vld [vmem:[%s1383 + $0x90] sm:$0xff]
    %v1397 = vld [vmem:[%s1383 + $0x98] sm:$0xff]
    %v1398 = vld [vmem:[%s1383 + $0xa8] sm:$0xff]
    %v1399 = vld [vmem:[%s1383 + $0xb0] sm:$0xff]
    %v1400 = vld [vmem:[%s1383 + $0xc0] sm:$0xff]
    %v1401 = vld [vmem:[%s1383 + $0xc8] sm:$0xff]
    %v1402 = vld [vmem:[%s1383 + $0xd8] sm:$0xff]
    %v1403 = vld [vmem:[%s1383 + $0xe0] sm:$0xff]
    %v1404 = vld [vmem:[%s1383 + $0xf0] sm:$0xff]
    %v1405 = vld [vmem:[%s1383 + $0xf8] sm:$0xff]
    %v1406 = vld [vmem:[%s1383 + $0x108] sm:$0xff]
    %v1407 = vld [vmem:[%s1383 + $0x110] sm:$0xff]
    %v1408 = vld [vmem:[%s1383 + $0x120] sm:$0xff]
    %v1409 = vld [vmem:[%s1383 + $0x128] sm:$0xff]
    %v1410 = vld [vmem:[%s1383 + $0x138] sm:$0xff]
    %v1411 = vld [vmem:[%s1383 + $0x140] sm:$0xff]
    %v1412 = vld [vmem:[%s1383 + $0x150] sm:$0xff]
    %v1413 = vld [vmem:[%s1383 + $0x158] sm:$0xff]
    %v1414 = vld [vmem:[%s1383 + $0x168] sm:$0xff]
    %v1415 = vld [vmem:[%s1383 + $0x170] sm:$0xff]
    %v1416 = vld [vmem:[%s1383 + $0x1b0] sm:$0xff]
    %v1417 = vld [vmem:[%s1383 + $0x1b8] sm:$0xff]
    %v1418 = vld [vmem:[%s1383 + $0x1c8] sm:$0xff]
    %v1419 = vld [vmem:[%s1383 + $0x1d0] sm:$0xff]
    %v1420 = vld [vmem:[%s1383 + $0x1e0] sm:$0xff]
    %v1421 = vld [vmem:[%s1383 + $0x1e8] sm:$0xff]
    %v1422 = vld [vmem:[%s1383 + $0x1f8] sm:$0xff]
    %v1423 = vld [vmem:[%s1383 + $0x200] sm:$0xff]
    %v1424 = vld [vmem:[%s1383 + $0x210] sm:$0xff]
    %v1425 = vld [vmem:[%s1383 + $0x218] sm:$0xff]
    %v1426 = vld [vmem:[%s1383 + $0x228] sm:$0xff]
    %v1427 = vld [vmem:[%s1383 + $0x230] sm:$0xff]
    %v1428 = vld [vmem:[%s1383 + $0x240] sm:$0xff]
    %v1429 = vld [vmem:[%s1383 + $0x248] sm:$0xff]
    %v1430 = vld [vmem:[%s1383 + $0x258] sm:$0xff]
    %v1431 = vld [vmem:[%s1383 + $0x260] sm:$0xff]
    %v1432 = vld [vmem:[%s1383 + $0x270] sm:$0xff]
    %v1433 = vld [vmem:[%s1383 + $0x278] sm:$0xff]
    %v1434 = vld [vmem:[%s1383 + $0x288] sm:$0xff]
    %v1435 = vld [vmem:[%s1383 + $0x290] sm:$0xff]
    %v1436 = vld [vmem:[%s1383 + $0x2a0] sm:$0xff]
    %v1437 = vld [vmem:[%s1383 + $0x2a8] sm:$0xff]
    %v1438 = vld [vmem:[%s1383 + $0x2b8] sm:$0xff]
    %v1439 = vld [vmem:[%s1383 + $0x2c0] sm:$0xff]
    %v1440 = vld [vmem:[%s1383 + $0x2d0] sm:$0xff]
    %v1441 = vld [vmem:[%s1383 + $0x2d8] sm:$0xff]
    %v1442 = vld [vmem:[%s1383 + $0x2e8] sm:$0xff]
    %v1443 = vld [vmem:[%s1383 + $0x2f0] sm:$0xff]
    %v1444 = vld [vmem:[%s1383 + $0x300] sm:$0xff]
    %v1445 = vld [vmem:[%s1383 + $0x308] sm:$0xff]
    %v1446 = vld [vmem:[%s1383 + $0x318] sm:$0xff]
    %v1447 = vld [vmem:[%s1383 + $0x320] sm:$0xff]
    %v1448 = vlaneseq
    %v1449 = vshrl.u32 %v1448, 7
    %v1450 = vsub.s32 6, %v1449
    %v1451 = vrot.slane %v269, %v1450
    %v1452 = vmul.f32 %v1384, %v1451
    %v1453 = vmul.f32 %v1385, %v1451
    %v1454 = vmul.f32 %v1386, %v1451
    %v1455 = vmul.f32 %v1387, %v1451
    %v1456 = vmul.f32 %v1388, %v1451
    %v1457 = vmul.f32 %v1389, %v1451
    %v1458 = vmul.f32 %v1390, %v1451
    %v1459 = vmul.f32 %v1391, %v1451
    %v1460 = vmul.f32 %v1392, %v1451
    %v1461 = vmul.f32 %v1393, %v1451
    %v1462 = vmul.f32 %v1394, %v1451
    %v1463 = vmul.f32 %v1395, %v1451
    %v1464 = vmul.f32 %v1396, %v1451
    %v1465 = vmul.f32 %v1397, %v1451
    %v1466 = vmul.f32 %v1398, %v1451
    %v1467 = vmul.f32 %v1399, %v1451
    %v1468 = vmul.f32 %v1400, %v1451
    %v1469 = vmul.f32 %v1401, %v1451
    %v1470 = vmul.f32 %v1402, %v1451
    %v1471 = vmul.f32 %v1403, %v1451
    %v1472 = vmul.f32 %v1404, %v1451
    %v1473 = vmul.f32 %v1405, %v1451
    %v1474 = vmul.f32 %v1406, %v1451
    %v1475 = vmul.f32 %v1407, %v1451
    %v1476 = vmul.f32 %v1408, %v1451
    %v1477 = vmul.f32 %v1409, %v1451
    %v1478 = vmul.f32 %v1410, %v1451
    %v1479 = vmul.f32 %v1411, %v1451
    %v1480 = vmul.f32 %v1412, %v1451
    %v1481 = vmul.f32 %v1413, %v1451
    %v1482 = vmul.f32 %v1414, %v1451
    %v1483 = vmul.f32 %v1415, %v1451
    %v1484 = vmul.f32 %v1416, %v1451
    %v1485 = vmul.f32 %v1417, %v1451
    %v1486 = vmul.f32 %v1418, %v1451
    %v1487 = vmul.f32 %v1419, %v1451
    %v1488 = vmul.f32 %v1420, %v1451
    %v1489 = vmul.f32 %v1421, %v1451
    %v1490 = vmul.f32 %v1422, %v1451
    %v1491 = vmul.f32 %v1423, %v1451
    %v1492 = vmul.f32 %v1424, %v1451
    %v1493 = vmul.f32 %v1425, %v1451
    %v1494 = vmul.f32 %v1426, %v1451
    %v1495 = vmul.f32 %v1427, %v1451
    %v1496 = vmul.f32 %v1428, %v1451
    %v1497 = vmul.f32 %v1429, %v1451
    %v1498 = vmul.f32 %v1430, %v1451
    %v1499 = vmul.f32 %v1431, %v1451
    %v1500 = vmul.f32 %v1432, %v1451
    %v1501 = vmul.f32 %v1433, %v1451
    %v1502 = vmul.f32 %v1434, %v1451
    %v1503 = vmul.f32 %v1435, %v1451
    %v1504 = vmul.f32 %v1436, %v1451
    %v1505 = vmul.f32 %v1437, %v1451
    %v1506 = vmul.f32 %v1438, %v1451
    %v1507 = vmul.f32 %v1439, %v1451
    %v1508 = vmul.f32 %v1440, %v1451
    %v1509 = vmul.f32 %v1441, %v1451
    %v1510 = vmul.f32 %v1442, %v1451
    %v1511 = vmul.f32 %v1443, %v1451
    %v1512 = vmul.f32 %v1444, %v1451
    %v1513 = vmul.f32 %v1445, %v1451
    %v1514 = vmul.f32 %v1446, %v1451
    %v1515 = vmul.f32 %v1447, %v1451
    %v1516 = vadd.f32 %v1319, %v1452
    %v1517 = vadd.f32 %v1320, %v1453
    %v1518 = vadd.f32 %v1321, %v1454
    %v1519 = vadd.f32 %v1322, %v1455
    %v1520 = vadd.f32 %v1323, %v1456
    %v1521 = vadd.f32 %v1324, %v1457
    %v1522 = vadd.f32 %v1325, %v1458
    %v1523 = vadd.f32 %v1326, %v1459
    %v1524 = vadd.f32 %v1327, %v1460
    %v1525 = vadd.f32 %v1328, %v1461
    %v1526 = vadd.f32 %v1329, %v1462
    %v1527 = vadd.f32 %v1330, %v1463
    %v1528 = vadd.f32 %v1331, %v1464
    %v1529 = vadd.f32 %v1332, %v1465
    %v1530 = vadd.f32 %v1333, %v1466
    %v1531 = vadd.f32 %v1334, %v1467
    %v1532 = vadd.f32 %v1335, %v1468
    %v1533 = vadd.f32 %v1336, %v1469
    %v1534 = vadd.f32 %v1337, %v1470
    %v1535 = vadd.f32 %v1338, %v1471
    %v1536 = vadd.f32 %v1339, %v1472
    %v1537 = vadd.f32 %v1340, %v1473
    %v1538 = vadd.f32 %v1341, %v1474
    %v1539 = vadd.f32 %v1342, %v1475
    %v1540 = vadd.f32 %v1343, %v1476
    %v1541 = vadd.f32 %v1344, %v1477
    %v1542 = vadd.f32 %v1345, %v1478
    %v1543 = vadd.f32 %v1346, %v1479
    %v1544 = vadd.f32 %v1347, %v1480
    %v1545 = vadd.f32 %v1348, %v1481
    %v1546 = vadd.f32 %v1349, %v1482
    %v1547 = vadd.f32 %v1350, %v1483
    %v1548 = vadd.f32 %v1351, %v1484
    %v1549 = vadd.f32 %v1352, %v1485
    %v1550 = vadd.f32 %v1353, %v1486
    %v1551 = vadd.f32 %v1354, %v1487
    %v1552 = vadd.f32 %v1355, %v1488
    %v1553 = vadd.f32 %v1356, %v1489
    %v1554 = vadd.f32 %v1357, %v1490
    %v1555 = vadd.f32 %v1358, %v1491
    %v1556 = vadd.f32 %v1359, %v1492
    %v1557 = vadd.f32 %v1360, %v1493
    %v1558 = vadd.f32 %v1361, %v1494
    %v1559 = vadd.f32 %v1362, %v1495
    %v1560 = vadd.f32 %v1363, %v1496
    %v1561 = vadd.f32 %v1364, %v1497
    %v1562 = vadd.f32 %v1365, %v1498
    %v1563 = vadd.f32 %v1366, %v1499
    %v1564 = vadd.f32 %v1367, %v1500
    %v1565 = vadd.f32 %v1368, %v1501
    %v1566 = vadd.f32 %v1369, %v1502
    %v1567 = vadd.f32 %v1370, %v1503
    %v1568 = vadd.f32 %v1371, %v1504
    %v1569 = vadd.f32 %v1372, %v1505
    %v1570 = vadd.f32 %v1373, %v1506
    %v1571 = vadd.f32 %v1374, %v1507
    %v1572 = vadd.f32 %v1375, %v1508
    %v1573 = vadd.f32 %v1376, %v1509
    %v1574 = vadd.f32 %v1377, %v1510
    %v1575 = vadd.f32 %v1378, %v1511
    %v1576 = vadd.f32 %v1379, %v1512
    %v1577 = vadd.f32 %v1380, %v1513
    %v1578 = vadd.f32 %v1381, %v1514
    %v1579 = vadd.f32 %v1382, %v1515
    %v1580 = vld [vmem:[%s1383 + $0x1] sm:$0xff]
    %v1581 = vld [vmem:[%s1383 + $0x9] sm:$0xff]
    %v1582 = vld [vmem:[%s1383 + $0x19] sm:$0xff]
    %v1583 = vld [vmem:[%s1383 + $0x21] sm:$0xff]
    %v1584 = vld [vmem:[%s1383 + $0x31] sm:$0xff]
    %v1585 = vld [vmem:[%s1383 + $0x39] sm:$0xff]
    %v1586 = vld [vmem:[%s1383 + $0x49] sm:$0xff]
    %v1587 = vld [vmem:[%s1383 + $0x51] sm:$0xff]
    %v1588 = vld [vmem:[%s1383 + $0x61] sm:$0xff]
    %v1589 = vld [vmem:[%s1383 + $0x69] sm:$0xff]
    %v1590 = vld [vmem:[%s1383 + $0x79] sm:$0xff]
    %v1591 = vld [vmem:[%s1383 + $0x81] sm:$0xff]
    %v1592 = vld [vmem:[%s1383 + $0x91] sm:$0xff]
    %v1593 = vld [vmem:[%s1383 + $0x99] sm:$0xff]
    %v1594 = vld [vmem:[%s1383 + $0xa9] sm:$0xff]
    %v1595 = vld [vmem:[%s1383 + $0xb1] sm:$0xff]
    %v1596 = vld [vmem:[%s1383 + $0xc1] sm:$0xff]
    %v1597 = vld [vmem:[%s1383 + $0xc9] sm:$0xff]
    %v1598 = vld [vmem:[%s1383 + $0xd9] sm:$0xff]
    %v1599 = vld [vmem:[%s1383 + $0xe1] sm:$0xff]
    %v1600 = vld [vmem:[%s1383 + $0xf1] sm:$0xff]
    %v1601 = vld [vmem:[%s1383 + $0xf9] sm:$0xff]
    %v1602 = vld [vmem:[%s1383 + $0x109] sm:$0xff]
    %v1603 = vld [vmem:[%s1383 + $0x111] sm:$0xff]
    %v1604 = vld [vmem:[%s1383 + $0x121] sm:$0xff]
    %v1605 = vld [vmem:[%s1383 + $0x129] sm:$0xff]
    %v1606 = vld [vmem:[%s1383 + $0x139] sm:$0xff]
    %v1607 = vld [vmem:[%s1383 + $0x141] sm:$0xff]
    %v1608 = vld [vmem:[%s1383 + $0x151] sm:$0xff]
    %v1609 = vld [vmem:[%s1383 + $0x159] sm:$0xff]
    %v1610 = vld [vmem:[%s1383 + $0x169] sm:$0xff]
    %v1611 = vld [vmem:[%s1383 + $0x171] sm:$0xff]
    %v1612 = vld [vmem:[%s1383 + $0x1b1] sm:$0xff]
    %v1613 = vld [vmem:[%s1383 + $0x1b9] sm:$0xff]
    %v1614 = vld [vmem:[%s1383 + $0x1c9] sm:$0xff]
    %v1615 = vld [vmem:[%s1383 + $0x1d1] sm:$0xff]
    %v1616 = vld [vmem:[%s1383 + $0x1e1] sm:$0xff]
    %v1617 = vld [vmem:[%s1383 + $0x1e9] sm:$0xff]
    %v1618 = vld [vmem:[%s1383 + $0x1f9] sm:$0xff]
    %v1619 = vld [vmem:[%s1383 + $0x201] sm:$0xff]
    %v1620 = vld [vmem:[%s1383 + $0x211] sm:$0xff]
    %v1621 = vld [vmem:[%s1383 + $0x219] sm:$0xff]
    %v1622 = vld [vmem:[%s1383 + $0x229] sm:$0xff]
    %v1623 = vld [vmem:[%s1383 + $0x231] sm:$0xff]
    %v1624 = vld [vmem:[%s1383 + $0x241] sm:$0xff]
    %v1625 = vld [vmem:[%s1383 + $0x249] sm:$0xff]
    %v1626 = vld [vmem:[%s1383 + $0x259] sm:$0xff]
    %v1627 = vld [vmem:[%s1383 + $0x261] sm:$0xff]
    %v1628 = vld [vmem:[%s1383 + $0x271] sm:$0xff]
    %v1629 = vld [vmem:[%s1383 + $0x279] sm:$0xff]
    %v1630 = vld [vmem:[%s1383 + $0x289] sm:$0xff]
    %v1631 = vld [vmem:[%s1383 + $0x291] sm:$0xff]
    %v1632 = vld [vmem:[%s1383 + $0x2a1] sm:$0xff]
    %v1633 = vld [vmem:[%s1383 + $0x2a9] sm:$0xff]
    %v1634 = vld [vmem:[%s1383 + $0x2b9] sm:$0xff]
    %v1635 = vld [vmem:[%s1383 + $0x2c1] sm:$0xff]
    %v1636 = vld [vmem:[%s1383 + $0x2d1] sm:$0xff]
    %v1637 = vld [vmem:[%s1383 + $0x2d9] sm:$0xff]
    %v1638 = vld [vmem:[%s1383 + $0x2e9] sm:$0xff]
    %v1639 = vld [vmem:[%s1383 + $0x2f1] sm:$0xff]
    %v1640 = vld [vmem:[%s1383 + $0x301] sm:$0xff]
    %v1641 = vld [vmem:[%s1383 + $0x309] sm:$0xff]
    %v1642 = vld [vmem:[%s1383 + $0x319] sm:$0xff]
    %v1643 = vld [vmem:[%s1383 + $0x321] sm:$0xff]
    %v1644 = vlaneseq
    %v1645 = vshrl.u32 %v1644, 7
    %v1646 = vsub.s32 7, %v1645
    %v1647 = vrot.slane %v269, %v1646
    %v1648 = vmul.f32 %v1580, %v1647
    %v1649 = vmul.f32 %v1581, %v1647
    %v1650 = vmul.f32 %v1582, %v1647
    %v1651 = vmul.f32 %v1583, %v1647
    %v1652 = vmul.f32 %v1584, %v1647
    %v1653 = vmul.f32 %v1585, %v1647
    %v1654 = vmul.f32 %v1586, %v1647
    %v1655 = vmul.f32 %v1587, %v1647
    %v1656 = vmul.f32 %v1588, %v1647
    %v1657 = vmul.f32 %v1589, %v1647
    %v1658 = vmul.f32 %v1590, %v1647
    %v1659 = vmul.f32 %v1591, %v1647
    %v1660 = vmul.f32 %v1592, %v1647
    %v1661 = vmul.f32 %v1593, %v1647
    %v1662 = vmul.f32 %v1594, %v1647
    %v1663 = vmul.f32 %v1595, %v1647
    %v1664 = vmul.f32 %v1596, %v1647
    %v1665 = vmul.f32 %v1597, %v1647
    %v1666 = vmul.f32 %v1598, %v1647
    %v1667 = vmul.f32 %v1599, %v1647
    %v1668 = vmul.f32 %v1600, %v1647
    %v1669 = vmul.f32 %v1601, %v1647
    %v1670 = vmul.f32 %v1602, %v1647
    %v1671 = vmul.f32 %v1603, %v1647
    %v1672 = vmul.f32 %v1604, %v1647
    %v1673 = vmul.f32 %v1605, %v1647
    %v1674 = vmul.f32 %v1606, %v1647
    %v1675 = vmul.f32 %v1607, %v1647
    %v1676 = vmul.f32 %v1608, %v1647
    %v1677 = vmul.f32 %v1609, %v1647
    %v1678 = vmul.f32 %v1610, %v1647
    %v1679 = vmul.f32 %v1611, %v1647
    %v1680 = vmul.f32 %v1612, %v1647
    %v1681 = vmul.f32 %v1613, %v1647
    %v1682 = vmul.f32 %v1614, %v1647
    %v1683 = vmul.f32 %v1615, %v1647
    %v1684 = vmul.f32 %v1616, %v1647
    %v1685 = vmul.f32 %v1617, %v1647
    %v1686 = vmul.f32 %v1618, %v1647
    %v1687 = vmul.f32 %v1619, %v1647
    %v1688 = vmul.f32 %v1620, %v1647
    %v1689 = vmul.f32 %v1621, %v1647
    %v1690 = vmul.f32 %v1622, %v1647
    %v1691 = vmul.f32 %v1623, %v1647
    %v1692 = vmul.f32 %v1624, %v1647
    %v1693 = vmul.f32 %v1625, %v1647
    %v1694 = vmul.f32 %v1626, %v1647
    %v1695 = vmul.f32 %v1627, %v1647
    %v1696 = vmul.f32 %v1628, %v1647
    %v1697 = vmul.f32 %v1629, %v1647
    %v1698 = vmul.f32 %v1630, %v1647
    %v1699 = vmul.f32 %v1631, %v1647
    %v1700 = vmul.f32 %v1632, %v1647
    %v1701 = vmul.f32 %v1633, %v1647
    %v1702 = vmul.f32 %v1634, %v1647
    %v1703 = vmul.f32 %v1635, %v1647
    %v1704 = vmul.f32 %v1636, %v1647
    %v1705 = vmul.f32 %v1637, %v1647
    %v1706 = vmul.f32 %v1638, %v1647
    %v1707 = vmul.f32 %v1639, %v1647
    %v1708 = vmul.f32 %v1640, %v1647
    %v1709 = vmul.f32 %v1641, %v1647
    %v1710 = vmul.f32 %v1642, %v1647
    %v1711 = vmul.f32 %v1643, %v1647
    %v1712 = vadd.f32 %v1516, %v1648
    %v1713 = vadd.f32 %v1517, %v1649
    %v1714 = vadd.f32 %v1518, %v1650
    %v1715 = vadd.f32 %v1519, %v1651
    %v1716 = vadd.f32 %v1520, %v1652
    %v1717 = vadd.f32 %v1521, %v1653
    %v1718 = vadd.f32 %v1522, %v1654
    %v1719 = vadd.f32 %v1523, %v1655
    %v1720 = vadd.f32 %v1524, %v1656
    %v1721 = vadd.f32 %v1525, %v1657
    %v1722 = vadd.f32 %v1526, %v1658
    %v1723 = vadd.f32 %v1527, %v1659
    %v1724 = vadd.f32 %v1528, %v1660
    %v1725 = vadd.f32 %v1529, %v1661
    %v1726 = vadd.f32 %v1530, %v1662
    %v1727 = vadd.f32 %v1531, %v1663
    %v1728 = vadd.f32 %v1532, %v1664
    %v1729 = vadd.f32 %v1533, %v1665
    %v1730 = vadd.f32 %v1534, %v1666
    %v1731 = vadd.f32 %v1535, %v1667
    %v1732 = vadd.f32 %v1536, %v1668
    %v1733 = vadd.f32 %v1537, %v1669
    %v1734 = vadd.f32 %v1538, %v1670
    %v1735 = vadd.f32 %v1539, %v1671
    %v1736 = vadd.f32 %v1540, %v1672
    %v1737 = vadd.f32 %v1541, %v1673
    %v1738 = vadd.f32 %v1542, %v1674
    %v1739 = vadd.f32 %v1543, %v1675
    %v1740 = vadd.f32 %v1544, %v1676
    %v1741 = vadd.f32 %v1545, %v1677
    %v1742 = vadd.f32 %v1546, %v1678
    %v1743 = vadd.f32 %v1547, %v1679
    %v1744 = vadd.f32 %v1548, %v1680
    %v1745 = vadd.f32 %v1549, %v1681
    %v1746 = vadd.f32 %v1550, %v1682
    %v1747 = vadd.f32 %v1551, %v1683
    %v1748 = vadd.f32 %v1552, %v1684
    %v1749 = vadd.f32 %v1553, %v1685
    %v1750 = vadd.f32 %v1554, %v1686
    %v1751 = vadd.f32 %v1555, %v1687
    %v1752 = vadd.f32 %v1556, %v1688
    %v1753 = vadd.f32 %v1557, %v1689
    %v1754 = vadd.f32 %v1558, %v1690
    %v1755 = vadd.f32 %v1559, %v1691
    %v1756 = vadd.f32 %v1560, %v1692
    %v1757 = vadd.f32 %v1561, %v1693
    %v1758 = vadd.f32 %v1562, %v1694
    %v1759 = vadd.f32 %v1563, %v1695
    %v1760 = vadd.f32 %v1564, %v1696
    %v1761 = vadd.f32 %v1565, %v1697
    %v1762 = vadd.f32 %v1566, %v1698
    %v1763 = vadd.f32 %v1567, %v1699
    %v1764 = vadd.f32 %v1568, %v1700
    %v1765 = vadd.f32 %v1569, %v1701
    %v1766 = vadd.f32 %v1570, %v1702
    %v1767 = vadd.f32 %v1571, %v1703
    %v1768 = vadd.f32 %v1572, %v1704
    %v1769 = vadd.f32 %v1573, %v1705
    %v1770 = vadd.f32 %v1574, %v1706
    %v1771 = vadd.f32 %v1575, %v1707
    %v1772 = vadd.f32 %v1576, %v1708
    %v1773 = vadd.f32 %v1577, %v1709
    %v1774 = vadd.f32 %v1578, %v1710
    %v1775 = vadd.f32 %v1579, %v1711
    %v1776 = vld [vmem:[%s1383 + $0x2] sm:$0xff]
    %v1777 = vld [vmem:[%s1383 + $0xa] sm:$0xff]
    %v1778 = vld [vmem:[%s1383 + $0x1a] sm:$0xff]
    %v1779 = vld [vmem:[%s1383 + $0x22] sm:$0xff]
    %v1780 = vld [vmem:[%s1383 + $0x32] sm:$0xff]
    %v1781 = vld [vmem:[%s1383 + $0x3a] sm:$0xff]
    %v1782 = vld [vmem:[%s1383 + $0x4a] sm:$0xff]
    %v1783 = vld [vmem:[%s1383 + $0x52] sm:$0xff]
    %v1784 = vld [vmem:[%s1383 + $0x62] sm:$0xff]
    %v1785 = vld [vmem:[%s1383 + $0x6a] sm:$0xff]
    %v1786 = vld [vmem:[%s1383 + $0x7a] sm:$0xff]
    %v1787 = vld [vmem:[%s1383 + $0x82] sm:$0xff]
    %v1788 = vld [vmem:[%s1383 + $0x92] sm:$0xff]
    %v1789 = vld [vmem:[%s1383 + $0x9a] sm:$0xff]
    %v1790 = vld [vmem:[%s1383 + $0xaa] sm:$0xff]
    %v1791 = vld [vmem:[%s1383 + $0xb2] sm:$0xff]
    %v1792 = vld [vmem:[%s1383 + $0xc2] sm:$0xff]
    %v1793 = vld [vmem:[%s1383 + $0xca] sm:$0xff]
    %v1794 = vld [vmem:[%s1383 + $0xda] sm:$0xff]
    %v1795 = vld [vmem:[%s1383 + $0xe2] sm:$0xff]
    %v1796 = vld [vmem:[%s1383 + $0xf2] sm:$0xff]
    %v1797 = vld [vmem:[%s1383 + $0xfa] sm:$0xff]
    %v1798 = vld [vmem:[%s1383 + $0x10a] sm:$0xff]
    %v1799 = vld [vmem:[%s1383 + $0x112] sm:$0xff]
    %v1800 = vld [vmem:[%s1383 + $0x122] sm:$0xff]
    %v1801 = vld [vmem:[%s1383 + $0x12a] sm:$0xff]
    %v1802 = vld [vmem:[%s1383 + $0x13a] sm:$0xff]
    %v1803 = vld [vmem:[%s1383 + $0x142] sm:$0xff]
    %v1804 = vld [vmem:[%s1383 + $0x152] sm:$0xff]
    %v1805 = vld [vmem:[%s1383 + $0x15a] sm:$0xff]
    %v1806 = vld [vmem:[%s1383 + $0x16a] sm:$0xff]
    %v1807 = vld [vmem:[%s1383 + $0x172] sm:$0xff]
    %v1808 = vld [vmem:[%s1383 + $0x1b2] sm:$0xff]
    %v1809 = vld [vmem:[%s1383 + $0x1ba] sm:$0xff]
    %v1810 = vld [vmem:[%s1383 + $0x1ca] sm:$0xff]
    %v1811 = vld [vmem:[%s1383 + $0x1d2] sm:$0xff]
    %v1812 = vld [vmem:[%s1383 + $0x1e2] sm:$0xff]
    %v1813 = vld [vmem:[%s1383 + $0x1ea] sm:$0xff]
    %v1814 = vld [vmem:[%s1383 + $0x1fa] sm:$0xff]
    %v1815 = vld [vmem:[%s1383 + $0x202] sm:$0xff]
    %v1816 = vld [vmem:[%s1383 + $0x212] sm:$0xff]
    %v1817 = vld [vmem:[%s1383 + $0x21a] sm:$0xff]
    %v1818 = vld [vmem:[%s1383 + $0x22a] sm:$0xff]
    %v1819 = vld [vmem:[%s1383 + $0x232] sm:$0xff]
    %v1820 = vld [vmem:[%s1383 + $0x242] sm:$0xff]
    %v1821 = vld [vmem:[%s1383 + $0x24a] sm:$0xff]
    %v1822 = vld [vmem:[%s1383 + $0x25a] sm:$0xff]
    %v1823 = vld [vmem:[%s1383 + $0x262] sm:$0xff]
    %v1824 = vld [vmem:[%s1383 + $0x272] sm:$0xff]
    %v1825 = vld [vmem:[%s1383 + $0x27a] sm:$0xff]
    %v1826 = vld [vmem:[%s1383 + $0x28a] sm:$0xff]
    %v1827 = vld [vmem:[%s1383 + $0x292] sm:$0xff]
    %v1828 = vld [vmem:[%s1383 + $0x2a2] sm:$0xff]
    %v1829 = vld [vmem:[%s1383 + $0x2aa] sm:$0xff]
    %v1830 = vld [vmem:[%s1383 + $0x2ba] sm:$0xff]
    %v1831 = vld [vmem:[%s1383 + $0x2c2] sm:$0xff]
    %v1832 = vld [vmem:[%s1383 + $0x2d2] sm:$0xff]
    %v1833 = vld [vmem:[%s1383 + $0x2da] sm:$0xff]
    %v1834 = vld [vmem:[%s1383 + $0x2ea] sm:$0xff]
    %v1835 = vld [vmem:[%s1383 + $0x2f2] sm:$0xff]
    %v1836 = vld [vmem:[%s1383 + $0x302] sm:$0xff]
    %v1837 = vld [vmem:[%s1383 + $0x30a] sm:$0xff]
    %v1838 = vld [vmem:[%s1383 + $0x31a] sm:$0xff]
    %v1839 = vld [vmem:[%s1383 + $0x322] sm:$0xff]
    %v1840 = vlaneseq
    %v1841 = vshrl.u32 %v1840, 7
    %v1842 = vsub.s32 0, %v1841
    %v1843 = vrot.slane %v270, %v1842
    %v1844 = vmul.f32 %v1776, %v1843
    %v1845 = vmul.f32 %v1777, %v1843
    %v1846 = vmul.f32 %v1778, %v1843
    %v1847 = vmul.f32 %v1779, %v1843
    %v1848 = vmul.f32 %v1780, %v1843
    %v1849 = vmul.f32 %v1781, %v1843
    %v1850 = vmul.f32 %v1782, %v1843
    %v1851 = vmul.f32 %v1783, %v1843
    %v1852 = vmul.f32 %v1784, %v1843
    %v1853 = vmul.f32 %v1785, %v1843
    %v1854 = vmul.f32 %v1786, %v1843
    %v1855 = vmul.f32 %v1787, %v1843
    %v1856 = vmul.f32 %v1788, %v1843
    %v1857 = vmul.f32 %v1789, %v1843
    %v1858 = vmul.f32 %v1790, %v1843
    %v1859 = vmul.f32 %v1791, %v1843
    %v1860 = vmul.f32 %v1792, %v1843
    %v1861 = vmul.f32 %v1793, %v1843
    %v1862 = vmul.f32 %v1794, %v1843
    %v1863 = vmul.f32 %v1795, %v1843
    %v1864 = vmul.f32 %v1796, %v1843
    %v1865 = vmul.f32 %v1797, %v1843
    %v1866 = vmul.f32 %v1798, %v1843
    %v1867 = vmul.f32 %v1799, %v1843
    %v1868 = vmul.f32 %v1800, %v1843
    %v1869 = vmul.f32 %v1801, %v1843
    %v1870 = vmul.f32 %v1802, %v1843
    %v1871 = vmul.f32 %v1803, %v1843
    %v1872 = vmul.f32 %v1804, %v1843
    %v1873 = vmul.f32 %v1805, %v1843
    %v1874 = vmul.f32 %v1806, %v1843
    %v1875 = vmul.f32 %v1807, %v1843
    %v1876 = vmul.f32 %v1808, %v1843
    %v1877 = vmul.f32 %v1809, %v1843
    %v1878 = vmul.f32 %v1810, %v1843
    %v1879 = vmul.f32 %v1811, %v1843
    %v1880 = vmul.f32 %v1812, %v1843
    %v1881 = vmul.f32 %v1813, %v1843
    %v1882 = vmul.f32 %v1814, %v1843
    %v1883 = vmul.f32 %v1815, %v1843
    %v1884 = vmul.f32 %v1816, %v1843
    %v1885 = vmul.f32 %v1817, %v1843
    %v1886 = vmul.f32 %v1818, %v1843
    %v1887 = vmul.f32 %v1819, %v1843
    %v1888 = vmul.f32 %v1820, %v1843
    %v1889 = vmul.f32 %v1821, %v1843
    %v1890 = vmul.f32 %v1822, %v1843
    %v1891 = vmul.f32 %v1823, %v1843
    %v1892 = vmul.f32 %v1824, %v1843
    %v1893 = vmul.f32 %v1825, %v1843
    %v1894 = vmul.f32 %v1826, %v1843
    %v1895 = vmul.f32 %v1827, %v1843
    %v1896 = vmul.f32 %v1828, %v1843
    %v1897 = vmul.f32 %v1829, %v1843
    %v1898 = vmul.f32 %v1830, %v1843
    %v1899 = vmul.f32 %v1831, %v1843
    %v1900 = vmul.f32 %v1832, %v1843
    %v1901 = vmul.f32 %v1833, %v1843
    %v1902 = vmul.f32 %v1834, %v1843
    %v1903 = vmul.f32 %v1835, %v1843
    %v1904 = vmul.f32 %v1836, %v1843
    %v1905 = vmul.f32 %v1837, %v1843
    %v1906 = vmul.f32 %v1838, %v1843
    %v1907 = vmul.f32 %v1839, %v1843
    %v1908 = vadd.f32 %v1712, %v1844
    %v1909 = vadd.f32 %v1713, %v1845
    %v1910 = vadd.f32 %v1714, %v1846
    %v1911 = vadd.f32 %v1715, %v1847
    %v1912 = vadd.f32 %v1716, %v1848
    %v1913 = vadd.f32 %v1717, %v1849
    %v1914 = vadd.f32 %v1718, %v1850
    %v1915 = vadd.f32 %v1719, %v1851
    %v1916 = vadd.f32 %v1720, %v1852
    %v1917 = vadd.f32 %v1721, %v1853
    %v1918 = vadd.f32 %v1722, %v1854
    %v1919 = vadd.f32 %v1723, %v1855
    %v1920 = vadd.f32 %v1724, %v1856
    %v1921 = vadd.f32 %v1725, %v1857
    %v1922 = vadd.f32 %v1726, %v1858
    %v1923 = vadd.f32 %v1727, %v1859
    %v1924 = vadd.f32 %v1728, %v1860
    %v1925 = vadd.f32 %v1729, %v1861
    %v1926 = vadd.f32 %v1730, %v1862
    %v1927 = vadd.f32 %v1731, %v1863
    %v1928 = vadd.f32 %v1732, %v1864
    %v1929 = vadd.f32 %v1733, %v1865
    %v1930 = vadd.f32 %v1734, %v1866
    %v1931 = vadd.f32 %v1735, %v1867
    %v1932 = vadd.f32 %v1736, %v1868
    %v1933 = vadd.f32 %v1737, %v1869
    %v1934 = vadd.f32 %v1738, %v1870
    %v1935 = vadd.f32 %v1739, %v1871
    %v1936 = vadd.f32 %v1740, %v1872
    %v1937 = vadd.f32 %v1741, %v1873
    %v1938 = vadd.f32 %v1742, %v1874
    %v1939 = vadd.f32 %v1743, %v1875
    %v1940 = vadd.f32 %v1744, %v1876
    %v1941 = vadd.f32 %v1745, %v1877
    %v1942 = vadd.f32 %v1746, %v1878
    %v1943 = vadd.f32 %v1747, %v1879
    %v1944 = vadd.f32 %v1748, %v1880
    %v1945 = vadd.f32 %v1749, %v1881
    %v1946 = vadd.f32 %v1750, %v1882
    %v1947 = vadd.f32 %v1751, %v1883
    %v1948 = vadd.f32 %v1752, %v1884
    %v1949 = vadd.f32 %v1753, %v1885
    %v1950 = vadd.f32 %v1754, %v1886
    %v1951 = vadd.f32 %v1755, %v1887
    %v1952 = vadd.f32 %v1756, %v1888
    %v1953 = vadd.f32 %v1757, %v1889
    %v1954 = vadd.f32 %v1758, %v1890
    %v1955 = vadd.f32 %v1759, %v1891
    %v1956 = vadd.f32 %v1760, %v1892
    %v1957 = vadd.f32 %v1761, %v1893
    %v1958 = vadd.f32 %v1762, %v1894
    %v1959 = vadd.f32 %v1763, %v1895
    %v1960 = vadd.f32 %v1764, %v1896
    %v1961 = vadd.f32 %v1765, %v1897
    %v1962 = vadd.f32 %v1766, %v1898
    %v1963 = vadd.f32 %v1767, %v1899
    %v1964 = vadd.f32 %v1768, %v1900
    %v1965 = vadd.f32 %v1769, %v1901
    %v1966 = vadd.f32 %v1770, %v1902
    %v1967 = vadd.f32 %v1771, %v1903
    %v1968 = vadd.f32 %v1772, %v1904
    %v1969 = vadd.f32 %v1773, %v1905
    %v1970 = vadd.f32 %v1774, %v1906
    %v1971 = vadd.f32 %v1775, %v1907
    %v1972 = vld [vmem:[%s2] sm:$0xf]
    %v1974 = vsel %vm204, %v1908, 0
    %v1977 = vsel %vm204, %v1909, 0
    %v1980 = vsel %vm204, %v1910, 0
    %v1983 = vsel %vm204, %v1911, 0
    %v1986 = vsel %vm204, %v1912, 0
    %v1989 = vsel %vm204, %v1913, 0
    %v1992 = vsel %vm204, %v1914, 0
    %v1995 = vsel %vm204, %v1915, 0
    %v1998 = vsel %vm204, %v1916, 0
    %v2001 = vsel %vm204, %v1917, 0
    %v2004 = vsel %vm204, %v1918, 0
    %v2007 = vsel %vm204, %v1919, 0
    %v2010 = vsel %vm204, %v1920, 0
    %v2013 = vsel %vm204, %v1921, 0
    %v2016 = vsel %vm204, %v1922, 0
    %v2019 = vsel %vm204, %v1923, 0
    %v2022 = vsel %vm204, %v1924, 0
    %v2025 = vsel %vm204, %v1925, 0
    %v2028 = vsel %vm204, %v1926, 0
    %v2031 = vsel %vm204, %v1927, 0
    %v2034 = vsel %vm204, %v1928, 0
    %v2037 = vsel %vm204, %v1929, 0
    %v2040 = vsel %vm204, %v1930, 0
    %v2043 = vsel %vm204, %v1931, 0
    %v2046 = vsel %vm204, %v1932, 0
    %v2049 = vsel %vm204, %v1933, 0
    %v2052 = vsel %vm204, %v1934, 0
    %v2055 = vsel %vm204, %v1935, 0
    %v2058 = vsel %vm204, %v1936, 0
    %v2061 = vsel %vm204, %v1937, 0
    %v2064 = vsel %vm204, %v1938, 0
    %v2067 = vsel %vm204, %v1939, 0
    %v2070 = vsel %vm204, %v1940, 0
    %v2073 = vsel %vm204, %v1941, 0
    %v2076 = vsel %vm204, %v1942, 0
    %v2079 = vsel %vm204, %v1943, 0
    %v2082 = vsel %vm204, %v1944, 0
    %v2085 = vsel %vm204, %v1945, 0
    %v2088 = vsel %vm204, %v1946, 0
    %v2091 = vsel %vm204, %v1947, 0
    %v2094 = vsel %vm204, %v1948, 0
    %v2097 = vsel %vm204, %v1949, 0
    %v2100 = vsel %vm204, %v1950, 0
    %v2103 = vsel %vm204, %v1951, 0
    %v2106 = vsel %vm204, %v1952, 0
    %v2109 = vsel %vm204, %v1953, 0
    %v2112 = vsel %vm204, %v1954, 0
    %v2115 = vsel %vm204, %v1955, 0
    %v2118 = vsel %vm204, %v1956, 0
    %v2121 = vsel %vm204, %v1957, 0
    %v2124 = vsel %vm204, %v1958, 0
    %v2127 = vsel %vm204, %v1959, 0
    %v2130 = vsel %vm204, %v1960, 0
    %v2133 = vsel %vm204, %v1961, 0
    %v2136 = vsel %vm204, %v1962, 0
    %v2139 = vsel %vm204, %v1963, 0
    %v2142 = vsel %vm204, %v1964, 0
    %v2145 = vsel %vm204, %v1965, 0
    %v2148 = vsel %vm204, %v1966, 0
    %v2151 = vsel %vm204, %v1967, 0
    %v2154 = vsel %vm204, %v1968, 0
    %v2157 = vsel %vm204, %v1969, 0
    %v2160 = vsel %vm204, %v1970, 0
    %v2163 = vsel %vm204, %v1971, 0
    %vm2165 = vcmask 1043456
    %v2167 = vsel %vm2165, %v1972, 0
    %2169 = vmatprep.subr.mxu0 0.0
    %2170 = vmatpush1.msra.mxu0 %v2167
    %2171 = vmatprep.subr.mxu0 0.0
    %2172 = vmatpush1.msra.mxu0 0.0
    %2173 = vmatprep.subr.mxu0 0.0
    %2174 = vmatpush1.msra.mxu0 0.0
    %2175 = vmatprep.subr.mxu0 0.0
    %2176 = vmatpush1.msra.mxu0 0.0
    %2177 = vmatprep.subr.mxu0 0.0
    %2178 = vmatpush1.msra.mxu0 0.0
    %2179 = vmatprep.subr.mxu0 0.0
    %2180 = vmatpush1.msra.mxu0 0.0
    %2181 = vmatprep.subr.mxu0 0.0
    %2182 = vmatpush1.msra.mxu0 0.0
    %2183 = vmatprep.subr.mxu0 0.0
    %2184 = vmatpush1.msra.mxu0 0.0
    %2185 = vmatprep.subr.mxu0 0.0
    %2186 = vmatpush1.msra.mxu0 0.0
    %2187 = vmatprep.subr.mxu0 0.0
    %2188 = vmatpush1.msra.mxu0 0.0
    %2189 = vmatprep.subr.mxu0 0.0
    %2190 = vmatpush1.msra.mxu0 0.0
    %2191 = vmatprep.subr.mxu0 0.0
    %2192 = vmatpush1.msra.mxu0 0.0
    %2193 = vmatprep.subr.mxu0 0.0
    %2194 = vmatpush1.msra.mxu0 0.0
    %2195 = vmatprep.subr.mxu0 0.0
    %2196 = vmatpush1.msra.mxu0 0.0
    %2197 = vmatprep.subr.mxu0 0.0
    %2198 = vmatpush1.msra.mxu0 0.0
    %2199 = vmatprep.subr.mxu0 0.0
    %2200 = vmatpush1.msra.mxu0 0.0
    %2201 = vmatprep.subr.mxu0 0.0
    %2202 = vmatpush1.msra.mxu0 0.0
    %2203 = vmatprep.subr.mxu0 0.0
    %2204 = vmatpush1.msra.mxu0 0.0
    %2205 = vmatprep.subr.mxu0 0.0
    %2206 = vmatpush1.msra.mxu0 0.0
    %2207 = vmatprep.subr.mxu0 0.0
    %2208 = vmatpush1.msra.mxu0 0.0
    %2209 = vmatprep.subr.mxu0 0.0
    %2210 = vmatpush1.msra.mxu0 0.0
    %2211 = vmatprep.subr.mxu0 0.0
    %2212 = vmatpush1.msra.mxu0 0.0
    %2213 = vmatprep.subr.mxu0 0.0
    %2214 = vmatpush1.msra.mxu0 0.0
    %2215 = vmatprep.subr.mxu0 0.0
    %2216 = vmatpush1.msra.mxu0 0.0
    %2217 = vmatprep.subr.mxu0 0.0
    %2218 = vmatpush1.msra.mxu0 0.0
    %2219 = vmatprep.subr.mxu0 0.0
    %2220 = vmatpush1.msra.mxu0 0.0
    %2221 = vmatprep.subr.mxu0 0.0
    %2222 = vmatpush1.msra.mxu0 0.0
    %2223 = vmatprep.subr.mxu0 0.0
    %2224 = vmatpush1.msra.mxu0 0.0
    %2225 = vmatprep.subr.mxu0 0.0
    %2226 = vmatpush1.msra.mxu0 0.0
    %2227 = vmatprep.subr.mxu0 0.0
    %2228 = vmatpush1.msra.mxu0 0.0
    %2229 = vmatprep.subr.mxu0 0.0
    %2230 = vmatpush1.msra.mxu0 0.0
    %2231 = vmatprep.subr.mxu0 0.0
    %2232 = vmatpush1.msra.mxu0 0.0
    %2233 = vmatprep.mubr.f32.mxu0 0.0
    %2234 = vmatmul.mubr.f32.gmra.mrb[0].mxu0 %v1974
    %v2235 = vpop.f32.mrb[0].mxu0
    %v2236 = vadd.f32 0.0, %v2235
    %v2237 = vpop.f32.mrb[0].mxu0
    %2238 = vmatprep.mubr.f32.mxu0 0.0
    %2239 = vmatmul.mubr.f32.gmra.mrb[0].mxu0 %v1977
    %v2240 = vpop.f32.mrb[0].mxu0
    %v2241 = vadd.f32 0.0, %v2240
    %v2242 = vpop.f32.mrb[0].mxu0
    %2243 = vmatprep.mubr.f32.mxu0 0.0
    %2244 = vmatmul.mubr.f32.gmra.mrb[0].mxu0 %v1980
    %v2245 = vpop.f32.mrb[0].mxu0
    %v2246 = vadd.f32 0.0, %v2245
    %v2247 = vpop.f32.mrb[0].mxu0
    %2248 = vmatprep.mubr.f32.mxu0 0.0
    %2249 = vmatmul.mubr.f32.gmra.mrb[0].mxu0 %v1983
    %v2250 = vpop.f32.mrb[0].mxu0
    %v2251 = vadd.f32 0.0, %v2250
    %v2252 = vpop.f32.mrb[0].mxu0
    %2253 = vmatprep.mubr.f32.mxu0 0.0
    %2254 = vmatmul.mubr.f32.gmra.mrb[0].mxu0 %v1986
    %v2255 = vpop.f32.mrb[0].mxu0
    %v2256 = vadd.f32 0.0, %v2255
    %v2257 = vpop.f32.mrb[0].mxu0
    %2258 = vmatprep.mubr.f32.mxu0 0.0
    %2259 = vmatmul.mubr.f32.gmra.mrb[0].mxu0 %v1989
    %v2260 = vpop.f32.mrb[0].mxu0
    %v2261 = vadd.f32 0.0, %v2260
    %v2262 = vpop.f32.mrb[0].mxu0
    %2263 = vmatprep.mubr.f32.mxu0 0.0
    %2264 = vmatmul.mubr.f32.gmra.mrb[0].mxu0 %v1992
    %v2265 = vpop.f32.mrb[0].mxu0
    %v2266 = vadd.f32 0.0, %v2265
    %v2267 = vpop.f32.mrb[0].mxu0
    %2268 = vmatprep.mubr.f32.mxu0 0.0
    %2269 = vmatmul.mubr.f32.gmra.mrb[0].mxu0 %v1995
    %v2270 = vpop.f32.mrb[0].mxu0
    %v2271 = vadd.f32 0.0, %v2270
    %v2272 = vpop.f32.mrb[0].mxu0
    %2273 = vmatprep.mubr.f32.mxu0 0.0
    %2274 = vmatmul.mubr.f32.gmra.mrb[0].mxu0 %v1998
    %v2275 = vpop.f32.mrb[0].mxu0
    %v2276 = vadd.f32 0.0, %v2275
    %v2277 = vpop.f32.mrb[0].mxu0
    %2278 = vmatprep.mubr.f32.mxu0 0.0
    %2279 = vmatmul.mubr.f32.gmra.mrb[0].mxu0 %v2001
    %v2280 = vpop.f32.mrb[0].mxu0
    %v2281 = vadd.f32 0.0, %v2280
    %v2282 = vpop.f32.mrb[0].mxu0
    %2283 = vmatprep.mubr.f32.mxu0 0.0
    %2284 = vmatmul.mubr.f32.gmra.mrb[0].mxu0 %v2004
    %v2285 = vpop.f32.mrb[0].mxu0
    %v2286 = vadd.f32 0.0, %v2285
    %v2287 = vpop.f32.mrb[0].mxu0
    %2288 = vmatprep.mubr.f32.mxu0 0.0
    %2289 = vmatmul.mubr.f32.gmra.mrb[0].mxu0 %v2007
    %v2290 = vpop.f32.mrb[0].mxu0
    %v2291 = vadd.f32 0.0, %v2290
    %v2292 = vpop.f32.mrb[0].mxu0
    %2293 = vmatprep.mubr.f32.mxu0 0.0
    %2294 = vmatmul.mubr.f32.gmra.mrb[0].mxu0 %v2010
    %v2295 = vpop.f32.mrb[0].mxu0
    %v2296 = vadd.f32 0.0, %v2295
    %v2297 = vpop.f32.mrb[0].mxu0
    %2298 = vmatprep.mubr.f32.mxu0 0.0
    %2299 = vmatmul.mubr.f32.gmra.mrb[0].mxu0 %v2013
    %v2300 = vpop.f32.mrb[0].mxu0
    %v2301 = vadd.f32 0.0, %v2300
    %v2302 = vpop.f32.mrb[0].mxu0
    %2303 = vmatprep.mubr.f32.mxu0 0.0
    %2304 = vmatmul.mubr.f32.gmra.mrb[0].mxu0 %v2016
    %v2305 = vpop.f32.mrb[0].mxu0
    %v2306 = vadd.f32 0.0, %v2305
    %v2307 = vpop.f32.mrb[0].mxu0
    %2308 = vmatprep.mubr.f32.mxu0 0.0
    %2309 = vmatmul.mubr.f32.gmra.mrb[0].mxu0 %v2019
    %v2310 = vpop.f32.mrb[0].mxu0
    %v2311 = vadd.f32 0.0, %v2310
    %v2312 = vpop.f32.mrb[0].mxu0
    %2313 = vmatprep.mubr.f32.mxu0 0.0
    %2314 = vmatmul.mubr.f32.gmra.mrb[0].mxu0 %v2022
    %v2315 = vpop.f32.mrb[0].mxu0
    %v2316 = vadd.f32 0.0, %v2315
    %v2317 = vpop.f32.mrb[0].mxu0
    %2318 = vmatprep.mubr.f32.mxu0 0.0
    %2319 = vmatmul.mubr.f32.gmra.mrb[0].mxu0 %v2025
    %v2320 = vpop.f32.mrb[0].mxu0
    %v2321 = vadd.f32 0.0, %v2320
    %v2322 = vpop.f32.mrb[0].mxu0
    %2323 = vmatprep.mubr.f32.mxu0 0.0
    %2324 = vmatmul.mubr.f32.gmra.mrb[0].mxu0 %v2028
    %v2325 = vpop.f32.mrb[0].mxu0
    %v2326 = vadd.f32 0.0, %v2325
    %v2327 = vpop.f32.mrb[0].mxu0
    %2328 = vmatprep.mubr.f32.mxu0 0.0
    %2329 = vmatmul.mubr.f32.gmra.mrb[0].mxu0 %v2031
    %v2330 = vpop.f32.mrb[0].mxu0
    %v2331 = vadd.f32 0.0, %v2330
    %v2332 = vpop.f32.mrb[0].mxu0
    %2333 = vmatprep.mubr.f32.mxu0 0.0
    %2334 = vmatmul.mubr.f32.gmra.mrb[0].mxu0 %v2034
    %v2335 = vpop.f32.mrb[0].mxu0
    %v2336 = vadd.f32 0.0, %v2335
    %v2337 = vpop.f32.mrb[0].mxu0
    %2338 = vmatprep.mubr.f32.mxu0 0.0
    %2339 = vmatmul.mubr.f32.gmra.mrb[0].mxu0 %v2037
    %v2340 = vpop.f32.mrb[0].mxu0
    %v2341 = vadd.f32 0.0, %v2340
    %v2342 = vpop.f32.mrb[0].mxu0
    %2343 = vmatprep.mubr.f32.mxu0 0.0
    %2344 = vmatmul.mubr.f32.gmra.mrb[0].mxu0 %v2040
    %v2345 = vpop.f32.mrb[0].mxu0
    %v2346 = vadd.f32 0.0, %v2345
    %v2347 = vpop.f32.mrb[0].mxu0
    %2348 = vmatprep.mubr.f32.mxu0 0.0
    %2349 = vmatmul.mubr.f32.gmra.mrb[0].mxu0 %v2043
    %v2350 = vpop.f32.mrb[0].mxu0
    %v2351 = vadd.f32 0.0, %v2350
    %v2352 = vpop.f32.mrb[0].mxu0
    %2353 = vmatprep.mubr.f32.mxu0 0.0
    %2354 = vmatmul.mubr.f32.gmra.mrb[0].mxu0 %v2046
    %v2355 = vpop.f32.mrb[0].mxu0
    %v2356 = vadd.f32 0.0, %v2355
    %v2357 = vpop.f32.mrb[0].mxu0
    %2358 = vmatprep.mubr.f32.mxu0 0.0
    %2359 = vmatmul.mubr.f32.gmra.mrb[0].mxu0 %v2049
    %v2360 = vpop.f32.mrb[0].mxu0
    %v2361 = vadd.f32 0.0, %v2360
    %v2362 = vpop.f32.mrb[0].mxu0
    %2363 = vmatprep.mubr.f32.mxu0 0.0
    %2364 = vmatmul.mubr.f32.gmra.mrb[0].mxu0 %v2052
    %v2365 = vpop.f32.mrb[0].mxu0
    %v2366 = vadd.f32 0.0, %v2365
    %v2367 = vpop.f32.mrb[0].mxu0
    %2368 = vmatprep.mubr.f32.mxu0 0.0
    %2369 = vmatmul.mubr.f32.gmra.mrb[0].mxu0 %v2055
    %v2370 = vpop.f32.mrb[0].mxu0
    %v2371 = vadd.f32 0.0, %v2370
    %v2372 = vpop.f32.mrb[0].mxu0
    %2373 = vmatprep.mubr.f32.mxu0 0.0
    %2374 = vmatmul.mubr.f32.gmra.mrb[0].mxu0 %v2058
    %v2375 = vpop.f32.mrb[0].mxu0
    %v2376 = vadd.f32 0.0, %v2375
    %v2377 = vpop.f32.mrb[0].mxu0
    %2378 = vmatprep.mubr.f32.mxu0 0.0
    %2379 = vmatmul.mubr.f32.gmra.mrb[0].mxu0 %v2061
    %v2380 = vpop.f32.mrb[0].mxu0
    %v2381 = vadd.f32 0.0, %v2380
    %v2382 = vpop.f32.mrb[0].mxu0
    %2383 = vmatprep.mubr.f32.mxu0 0.0
    %2384 = vmatmul.mubr.f32.gmra.mrb[0].mxu0 %v2064
    %v2385 = vpop.f32.mrb[0].mxu0
    %v2386 = vadd.f32 0.0, %v2385
    %v2387 = vpop.f32.mrb[0].mxu0
    %2388 = vmatprep.mubr.f32.mxu0 0.0
    %2389 = vmatmul.mubr.f32.gmra.mrb[0].mxu0 %v2067
    %v2390 = vpop.f32.mrb[0].mxu0
    %v2391 = vadd.f32 0.0, %v2390
    %v2392 = vpop.f32.mrb[0].mxu0
    %2393 = vmatprep.mubr.f32.mxu0 0.0
    %2394 = vmatmul.mubr.f32.gmra.mrb[0].mxu0 %v2070
    %v2395 = vpop.f32.mrb[0].mxu0
    %v2396 = vadd.f32 0.0, %v2395
    %v2397 = vpop.f32.mrb[0].mxu0
    %2398 = vmatprep.mubr.f32.mxu0 0.0
    %2399 = vmatmul.mubr.f32.gmra.mrb[0].mxu0 %v2073
    %v2400 = vpop.f32.mrb[0].mxu0
    %v2401 = vadd.f32 0.0, %v2400
    %v2402 = vpop.f32.mrb[0].mxu0
    %2403 = vmatprep.mubr.f32.mxu0 0.0
    %2404 = vmatmul.mubr.f32.gmra.mrb[0].mxu0 %v2076
    %v2405 = vpop.f32.mrb[0].mxu0
    %v2406 = vadd.f32 0.0, %v2405
    %v2407 = vpop.f32.mrb[0].mxu0
    %2408 = vmatprep.mubr.f32.mxu0 0.0
    %2409 = vmatmul.mubr.f32.gmra.mrb[0].mxu0 %v2079
    %v2410 = vpop.f32.mrb[0].mxu0
    %v2411 = vadd.f32 0.0, %v2410
    %v2412 = vpop.f32.mrb[0].mxu0
    %2413 = vmatprep.mubr.f32.mxu0 0.0
    %2414 = vmatmul.mubr.f32.gmra.mrb[0].mxu0 %v2082
    %v2415 = vpop.f32.mrb[0].mxu0
    %v2416 = vadd.f32 0.0, %v2415
    %v2417 = vpop.f32.mrb[0].mxu0
    %2418 = vmatprep.mubr.f32.mxu0 0.0
    %2419 = vmatmul.mubr.f32.gmra.mrb[0].mxu0 %v2085
    %v2420 = vpop.f32.mrb[0].mxu0
    %v2421 = vadd.f32 0.0, %v2420
    %v2422 = vpop.f32.mrb[0].mxu0
    %2423 = vmatprep.mubr.f32.mxu0 0.0
    %2424 = vmatmul.mubr.f32.gmra.mrb[0].mxu0 %v2088
    %v2425 = vpop.f32.mrb[0].mxu0
    %v2426 = vadd.f32 0.0, %v2425
    %v2427 = vpop.f32.mrb[0].mxu0
    %2428 = vmatprep.mubr.f32.mxu0 0.0
    %2429 = vmatmul.mubr.f32.gmra.mrb[0].mxu0 %v2091
    %v2430 = vpop.f32.mrb[0].mxu0
    %v2431 = vadd.f32 0.0, %v2430
    %v2432 = vpop.f32.mrb[0].mxu0
    %2433 = vmatprep.mubr.f32.mxu0 0.0
    %2434 = vmatmul.mubr.f32.gmra.mrb[0].mxu0 %v2094
    %v2435 = vpop.f32.mrb[0].mxu0
    %v2436 = vadd.f32 0.0, %v2435
    %v2437 = vpop.f32.mrb[0].mxu0
    %2438 = vmatprep.mubr.f32.mxu0 0.0
    %2439 = vmatmul.mubr.f32.gmra.mrb[0].mxu0 %v2097
    %v2440 = vpop.f32.mrb[0].mxu0
    %v2441 = vadd.f32 0.0, %v2440
    %v2442 = vpop.f32.mrb[0].mxu0
    %2443 = vmatprep.mubr.f32.mxu0 0.0
    %2444 = vmatmul.mubr.f32.gmra.mrb[0].mxu0 %v2100
    %v2445 = vpop.f32.mrb[0].mxu0
    %v2446 = vadd.f32 0.0, %v2445
    %v2447 = vpop.f32.mrb[0].mxu0
    %2448 = vmatprep.mubr.f32.mxu0 0.0
    %2449 = vmatmul.mubr.f32.gmra.mrb[0].mxu0 %v2103
    %v2450 = vpop.f32.mrb[0].mxu0
    %v2451 = vadd.f32 0.0, %v2450
    %v2452 = vpop.f32.mrb[0].mxu0
    %2453 = vmatprep.mubr.f32.mxu0 0.0
    %2454 = vmatmul.mubr.f32.gmra.mrb[0].mxu0 %v2106
    %v2455 = vpop.f32.mrb[0].mxu0
    %v2456 = vadd.f32 0.0, %v2455
    %v2457 = vpop.f32.mrb[0].mxu0
    %2458 = vmatprep.mubr.f32.mxu0 0.0
    %2459 = vmatmul.mubr.f32.gmra.mrb[0].mxu0 %v2109
    %v2460 = vpop.f32.mrb[0].mxu0
    %v2461 = vadd.f32 0.0, %v2460
    %v2462 = vpop.f32.mrb[0].mxu0
    %2463 = vmatprep.mubr.f32.mxu0 0.0
    %2464 = vmatmul.mubr.f32.gmra.mrb[0].mxu0 %v2112
    %v2465 = vpop.f32.mrb[0].mxu0
    %v2466 = vadd.f32 0.0, %v2465
    %v2467 = vpop.f32.mrb[0].mxu0
    %2468 = vmatprep.mubr.f32.mxu0 0.0
    %2469 = vmatmul.mubr.f32.gmra.mrb[0].mxu0 %v2115
    %v2470 = vpop.f32.mrb[0].mxu0
    %v2471 = vadd.f32 0.0, %v2470
    %v2472 = vpop.f32.mrb[0].mxu0
    %2473 = vmatprep.mubr.f32.mxu0 0.0
    %2474 = vmatmul.mubr.f32.gmra.mrb[0].mxu0 %v2118
    %v2475 = vpop.f32.mrb[0].mxu0
    %v2476 = vadd.f32 0.0, %v2475
    %v2477 = vpop.f32.mrb[0].mxu0
    %2478 = vmatprep.mubr.f32.mxu0 0.0
    %2479 = vmatmul.mubr.f32.gmra.mrb[0].mxu0 %v2121
    %v2480 = vpop.f32.mrb[0].mxu0
    %v2481 = vadd.f32 0.0, %v2480
    %v2482 = vpop.f32.mrb[0].mxu0
    %2483 = vmatprep.mubr.f32.mxu0 0.0
    %2484 = vmatmul.mubr.f32.gmra.mrb[0].mxu0 %v2124
    %v2485 = vpop.f32.mrb[0].mxu0
    %v2486 = vadd.f32 0.0, %v2485
    %v2487 = vpop.f32.mrb[0].mxu0
    %2488 = vmatprep.mubr.f32.mxu0 0.0
    %2489 = vmatmul.mubr.f32.gmra.mrb[0].mxu0 %v2127
    %v2490 = vpop.f32.mrb[0].mxu0
    %v2491 = vadd.f32 0.0, %v2490
    %v2492 = vpop.f32.mrb[0].mxu0
    %2493 = vmatprep.mubr.f32.mxu0 0.0
    %2494 = vmatmul.mubr.f32.gmra.mrb[0].mxu0 %v2130
    %v2495 = vpop.f32.mrb[0].mxu0
    %v2496 = vadd.f32 0.0, %v2495
    %v2497 = vpop.f32.mrb[0].mxu0
    %2498 = vmatprep.mubr.f32.mxu0 0.0
    %2499 = vmatmul.mubr.f32.gmra.mrb[0].mxu0 %v2133
    %v2500 = vpop.f32.mrb[0].mxu0
    %v2501 = vadd.f32 0.0, %v2500
    %v2502 = vpop.f32.mrb[0].mxu0
    %2503 = vmatprep.mubr.f32.mxu0 0.0
    %2504 = vmatmul.mubr.f32.gmra.mrb[0].mxu0 %v2136
    %v2505 = vpop.f32.mrb[0].mxu0
    %v2506 = vadd.f32 0.0, %v2505
    %v2507 = vpop.f32.mrb[0].mxu0
    %2508 = vmatprep.mubr.f32.mxu0 0.0
    %2509 = vmatmul.mubr.f32.gmra.mrb[0].mxu0 %v2139
    %v2510 = vpop.f32.mrb[0].mxu0
    %v2511 = vadd.f32 0.0, %v2510
    %v2512 = vpop.f32.mrb[0].mxu0
    %2513 = vmatprep.mubr.f32.mxu0 0.0
    %2514 = vmatmul.mubr.f32.gmra.mrb[0].mxu0 %v2142
    %v2515 = vpop.f32.mrb[0].mxu0
    %v2516 = vadd.f32 0.0, %v2515
    %v2517 = vpop.f32.mrb[0].mxu0
    %2518 = vmatprep.mubr.f32.mxu0 0.0
    %2519 = vmatmul.mubr.f32.gmra.mrb[0].mxu0 %v2145
    %v2520 = vpop.f32.mrb[0].mxu0
    %v2521 = vadd.f32 0.0, %v2520
    %v2522 = vpop.f32.mrb[0].mxu0
    %2523 = vmatprep.mubr.f32.mxu0 0.0
    %2524 = vmatmul.mubr.f32.gmra.mrb[0].mxu0 %v2148
    %v2525 = vpop.f32.mrb[0].mxu0
    %v2526 = vadd.f32 0.0, %v2525
    %v2527 = vpop.f32.mrb[0].mxu0
    %2528 = vmatprep.mubr.f32.mxu0 0.0
    %2529 = vmatmul.mubr.f32.gmra.mrb[0].mxu0 %v2151
    %v2530 = vpop.f32.mrb[0].mxu0
    %v2531 = vadd.f32 0.0, %v2530
    %v2532 = vpop.f32.mrb[0].mxu0
    %2533 = vmatprep.mubr.f32.mxu0 0.0
    %2534 = vmatmul.mubr.f32.gmra.mrb[0].mxu0 %v2154
    %v2535 = vpop.f32.mrb[0].mxu0
    %v2536 = vadd.f32 0.0, %v2535
    %v2537 = vpop.f32.mrb[0].mxu0
    %2538 = vmatprep.mubr.f32.mxu0 0.0
    %2539 = vmatmul.mubr.f32.gmra.mrb[0].mxu0 %v2157
    %v2540 = vpop.f32.mrb[0].mxu0
    %v2541 = vadd.f32 0.0, %v2540
    %v2542 = vpop.f32.mrb[0].mxu0
    %2543 = vmatprep.mubr.f32.mxu0 0.0
    %2544 = vmatmul.mubr.f32.gmra.mrb[0].mxu0 %v2160
    %v2545 = vpop.f32.mrb[0].mxu0
    %v2546 = vadd.f32 0.0, %v2545
    %v2547 = vpop.f32.mrb[0].mxu0
    %2548 = vmatprep.mubr.f32.mxu0 0.0
    %2549 = vmatmul.mubr.f32.gmra.mrb[0].mxu0 %v2163
    %v2550 = vpop.f32.mrb[0].mxu0
    %v2551 = vadd.f32 0.0, %v2550
    %v2552 = vpop.f32.mrb[0].mxu0
    %2553 = vdwg.mxu0
    %v2554 = vsel %vm51, %v2236, 0.0
    %v2555 = vsel %vm51, %v2241, 0.0
    %v2556 = vadd.f32 %v2554, %v2555
    %v2557 = vsel %vm51, %v2246, 0.0
    %v2558 = vadd.f32 %v2556, %v2557
    %v2559 = vsel %vm51, %v2251, 0.0
    %v2560 = vadd.f32 %v2558, %v2559
    %v2561 = vsel %vm51, %v2256, 0.0
    %v2562 = vadd.f32 %v2560, %v2561
    %v2563 = vsel %vm51, %v2261, 0.0
    %v2564 = vadd.f32 %v2562, %v2563
    %v2565 = vsel %vm51, %v2266, 0.0
    %v2566 = vadd.f32 %v2564, %v2565
    %v2567 = vsel %vm51, %v2271, 0.0
    %v2568 = vadd.f32 %v2566, %v2567
    %v2569 = vsel %vm51, %v2276, 0.0
    %v2570 = vadd.f32 %v2568, %v2569
    %v2571 = vsel %vm51, %v2281, 0.0
    %v2572 = vadd.f32 %v2570, %v2571
    %v2573 = vsel %vm51, %v2286, 0.0
    %v2574 = vadd.f32 %v2572, %v2573
    %v2575 = vsel %vm51, %v2291, 0.0
    %v2576 = vadd.f32 %v2574, %v2575
    %v2577 = vsel %vm51, %v2296, 0.0
    %v2578 = vadd.f32 %v2576, %v2577
    %v2579 = vsel %vm51, %v2301, 0.0
    %v2580 = vadd.f32 %v2578, %v2579
    %v2581 = vsel %vm51, %v2306, 0.0
    %v2582 = vadd.f32 %v2580, %v2581
    %v2583 = vsel %vm51, %v2311, 0.0
    %v2584 = vadd.f32 %v2582, %v2583
    %v2585 = vsel %vm51, %v2316, 0.0
    %v2586 = vadd.f32 %v2584, %v2585
    %v2587 = vsel %vm51, %v2321, 0.0
    %v2588 = vadd.f32 %v2586, %v2587
    %v2589 = vsel %vm51, %v2326, 0.0
    %v2590 = vadd.f32 %v2588, %v2589
    %v2591 = vsel %vm51, %v2331, 0.0
    %v2592 = vadd.f32 %v2590, %v2591
    %v2593 = vsel %vm51, %v2336, 0.0
    %v2594 = vadd.f32 %v2592, %v2593
    %v2595 = vsel %vm51, %v2341, 0.0
    %v2596 = vadd.f32 %v2594, %v2595
    %v2597 = vsel %vm51, %v2346, 0.0
    %v2598 = vadd.f32 %v2596, %v2597
    %v2599 = vsel %vm51, %v2351, 0.0
    %v2600 = vadd.f32 %v2598, %v2599
    %v2601 = vsel %vm51, %v2356, 0.0
    %v2602 = vadd.f32 %v2600, %v2601
    %v2603 = vsel %vm51, %v2361, 0.0
    %v2604 = vadd.f32 %v2602, %v2603
    %v2605 = vsel %vm51, %v2366, 0.0
    %v2606 = vadd.f32 %v2604, %v2605
    %v2607 = vsel %vm51, %v2371, 0.0
    %v2608 = vadd.f32 %v2606, %v2607
    %v2609 = vsel %vm51, %v2376, 0.0
    %v2610 = vadd.f32 %v2608, %v2609
    %v2611 = vsel %vm51, %v2381, 0.0
    %v2612 = vadd.f32 %v2610, %v2611
    %v2613 = vsel %vm51, %v2386, 0.0
    %v2614 = vadd.f32 %v2612, %v2613
    %v2615 = vsel %vm51, %v2391, 0.0
    %v2616 = vadd.f32 %v2614, %v2615
    %v2617 = vsel %vm51, %v2396, 0.0
    %v2618 = vadd.f32 %v2616, %v2617
    %v2619 = vsel %vm51, %v2401, 0.0
    %v2620 = vadd.f32 %v2618, %v2619
    %v2621 = vsel %vm51, %v2406, 0.0
    %v2622 = vadd.f32 %v2620, %v2621
    %v2623 = vsel %vm51, %v2411, 0.0
    %v2624 = vadd.f32 %v2622, %v2623
    %v2625 = vsel %vm51, %v2416, 0.0
    %v2626 = vadd.f32 %v2624, %v2625
    %v2627 = vsel %vm51, %v2421, 0.0
    %v2628 = vadd.f32 %v2626, %v2627
    %v2629 = vsel %vm51, %v2426, 0.0
    %v2630 = vadd.f32 %v2628, %v2629
    %v2631 = vsel %vm51, %v2431, 0.0
    %v2632 = vadd.f32 %v2630, %v2631
    %v2633 = vsel %vm51, %v2436, 0.0
    %v2634 = vadd.f32 %v2632, %v2633
    %v2635 = vsel %vm51, %v2441, 0.0
    %v2636 = vadd.f32 %v2634, %v2635
    %v2637 = vsel %vm51, %v2446, 0.0
    %v2638 = vadd.f32 %v2636, %v2637
    %v2639 = vsel %vm51, %v2451, 0.0
    %v2640 = vadd.f32 %v2638, %v2639
    %v2641 = vsel %vm51, %v2456, 0.0
    %v2642 = vadd.f32 %v2640, %v2641
    %v2643 = vsel %vm51, %v2461, 0.0
    %v2644 = vadd.f32 %v2642, %v2643
    %v2645 = vsel %vm51, %v2466, 0.0
    %v2646 = vadd.f32 %v2644, %v2645
    %v2647 = vsel %vm51, %v2471, 0.0
    %v2648 = vadd.f32 %v2646, %v2647
    %v2649 = vsel %vm51, %v2476, 0.0
    %v2650 = vadd.f32 %v2648, %v2649
    %v2651 = vsel %vm51, %v2481, 0.0
    %v2652 = vadd.f32 %v2650, %v2651
    %v2653 = vsel %vm51, %v2486, 0.0
    %v2654 = vadd.f32 %v2652, %v2653
    %v2655 = vsel %vm51, %v2491, 0.0
    %v2656 = vadd.f32 %v2654, %v2655
    %v2657 = vsel %vm51, %v2496, 0.0
    %v2658 = vadd.f32 %v2656, %v2657
    %v2659 = vsel %vm51, %v2501, 0.0
    %v2660 = vadd.f32 %v2658, %v2659
    %v2661 = vsel %vm51, %v2506, 0.0
    %v2662 = vadd.f32 %v2660, %v2661
    %v2663 = vsel %vm51, %v2511, 0.0
    %v2664 = vadd.f32 %v2662, %v2663
    %v2665 = vsel %vm51, %v2516, 0.0
    %v2666 = vadd.f32 %v2664, %v2665
    %v2667 = vsel %vm51, %v2521, 0.0
    %v2668 = vadd.f32 %v2666, %v2667
    %v2669 = vsel %vm51, %v2526, 0.0
    %v2670 = vadd.f32 %v2668, %v2669
    %v2671 = vsel %vm51, %v2531, 0.0
    %v2672 = vadd.f32 %v2670, %v2671
    %v2673 = vsel %vm51, %v2536, 0.0
    %v2674 = vadd.f32 %v2672, %v2673
    %v2675 = vsel %vm51, %v2541, 0.0
    %v2676 = vadd.f32 %v2674, %v2675
    %v2677 = vsel %vm51, %v2546, 0.0
    %v2678 = vadd.f32 %v2676, %v2677
    %v2679 = vsel %vm51, %v2551, 0.0
    %v2680 = vadd.f32 %v2678, %v2679
    %v2681 = vrot.slane %v2680, 4
    %v2682 = vadd.f32 %v2680, %v2681
    %v2683 = vrot.slane %v2682, 2
    %v2684 = vadd.f32 %v2682, %v2683
    %v2685 = vrot.slane %v2684, 1
    %v2686 = vadd.f32 %v2684, %v2685
    %v2687 = vmul.f32 %v2236, %v2236
    %v2688 = vmul.f32 %v2241, %v2241
    %v2689 = vmul.f32 %v2246, %v2246
    %v2690 = vmul.f32 %v2251, %v2251
    %v2691 = vmul.f32 %v2256, %v2256
    %v2692 = vmul.f32 %v2261, %v2261
    %v2693 = vmul.f32 %v2266, %v2266
    %v2694 = vmul.f32 %v2271, %v2271
    %v2695 = vmul.f32 %v2276, %v2276
    %v2696 = vmul.f32 %v2281, %v2281
    %v2697 = vmul.f32 %v2286, %v2286
    %v2698 = vmul.f32 %v2291, %v2291
    %v2699 = vmul.f32 %v2296, %v2296
    %v2700 = vmul.f32 %v2301, %v2301
    %v2701 = vmul.f32 %v2306, %v2306
    %v2702 = vmul.f32 %v2311, %v2311
    %v2703 = vmul.f32 %v2316, %v2316
    %v2704 = vmul.f32 %v2321, %v2321
    %v2705 = vmul.f32 %v2326, %v2326
    %v2706 = vmul.f32 %v2331, %v2331
    %v2707 = vmul.f32 %v2336, %v2336
    %v2708 = vmul.f32 %v2341, %v2341
    %v2709 = vmul.f32 %v2346, %v2346
    %v2710 = vmul.f32 %v2351, %v2351
    %v2711 = vmul.f32 %v2356, %v2356
    %v2712 = vmul.f32 %v2361, %v2361
    %v2713 = vmul.f32 %v2366, %v2366
    %v2714 = vmul.f32 %v2371, %v2371
    %v2715 = vmul.f32 %v2376, %v2376
    %v2716 = vmul.f32 %v2381, %v2381
    %v2717 = vmul.f32 %v2386, %v2386
    %v2718 = vmul.f32 %v2391, %v2391
    %v2719 = vmul.f32 %v2396, %v2396
    %v2720 = vmul.f32 %v2401, %v2401
    %v2721 = vmul.f32 %v2406, %v2406
    %v2722 = vmul.f32 %v2411, %v2411
    %v2723 = vmul.f32 %v2416, %v2416
    %v2724 = vmul.f32 %v2421, %v2421
    %v2725 = vmul.f32 %v2426, %v2426
    %v2726 = vmul.f32 %v2431, %v2431
    %v2727 = vmul.f32 %v2436, %v2436
    %v2728 = vmul.f32 %v2441, %v2441
    %v2729 = vmul.f32 %v2446, %v2446
    %v2730 = vmul.f32 %v2451, %v2451
    %v2731 = vmul.f32 %v2456, %v2456
    %v2732 = vmul.f32 %v2461, %v2461
    %v2733 = vmul.f32 %v2466, %v2466
    %v2734 = vmul.f32 %v2471, %v2471
    %v2735 = vmul.f32 %v2476, %v2476
    %v2736 = vmul.f32 %v2481, %v2481
    %v2737 = vmul.f32 %v2486, %v2486
    %v2738 = vmul.f32 %v2491, %v2491
    %v2739 = vmul.f32 %v2496, %v2496
    %v2740 = vmul.f32 %v2501, %v2501
    %v2741 = vmul.f32 %v2506, %v2506
    %v2742 = vmul.f32 %v2511, %v2511
    %v2743 = vmul.f32 %v2516, %v2516
    %v2744 = vmul.f32 %v2521, %v2521
    %v2745 = vmul.f32 %v2526, %v2526
    %v2746 = vmul.f32 %v2531, %v2531
    %v2747 = vmul.f32 %v2536, %v2536
    %v2748 = vmul.f32 %v2541, %v2541
    %v2749 = vmul.f32 %v2546, %v2546
    %v2750 = vmul.f32 %v2551, %v2551
    %v2751 = vsel %vm51, %v2687, 0.0
    %v2752 = vsel %vm51, %v2688, 0.0
    %v2753 = vadd.f32 %v2751, %v2752
    %v2754 = vsel %vm51, %v2689, 0.0
    %v2755 = vadd.f32 %v2753, %v2754
    %v2756 = vsel %vm51, %v2690, 0.0
    %v2757 = vadd.f32 %v2755, %v2756
    %v2758 = vsel %vm51, %v2691, 0.0
    %v2759 = vadd.f32 %v2757, %v2758
    %v2760 = vsel %vm51, %v2692, 0.0
    %v2761 = vadd.f32 %v2759, %v2760
    %v2762 = vsel %vm51, %v2693, 0.0
    %v2763 = vadd.f32 %v2761, %v2762
    %v2764 = vsel %vm51, %v2694, 0.0
    %v2765 = vadd.f32 %v2763, %v2764
    %v2766 = vsel %vm51, %v2695, 0.0
    %v2767 = vadd.f32 %v2765, %v2766
    %v2768 = vsel %vm51, %v2696, 0.0
    %v2769 = vadd.f32 %v2767, %v2768
    %v2770 = vsel %vm51, %v2697, 0.0
    %v2771 = vadd.f32 %v2769, %v2770
    %v2772 = vsel %vm51, %v2698, 0.0
    %v2773 = vadd.f32 %v2771, %v2772
    %v2774 = vsel %vm51, %v2699, 0.0
    %v2775 = vadd.f32 %v2773, %v2774
    %v2776 = vsel %vm51, %v2700, 0.0
    %v2777 = vadd.f32 %v2775, %v2776
    %v2778 = vsel %vm51, %v2701, 0.0
    %v2779 = vadd.f32 %v2777, %v2778
    %v2780 = vsel %vm51, %v2702, 0.0
    %v2781 = vadd.f32 %v2779, %v2780
    %v2782 = vsel %vm51, %v2703, 0.0
    %v2783 = vadd.f32 %v2781, %v2782
    %v2784 = vsel %vm51, %v2704, 0.0
    %v2785 = vadd.f32 %v2783, %v2784
    %v2786 = vsel %vm51, %v2705, 0.0
    %v2787 = vadd.f32 %v2785, %v2786
    %v2788 = vsel %vm51, %v2706, 0.0
    %v2789 = vadd.f32 %v2787, %v2788
    %v2790 = vsel %vm51, %v2707, 0.0
    %v2791 = vadd.f32 %v2789, %v2790
    %v2792 = vsel %vm51, %v2708, 0.0
    %v2793 = vadd.f32 %v2791, %v2792
    %v2794 = vsel %vm51, %v2709, 0.0
    %v2795 = vadd.f32 %v2793, %v2794
    %v2796 = vsel %vm51, %v2710, 0.0
    %v2797 = vadd.f32 %v2795, %v2796
    %v2798 = vsel %vm51, %v2711, 0.0
    %v2799 = vadd.f32 %v2797, %v2798
    %v2800 = vsel %vm51, %v2712, 0.0
    %v2801 = vadd.f32 %v2799, %v2800
    %v2802 = vsel %vm51, %v2713, 0.0
    %v2803 = vadd.f32 %v2801, %v2802
    %v2804 = vsel %vm51, %v2714, 0.0
    %v2805 = vadd.f32 %v2803, %v2804
    %v2806 = vsel %vm51, %v2715, 0.0
    %v2807 = vadd.f32 %v2805, %v2806
    %v2808 = vsel %vm51, %v2716, 0.0
    %v2809 = vadd.f32 %v2807, %v2808
    %v2810 = vsel %vm51, %v2717, 0.0
    %v2811 = vadd.f32 %v2809, %v2810
    %v2812 = vsel %vm51, %v2718, 0.0
    %v2813 = vadd.f32 %v2811, %v2812
    %v2814 = vsel %vm51, %v2719, 0.0
    %v2815 = vadd.f32 %v2813, %v2814
    %v2816 = vsel %vm51, %v2720, 0.0
    %v2817 = vadd.f32 %v2815, %v2816
    %v2818 = vsel %vm51, %v2721, 0.0
    %v2819 = vadd.f32 %v2817, %v2818
    %v2820 = vsel %vm51, %v2722, 0.0
    %v2821 = vadd.f32 %v2819, %v2820
    %v2822 = vsel %vm51, %v2723, 0.0
    %v2823 = vadd.f32 %v2821, %v2822
    %v2824 = vsel %vm51, %v2724, 0.0
    %v2825 = vadd.f32 %v2823, %v2824
    %v2826 = vsel %vm51, %v2725, 0.0
    %v2827 = vadd.f32 %v2825, %v2826
    %v2828 = vsel %vm51, %v2726, 0.0
    %v2829 = vadd.f32 %v2827, %v2828
    %v2830 = vsel %vm51, %v2727, 0.0
    %v2831 = vadd.f32 %v2829, %v2830
    %v2832 = vsel %vm51, %v2728, 0.0
    %v2833 = vadd.f32 %v2831, %v2832
    %v2834 = vsel %vm51, %v2729, 0.0
    %v2835 = vadd.f32 %v2833, %v2834
    %v2836 = vsel %vm51, %v2730, 0.0
    %v2837 = vadd.f32 %v2835, %v2836
    %v2838 = vsel %vm51, %v2731, 0.0
    %v2839 = vadd.f32 %v2837, %v2838
    %v2840 = vsel %vm51, %v2732, 0.0
    %v2841 = vadd.f32 %v2839, %v2840
    %v2842 = vsel %vm51, %v2733, 0.0
    %v2843 = vadd.f32 %v2841, %v2842
    %v2844 = vsel %vm51, %v2734, 0.0
    %v2845 = vadd.f32 %v2843, %v2844
    %v2846 = vsel %vm51, %v2735, 0.0
    %v2847 = vadd.f32 %v2845, %v2846
    %v2848 = vsel %vm51, %v2736, 0.0
    %v2849 = vadd.f32 %v2847, %v2848
    %v2850 = vsel %vm51, %v2737, 0.0
    %v2851 = vadd.f32 %v2849, %v2850
    %v2852 = vsel %vm51, %v2738, 0.0
    %v2853 = vadd.f32 %v2851, %v2852
    %v2854 = vsel %vm51, %v2739, 0.0
    %v2855 = vadd.f32 %v2853, %v2854
    %v2856 = vsel %vm51, %v2740, 0.0
    %v2857 = vadd.f32 %v2855, %v2856
    %v2858 = vsel %vm51, %v2741, 0.0
    %v2859 = vadd.f32 %v2857, %v2858
    %v2860 = vsel %vm51, %v2742, 0.0
    %v2861 = vadd.f32 %v2859, %v2860
    %v2862 = vsel %vm51, %v2743, 0.0
    %v2863 = vadd.f32 %v2861, %v2862
    %v2864 = vsel %vm51, %v2744, 0.0
    %v2865 = vadd.f32 %v2863, %v2864
    %v2866 = vsel %vm51, %v2745, 0.0
    %v2867 = vadd.f32 %v2865, %v2866
    %v2868 = vsel %vm51, %v2746, 0.0
    %v2869 = vadd.f32 %v2867, %v2868
    %v2870 = vsel %vm51, %v2747, 0.0
    %v2871 = vadd.f32 %v2869, %v2870
    %v2872 = vsel %vm51, %v2748, 0.0
    %v2873 = vadd.f32 %v2871, %v2872
    %v2874 = vsel %vm51, %v2749, 0.0
    %v2875 = vadd.f32 %v2873, %v2874
    %v2876 = vsel %vm51, %v2750, 0.0
    %v2877 = vadd.f32 %v2875, %v2876
    %v2878 = vrot.slane %v2877, 4
    %v2879 = vadd.f32 %v2877, %v2878
    %v2880 = vrot.slane %v2879, 2
    %v2881 = vadd.f32 %v2879, %v2880
    %v2882 = vrot.slane %v2881, 1
    %v2883 = vadd.f32 %v2881, %v2882
    %v2884 = vmul.f32 %v2686, 0.001953125
    %v2885 = vmul.f32 %v2883, 0.001953125
    %v2886 = vmul.f32 %v2884, %v2884
    %v2887 = vsub.f32 %v2885, %v2886
    %v2888 = vmax.f32 %v2887, 0.0
    %v2889 = vadd.f32 %v2888, 1e-05
    %v2890 = vrsqrt.pop %v2889
    %v2891 = vld [vmem:[%s3] sm:$0x1]
    %v2892 = vmul.f32 %v2890, %v2891
    %v2893 = vld [vmem:[%s4] sm:$0x1]
    %v2894 = vmul.f32 %v2884, %v2892
    %v2895 = vsub.f32 %v2893, %v2894
    %v2896 = vlaneseq
    %v2897 = vshrl.u32 %v2896, 7
    %v2898 = vsub.s32 0, %v2897
    %v2899 = vrot.slane %v2892, %v2898
    %v2900 = vmul.f32 %v2236, %v2899
    %v2901 = vmul.f32 %v2241, %v2899
    %v2902 = vmul.f32 %v2246, %v2899
    %v2903 = vmul.f32 %v2251, %v2899
    %v2904 = vmul.f32 %v2256, %v2899
    %v2905 = vmul.f32 %v2261, %v2899
    %v2906 = vmul.f32 %v2266, %v2899
    %v2907 = vmul.f32 %v2271, %v2899
    %v2908 = vmul.f32 %v2276, %v2899
    %v2909 = vmul.f32 %v2281, %v2899
    %v2910 = vmul.f32 %v2286, %v2899
    %v2911 = vmul.f32 %v2291, %v2899
    %v2912 = vmul.f32 %v2296, %v2899
    %v2913 = vmul.f32 %v2301, %v2899
    %v2914 = vmul.f32 %v2306, %v2899
    %v2915 = vmul.f32 %v2311, %v2899
    %v2916 = vmul.f32 %v2316, %v2899
    %v2917 = vmul.f32 %v2321, %v2899
    %v2918 = vmul.f32 %v2326, %v2899
    %v2919 = vmul.f32 %v2331, %v2899
    %v2920 = vmul.f32 %v2336, %v2899
    %v2921 = vmul.f32 %v2341, %v2899
    %v2922 = vmul.f32 %v2346, %v2899
    %v2923 = vmul.f32 %v2351, %v2899
    %v2924 = vmul.f32 %v2356, %v2899
    %v2925 = vmul.f32 %v2361, %v2899
    %v2926 = vmul.f32 %v2366, %v2899
    %v2927 = vmul.f32 %v2371, %v2899
    %v2928 = vmul.f32 %v2376, %v2899
    %v2929 = vmul.f32 %v2381, %v2899
    %v2930 = vmul.f32 %v2386, %v2899
    %v2931 = vmul.f32 %v2391, %v2899
    %v2932 = vmul.f32 %v2396, %v2899
    %v2933 = vmul.f32 %v2401, %v2899
    %v2934 = vmul.f32 %v2406, %v2899
    %v2935 = vmul.f32 %v2411, %v2899
    %v2936 = vmul.f32 %v2416, %v2899
    %v2937 = vmul.f32 %v2421, %v2899
    %v2938 = vmul.f32 %v2426, %v2899
    %v2939 = vmul.f32 %v2431, %v2899
    %v2940 = vmul.f32 %v2436, %v2899
    %v2941 = vmul.f32 %v2441, %v2899
    %v2942 = vmul.f32 %v2446, %v2899
    %v2943 = vmul.f32 %v2451, %v2899
    %v2944 = vmul.f32 %v2456, %v2899
    %v2945 = vmul.f32 %v2461, %v2899
    %v2946 = vmul.f32 %v2466, %v2899
    %v2947 = vmul.f32 %v2471, %v2899
    %v2948 = vmul.f32 %v2476, %v2899
    %v2949 = vmul.f32 %v2481, %v2899
    %v2950 = vmul.f32 %v2486, %v2899
    %v2951 = vmul.f32 %v2491, %v2899
    %v2952 = vmul.f32 %v2496, %v2899
    %v2953 = vmul.f32 %v2501, %v2899
    %v2954 = vmul.f32 %v2506, %v2899
    %v2955 = vmul.f32 %v2511, %v2899
    %v2956 = vmul.f32 %v2516, %v2899
    %v2957 = vmul.f32 %v2521, %v2899
    %v2958 = vmul.f32 %v2526, %v2899
    %v2959 = vmul.f32 %v2531, %v2899
    %v2960 = vmul.f32 %v2536, %v2899
    %v2961 = vmul.f32 %v2541, %v2899
    %v2962 = vmul.f32 %v2546, %v2899
    %v2963 = vmul.f32 %v2551, %v2899
    %v2965 = vlaneseq
    %v2966 = vshrl.u32 %v2965, 7
    %v2967 = vsub.s32 0, %v2966
    %v2968 = vrot.slane %v2895, %v2967
    %v2970 = vadd.f32 %v2900, %v2968
    %v2971 = vadd.f32 %v2901, %v2968
    %v2972 = vadd.f32 %v2902, %v2968
    %v2973 = vadd.f32 %v2903, %v2968
    %v2974 = vadd.f32 %v2904, %v2968
    %v2975 = vadd.f32 %v2905, %v2968
    %v2976 = vadd.f32 %v2906, %v2968
    %v2977 = vadd.f32 %v2907, %v2968
    %v2978 = vadd.f32 %v2908, %v2968
    %v2979 = vadd.f32 %v2909, %v2968
    %v2980 = vadd.f32 %v2910, %v2968
    %v2981 = vadd.f32 %v2911, %v2968
    %v2982 = vadd.f32 %v2912, %v2968
    %v2983 = vadd.f32 %v2913, %v2968
    %v2984 = vadd.f32 %v2914, %v2968
    %v2985 = vadd.f32 %v2915, %v2968
    %v2986 = vadd.f32 %v2916, %v2968
    %v2987 = vadd.f32 %v2917, %v2968
    %v2988 = vadd.f32 %v2918, %v2968
    %v2989 = vadd.f32 %v2919, %v2968
    %v2990 = vadd.f32 %v2920, %v2968
    %v2991 = vadd.f32 %v2921, %v2968
    %v2992 = vadd.f32 %v2922, %v2968
    %v2993 = vadd.f32 %v2923, %v2968
    %v2994 = vadd.f32 %v2924, %v2968
    %v2995 = vadd.f32 %v2925, %v2968
    %v2996 = vadd.f32 %v2926, %v2968
    %v2997 = vadd.f32 %v2927, %v2968
    %v2998 = vadd.f32 %v2928, %v2968
    %v2999 = vadd.f32 %v2929, %v2968
    %v3000 = vadd.f32 %v2930, %v2968
    %v3001 = vadd.f32 %v2931, %v2968
    %v3002 = vadd.f32 %v2932, %v2968
    %v3003 = vadd.f32 %v2933, %v2968
    %v3004 = vadd.f32 %v2934, %v2968
    %v3005 = vadd.f32 %v2935, %v2968
    %v3006 = vadd.f32 %v2936, %v2968
    %v3007 = vadd.f32 %v2937, %v2968
    %v3008 = vadd.f32 %v2938, %v2968
    %v3009 = vadd.f32 %v2939, %v2968
    %v3010 = vadd.f32 %v2940, %v2968
    %v3011 = vadd.f32 %v2941, %v2968
    %v3012 = vadd.f32 %v2942, %v2968
    %v3013 = vadd.f32 %v2943, %v2968
    %v3014 = vadd.f32 %v2944, %v2968
    %v3015 = vadd.f32 %v2945, %v2968
    %v3016 = vadd.f32 %v2946, %v2968
    %v3017 = vadd.f32 %v2947, %v2968
    %v3018 = vadd.f32 %v2948, %v2968
    %v3019 = vadd.f32 %v2949, %v2968
    %v3020 = vadd.f32 %v2950, %v2968
    %v3021 = vadd.f32 %v2951, %v2968
    %v3022 = vadd.f32 %v2952, %v2968
    %v3023 = vadd.f32 %v2953, %v2968
    %v3024 = vadd.f32 %v2954, %v2968
    %v3025 = vadd.f32 %v2955, %v2968
    %v3026 = vadd.f32 %v2956, %v2968
    %v3027 = vadd.f32 %v2957, %v2968
    %v3028 = vadd.f32 %v2958, %v2968
    %v3029 = vadd.f32 %v2959, %v2968
    %v3030 = vadd.f32 %v2960, %v2968
    %v3031 = vadd.f32 %v2961, %v2968
    %v3032 = vadd.f32 %v2962, %v2968
    %v3033 = vadd.f32 %v2963, %v2968
    %v3034 = vmax.f32 %v2970, 0.0
    %v3035 = vmax.f32 %v2971, 0.0
    %v3036 = vmax.f32 %v2972, 0.0
    %v3037 = vmax.f32 %v2973, 0.0
    %v3038 = vmax.f32 %v2974, 0.0
    %v3039 = vmax.f32 %v2975, 0.0
    %v3040 = vmax.f32 %v2976, 0.0
    %v3041 = vmax.f32 %v2977, 0.0
    %v3042 = vmax.f32 %v2978, 0.0
    %v3043 = vmax.f32 %v2979, 0.0
    %v3044 = vmax.f32 %v2980, 0.0
    %v3045 = vmax.f32 %v2981, 0.0
    %v3046 = vmax.f32 %v2982, 0.0
    %v3047 = vmax.f32 %v2983, 0.0
    %v3048 = vmax.f32 %v2984, 0.0
    %v3049 = vmax.f32 %v2985, 0.0
    %v3050 = vmax.f32 %v2986, 0.0
    %v3051 = vmax.f32 %v2987, 0.0
    %v3052 = vmax.f32 %v2988, 0.0
    %v3053 = vmax.f32 %v2989, 0.0
    %v3054 = vmax.f32 %v2990, 0.0
    %v3055 = vmax.f32 %v2991, 0.0
    %v3056 = vmax.f32 %v2992, 0.0
    %v3057 = vmax.f32 %v2993, 0.0
    %v3058 = vmax.f32 %v2994, 0.0
    %v3059 = vmax.f32 %v2995, 0.0
    %v3060 = vmax.f32 %v2996, 0.0
    %v3061 = vmax.f32 %v2997, 0.0
    %v3062 = vmax.f32 %v2998, 0.0
    %v3063 = vmax.f32 %v2999, 0.0
    %v3064 = vmax.f32 %v3000, 0.0
    %v3065 = vmax.f32 %v3001, 0.0
    %v3066 = vmax.f32 %v3002, 0.0
    %v3067 = vmax.f32 %v3003, 0.0
    %v3068 = vmax.f32 %v3004, 0.0
    %v3069 = vmax.f32 %v3005, 0.0
    %v3070 = vmax.f32 %v3006, 0.0
    %v3071 = vmax.f32 %v3007, 0.0
    %v3072 = vmax.f32 %v3008, 0.0
    %v3073 = vmax.f32 %v3009, 0.0
    %v3074 = vmax.f32 %v3010, 0.0
    %v3075 = vmax.f32 %v3011, 0.0
    %v3076 = vmax.f32 %v3012, 0.0
    %v3077 = vmax.f32 %v3013, 0.0
    %v3078 = vmax.f32 %v3014, 0.0
    %v3079 = vmax.f32 %v3015, 0.0
    %v3080 = vmax.f32 %v3016, 0.0
    %v3081 = vmax.f32 %v3017, 0.0
    %v3082 = vmax.f32 %v3018, 0.0
    %v3083 = vmax.f32 %v3019, 0.0
    %v3084 = vmax.f32 %v3020, 0.0
    %v3085 = vmax.f32 %v3021, 0.0
    %v3086 = vmax.f32 %v3022, 0.0
    %v3087 = vmax.f32 %v3023, 0.0
    %v3088 = vmax.f32 %v3024, 0.0
    %v3089 = vmax.f32 %v3025, 0.0
    %v3090 = vmax.f32 %v3026, 0.0
    %v3091 = vmax.f32 %v3027, 0.0
    %v3092 = vmax.f32 %v3028, 0.0
    %v3093 = vmax.f32 %v3029, 0.0
    %v3094 = vmax.f32 %v3030, 0.0
    %v3095 = vmax.f32 %v3031, 0.0
    %v3096 = vmax.f32 %v3032, 0.0
    %v3097 = vmax.f32 %v3033, 0.0
    %v3098 = vmin.f32 %v3034, 6.0
    %v3099 = vmin.f32 %v3035, 6.0
    %v3100 = vmin.f32 %v3036, 6.0
    %v3101 = vmin.f32 %v3037, 6.0
    %v3102 = vmin.f32 %v3038, 6.0
    %v3103 = vmin.f32 %v3039, 6.0
    %v3104 = vmin.f32 %v3040, 6.0
    %v3105 = vmin.f32 %v3041, 6.0
    %v3106 = vmin.f32 %v3042, 6.0
    %v3107 = vmin.f32 %v3043, 6.0
    %v3108 = vmin.f32 %v3044, 6.0
    %v3109 = vmin.f32 %v3045, 6.0
    %v3110 = vmin.f32 %v3046, 6.0
    %v3111 = vmin.f32 %v3047, 6.0
    %v3112 = vmin.f32 %v3048, 6.0
    %v3113 = vmin.f32 %v3049, 6.0
    %v3114 = vmin.f32 %v3050, 6.0
    %v3115 = vmin.f32 %v3051, 6.0
    %v3116 = vmin.f32 %v3052, 6.0
    %v3117 = vmin.f32 %v3053, 6.0
    %v3118 = vmin.f32 %v3054, 6.0
    %v3119 = vmin.f32 %v3055, 6.0
    %v3120 = vmin.f32 %v3056, 6.0
    %v3121 = vmin.f32 %v3057, 6.0
    %v3122 = vmin.f32 %v3058, 6.0
    %v3123 = vmin.f32 %v3059, 6.0
    %v3124 = vmin.f32 %v3060, 6.0
    %v3125 = vmin.f32 %v3061, 6.0
    %v3126 = vmin.f32 %v3062, 6.0
    %v3127 = vmin.f32 %v3063, 6.0
    %v3128 = vmin.f32 %v3064, 6.0
    %v3129 = vmin.f32 %v3065, 6.0
    %v3130 = vmin.f32 %v3066, 6.0
    %v3131 = vmin.f32 %v3067, 6.0
    %v3132 = vmin.f32 %v3068, 6.0
    %v3133 = vmin.f32 %v3069, 6.0
    %v3134 = vmin.f32 %v3070, 6.0
    %v3135 = vmin.f32 %v3071, 6.0
    %v3136 = vmin.f32 %v3072, 6.0
    %v3137 = vmin.f32 %v3073, 6.0
    %v3138 = vmin.f32 %v3074, 6.0
    %v3139 = vmin.f32 %v3075, 6.0
    %v3140 = vmin.f32 %v3076, 6.0
    %v3141 = vmin.f32 %v3077, 6.0
    %v3142 = vmin.f32 %v3078, 6.0
    %v3143 = vmin.f32 %v3079, 6.0
    %v3144 = vmin.f32 %v3080, 6.0
    %v3145 = vmin.f32 %v3081, 6.0
    %v3146 = vmin.f32 %v3082, 6.0
    %v3147 = vmin.f32 %v3083, 6.0
    %v3148 = vmin.f32 %v3084, 6.0
    %v3149 = vmin.f32 %v3085, 6.0
    %v3150 = vmin.f32 %v3086, 6.0
    %v3151 = vmin.f32 %v3087, 6.0
    %v3152 = vmin.f32 %v3088, 6.0
    %v3153 = vmin.f32 %v3089, 6.0
    %v3154 = vmin.f32 %v3090, 6.0
    %v3155 = vmin.f32 %v3091, 6.0
    %v3156 = vmin.f32 %v3092, 6.0
    %v3157 = vmin.f32 %v3093, 6.0
    %v3158 = vmin.f32 %v3094, 6.0
    %v3159 = vmin.f32 %v3095, 6.0
    %v3160 = vmin.f32 %v3096, 6.0
    %v3161 = vmin.f32 %v3097, 6.0
    %3162 = vst.msk [vmem:[%s203 + $0x1] sm:$0xff] %vm51, %v3098
    %3163 = vst.msk [vmem:[%s203 + $0x9] sm:$0xff] %vm51, %v3099
    %3164 = vst.msk [vmem:[%s203 + $0x19] sm:$0xff] %vm51, %v3100
    %3165 = vst.msk [vmem:[%s203 + $0x21] sm:$0xff] %vm51, %v3101
    %3166 = vst.msk [vmem:[%s203 + $0x31] sm:$0xff] %vm51, %v3102
    %3167 = vst.msk [vmem:[%s203 + $0x39] sm:$0xff] %vm51, %v3103
    %3168 = vst.msk [vmem:[%s203 + $0x49] sm:$0xff] %vm51, %v3104
    %3169 = vst.msk [vmem:[%s203 + $0x51] sm:$0xff] %vm51, %v3105
    %3170 = vst.msk [vmem:[%s203 + $0x61] sm:$0xff] %vm51, %v3106
    %3171 = vst.msk [vmem:[%s203 + $0x69] sm:$0xff] %vm51, %v3107
    %3172 = vst.msk [vmem:[%s203 + $0x79] sm:$0xff] %vm51, %v3108
    %3173 = vst.msk [vmem:[%s203 + $0x81] sm:$0xff] %vm51, %v3109
    %3174 = vst.msk [vmem:[%s203 + $0x91] sm:$0xff] %vm51, %v3110
    %3175 = vst.msk [vmem:[%s203 + $0x99] sm:$0xff] %vm51, %v3111
    %3176 = vst.msk [vmem:[%s203 + $0xa9] sm:$0xff] %vm51, %v3112
    %3177 = vst.msk [vmem:[%s203 + $0xb1] sm:$0xff] %vm51, %v3113
    %3178 = vst.msk [vmem:[%s203 + $0xc1] sm:$0xff] %vm51, %v3114
    %3179 = vst.msk [vmem:[%s203 + $0xc9] sm:$0xff] %vm51, %v3115
    %3180 = vst.msk [vmem:[%s203 + $0xd9] sm:$0xff] %vm51, %v3116
    %3181 = vst.msk [vmem:[%s203 + $0xe1] sm:$0xff] %vm51, %v3117
    %3182 = vst.msk [vmem:[%s203 + $0xf1] sm:$0xff] %vm51, %v3118
    %3183 = vst.msk [vmem:[%s203 + $0xf9] sm:$0xff] %vm51, %v3119
    %3184 = vst.msk [vmem:[%s203 + $0x109] sm:$0xff] %vm51, %v3120
    %3185 = vst.msk [vmem:[%s203 + $0x111] sm:$0xff] %vm51, %v3121
    %3186 = vst.msk [vmem:[%s203 + $0x121] sm:$0xff] %vm51, %v3122
    %3187 = vst.msk [vmem:[%s203 + $0x129] sm:$0xff] %vm51, %v3123
    %3188 = vst.msk [vmem:[%s203 + $0x139] sm:$0xff] %vm51, %v3124
    %3189 = vst.msk [vmem:[%s203 + $0x141] sm:$0xff] %vm51, %v3125
    %3190 = vst.msk [vmem:[%s203 + $0x151] sm:$0xff] %vm51, %v3126
    %3191 = vst.msk [vmem:[%s203 + $0x159] sm:$0xff] %vm51, %v3127
    %3192 = vst.msk [vmem:[%s203 + $0x169] sm:$0xff] %vm51, %v3128
    %3193 = vst.msk [vmem:[%s203 + $0x171] sm:$0xff] %vm51, %v3129
    %3194 = vst.msk [vmem:[%s203 + $0x1b1] sm:$0xff] %vm51, %v3130
    %3195 = vst.msk [vmem:[%s203 + $0x1b9] sm:$0xff] %vm51, %v3131
    %3196 = vst.msk [vmem:[%s203 + $0x1c9] sm:$0xff] %vm51, %v3132
    %3197 = vst.msk [vmem:[%s203 + $0x1d1] sm:$0xff] %vm51, %v3133
    %3198 = vst.msk [vmem:[%s203 + $0x1e1] sm:$0xff] %vm51, %v3134
    %3199 = vst.msk [vmem:[%s203 + $0x1e9] sm:$0xff] %vm51, %v3135
    %3200 = vst.msk [vmem:[%s203 + $0x1f9] sm:$0xff] %vm51, %v3136
    %3201 = vst.msk [vmem:[%s203 + $0x201] sm:$0xff] %vm51, %v3137
    %3202 = vst.msk [vmem:[%s203 + $0x211] sm:$0xff] %vm51, %v3138
    %3203 = vst.msk [vmem:[%s203 + $0x219] sm:$0xff] %vm51, %v3139
    %3204 = vst.msk [vmem:[%s203 + $0x229] sm:$0xff] %vm51, %v3140
    %3205 = vst.msk [vmem:[%s203 + $0x231] sm:$0xff] %vm51, %v3141
    %3206 = vst.msk [vmem:[%s203 + $0x241] sm:$0xff] %vm51, %v3142
    %3207 = vst.msk [vmem:[%s203 + $0x249] sm:$0xff] %vm51, %v3143
    %3208 = vst.msk [vmem:[%s203 + $0x259] sm:$0xff] %vm51, %v3144
    %3209 = vst.msk [vmem:[%s203 + $0x261] sm:$0xff] %vm51, %v3145
    %3210 = vst.msk [vmem:[%s203 + $0x271] sm:$0xff] %vm51, %v3146
    %3211 = vst.msk [vmem:[%s203 + $0x279] sm:$0xff] %vm51, %v3147
    %3212 = vst.msk [vmem:[%s203 + $0x289] sm:$0xff] %vm51, %v3148
    %3213 = vst.msk [vmem:[%s203 + $0x291] sm:$0xff] %vm51, %v3149
    %3214 = vst.msk [vmem:[%s203 + $0x2a1] sm:$0xff] %vm51, %v3150
    %3215 = vst.msk [vmem:[%s203 + $0x2a9] sm:$0xff] %vm51, %v3151
    %3216 = vst.msk [vmem:[%s203 + $0x2b9] sm:$0xff] %vm51, %v3152
    %3217 = vst.msk [vmem:[%s203 + $0x2c1] sm:$0xff] %vm51, %v3153
    %3218 = vst.msk [vmem:[%s203 + $0x2d1] sm:$0xff] %vm51, %v3154
    %3219 = vst.msk [vmem:[%s203 + $0x2d9] sm:$0xff] %vm51, %v3155
    %3220 = vst.msk [vmem:[%s203 + $0x2e9] sm:$0xff] %vm51, %v3156
    %3221 = vst.msk [vmem:[%s203 + $0x2f1] sm:$0xff] %vm51, %v3157
    %3222 = vst.msk [vmem:[%s203 + $0x301] sm:$0xff] %vm51, %v3158
    %3223 = vst.msk [vmem:[%s203 + $0x309] sm:$0xff] %vm51, %v3159
    %3224 = vst.msk [vmem:[%s203 + $0x319] sm:$0xff] %vm51, %v3160
    %3225 = vst.msk [vmem:[%s203 + $0x321] sm:$0xff] %vm51, %v3161
    %v3226 = vld [vmem:[%s5] sm:$0xff]
    %v3227 = vld [vmem:[%s5 + $0x8] sm:$0x1]
    %v3228 = vld [vmem:[#allocation2] sm:$0xff]
    %v3229 = vld [vmem:[#allocation2 + $0x8] sm:$0xff]
    %v3230 = vld [vmem:[#allocation2 + $0x18] sm:$0xff]
    %v3231 = vld [vmem:[#allocation2 + $0x20] sm:$0xff]
    %v3232 = vld [vmem:[#allocation2 + $0x30] sm:$0xff]
    %v3233 = vld [vmem:[#allocation2 + $0x38] sm:$0xff]
    %v3234 = vld [vmem:[#allocation2 + $0x48] sm:$0xff]
    %v3235 = vld [vmem:[#allocation2 + $0x50] sm:$0xff]
    %v3236 = vld [vmem:[#allocation2 + $0x60] sm:$0xff]
    %v3237 = vld [vmem:[#allocation2 + $0x68] sm:$0xff]
    %v3238 = vld [vmem:[#allocation2 + $0x78] sm:$0xff]
    %v3239 = vld [vmem:[#allocation2 + $0x80] sm:$0xff]
    %v3240 = vld [vmem:[#allocation2 + $0x90] sm:$0xff]
    %v3241 = vld [vmem:[#allocation2 + $0x98] sm:$0xff]
    %v3242 = vld [vmem:[#allocation2 + $0xa8] sm:$0xff]
    %v3243 = vld [vmem:[#allocation2 + $0xb0] sm:$0xff]
    %v3244 = vld [vmem:[#allocation2 + $0xc0] sm:$0xff]
    %v3245 = vld [vmem:[#allocation2 + $0xc8] sm:$0xff]
    %v3246 = vld [vmem:[#allocation2 + $0xd8] sm:$0xff]
    %v3247 = vld [vmem:[#allocation2 + $0xe0] sm:$0xff]
    %v3248 = vld [vmem:[#allocation2 + $0xf0] sm:$0xff]
    %v3249 = vld [vmem:[#allocation2 + $0xf8] sm:$0xff]
    %v3250 = vld [vmem:[#allocation2 + $0x108] sm:$0xff]
    %v3251 = vld [vmem:[#allocation2 + $0x110] sm:$0xff]
    %v3252 = vld [vmem:[#allocation2 + $0x120] sm:$0xff]
    %v3253 = vld [vmem:[#allocation2 + $0x128] sm:$0xff]
    %v3254 = vld [vmem:[#allocation2 + $0x138] sm:$0xff]
    %v3255 = vld [vmem:[#allocation2 + $0x140] sm:$0xff]
    %v3256 = vld [vmem:[#allocation2 + $0x150] sm:$0xff]
    %v3257 = vld [vmem:[#allocation2 + $0x158] sm:$0xff]
    %v3258 = vld [vmem:[#allocation2 + $0x168] sm:$0xff]
    %v3259 = vld [vmem:[#allocation2 + $0x170] sm:$0xff]
    %v3260 = vld [vmem:[#allocation2 + $0x1b0] sm:$0xff]
    %v3261 = vld [vmem:[#allocation2 + $0x1b8] sm:$0xff]
    %v3262 = vld [vmem:[#allocation2 + $0x1c8] sm:$0xff]
    %v3263 = vld [vmem:[#allocation2 + $0x1d0] sm:$0xff]
    %v3264 = vld [vmem:[#allocation2 + $0x1e0] sm:$0xff]
    %v3265 = vld [vmem:[#allocation2 + $0x1e8] sm:$0xff]
    %v3266 = vld [vmem:[#allocation2 + $0x1f8] sm:$0xff]
    %v3267 = vld [vmem:[#allocation2 + $0x200] sm:$0xff]
    %v3268 = vld [vmem:[#allocation2 + $0x210] sm:$0xff]
    %v3269 = vld [vmem:[#allocation2 + $0x218] sm:$0xff]
    %v3270 = vld [vmem:[#allocation2 + $0x228] sm:$0xff]
    %v3271 = vld [vmem:[#allocation2 + $0x230] sm:$0xff]
    %v3272 = vld [vmem:[#allocation2 + $0x240] sm:$0xff]
    %v3273 = vld [vmem:[#allocation2 + $0x248] sm:$0xff]
    %v3274 = vld [vmem:[#allocation2 + $0x258] sm:$0xff]
    %v3275 = vld [vmem:[#allocation2 + $0x260] sm:$0xff]
    %v3276 = vld [vmem:[#allocation2 + $0x270] sm:$0xff]
    %v3277 = vld [vmem:[#allocation2 + $0x278] sm:$0xff]
    %v3278 = vld [vmem:[#allocation2 + $0x288] sm:$0xff]
    %v3279 = vld [vmem:[#allocation2 + $0x290] sm:$0xff]
    %v3280 = vld [vmem:[#allocation2 + $0x2a0] sm:$0xff]
    %v3281 = vld [vmem:[#allocation2 + $0x2a8] sm:$0xff]
    %v3282 = vld [vmem:[#allocation2 + $0x2b8] sm:$0xff]
    %v3283 = vld [vmem:[#allocation2 + $0x2c0] sm:$0xff]
    %v3284 = vld [vmem:[#allocation2 + $0x2d0] sm:$0xff]
    %v3285 = vld [vmem:[#allocation2 + $0x2d8] sm:$0xff]
    %v3286 = vld [vmem:[#allocation2 + $0x2e8] sm:$0xff]
    %v3287 = vld [vmem:[#allocation2 + $0x2f0] sm:$0xff]
    %v3288 = vld [vmem:[#allocation2 + $0x300] sm:$0xff]
    %v3289 = vld [vmem:[#allocation2 + $0x308] sm:$0xff]
    %v3290 = vld [vmem:[#allocation2 + $0x318] sm:$0xff]
    %v3291 = vld [vmem:[#allocation2 + $0x320] sm:$0xff]
    %v3292 = vlaneseq
    %v3293 = vshrl.u32 %v3292, 7
    %v3294 = vsub.s32 0, %v3293
    %v3295 = vrot.slane %v3226, %v3294
    %v3296 = vmul.f32 %v3228, %v3295
    %v3297 = vmul.f32 %v3229, %v3295
    %v3298 = vmul.f32 %v3230, %v3295
    %v3299 = vmul.f32 %v3231, %v3295
    %v3300 = vmul.f32 %v3232, %v3295
    %v3301 = vmul.f32 %v3233, %v3295
    %v3302 = vmul.f32 %v3234, %v3295
    %v3303 = vmul.f32 %v3235, %v3295
    %v3304 = vmul.f32 %v3236, %v3295
    %v3305 = vmul.f32 %v3237, %v3295
    %v3306 = vmul.f32 %v3238, %v3295
    %v3307 = vmul.f32 %v3239, %v3295
    %v3308 = vmul.f32 %v3240, %v3295
    %v3309 = vmul.f32 %v3241, %v3295
    %v3310 = vmul.f32 %v3242, %v3295
    %v3311 = vmul.f32 %v3243, %v3295
    %v3312 = vmul.f32 %v3244, %v3295
    %v3313 = vmul.f32 %v3245, %v3295
    %v3314 = vmul.f32 %v3246, %v3295
    %v3315 = vmul.f32 %v3247, %v3295
    %v3316 = vmul.f32 %v3248, %v3295
    %v3317 = vmul.f32 %v3249, %v3295
    %v3318 = vmul.f32 %v3250, %v3295
    %v3319 = vmul.f32 %v3251, %v3295
    %v3320 = vmul.f32 %v3252, %v3295
    %v3321 = vmul.f32 %v3253, %v3295
    %v3322 = vmul.f32 %v3254, %v3295
    %v3323 = vmul.f32 %v3255, %v3295
    %v3324 = vmul.f32 %v3256, %v3295
    %v3325 = vmul.f32 %v3257, %v3295
    %v3326 = vmul.f32 %v3258, %v3295
    %v3327 = vmul.f32 %v3259, %v3295
    %v3328 = vmul.f32 %v3260, %v3295
    %v3329 = vmul.f32 %v3261, %v3295
    %v3330 = vmul.f32 %v3262, %v3295
    %v3331 = vmul.f32 %v3263, %v3295
    %v3332 = vmul.f32 %v3264, %v3295
    %v3333 = vmul.f32 %v3265, %v3295
    %v3334 = vmul.f32 %v3266, %v3295
    %v3335 = vmul.f32 %v3267, %v3295
    %v3336 = vmul.f32 %v3268, %v3295
    %v3337 = vmul.f32 %v3269, %v3295
    %v3338 = vmul.f32 %v3270, %v3295
    %v3339 = vmul.f32 %v3271, %v3295
    %v3340 = vmul.f32 %v3272, %v3295
    %v3341 = vmul.f32 %v3273, %v3295
    %v3342 = vmul.f32 %v3274, %v3295
    %v3343 = vmul.f32 %v3275, %v3295
    %v3344 = vmul.f32 %v3276, %v3295
    %v3345 = vmul.f32 %v3277, %v3295
    %v3346 = vmul.f32 %v3278, %v3295
    %v3347 = vmul.f32 %v3279, %v3295
    %v3348 = vmul.f32 %v3280, %v3295
    %v3349 = vmul.f32 %v3281, %v3295
    %v3350 = vmul.f32 %v3282, %v3295
    %v3351 = vmul.f32 %v3283, %v3295
    %v3352 = vmul.f32 %v3284, %v3295
    %v3353 = vmul.f32 %v3285, %v3295
    %v3354 = vmul.f32 %v3286, %v3295
    %v3355 = vmul.f32 %v3287, %v3295
    %v3356 = vmul.f32 %v3288, %v3295
    %v3357 = vmul.f32 %v3289, %v3295
    %v3358 = vmul.f32 %v3290, %v3295
    %v3359 = vmul.f32 %v3291, %v3295
    %v3360 = vld [vmem:[#allocation2 + $0x1] sm:$0xff]
    %v3361 = vld [vmem:[#allocation2 + $0x9] sm:$0xff]
    %v3362 = vld [vmem:[#allocation2 + $0x19] sm:$0xff]
    %v3363 = vld [vmem:[#allocation2 + $0x21] sm:$0xff]
    %v3364 = vld [vmem:[#allocation2 + $0x31] sm:$0xff]
    %v3365 = vld [vmem:[#allocation2 + $0x39] sm:$0xff]
    %v3366 = vld [vmem:[#allocation2 + $0x49] sm:$0xff]
    %v3367 = vld [vmem:[#allocation2 + $0x51] sm:$0xff]
    %v3368 = vld [vmem:[#allocation2 + $0x61] sm:$0xff]
    %v3369 = vld [vmem:[#allocation2 + $0x69] sm:$0xff]
    %v3370 = vld [vmem:[#allocation2 + $0x79] sm:$0xff]
    %v3371 = vld [vmem:[#allocation2 + $0x81] sm:$0xff]
    %v3372 = vld [vmem:[#allocation2 + $0x91] sm:$0xff]
    %v3373 = vld [vmem:[#allocation2 + $0x99] sm:$0xff]
    %v3374 = vld [vmem:[#allocation2 + $0xa9] sm:$0xff]
    %v3375 = vld [vmem:[#allocation2 + $0xb1] sm:$0xff]
    %v3376 = vld [vmem:[#allocation2 + $0xc1] sm:$0xff]
    %v3377 = vld [vmem:[#allocation2 + $0xc9] sm:$0xff]
    %v3378 = vld [vmem:[#allocation2 + $0xd9] sm:$0xff]
    %v3379 = vld [vmem:[#allocation2 + $0xe1] sm:$0xff]
    %v3380 = vld [vmem:[#allocation2 + $0xf1] sm:$0xff]
    %v3381 = vld [vmem:[#allocation2 + $0xf9] sm:$0xff]
    %v3382 = vld [vmem:[#allocation2 + $0x109] sm:$0xff]
    %v3383 = vld [vmem:[#allocation2 + $0x111] sm:$0xff]
    %v3384 = vld [vmem:[#allocation2 + $0x121] sm:$0xff]
    %v3385 = vld [vmem:[#allocation2 + $0x129] sm:$0xff]
    %v3386 = vld [vmem:[#allocation2 + $0x139] sm:$0xff]
    %v3387 = vld [vmem:[#allocation2 + $0x141] sm:$0xff]
    %v3388 = vld [vmem:[#allocation2 + $0x151] sm:$0xff]
    %v3389 = vld [vmem:[#allocation2 + $0x159] sm:$0xff]
    %v3390 = vld [vmem:[#allocation2 + $0x169] sm:$0xff]
    %v3391 = vld [vmem:[#allocation2 + $0x171] sm:$0xff]
    %v3392 = vld [vmem:[#allocation2 + $0x1b1] sm:$0xff]
    %v3393 = vld [vmem:[#allocation2 + $0x1b9] sm:$0xff]
    %v3394 = vld [vmem:[#allocation2 + $0x1c9] sm:$0xff]
    %v3395 = vld [vmem:[#allocation2 + $0x1d1] sm:$0xff]
    %v3396 = vld [vmem:[#allocation2 + $0x1e1] sm:$0xff]
    %v3397 = vld [vmem:[#allocation2 + $0x1e9] sm:$0xff]
    %v3398 = vld [vmem:[#allocation2 + $0x1f9] sm:$0xff]
    %v3399 = vld [vmem:[#allocation2 + $0x201] sm:$0xff]
    %v3400 = vld [vmem:[#allocation2 + $0x211] sm:$0xff]
    %v3401 = vld [vmem:[#allocation2 + $0x219] sm:$0xff]
    %v3402 = vld [vmem:[#allocation2 + $0x229] sm:$0xff]
    %v3403 = vld [vmem:[#allocation2 + $0x231] sm:$0xff]
    %v3404 = vld [vmem:[#allocation2 + $0x241] sm:$0xff]
    %v3405 = vld [vmem:[#allocation2 + $0x249] sm:$0xff]
    %v3406 = vld [vmem:[#allocation2 + $0x259] sm:$0xff]
    %v3407 = vld [vmem:[#allocation2 + $0x261] sm:$0xff]
    %v3408 = vld [vmem:[#allocation2 + $0x271] sm:$0xff]
    %v3409 = vld [vmem:[#allocation2 + $0x279] sm:$0xff]
    %v3410 = vld [vmem:[#allocation2 + $0x289] sm:$0xff]
    %v3411 = vld [vmem:[#allocation2 + $0x291] sm:$0xff]
    %v3412 = vld [vmem:[#allocation2 + $0x2a1] sm:$0xff]
    %v3413 = vld [vmem:[#allocation2 + $0x2a9] sm:$0xff]
    %v3414 = vld [vmem:[#allocation2 + $0x2b9] sm:$0xff]
    %v3415 = vld [vmem:[#allocation2 + $0x2c1] sm:$0xff]
    %v3416 = vld [vmem:[#allocation2 + $0x2d1] sm:$0xff]
    %v3417 = vld [vmem:[#allocation2 + $0x2d9] sm:$0xff]
    %v3418 = vld [vmem:[#allocation2 + $0x2e9] sm:$0xff]
    %v3419 = vld [vmem:[#allocation2 + $0x2f1] sm:$0xff]
    %v3420 = vld [vmem:[#allocation2 + $0x301] sm:$0xff]
    %v3421 = vld [vmem:[#allocation2 + $0x309] sm:$0xff]
    %v3422 = vld [vmem:[#allocation2 + $0x319] sm:$0xff]
    %v3423 = vld [vmem:[#allocation2 + $0x321] sm:$0xff]
    %v3424 = vlaneseq
    %v3425 = vshrl.u32 %v3424, 7
    %v3426 = vsub.s32 1, %v3425
    %v3427 = vrot.slane %v3226, %v3426
    %v3428 = vmul.f32 %v3360, %v3427
    %v3429 = vmul.f32 %v3361, %v3427
    %v3430 = vmul.f32 %v3362, %v3427
    %v3431 = vmul.f32 %v3363, %v3427
    %v3432 = vmul.f32 %v3364, %v3427
    %v3433 = vmul.f32 %v3365, %v3427
    %v3434 = vmul.f32 %v3366, %v3427
    %v3435 = vmul.f32 %v3367, %v3427
    %v3436 = vmul.f32 %v3368, %v3427
    %v3437 = vmul.f32 %v3369, %v3427
    %v3438 = vmul.f32 %v3370, %v3427
    %v3439 = vmul.f32 %v3371, %v3427
    %v3440 = vmul.f32 %v3372, %v3427
    %v3441 = vmul.f32 %v3373, %v3427
    %v3442 = vmul.f32 %v3374, %v3427
    %v3443 = vmul.f32 %v3375, %v3427
    %v3444 = vmul.f32 %v3376, %v3427
    %v3445 = vmul.f32 %v3377, %v3427
    %v3446 = vmul.f32 %v3378, %v3427
    %v3447 = vmul.f32 %v3379, %v3427
    %v3448 = vmul.f32 %v3380, %v3427
    %v3449 = vmul.f32 %v3381, %v3427
    %v3450 = vmul.f32 %v3382, %v3427
    %v3451 = vmul.f32 %v3383, %v3427
    %v3452 = vmul.f32 %v3384, %v3427
    %v3453 = vmul.f32 %v3385, %v3427
    %v3454 = vmul.f32 %v3386, %v3427
    %v3455 = vmul.f32 %v3387, %v3427
    %v3456 = vmul.f32 %v3388, %v3427
    %v3457 = vmul.f32 %v3389, %v3427
    %v3458 = vmul.f32 %v3390, %v3427
    %v3459 = vmul.f32 %v3391, %v3427
    %v3460 = vmul.f32 %v3392, %v3427
    %v3461 = vmul.f32 %v3393, %v3427
    %v3462 = vmul.f32 %v3394, %v3427
    %v3463 = vmul.f32 %v3395, %v3427
    %v3464 = vmul.f32 %v3396, %v3427
    %v3465 = vmul.f32 %v3397, %v3427
    %v3466 = vmul.f32 %v3398, %v3427
    %v3467 = vmul.f32 %v3399, %v3427
    %v3468 = vmul.f32 %v3400, %v3427
    %v3469 = vmul.f32 %v3401, %v3427
    %v3470 = vmul.f32 %v3402, %v3427
    %v3471 = vmul.f32 %v3403, %v3427
    %v3472 = vmul.f32 %v3404, %v3427
    %v3473 = vmul.f32 %v3405, %v3427
    %v3474 = vmul.f32 %v3406, %v3427
    %v3475 = vmul.f32 %v3407, %v3427
    %v3476 = vmul.f32 %v3408, %v3427
    %v3477 = vmul.f32 %v3409, %v3427
    %v3478 = vmul.f32 %v3410, %v3427
    %v3479 = vmul.f32 %v3411, %v3427
    %v3480 = vmul.f32 %v3412, %v3427
    %v3481 = vmul.f32 %v3413, %v3427
    %v3482 = vmul.f32 %v3414, %v3427
    %v3483 = vmul.f32 %v3415, %v3427
    %v3484 = vmul.f32 %v3416, %v3427
    %v3485 = vmul.f32 %v3417, %v3427
    %v3486 = vmul.f32 %v3418, %v3427
    %v3487 = vmul.f32 %v3419, %v3427
    %v3488 = vmul.f32 %v3420, %v3427
    %v3489 = vmul.f32 %v3421, %v3427
    %v3490 = vmul.f32 %v3422, %v3427
    %v3491 = vmul.f32 %v3423, %v3427
    %v3492 = vadd.f32 %v3296, %v3428
    %v3493 = vadd.f32 %v3297, %v3429
    %v3494 = vadd.f32 %v3298, %v3430
    %v3495 = vadd.f32 %v3299, %v3431
    %v3496 = vadd.f32 %v3300, %v3432
    %v3497 = vadd.f32 %v3301, %v3433
    %v3498 = vadd.f32 %v3302, %v3434
    %v3499 = vadd.f32 %v3303, %v3435
    %v3500 = vadd.f32 %v3304, %v3436
    %v3501 = vadd.f32 %v3305, %v3437
    %v3502 = vadd.f32 %v3306, %v3438
    %v3503 = vadd.f32 %v3307, %v3439
    %v3504 = vadd.f32 %v3308, %v3440
    %v3505 = vadd.f32 %v3309, %v3441
    %v3506 = vadd.f32 %v3310, %v3442
    %v3507 = vadd.f32 %v3311, %v3443
    %v3508 = vadd.f32 %v3312, %v3444
    %v3509 = vadd.f32 %v3313, %v3445
    %v3510 = vadd.f32 %v3314, %v3446
    %v3511 = vadd.f32 %v3315, %v3447
    %v3512 = vadd.f32 %v3316, %v3448
    %v3513 = vadd.f32 %v3317, %v3449
    %v3514 = vadd.f32 %v3318, %v3450
    %v3515 = vadd.f32 %v3319, %v3451
    %v3516 = vadd.f32 %v3320, %v3452
    %v3517 = vadd.f32 %v3321, %v3453
    %v3518 = vadd.f32 %v3322, %v3454
    %v3519 = vadd.f32 %v3323, %v3455
    %v3520 = vadd.f32 %v3324, %v3456
    %v3521 = vadd.f32 %v3325, %v3457
    %v3522 = vadd.f32 %v3326, %v3458
    %v3523 = vadd.f32 %v3327, %v3459
    %v3524 = vadd.f32 %v3328, %v3460
    %v3525 = vadd.f32 %v3329, %v3461
    %v3526 = vadd.f32 %v3330, %v3462
    %v3527 = vadd.f32 %v3331, %v3463
    %v3528 = vadd.f32 %v3332, %v3464
    %v3529 = vadd.f32 %v3333, %v3465
    %v3530 = vadd.f32 %v3334, %v3466
    %v3531 = vadd.f32 %v3335, %v3467
    %v3532 = vadd.f32 %v3336, %v3468
    %v3533 = vadd.f32 %v3337, %v3469
    %v3534 = vadd.f32 %v3338, %v3470
    %v3535 = vadd.f32 %v3339, %v3471
    %v3536 = vadd.f32 %v3340, %v3472
    %v3537 = vadd.f32 %v3341, %v3473
    %v3538 = vadd.f32 %v3342, %v3474
    %v3539 = vadd.f32 %v3343, %v3475
    %v3540 = vadd.f32 %v3344, %v3476
    %v3541 = vadd.f32 %v3345, %v3477
    %v3542 = vadd.f32 %v3346, %v3478
    %v3543 = vadd.f32 %v3347, %v3479
    %v3544 = vadd.f32 %v3348, %v3480
    %v3545 = vadd.f32 %v3349, %v3481
    %v3546 = vadd.f32 %v3350, %v3482
    %v3547 = vadd.f32 %v3351, %v3483
    %v3548 = vadd.f32 %v3352, %v3484
    %v3549 = vadd.f32 %v3353, %v3485
    %v3550 = vadd.f32 %v3354, %v3486
    %v3551 = vadd.f32 %v3355, %v3487
    %v3552 = vadd.f32 %v3356, %v3488
    %v3553 = vadd.f32 %v3357, %v3489
    %v3554 = vadd.f32 %v3358, %v3490
    %v3555 = vadd.f32 %v3359, %v3491
    %v3556 = vld [vmem:[#allocation2 + $0x2] sm:$0xff]
    %v3557 = vld [vmem:[#allocation2 + $0xa] sm:$0xff]
    %v3558 = vld [vmem:[#allocation2 + $0x1a] sm:$0xff]
    %v3559 = vld [vmem:[#allocation2 + $0x22] sm:$0xff]
    %v3560 = vld [vmem:[#allocation2 + $0x32] sm:$0xff]
    %v3561 = vld [vmem:[#allocation2 + $0x3a] sm:$0xff]
    %v3562 = vld [vmem:[#allocation2 + $0x4a] sm:$0xff]
    %v3563 = vld [vmem:[#allocation2 + $0x52] sm:$0xff]
    %v3564 = vld [vmem:[#allocation2 + $0x62] sm:$0xff]
    %v3565 = vld [vmem:[#allocation2 + $0x6a] sm:$0xff]
    %v3566 = vld [vmem:[#allocation2 + $0x7a] sm:$0xff]
    %v3567 = vld [vmem:[#allocation2 + $0x82] sm:$0xff]
    %v3568 = vld [vmem:[#allocation2 + $0x92] sm:$0xff]
    %v3569 = vld [vmem:[#allocation2 + $0x9a] sm:$0xff]
    %v3570 = vld [vmem:[#allocation2 + $0xaa] sm:$0xff]
    %v3571 = vld [vmem:[#allocation2 + $0xb2] sm:$0xff]
    %v3572 = vld [vmem:[#allocation2 + $0xc2] sm:$0xff]
    %v3573 = vld [vmem:[#allocation2 + $0xca] sm:$0xff]
    %v3574 = vld [vmem:[#allocation2 + $0xda] sm:$0xff]
    %v3575 = vld [vmem:[#allocation2 + $0xe2] sm:$0xff]
    %v3576 = vld [vmem:[#allocation2 + $0xf2] sm:$0xff]
    %v3577 = vld [vmem:[#allocation2 + $0xfa] sm:$0xff]
    %v3578 = vld [vmem:[#allocation2 + $0x10a] sm:$0xff]
    %v3579 = vld [vmem:[#allocation2 + $0x112] sm:$0xff]
    %v3580 = vld [vmem:[#allocation2 + $0x122] sm:$0xff]
    %v3581 = vld [vmem:[#allocation2 + $0x12a] sm:$0xff]
    %v3582 = vld [vmem:[#allocation2 + $0x13a] sm:$0xff]
    %v3583 = vld [vmem:[#allocation2 + $0x142] sm:$0xff]
    %v3584 = vld [vmem:[#allocation2 + $0x152] sm:$0xff]
    %v3585 = vld [vmem:[#allocation2 + $0x15a] sm:$0xff]
    %v3586 = vld [vmem:[#allocation2 + $0x16a] sm:$0xff]
    %v3587 = vld [vmem:[#allocation2 + $0x172] sm:$0xff]
    %v3588 = vld [vmem:[#allocation2 + $0x1b2] sm:$0xff]
    %v3589 = vld [vmem:[#allocation2 + $0x1ba] sm:$0xff]
    %v3590 = vld [vmem:[#allocation2 + $0x1ca] sm:$0xff]
    %v3591 = vld [vmem:[#allocation2 + $0x1d2] sm:$0xff]
    %v3592 = vld [vmem:[#allocation2 + $0x1e2] sm:$0xff]
    %v3593 = vld [vmem:[#allocation2 + $0x1ea] sm:$0xff]
    %v3594 = vld [vmem:[#allocation2 + $0x1fa] sm:$0xff]
    %v3595 = vld [vmem:[#allocation2 + $0x202] sm:$0xff]
    %v3596 = vld [vmem:[#allocation2 + $0x212] sm:$0xff]
    %v3597 = vld [vmem:[#allocation2 + $0x21a] sm:$0xff]
    %v3598 = vld [vmem:[#allocation2 + $0x22a] sm:$0xff]
    %v3599 = vld [vmem:[#allocation2 + $0x232] sm:$0xff]
    %v3600 = vld [vmem:[#allocation2 + $0x242] sm:$0xff]
    %v3601 = vld [vmem:[#allocation2 + $0x24a] sm:$0xff]
    %v3602 = vld [vmem:[#allocation2 + $0x25a] sm:$0xff]
    %v3603 = vld [vmem:[#allocation2 + $0x262] sm:$0xff]
    %v3604 = vld [vmem:[#allocation2 + $0x272] sm:$0xff]
    %v3605 = vld [vmem:[#allocation2 + $0x27a] sm:$0xff]
    %v3606 = vld [vmem:[#allocation2 + $0x28a] sm:$0xff]
    %v3607 = vld [vmem:[#allocation2 + $0x292] sm:$0xff]
    %v3608 = vld [vmem:[#allocation2 + $0x2a2] sm:$0xff]
    %v3609 = vld [vmem:[#allocation2 + $0x2aa] sm:$0xff]
    %v3610 = vld [vmem:[#allocation2 + $0x2ba] sm:$0xff]
    %v3611 = vld [vmem:[#allocation2 + $0x2c2] sm:$0xff]
    %v3612 = vld [vmem:[#allocation2 + $0x2d2] sm:$0xff]
    %v3613 = vld [vmem:[#allocation2 + $0x2da] sm:$0xff]
    %v3614 = vld [vmem:[#allocation2 + $0x2ea] sm:$0xff]
    %v3615 = vld [vmem:[#allocation2 + $0x2f2] sm:$0xff]
    %v3616 = vld [vmem:[#allocation2 + $0x302] sm:$0xff]
    %v3617 = vld [vmem:[#allocation2 + $0x30a] sm:$0xff]
    %v3618 = vld [vmem:[#allocation2 + $0x31a] sm:$0xff]
    %v3619 = vld [vmem:[#allocation2 + $0x322] sm:$0xff]
    %v3620 = vlaneseq
    %v3621 = vshrl.u32 %v3620, 7
    %v3622 = vsub.s32 2, %v3621
    %v3623 = vrot.slane %v3226, %v3622
    %v3624 = vmul.f32 %v3556, %v3623
    %v3625 = vmul.f32 %v3557, %v3623
    %v3626 = vmul.f32 %v3558, %v3623
    %v3627 = vmul.f32 %v3559, %v3623
    %v3628 = vmul.f32 %v3560, %v3623
    %v3629 = vmul.f32 %v3561, %v3623
    %v3630 = vmul.f32 %v3562, %v3623
    %v3631 = vmul.f32 %v3563, %v3623
    %v3632 = vmul.f32 %v3564, %v3623
    %v3633 = vmul.f32 %v3565, %v3623
    %v3634 = vmul.f32 %v3566, %v3623
    %v3635 = vmul.f32 %v3567, %v3623
    %v3636 = vmul.f32 %v3568, %v3623
    %v3637 = vmul.f32 %v3569, %v3623
    %v3638 = vmul.f32 %v3570, %v3623
    %v3639 = vmul.f32 %v3571, %v3623
    %v3640 = vmul.f32 %v3572, %v3623
    %v3641 = vmul.f32 %v3573, %v3623
    %v3642 = vmul.f32 %v3574, %v3623
    %v3643 = vmul.f32 %v3575, %v3623
    %v3644 = vmul.f32 %v3576, %v3623
    %v3645 = vmul.f32 %v3577, %v3623
    %v3646 = vmul.f32 %v3578, %v3623
    %v3647 = vmul.f32 %v3579, %v3623
    %v3648 = vmul.f32 %v3580, %v3623
    %v3649 = vmul.f32 %v3581, %v3623
    %v3650 = vmul.f32 %v3582, %v3623
    %v3651 = vmul.f32 %v3583, %v3623
    %v3652 = vmul.f32 %v3584, %v3623
    %v3653 = vmul.f32 %v3585, %v3623
    %v3654 = vmul.f32 %v3586, %v3623
    %v3655 = vmul.f32 %v3587, %v3623
    %v3656 = vmul.f32 %v3588, %v3623
    %v3657 = vmul.f32 %v3589, %v3623
    %v3658 = vmul.f32 %v3590, %v3623
    %v3659 = vmul.f32 %v3591, %v3623
    %v3660 = vmul.f32 %v3592, %v3623
    %v3661 = vmul.f32 %v3593, %v3623
    %v3662 = vmul.f32 %v3594, %v3623
    %v3663 = vmul.f32 %v3595, %v3623
    %v3664 = vmul.f32 %v3596, %v3623
    %v3665 = vmul.f32 %v3597, %v3623
    %v3666 = vmul.f32 %v3598, %v3623
    %v3667 = vmul.f32 %v3599, %v3623
    %v3668 = vmul.f32 %v3600, %v3623
    %v3669 = vmul.f32 %v3601, %v3623
    %v3670 = vmul.f32 %v3602, %v3623
    %v3671 = vmul.f32 %v3603, %v3623
    %v3672 = vmul.f32 %v3604, %v3623
    %v3673 = vmul.f32 %v3605, %v3623
    %v3674 = vmul.f32 %v3606, %v3623
    %v3675 = vmul.f32 %v3607, %v3623
    %v3676 = vmul.f32 %v3608, %v3623
    %v3677 = vmul.f32 %v3609, %v3623
    %v3678 = vmul.f32 %v3610, %v3623
    %v3679 = vmul.f32 %v3611, %v3623
    %v3680 = vmul.f32 %v3612, %v3623
    %v3681 = vmul.f32 %v3613, %v3623
    %v3682 = vmul.f32 %v3614, %v3623
    %v3683 = vmul.f32 %v3615, %v3623
    %v3684 = vmul.f32 %v3616, %v3623
    %v3685 = vmul.f32 %v3617, %v3623
    %v3686 = vmul.f32 %v3618, %v3623
    %v3687 = vmul.f32 %v3619, %v3623
    %v3688 = vadd.f32 %v3492, %v3624
    %v3689 = vadd.f32 %v3493, %v3625
    %v3690 = vadd.f32 %v3494, %v3626
    %v3691 = vadd.f32 %v3495, %v3627
    %v3692 = vadd.f32 %v3496, %v3628
    %v3693 = vadd.f32 %v3497, %v3629
    %v3694 = vadd.f32 %v3498, %v3630
    %v3695 = vadd.f32 %v3499, %v3631
    %v3696 = vadd.f32 %v3500, %v3632
    %v3697 = vadd.f32 %v3501, %v3633
    %v3698 = vadd.f32 %v3502, %v3634
    %v3699 = vadd.f32 %v3503, %v3635
    %v3700 = vadd.f32 %v3504, %v3636
    %v3701 = vadd.f32 %v3505, %v3637
    %v3702 = vadd.f32 %v3506, %v3638
    %v3703 = vadd.f32 %v3507, %v3639
    %v3704 = vadd.f32 %v3508, %v3640
    %v3705 = vadd.f32 %v3509, %v3641
    %v3706 = vadd.f32 %v3510, %v3642
    %v3707 = vadd.f32 %v3511, %v3643
    %v3708 = vadd.f32 %v3512, %v3644
    %v3709 = vadd.f32 %v3513, %v3645
    %v3710 = vadd.f32 %v3514, %v3646
    %v3711 = vadd.f32 %v3515, %v3647
    %v3712 = vadd.f32 %v3516, %v3648
    %v3713 = vadd.f32 %v3517, %v3649
    %v3714 = vadd.f32 %v3518, %v3650
    %v3715 = vadd.f32 %v3519, %v3651
    %v3716 = vadd.f32 %v3520, %v3652
    %v3717 = vadd.f32 %v3521, %v3653
    %v3718 = vadd.f32 %v3522, %v3654
    %v3719 = vadd.f32 %v3523, %v3655
    %v3720 = vadd.f32 %v3524, %v3656
    %v3721 = vadd.f32 %v3525, %v3657
    %v3722 = vadd.f32 %v3526, %v3658
    %v3723 = vadd.f32 %v3527, %v3659
    %v3724 = vadd.f32 %v3528, %v3660
    %v3725 = vadd.f32 %v3529, %v3661
    %v3726 = vadd.f32 %v3530, %v3662
    %v3727 = vadd.f32 %v3531, %v3663
    %v3728 = vadd.f32 %v3532, %v3664
    %v3729 = vadd.f32 %v3533, %v3665
    %v3730 = vadd.f32 %v3534, %v3666
    %v3731 = vadd.f32 %v3535, %v3667
    %v3732 = vadd.f32 %v3536, %v3668
    %v3733 = vadd.f32 %v3537, %v3669
    %v3734 = vadd.f32 %v3538, %v3670
    %v3735 = vadd.f32 %v3539, %v3671
    %v3736 = vadd.f32 %v3540, %v3672
    %v3737 = vadd.f32 %v3541, %v3673
    %v3738 = vadd.f32 %v3542, %v3674
    %v3739 = vadd.f32 %v3543, %v3675
    %v3740 = vadd.f32 %v3544, %v3676
    %v3741 = vadd.f32 %v3545, %v3677
    %v3742 = vadd.f32 %v3546, %v3678
    %v3743 = vadd.f32 %v3547, %v3679
    %v3744 = vadd.f32 %v3548, %v3680
    %v3745 = vadd.f32 %v3549, %v3681
    %v3746 = vadd.f32 %v3550, %v3682
    %v3747 = vadd.f32 %v3551, %v3683
    %v3748 = vadd.f32 %v3552, %v3684
    %v3749 = vadd.f32 %v3553, %v3685
    %v3750 = vadd.f32 %v3554, %v3686
    %v3751 = vadd.f32 %v3555, %v3687
    %v3752 = vld [vmem:[%s203] sm:$0xff]
    %v3753 = vld [vmem:[%s203 + $0x8] sm:$0xff]
    %v3754 = vld [vmem:[%s203 + $0x18] sm:$0xff]
    %v3755 = vld [vmem:[%s203 + $0x20] sm:$0xff]
    %v3756 = vld [vmem:[%s203 + $0x30] sm:$0xff]
    %v3757 = vld [vmem:[%s203 + $0x38] sm:$0xff]
    %v3758 = vld [vmem:[%s203 + $0x48] sm:$0xff]
    %v3759 = vld [vmem:[%s203 + $0x50] sm:$0xff]
    %v3760 = vld [vmem:[%s203 + $0x60] sm:$0xff]
    %v3761 = vld [vmem:[%s203 + $0x68] sm:$0xff]
    %v3762 = vld [vmem:[%s203 + $0x78] sm:$0xff]
    %v3763 = vld [vmem:[%s203 + $0x80] sm:$0xff]
    %v3764 = vld [vmem:[%s203 + $0x90] sm:$0xff]
    %v3765 = vld [vmem:[%s203 + $0x98] sm:$0xff]
    %v3766 = vld [vmem:[%s203 + $0xa8] sm:$0xff]
    %v3767 = vld [vmem:[%s203 + $0xb0] sm:$0xff]
    %v3768 = vld [vmem:[%s203 + $0xc0] sm:$0xff]
    %v3769 = vld [vmem:[%s203 + $0xc8] sm:$0xff]
    %v3770 = vld [vmem:[%s203 + $0xd8] sm:$0xff]
    %v3771 = vld [vmem:[%s203 + $0xe0] sm:$0xff]
    %v3772 = vld [vmem:[%s203 + $0xf0] sm:$0xff]
    %v3773 = vld [vmem:[%s203 + $0xf8] sm:$0xff]
    %v3774 = vld [vmem:[%s203 + $0x108] sm:$0xff]
    %v3775 = vld [vmem:[%s203 + $0x110] sm:$0xff]
    %v3776 = vld [vmem:[%s203 + $0x120] sm:$0xff]
    %v3777 = vld [vmem:[%s203 + $0x128] sm:$0xff]
    %v3778 = vld [vmem:[%s203 + $0x138] sm:$0xff]
    %v3779 = vld [vmem:[%s203 + $0x140] sm:$0xff]
    %v3780 = vld [vmem:[%s203 + $0x150] sm:$0xff]
    %v3781 = vld [vmem:[%s203 + $0x158] sm:$0xff]
    %v3782 = vld [vmem:[%s203 + $0x168] sm:$0xff]
    %v3783 = vld [vmem:[%s203 + $0x170] sm:$0xff]
    %v3784 = vld [vmem:[%s203 + $0x1b0] sm:$0xff]
    %v3785 = vld [vmem:[%s203 + $0x1b8] sm:$0xff]
    %v3786 = vld [vmem:[%s203 + $0x1c8] sm:$0xff]
    %v3787 = vld [vmem:[%s203 + $0x1d0] sm:$0xff]
    %v3788 = vld [vmem:[%s203 + $0x1e0] sm:$0xff]
    %v3789 = vld [vmem:[%s203 + $0x1e8] sm:$0xff]
    %v3790 = vld [vmem:[%s203 + $0x1f8] sm:$0xff]
    %v3791 = vld [vmem:[%s203 + $0x200] sm:$0xff]
    %v3792 = vld [vmem:[%s203 + $0x210] sm:$0xff]
    %v3793 = vld [vmem:[%s203 + $0x218] sm:$0xff]
    %v3794 = vld [vmem:[%s203 + $0x228] sm:$0xff]
    %v3795 = vld [vmem:[%s203 + $0x230] sm:$0xff]
    %v3796 = vld [vmem:[%s203 + $0x240] sm:$0xff]
    %v3797 = vld [vmem:[%s203 + $0x248] sm:$0xff]
    %v3798 = vld [vmem:[%s203 + $0x258] sm:$0xff]
    %v3799 = vld [vmem:[%s203 + $0x260] sm:$0xff]
    %v3800 = vld [vmem:[%s203 + $0x270] sm:$0xff]
    %v3801 = vld [vmem:[%s203 + $0x278] sm:$0xff]
    %v3802 = vld [vmem:[%s203 + $0x288] sm:$0xff]
    %v3803 = vld [vmem:[%s203 + $0x290] sm:$0xff]
    %v3804 = vld [vmem:[%s203 + $0x2a0] sm:$0xff]
    %v3805 = vld [vmem:[%s203 + $0x2a8] sm:$0xff]
    %v3806 = vld [vmem:[%s203 + $0x2b8] sm:$0xff]
    %v3807 = vld [vmem:[%s203 + $0x2c0] sm:$0xff]
    %v3808 = vld [vmem:[%s203 + $0x2d0] sm:$0xff]
    %v3809 = vld [vmem:[%s203 + $0x2d8] sm:$0xff]
    %v3810 = vld [vmem:[%s203 + $0x2e8] sm:$0xff]
    %v3811 = vld [vmem:[%s203 + $0x2f0] sm:$0xff]
    %v3812 = vld [vmem:[%s203 + $0x300] sm:$0xff]
    %v3813 = vld [vmem:[%s203 + $0x308] sm:$0xff]
    %v3814 = vld [vmem:[%s203 + $0x318] sm:$0xff]
    %v3815 = vld [vmem:[%s203 + $0x320] sm:$0xff]
    %v3816 = vlaneseq
    %v3817 = vshrl.u32 %v3816, 7
    %v3818 = vsub.s32 3, %v3817
    %v3819 = vrot.slane %v3226, %v3818
    %v3820 = vmul.f32 %v3752, %v3819
    %v3821 = vmul.f32 %v3753, %v3819
    %v3822 = vmul.f32 %v3754, %v3819
    %v3823 = vmul.f32 %v3755, %v3819
    %v3824 = vmul.f32 %v3756, %v3819
    %v3825 = vmul.f32 %v3757, %v3819
    %v3826 = vmul.f32 %v3758, %v3819
    %v3827 = vmul.f32 %v3759, %v3819
    %v3828 = vmul.f32 %v3760, %v3819
    %v3829 = vmul.f32 %v3761, %v3819
    %v3830 = vmul.f32 %v3762, %v3819
    %v3831 = vmul.f32 %v3763, %v3819
    %v3832 = vmul.f32 %v3764, %v3819
    %v3833 = vmul.f32 %v3765, %v3819
    %v3834 = vmul.f32 %v3766, %v3819
    %v3835 = vmul.f32 %v3767, %v3819
    %v3836 = vmul.f32 %v3768, %v3819
    %v3837 = vmul.f32 %v3769, %v3819
    %v3838 = vmul.f32 %v3770, %v3819
    %v3839 = vmul.f32 %v3771, %v3819
    %v3840 = vmul.f32 %v3772, %v3819
    %v3841 = vmul.f32 %v3773, %v3819
    %v3842 = vmul.f32 %v3774, %v3819
    %v3843 = vmul.f32 %v3775, %v3819
    %v3844 = vmul.f32 %v3776, %v3819
    %v3845 = vmul.f32 %v3777, %v3819
    %v3846 = vmul.f32 %v3778, %v3819
    %v3847 = vmul.f32 %v3779, %v3819
    %v3848 = vmul.f32 %v3780, %v3819
    %v3849 = vmul.f32 %v3781, %v3819
    %v3850 = vmul.f32 %v3782, %v3819
    %v3851 = vmul.f32 %v3783, %v3819
    %v3852 = vmul.f32 %v3784, %v3819
    %v3853 = vmul.f32 %v3785, %v3819
    %v3854 = vmul.f32 %v3786, %v3819
    %v3855 = vmul.f32 %v3787, %v3819
    %v3856 = vmul.f32 %v3788, %v3819
    %v3857 = vmul.f32 %v3789, %v3819
    %v3858 = vmul.f32 %v3790, %v3819
    %v3859 = vmul.f32 %v3791, %v3819
    %v3860 = vmul.f32 %v3792, %v3819
    %v3861 = vmul.f32 %v3793, %v3819
    %v3862 = vmul.f32 %v3794, %v3819
    %v3863 = vmul.f32 %v3795, %v3819
    %v3864 = vmul.f32 %v3796, %v3819
    %v3865 = vmul.f32 %v3797, %v3819
    %v3866 = vmul.f32 %v3798, %v3819
    %v3867 = vmul.f32 %v3799, %v3819
    %v3868 = vmul.f32 %v3800, %v3819
    %v3869 = vmul.f32 %v3801, %v3819
    %v3870 = vmul.f32 %v3802, %v3819
    %v3871 = vmul.f32 %v3803, %v3819
    %v3872 = vmul.f32 %v3804, %v3819
    %v3873 = vmul.f32 %v3805, %v3819
    %v3874 = vmul.f32 %v3806, %v3819
    %v3875 = vmul.f32 %v3807, %v3819
    %v3876 = vmul.f32 %v3808, %v3819
    %v3877 = vmul.f32 %v3809, %v3819
    %v3878 = vmul.f32 %v3810, %v3819
    %v3879 = vmul.f32 %v3811, %v3819
    %v3880 = vmul.f32 %v3812, %v3819
    %v3881 = vmul.f32 %v3813, %v3819
    %v3882 = vmul.f32 %v3814, %v3819
    %v3883 = vmul.f32 %v3815, %v3819
    %v3884 = vadd.f32 %v3688, %v3820
    %v3885 = vadd.f32 %v3689, %v3821
    %v3886 = vadd.f32 %v3690, %v3822
    %v3887 = vadd.f32 %v3691, %v3823
    %v3888 = vadd.f32 %v3692, %v3824
    %v3889 = vadd.f32 %v3693, %v3825
    %v3890 = vadd.f32 %v3694, %v3826
    %v3891 = vadd.f32 %v3695, %v3827
    %v3892 = vadd.f32 %v3696, %v3828
    %v3893 = vadd.f32 %v3697, %v3829
    %v3894 = vadd.f32 %v3698, %v3830
    %v3895 = vadd.f32 %v3699, %v3831
    %v3896 = vadd.f32 %v3700, %v3832
    %v3897 = vadd.f32 %v3701, %v3833
    %v3898 = vadd.f32 %v3702, %v3834
    %v3899 = vadd.f32 %v3703, %v3835
    %v3900 = vadd.f32 %v3704, %v3836
    %v3901 = vadd.f32 %v3705, %v3837
    %v3902 = vadd.f32 %v3706, %v3838
    %v3903 = vadd.f32 %v3707, %v3839
    %v3904 = vadd.f32 %v3708, %v3840
    %v3905 = vadd.f32 %v3709, %v3841
    %v3906 = vadd.f32 %v3710, %v3842
    %v3907 = vadd.f32 %v3711, %v3843
    %v3908 = vadd.f32 %v3712, %v3844
    %v3909 = vadd.f32 %v3713, %v3845
    %v3910 = vadd.f32 %v3714, %v3846
    %v3911 = vadd.f32 %v3715, %v3847
    %v3912 = vadd.f32 %v3716, %v3848
    %v3913 = vadd.f32 %v3717, %v3849
    %v3914 = vadd.f32 %v3718, %v3850
    %v3915 = vadd.f32 %v3719, %v3851
    %v3916 = vadd.f32 %v3720, %v3852
    %v3917 = vadd.f32 %v3721, %v3853
    %v3918 = vadd.f32 %v3722, %v3854
    %v3919 = vadd.f32 %v3723, %v3855
    %v3920 = vadd.f32 %v3724, %v3856
    %v3921 = vadd.f32 %v3725, %v3857
    %v3922 = vadd.f32 %v3726, %v3858
    %v3923 = vadd.f32 %v3727, %v3859
    %v3924 = vadd.f32 %v3728, %v3860
    %v3925 = vadd.f32 %v3729, %v3861
    %v3926 = vadd.f32 %v3730, %v3862
    %v3927 = vadd.f32 %v3731, %v3863
    %v3928 = vadd.f32 %v3732, %v3864
    %v3929 = vadd.f32 %v3733, %v3865
    %v3930 = vadd.f32 %v3734, %v3866
    %v3931 = vadd.f32 %v3735, %v3867
    %v3932 = vadd.f32 %v3736, %v3868
    %v3933 = vadd.f32 %v3737, %v3869
    %v3934 = vadd.f32 %v3738, %v3870
    %v3935 = vadd.f32 %v3739, %v3871
    %v3936 = vadd.f32 %v3740, %v3872
    %v3937 = vadd.f32 %v3741, %v3873
    %v3938 = vadd.f32 %v3742, %v3874
    %v3939 = vadd.f32 %v3743, %v3875
    %v3940 = vadd.f32 %v3744, %v3876
    %v3941 = vadd.f32 %v3745, %v3877
    %v3942 = vadd.f32 %v3746, %v3878
    %v3943 = vadd.f32 %v3747, %v3879
    %v3944 = vadd.f32 %v3748, %v3880
    %v3945 = vadd.f32 %v3749, %v3881
    %v3946 = vadd.f32 %v3750, %v3882
    %v3947 = vadd.f32 %v3751, %v3883
    %v3948 = vld [vmem:[%s203 + $0x1] sm:$0xff]
    %v3949 = vld [vmem:[%s203 + $0x9] sm:$0xff]
    %v3950 = vld [vmem:[%s203 + $0x19] sm:$0xff]
    %v3951 = vld [vmem:[%s203 + $0x21] sm:$0xff]
    %v3952 = vld [vmem:[%s203 + $0x31] sm:$0xff]
    %v3953 = vld [vmem:[%s203 + $0x39] sm:$0xff]
    %v3954 = vld [vmem:[%s203 + $0x49] sm:$0xff]
    %v3955 = vld [vmem:[%s203 + $0x51] sm:$0xff]
    %v3956 = vld [vmem:[%s203 + $0x61] sm:$0xff]
    %v3957 = vld [vmem:[%s203 + $0x69] sm:$0xff]
    %v3958 = vld [vmem:[%s203 + $0x79] sm:$0xff]
    %v3959 = vld [vmem:[%s203 + $0x81] sm:$0xff]
    %v3960 = vld [vmem:[%s203 + $0x91] sm:$0xff]
    %v3961 = vld [vmem:[%s203 + $0x99] sm:$0xff]
    %v3962 = vld [vmem:[%s203 + $0xa9] sm:$0xff]
    %v3963 = vld [vmem:[%s203 + $0xb1] sm:$0xff]
    %v3964 = vld [vmem:[%s203 + $0xc1] sm:$0xff]
    %v3965 = vld [vmem:[%s203 + $0xc9] sm:$0xff]
    %v3966 = vld [vmem:[%s203 + $0xd9] sm:$0xff]
    %v3967 = vld [vmem:[%s203 + $0xe1] sm:$0xff]
    %v3968 = vld [vmem:[%s203 + $0xf1] sm:$0xff]
    %v3969 = vld [vmem:[%s203 + $0xf9] sm:$0xff]
    %v3970 = vld [vmem:[%s203 + $0x109] sm:$0xff]
    %v3971 = vld [vmem:[%s203 + $0x111] sm:$0xff]
    %v3972 = vld [vmem:[%s203 + $0x121] sm:$0xff]
    %v3973 = vld [vmem:[%s203 + $0x129] sm:$0xff]
    %v3974 = vld [vmem:[%s203 + $0x139] sm:$0xff]
    %v3975 = vld [vmem:[%s203 + $0x141] sm:$0xff]
    %v3976 = vld [vmem:[%s203 + $0x151] sm:$0xff]
    %v3977 = vld [vmem:[%s203 + $0x159] sm:$0xff]
    %v3978 = vld [vmem:[%s203 + $0x169] sm:$0xff]
    %v3979 = vld [vmem:[%s203 + $0x171] sm:$0xff]
    %v3980 = vld [vmem:[%s203 + $0x1b1] sm:$0xff]
    %v3981 = vld [vmem:[%s203 + $0x1b9] sm:$0xff]
    %v3982 = vld [vmem:[%s203 + $0x1c9] sm:$0xff]
    %v3983 = vld [vmem:[%s203 + $0x1d1] sm:$0xff]
    %v3984 = vld [vmem:[%s203 + $0x1e1] sm:$0xff]
    %v3985 = vld [vmem:[%s203 + $0x1e9] sm:$0xff]
    %v3986 = vld [vmem:[%s203 + $0x1f9] sm:$0xff]
    %v3987 = vld [vmem:[%s203 + $0x201] sm:$0xff]
    %v3988 = vld [vmem:[%s203 + $0x211] sm:$0xff]
    %v3989 = vld [vmem:[%s203 + $0x219] sm:$0xff]
    %v3990 = vld [vmem:[%s203 + $0x229] sm:$0xff]
    %v3991 = vld [vmem:[%s203 + $0x231] sm:$0xff]
    %v3992 = vld [vmem:[%s203 + $0x241] sm:$0xff]
    %v3993 = vld [vmem:[%s203 + $0x249] sm:$0xff]
    %v3994 = vld [vmem:[%s203 + $0x259] sm:$0xff]
    %v3995 = vld [vmem:[%s203 + $0x261] sm:$0xff]
    %v3996 = vld [vmem:[%s203 + $0x271] sm:$0xff]
    %v3997 = vld [vmem:[%s203 + $0x279] sm:$0xff]
    %v3998 = vld [vmem:[%s203 + $0x289] sm:$0xff]
    %v3999 = vld [vmem:[%s203 + $0x291] sm:$0xff]
    %v4000 = vld [vmem:[%s203 + $0x2a1] sm:$0xff]
    %v4001 = vld [vmem:[%s203 + $0x2a9] sm:$0xff]
    %v4002 = vld [vmem:[%s203 + $0x2b9] sm:$0xff]
    %v4003 = vld [vmem:[%s203 + $0x2c1] sm:$0xff]
    %v4004 = vld [vmem:[%s203 + $0x2d1] sm:$0xff]
    %v4005 = vld [vmem:[%s203 + $0x2d9] sm:$0xff]
    %v4006 = vld [vmem:[%s203 + $0x2e9] sm:$0xff]
    %v4007 = vld [vmem:[%s203 + $0x2f1] sm:$0xff]
    %v4008 = vld [vmem:[%s203 + $0x301] sm:$0xff]
    %v4009 = vld [vmem:[%s203 + $0x309] sm:$0xff]
    %v4010 = vld [vmem:[%s203 + $0x319] sm:$0xff]
    %v4011 = vld [vmem:[%s203 + $0x321] sm:$0xff]
    %v4012 = vlaneseq
    %v4013 = vshrl.u32 %v4012, 7
    %v4014 = vsub.s32 4, %v4013
    %v4015 = vrot.slane %v3226, %v4014
    %v4016 = vmul.f32 %v3948, %v4015
    %v4017 = vmul.f32 %v3949, %v4015
    %v4018 = vmul.f32 %v3950, %v4015
    %v4019 = vmul.f32 %v3951, %v4015
    %v4020 = vmul.f32 %v3952, %v4015
    %v4021 = vmul.f32 %v3953, %v4015
    %v4022 = vmul.f32 %v3954, %v4015
    %v4023 = vmul.f32 %v3955, %v4015
    %v4024 = vmul.f32 %v3956, %v4015
    %v4025 = vmul.f32 %v3957, %v4015
    %v4026 = vmul.f32 %v3958, %v4015
    %v4027 = vmul.f32 %v3959, %v4015
    %v4028 = vmul.f32 %v3960, %v4015
    %v4029 = vmul.f32 %v3961, %v4015
    %v4030 = vmul.f32 %v3962, %v4015
    %v4031 = vmul.f32 %v3963, %v4015
    %v4032 = vmul.f32 %v3964, %v4015
    %v4033 = vmul.f32 %v3965, %v4015
    %v4034 = vmul.f32 %v3966, %v4015
    %v4035 = vmul.f32 %v3967, %v4015
    %v4036 = vmul.f32 %v3968, %v4015
    %v4037 = vmul.f32 %v3969, %v4015
    %v4038 = vmul.f32 %v3970, %v4015
    %v4039 = vmul.f32 %v3971, %v4015
    %v4040 = vmul.f32 %v3972, %v4015
    %v4041 = vmul.f32 %v3973, %v4015
    %v4042 = vmul.f32 %v3974, %v4015
    %v4043 = vmul.f32 %v3975, %v4015
    %v4044 = vmul.f32 %v3976, %v4015
    %v4045 = vmul.f32 %v3977, %v4015
    %v4046 = vmul.f32 %v3978, %v4015
    %v4047 = vmul.f32 %v3979, %v4015
    %v4048 = vmul.f32 %v3980, %v4015
    %v4049 = vmul.f32 %v3981, %v4015
    %v4050 = vmul.f32 %v3982, %v4015
    %v4051 = vmul.f32 %v3983, %v4015
    %v4052 = vmul.f32 %v3984, %v4015
    %v4053 = vmul.f32 %v3985, %v4015
    %v4054 = vmul.f32 %v3986, %v4015
    %v4055 = vmul.f32 %v3987, %v4015
    %v4056 = vmul.f32 %v3988, %v4015
    %v4057 = vmul.f32 %v3989, %v4015
    %v4058 = vmul.f32 %v3990, %v4015
    %v4059 = vmul.f32 %v3991, %v4015
    %v4060 = vmul.f32 %v3992, %v4015
    %v4061 = vmul.f32 %v3993, %v4015
    %v4062 = vmul.f32 %v3994, %v4015
    %v4063 = vmul.f32 %v3995, %v4015
    %v4064 = vmul.f32 %v3996, %v4015
    %v4065 = vmul.f32 %v3997, %v4015
    %v4066 = vmul.f32 %v3998, %v4015
    %v4067 = vmul.f32 %v3999, %v4015
    %v4068 = vmul.f32 %v4000, %v4015
    %v4069 = vmul.f32 %v4001, %v4015
    %v4070 = vmul.f32 %v4002, %v4015
    %v4071 = vmul.f32 %v4003, %v4015
    %v4072 = vmul.f32 %v4004, %v4015
    %v4073 = vmul.f32 %v4005, %v4015
    %v4074 = vmul.f32 %v4006, %v4015
    %v4075 = vmul.f32 %v4007, %v4015
    %v4076 = vmul.f32 %v4008, %v4015
    %v4077 = vmul.f32 %v4009, %v4015
    %v4078 = vmul.f32 %v4010, %v4015
    %v4079 = vmul.f32 %v4011, %v4015
    %v4080 = vadd.f32 %v3884, %v4016
    %v4081 = vadd.f32 %v3885, %v4017
    %v4082 = vadd.f32 %v3886, %v4018
    %v4083 = vadd.f32 %v3887, %v4019
    %v4084 = vadd.f32 %v3888, %v4020
    %v4085 = vadd.f32 %v3889, %v4021
    %v4086 = vadd.f32 %v3890, %v4022
    %v4087 = vadd.f32 %v3891, %v4023
    %v4088 = vadd.f32 %v3892, %v4024
    %v4089 = vadd.f32 %v3893, %v4025
    %v4090 = vadd.f32 %v3894, %v4026
    %v4091 = vadd.f32 %v3895, %v4027
    %v4092 = vadd.f32 %v3896, %v4028
    %v4093 = vadd.f32 %v3897, %v4029
    %v4094 = vadd.f32 %v3898, %v4030
    %v4095 = vadd.f32 %v3899, %v4031
    %v4096 = vadd.f32 %v3900, %v4032
    %v4097 = vadd.f32 %v3901, %v4033
    %v4098 = vadd.f32 %v3902, %v4034
    %v4099 = vadd.f32 %v3903, %v4035
    %v4100 = vadd.f32 %v3904, %v4036
    %v4101 = vadd.f32 %v3905, %v4037
    %v4102 = vadd.f32 %v3906, %v4038
    %v4103 = vadd.f32 %v3907, %v4039
    %v4104 = vadd.f32 %v3908, %v4040
    %v4105 = vadd.f32 %v3909, %v4041
    %v4106 = vadd.f32 %v3910, %v4042
    %v4107 = vadd.f32 %v3911, %v4043
    %v4108 = vadd.f32 %v3912, %v4044
    %v4109 = vadd.f32 %v3913, %v4045
    %v4110 = vadd.f32 %v3914, %v4046
    %v4111 = vadd.f32 %v3915, %v4047
    %v4112 = vadd.f32 %v3916, %v4048
    %v4113 = vadd.f32 %v3917, %v4049
    %v4114 = vadd.f32 %v3918, %v4050
    %v4115 = vadd.f32 %v3919, %v4051
    %v4116 = vadd.f32 %v3920, %v4052
    %v4117 = vadd.f32 %v3921, %v4053
    %v4118 = vadd.f32 %v3922, %v4054
    %v4119 = vadd.f32 %v3923, %v4055
    %v4120 = vadd.f32 %v3924, %v4056
    %v4121 = vadd.f32 %v3925, %v4057
    %v4122 = vadd.f32 %v3926, %v4058
    %v4123 = vadd.f32 %v3927, %v4059
    %v4124 = vadd.f32 %v3928, %v4060
    %v4125 = vadd.f32 %v3929, %v4061
    %v4126 = vadd.f32 %v3930, %v4062
    %v4127 = vadd.f32 %v3931, %v4063
    %v4128 = vadd.f32 %v3932, %v4064
    %v4129 = vadd.f32 %v3933, %v4065
    %v4130 = vadd.f32 %v3934, %v4066
    %v4131 = vadd.f32 %v3935, %v4067
    %v4132 = vadd.f32 %v3936, %v4068
    %v4133 = vadd.f32 %v3937, %v4069
    %v4134 = vadd.f32 %v3938, %v4070
    %v4135 = vadd.f32 %v3939, %v4071
    %v4136 = vadd.f32 %v3940, %v4072
    %v4137 = vadd.f32 %v3941, %v4073
    %v4138 = vadd.f32 %v3942, %v4074
    %v4139 = vadd.f32 %v3943, %v4075
    %v4140 = vadd.f32 %v3944, %v4076
    %v4141 = vadd.f32 %v3945, %v4077
    %v4142 = vadd.f32 %v3946, %v4078
    %v4143 = vadd.f32 %v3947, %v4079
    %v4144 = vld [vmem:[%s203 + $0x2] sm:$0xff]
    %v4145 = vld [vmem:[%s203 + $0xa] sm:$0xff]
    %v4146 = vld [vmem:[%s203 + $0x1a] sm:$0xff]
    %v4147 = vld [vmem:[%s203 + $0x22] sm:$0xff]
    %v4148 = vld [vmem:[%s203 + $0x32] sm:$0xff]
    %v4149 = vld [vmem:[%s203 + $0x3a] sm:$0xff]
    %v4150 = vld [vmem:[%s203 + $0x4a] sm:$0xff]
    %v4151 = vld [vmem:[%s203 + $0x52] sm:$0xff]
    %v4152 = vld [vmem:[%s203 + $0x62] sm:$0xff]
    %v4153 = vld [vmem:[%s203 + $0x6a] sm:$0xff]
    %v4154 = vld [vmem:[%s203 + $0x7a] sm:$0xff]
    %v4155 = vld [vmem:[%s203 + $0x82] sm:$0xff]
    %v4156 = vld [vmem:[%s203 + $0x92] sm:$0xff]
    %v4157 = vld [vmem:[%s203 + $0x9a] sm:$0xff]
    %v4158 = vld [vmem:[%s203 + $0xaa] sm:$0xff]
    %v4159 = vld [vmem:[%s203 + $0xb2] sm:$0xff]
    %v4160 = vld [vmem:[%s203 + $0xc2] sm:$0xff]
    %v4161 = vld [vmem:[%s203 + $0xca] sm:$0xff]
    %v4162 = vld [vmem:[%s203 + $0xda] sm:$0xff]
    %v4163 = vld [vmem:[%s203 + $0xe2] sm:$0xff]
    %v4164 = vld [vmem:[%s203 + $0xf2] sm:$0xff]
    %v4165 = vld [vmem:[%s203 + $0xfa] sm:$0xff]
    %v4166 = vld [vmem:[%s203 + $0x10a] sm:$0xff]
    %v4167 = vld [vmem:[%s203 + $0x112] sm:$0xff]
    %v4168 = vld [vmem:[%s203 + $0x122] sm:$0xff]
    %v4169 = vld [vmem:[%s203 + $0x12a] sm:$0xff]
    %v4170 = vld [vmem:[%s203 + $0x13a] sm:$0xff]
    %v4171 = vld [vmem:[%s203 + $0x142] sm:$0xff]
    %v4172 = vld [vmem:[%s203 + $0x152] sm:$0xff]
    %v4173 = vld [vmem:[%s203 + $0x15a] sm:$0xff]
    %v4174 = vld [vmem:[%s203 + $0x16a] sm:$0xff]
    %v4175 = vld [vmem:[%s203 + $0x172] sm:$0xff]
    %v4176 = vld [vmem:[%s203 + $0x1b2] sm:$0xff]
    %v4177 = vld [vmem:[%s203 + $0x1ba] sm:$0xff]
    %v4178 = vld [vmem:[%s203 + $0x1ca] sm:$0xff]
    %v4179 = vld [vmem:[%s203 + $0x1d2] sm:$0xff]
    %v4180 = vld [vmem:[%s203 + $0x1e2] sm:$0xff]
    %v4181 = vld [vmem:[%s203 + $0x1ea] sm:$0xff]
    %v4182 = vld [vmem:[%s203 + $0x1fa] sm:$0xff]
    %v4183 = vld [vmem:[%s203 + $0x202] sm:$0xff]
    %v4184 = vld [vmem:[%s203 + $0x212] sm:$0xff]
    %v4185 = vld [vmem:[%s203 + $0x21a] sm:$0xff]
    %v4186 = vld [vmem:[%s203 + $0x22a] sm:$0xff]
    %v4187 = vld [vmem:[%s203 + $0x232] sm:$0xff]
    %v4188 = vld [vmem:[%s203 + $0x242] sm:$0xff]
    %v4189 = vld [vmem:[%s203 + $0x24a] sm:$0xff]
    %v4190 = vld [vmem:[%s203 + $0x25a] sm:$0xff]
    %v4191 = vld [vmem:[%s203 + $0x262] sm:$0xff]
    %v4192 = vld [vmem:[%s203 + $0x272] sm:$0xff]
    %v4193 = vld [vmem:[%s203 + $0x27a] sm:$0xff]
    %v4194 = vld [vmem:[%s203 + $0x28a] sm:$0xff]
    %v4195 = vld [vmem:[%s203 + $0x292] sm:$0xff]
    %v4196 = vld [vmem:[%s203 + $0x2a2] sm:$0xff]
    %v4197 = vld [vmem:[%s203 + $0x2aa] sm:$0xff]
    %v4198 = vld [vmem:[%s203 + $0x2ba] sm:$0xff]
    %v4199 = vld [vmem:[%s203 + $0x2c2] sm:$0xff]
    %v4200 = vld [vmem:[%s203 + $0x2d2] sm:$0xff]
    %v4201 = vld [vmem:[%s203 + $0x2da] sm:$0xff]
    %v4202 = vld [vmem:[%s203 + $0x2ea] sm:$0xff]
    %v4203 = vld [vmem:[%s203 + $0x2f2] sm:$0xff]
    %v4204 = vld [vmem:[%s203 + $0x302] sm:$0xff]
    %v4205 = vld [vmem:[%s203 + $0x30a] sm:$0xff]
    %v4206 = vld [vmem:[%s203 + $0x31a] sm:$0xff]
    %v4207 = vld [vmem:[%s203 + $0x322] sm:$0xff]
    %v4208 = vlaneseq
    %v4209 = vshrl.u32 %v4208, 7
    %v4210 = vsub.s32 5, %v4209
    %v4211 = vrot.slane %v3226, %v4210
    %v4212 = vmul.f32 %v4144, %v4211
    %v4213 = vmul.f32 %v4145, %v4211
    %v4214 = vmul.f32 %v4146, %v4211
    %v4215 = vmul.f32 %v4147, %v4211
    %v4216 = vmul.f32 %v4148, %v4211
    %v4217 = vmul.f32 %v4149, %v4211
    %v4218 = vmul.f32 %v4150, %v4211
    %v4219 = vmul.f32 %v4151, %v4211
    %v4220 = vmul.f32 %v4152, %v4211
    %v4221 = vmul.f32 %v4153, %v4211
    %v4222 = vmul.f32 %v4154, %v4211
    %v4223 = vmul.f32 %v4155, %v4211
    %v4224 = vmul.f32 %v4156, %v4211
    %v4225 = vmul.f32 %v4157, %v4211
    %v4226 = vmul.f32 %v4158, %v4211
    %v4227 = vmul.f32 %v4159, %v4211
    %v4228 = vmul.f32 %v4160, %v4211
    %v4229 = vmul.f32 %v4161, %v4211
    %v4230 = vmul.f32 %v4162, %v4211
    %v4231 = vmul.f32 %v4163, %v4211
    %v4232 = vmul.f32 %v4164, %v4211
    %v4233 = vmul.f32 %v4165, %v4211
    %v4234 = vmul.f32 %v4166, %v4211
    %v4235 = vmul.f32 %v4167, %v4211
    %v4236 = vmul.f32 %v4168, %v4211
    %v4237 = vmul.f32 %v4169, %v4211
    %v4238 = vmul.f32 %v4170, %v4211
    %v4239 = vmul.f32 %v4171, %v4211
    %v4240 = vmul.f32 %v4172, %v4211
    %v4241 = vmul.f32 %v4173, %v4211
    %v4242 = vmul.f32 %v4174, %v4211
    %v4243 = vmul.f32 %v4175, %v4211
    %v4244 = vmul.f32 %v4176, %v4211
    %v4245 = vmul.f32 %v4177, %v4211
    %v4246 = vmul.f32 %v4178, %v4211
    %v4247 = vmul.f32 %v4179, %v4211
    %v4248 = vmul.f32 %v4180, %v4211
    %v4249 = vmul.f32 %v4181, %v4211
    %v4250 = vmul.f32 %v4182, %v4211
    %v4251 = vmul.f32 %v4183, %v4211
    %v4252 = vmul.f32 %v4184, %v4211
    %v4253 = vmul.f32 %v4185, %v4211
    %v4254 = vmul.f32 %v4186, %v4211
    %v4255 = vmul.f32 %v4187, %v4211
    %v4256 = vmul.f32 %v4188, %v4211
    %v4257 = vmul.f32 %v4189, %v4211
    %v4258 = vmul.f32 %v4190, %v4211
    %v4259 = vmul.f32 %v4191, %v4211
    %v4260 = vmul.f32 %v4192, %v4211
    %v4261 = vmul.f32 %v4193, %v4211
    %v4262 = vmul.f32 %v4194, %v4211
    %v4263 = vmul.f32 %v4195, %v4211
    %v4264 = vmul.f32 %v4196, %v4211
    %v4265 = vmul.f32 %v4197, %v4211
    %v4266 = vmul.f32 %v4198, %v4211
    %v4267 = vmul.f32 %v4199, %v4211
    %v4268 = vmul.f32 %v4200, %v4211
    %v4269 = vmul.f32 %v4201, %v4211
    %v4270 = vmul.f32 %v4202, %v4211
    %v4271 = vmul.f32 %v4203, %v4211
    %v4272 = vmul.f32 %v4204, %v4211
    %v4273 = vmul.f32 %v4205, %v4211
    %v4274 = vmul.f32 %v4206, %v4211
    %v4275 = vmul.f32 %v4207, %v4211
    %v4276 = vadd.f32 %v4080, %v4212
    %v4277 = vadd.f32 %v4081, %v4213
    %v4278 = vadd.f32 %v4082, %v4214
    %v4279 = vadd.f32 %v4083, %v4215
    %v4280 = vadd.f32 %v4084, %v4216
    %v4281 = vadd.f32 %v4085, %v4217
    %v4282 = vadd.f32 %v4086, %v4218
    %v4283 = vadd.f32 %v4087, %v4219
    %v4284 = vadd.f32 %v4088, %v4220
    %v4285 = vadd.f32 %v4089, %v4221
    %v4286 = vadd.f32 %v4090, %v4222
    %v4287 = vadd.f32 %v4091, %v4223
    %v4288 = vadd.f32 %v4092, %v4224
    %v4289 = vadd.f32 %v4093, %v4225
    %v4290 = vadd.f32 %v4094, %v4226
    %v4291 = vadd.f32 %v4095, %v4227
    %v4292 = vadd.f32 %v4096, %v4228
    %v4293 = vadd.f32 %v4097, %v4229
    %v4294 = vadd.f32 %v4098, %v4230
    %v4295 = vadd.f32 %v4099, %v4231
    %v4296 = vadd.f32 %v4100, %v4232
    %v4297 = vadd.f32 %v4101, %v4233
    %v4298 = vadd.f32 %v4102, %v4234
    %v4299 = vadd.f32 %v4103, %v4235
    %v4300 = vadd.f32 %v4104, %v4236
    %v4301 = vadd.f32 %v4105, %v4237
    %v4302 = vadd.f32 %v4106, %v4238
    %v4303 = vadd.f32 %v4107, %v4239
    %v4304 = vadd.f32 %v4108, %v4240
    %v4305 = vadd.f32 %v4109, %v4241
    %v4306 = vadd.f32 %v4110, %v4242
    %v4307 = vadd.f32 %v4111, %v4243
    %v4308 = vadd.f32 %v4112, %v4244
    %v4309 = vadd.f32 %v4113, %v4245
    %v4310 = vadd.f32 %v4114, %v4246
    %v4311 = vadd.f32 %v4115, %v4247
    %v4312 = vadd.f32 %v4116, %v4248
    %v4313 = vadd.f32 %v4117, %v4249
    %v4314 = vadd.f32 %v4118, %v4250
    %v4315 = vadd.f32 %v4119, %v4251
    %v4316 = vadd.f32 %v4120, %v4252
    %v4317 = vadd.f32 %v4121, %v4253
    %v4318 = vadd.f32 %v4122, %v4254
    %v4319 = vadd.f32 %v4123, %v4255
    %v4320 = vadd.f32 %v4124, %v4256
    %v4321 = vadd.f32 %v4125, %v4257
    %v4322 = vadd.f32 %v4126, %v4258
    %v4323 = vadd.f32 %v4127, %v4259
    %v4324 = vadd.f32 %v4128, %v4260
    %v4325 = vadd.f32 %v4129, %v4261
    %v4326 = vadd.f32 %v4130, %v4262
    %v4327 = vadd.f32 %v4131, %v4263
    %v4328 = vadd.f32 %v4132, %v4264
    %v4329 = vadd.f32 %v4133, %v4265
    %v4330 = vadd.f32 %v4134, %v4266
    %v4331 = vadd.f32 %v4135, %v4267
    %v4332 = vadd.f32 %v4136, %v4268
    %v4333 = vadd.f32 %v4137, %v4269
    %v4334 = vadd.f32 %v4138, %v4270
    %v4335 = vadd.f32 %v4139, %v4271
    %v4336 = vadd.f32 %v4140, %v4272
    %v4337 = vadd.f32 %v4141, %v4273
    %v4338 = vadd.f32 %v4142, %v4274
    %v4339 = vadd.f32 %v4143, %v4275
    %v4340 = vld [vmem:[%s1383] sm:$0xff]
    %v4341 = vld [vmem:[%s1383 + $0x8] sm:$0xff]
    %v4342 = vld [vmem:[%s1383 + $0x18] sm:$0xff]
    %v4343 = vld [vmem:[%s1383 + $0x20] sm:$0xff]
    %v4344 = vld [vmem:[%s1383 + $0x30] sm:$0xff]
    %v4345 = vld [vmem:[%s1383 + $0x38] sm:$0xff]
    %v4346 = vld [vmem:[%s1383 + $0x48] sm:$0xff]
    %v4347 = vld [vmem:[%s1383 + $0x50] sm:$0xff]
    %v4348 = vld [vmem:[%s1383 + $0x60] sm:$0xff]
    %v4349 = vld [vmem:[%s1383 + $0x68] sm:$0xff]
    %v4350 = vld [vmem:[%s1383 + $0x78] sm:$0xff]
    %v4351 = vld [vmem:[%s1383 + $0x80] sm:$0xff]
    %v4352 = vld [vmem:[%s1383 + $0x90] sm:$0xff]
    %v4353 = vld [vmem:[%s1383 + $0x98] sm:$0xff]
    %v4354 = vld [vmem:[%s1383 + $0xa8] sm:$0xff]
    %v4355 = vld [vmem:[%s1383 + $0xb0] sm:$0xff]
    %v4356 = vld [vmem:[%s1383 + $0xc0] sm:$0xff]
    %v4357 = vld [vmem:[%s1383 + $0xc8] sm:$0xff]
    %v4358 = vld [vmem:[%s1383 + $0xd8] sm:$0xff]
    %v4359 = vld [vmem:[%s1383 + $0xe0] sm:$0xff]
    %v4360 = vld [vmem:[%s1383 + $0xf0] sm:$0xff]
    %v4361 = vld [vmem:[%s1383 + $0xf8] sm:$0xff]
    %v4362 = vld [vmem:[%s1383 + $0x108] sm:$0xff]
    %v4363 = vld [vmem:[%s1383 + $0x110] sm:$0xff]
    %v4364 = vld [vmem:[%s1383 + $0x120] sm:$0xff]
    %v4365 = vld [vmem:[%s1383 + $0x128] sm:$0xff]
    %v4366 = vld [vmem:[%s1383 + $0x138] sm:$0xff]
    %v4367 = vld [vmem:[%s1383 + $0x140] sm:$0xff]
    %v4368 = vld [vmem:[%s1383 + $0x150] sm:$0xff]
    %v4369 = vld [vmem:[%s1383 + $0x158] sm:$0xff]
    %v4370 = vld [vmem:[%s1383 + $0x168] sm:$0xff]
    %v4371 = vld [vmem:[%s1383 + $0x170] sm:$0xff]
    %v4372 = vld [vmem:[%s1383 + $0x1b0] sm:$0xff]
    %v4373 = vld [vmem:[%s1383 + $0x1b8] sm:$0xff]
    %v4374 = vld [vmem:[%s1383 + $0x1c8] sm:$0xff]
    %v4375 = vld [vmem:[%s1383 + $0x1d0] sm:$0xff]
    %v4376 = vld [vmem:[%s1383 + $0x1e0] sm:$0xff]
    %v4377 = vld [vmem:[%s1383 + $0x1e8] sm:$0xff]
    %v4378 = vld [vmem:[%s1383 + $0x1f8] sm:$0xff]
    %v4379 = vld [vmem:[%s1383 + $0x200] sm:$0xff]
    %v4380 = vld [vmem:[%s1383 + $0x210] sm:$0xff]
    %v4381 = vld [vmem:[%s1383 + $0x218] sm:$0xff]
    %v4382 = vld [vmem:[%s1383 + $0x228] sm:$0xff]
    %v4383 = vld [vmem:[%s1383 + $0x230] sm:$0xff]
    %v4384 = vld [vmem:[%s1383 + $0x240] sm:$0xff]
    %v4385 = vld [vmem:[%s1383 + $0x248] sm:$0xff]
    %v4386 = vld [vmem:[%s1383 + $0x258] sm:$0xff]
    %v4387 = vld [vmem:[%s1383 + $0x260] sm:$0xff]
    %v4388 = vld [vmem:[%s1383 + $0x270] sm:$0xff]
    %v4389 = vld [vmem:[%s1383 + $0x278] sm:$0xff]
    %v4390 = vld [vmem:[%s1383 + $0x288] sm:$0xff]
    %v4391 = vld [vmem:[%s1383 + $0x290] sm:$0xff]
    %v4392 = vld [vmem:[%s1383 + $0x2a0] sm:$0xff]
    %v4393 = vld [vmem:[%s1383 + $0x2a8] sm:$0xff]
    %v4394 = vld [vmem:[%s1383 + $0x2b8] sm:$0xff]
    %v4395 = vld [vmem:[%s1383 + $0x2c0] sm:$0xff]
    %v4396 = vld [vmem:[%s1383 + $0x2d0] sm:$0xff]
    %v4397 = vld [vmem:[%s1383 + $0x2d8] sm:$0xff]
    %v4398 = vld [vmem:[%s1383 + $0x2e8] sm:$0xff]
    %v4399 = vld [vmem:[%s1383 + $0x2f0] sm:$0xff]
    %v4400 = vld [vmem:[%s1383 + $0x300] sm:$0xff]
    %v4401 = vld [vmem:[%s1383 + $0x308] sm:$0xff]
    %v4402 = vld [vmem:[%s1383 + $0x318] sm:$0xff]
    %v4403 = vld [vmem:[%s1383 + $0x320] sm:$0xff]
    %v4404 = vlaneseq
    %v4405 = vshrl.u32 %v4404, 7
    %v4406 = vsub.s32 6, %v4405
    %v4407 = vrot.slane %v3226, %v4406
    %v4408 = vmul.f32 %v4340, %v4407
    %v4409 = vmul.f32 %v4341, %v4407
    %v4410 = vmul.f32 %v4342, %v4407
    %v4411 = vmul.f32 %v4343, %v4407
    %v4412 = vmul.f32 %v4344, %v4407
    %v4413 = vmul.f32 %v4345, %v4407
    %v4414 = vmul.f32 %v4346, %v4407
    %v4415 = vmul.f32 %v4347, %v4407
    %v4416 = vmul.f32 %v4348, %v4407
    %v4417 = vmul.f32 %v4349, %v4407
    %v4418 = vmul.f32 %v4350, %v4407
    %v4419 = vmul.f32 %v4351, %v4407
    %v4420 = vmul.f32 %v4352, %v4407
    %v4421 = vmul.f32 %v4353, %v4407
    %v4422 = vmul.f32 %v4354, %v4407
    %v4423 = vmul.f32 %v4355, %v4407
    %v4424 = vmul.f32 %v4356, %v4407
    %v4425 = vmul.f32 %v4357, %v4407
    %v4426 = vmul.f32 %v4358, %v4407
    %v4427 = vmul.f32 %v4359, %v4407
    %v4428 = vmul.f32 %v4360, %v4407
    %v4429 = vmul.f32 %v4361, %v4407
    %v4430 = vmul.f32 %v4362, %v4407
    %v4431 = vmul.f32 %v4363, %v4407
    %v4432 = vmul.f32 %v4364, %v4407
    %v4433 = vmul.f32 %v4365, %v4407
    %v4434 = vmul.f32 %v4366, %v4407
    %v4435 = vmul.f32 %v4367, %v4407
    %v4436 = vmul.f32 %v4368, %v4407
    %v4437 = vmul.f32 %v4369, %v4407
    %v4438 = vmul.f32 %v4370, %v4407
    %v4439 = vmul.f32 %v4371, %v4407
    %v4440 = vmul.f32 %v4372, %v4407
    %v4441 = vmul.f32 %v4373, %v4407
    %v4442 = vmul.f32 %v4374, %v4407
    %v4443 = vmul.f32 %v4375, %v4407
    %v4444 = vmul.f32 %v4376, %v4407
    %v4445 = vmul.f32 %v4377, %v4407
    %v4446 = vmul.f32 %v4378, %v4407
    %v4447 = vmul.f32 %v4379, %v4407
    %v4448 = vmul.f32 %v4380, %v4407
    %v4449 = vmul.f32 %v4381, %v4407
    %v4450 = vmul.f32 %v4382, %v4407
    %v4451 = vmul.f32 %v4383, %v4407
    %v4452 = vmul.f32 %v4384, %v4407
    %v4453 = vmul.f32 %v4385, %v4407
    %v4454 = vmul.f32 %v4386, %v4407
    %v4455 = vmul.f32 %v4387, %v4407
    %v4456 = vmul.f32 %v4388, %v4407
    %v4457 = vmul.f32 %v4389, %v4407
    %v4458 = vmul.f32 %v4390, %v4407
    %v4459 = vmul.f32 %v4391, %v4407
    %v4460 = vmul.f32 %v4392, %v4407
    %v4461 = vmul.f32 %v4393, %v4407
    %v4462 = vmul.f32 %v4394, %v4407
    %v4463 = vmul.f32 %v4395, %v4407
    %v4464 = vmul.f32 %v4396, %v4407
    %v4465 = vmul.f32 %v4397, %v4407
    %v4466 = vmul.f32 %v4398, %v4407
    %v4467 = vmul.f32 %v4399, %v4407
    %v4468 = vmul.f32 %v4400, %v4407
    %v4469 = vmul.f32 %v4401, %v4407
    %v4470 = vmul.f32 %v4402, %v4407
    %v4471 = vmul.f32 %v4403, %v4407
    %v4472 = vadd.f32 %v4276, %v4408
    %v4473 = vadd.f32 %v4277, %v4409
    %v4474 = vadd.f32 %v4278, %v4410
    %v4475 = vadd.f32 %v4279, %v4411
    %v4476 = vadd.f32 %v4280, %v4412
    %v4477 = vadd.f32 %v4281, %v4413
    %v4478 = vadd.f32 %v4282, %v4414
    %v4479 = vadd.f32 %v4283, %v4415
    %v4480 = vadd.f32 %v4284, %v4416
    %v4481 = vadd.f32 %v4285, %v4417
    %v4482 = vadd.f32 %v4286, %v4418
    %v4483 = vadd.f32 %v4287, %v4419
    %v4484 = vadd.f32 %v4288, %v4420
    %v4485 = vadd.f32 %v4289, %v4421
    %v4486 = vadd.f32 %v4290, %v4422
    %v4487 = vadd.f32 %v4291, %v4423
    %v4488 = vadd.f32 %v4292, %v4424
    %v4489 = vadd.f32 %v4293, %v4425
    %v4490 = vadd.f32 %v4294, %v4426
    %v4491 = vadd.f32 %v4295, %v4427
    %v4492 = vadd.f32 %v4296, %v4428
    %v4493 = vadd.f32 %v4297, %v4429
    %v4494 = vadd.f32 %v4298, %v4430
    %v4495 = vadd.f32 %v4299, %v4431
    %v4496 = vadd.f32 %v4300, %v4432
    %v4497 = vadd.f32 %v4301, %v4433
    %v4498 = vadd.f32 %v4302, %v4434
    %v4499 = vadd.f32 %v4303, %v4435
    %v4500 = vadd.f32 %v4304, %v4436
    %v4501 = vadd.f32 %v4305, %v4437
    %v4502 = vadd.f32 %v4306, %v4438
    %v4503 = vadd.f32 %v4307, %v4439
    %v4504 = vadd.f32 %v4308, %v4440
    %v4505 = vadd.f32 %v4309, %v4441
    %v4506 = vadd.f32 %v4310, %v4442
    %v4507 = vadd.f32 %v4311, %v4443
    %v4508 = vadd.f32 %v4312, %v4444
    %v4509 = vadd.f32 %v4313, %v4445
    %v4510 = vadd.f32 %v4314, %v4446
    %v4511 = vadd.f32 %v4315, %v4447
    %v4512 = vadd.f32 %v4316, %v4448
    %v4513 = vadd.f32 %v4317, %v4449
    %v4514 = vadd.f32 %v4318, %v4450
    %v4515 = vadd.f32 %v4319, %v4451
    %v4516 = vadd.f32 %v4320, %v4452
    %v4517 = vadd.f32 %v4321, %v4453
    %v4518 = vadd.f32 %v4322, %v4454
    %v4519 = vadd.f32 %v4323, %v4455
    %v4520 = vadd.f32 %v4324, %v4456
    %v4521 = vadd.f32 %v4325, %v4457
    %v4522 = vadd.f32 %v4326, %v4458
    %v4523 = vadd.f32 %v4327, %v4459
    %v4524 = vadd.f32 %v4328, %v4460
    %v4525 = vadd.f32 %v4329, %v4461
    %v4526 = vadd.f32 %v4330, %v4462
    %v4527 = vadd.f32 %v4331, %v4463
    %v4528 = vadd.f32 %v4332, %v4464
    %v4529 = vadd.f32 %v4333, %v4465
    %v4530 = vadd.f32 %v4334, %v4466
    %v4531 = vadd.f32 %v4335, %v4467
    %v4532 = vadd.f32 %v4336, %v4468
    %v4533 = vadd.f32 %v4337, %v4469
    %v4534 = vadd.f32 %v4338, %v4470
    %v4535 = vadd.f32 %v4339, %v4471
    %v4536 = vld [vmem:[%s1383 + $0x1] sm:$0xff]
    %v4537 = vld [vmem:[%s1383 + $0x9] sm:$0xff]
    %v4538 = vld [vmem:[%s1383 + $0x19] sm:$0xff]
    %v4539 = vld [vmem:[%s1383 + $0x21] sm:$0xff]
    %v4540 = vld [vmem:[%s1383 + $0x31] sm:$0xff]
    %v4541 = vld [vmem:[%s1383 + $0x39] sm:$0xff]
    %v4542 = vld [vmem:[%s1383 + $0x49] sm:$0xff]
    %v4543 = vld [vmem:[%s1383 + $0x51] sm:$0xff]
    %v4544 = vld [vmem:[%s1383 + $0x61] sm:$0xff]
    %v4545 = vld [vmem:[%s1383 + $0x69] sm:$0xff]
    %v4546 = vld [vmem:[%s1383 + $0x79] sm:$0xff]
    %v4547 = vld [vmem:[%s1383 + $0x81] sm:$0xff]
    %v4548 = vld [vmem:[%s1383 + $0x91] sm:$0xff]
    %v4549 = vld [vmem:[%s1383 + $0x99] sm:$0xff]
    %v4550 = vld [vmem:[%s1383 + $0xa9] sm:$0xff]
    %v4551 = vld [vmem:[%s1383 + $0xb1] sm:$0xff]
    %v4552 = vld [vmem:[%s1383 + $0xc1] sm:$0xff]
    %v4553 = vld [vmem:[%s1383 + $0xc9] sm:$0xff]
    %v4554 = vld [vmem:[%s1383 + $0xd9] sm:$0xff]
    %v4555 = vld [vmem:[%s1383 + $0xe1] sm:$0xff]
    %v4556 = vld [vmem:[%s1383 + $0xf1] sm:$0xff]
    %v4557 = vld [vmem:[%s1383 + $0xf9] sm:$0xff]
    %v4558 = vld [vmem:[%s1383 + $0x109] sm:$0xff]
    %v4559 = vld [vmem:[%s1383 + $0x111] sm:$0xff]
    %v4560 = vld [vmem:[%s1383 + $0x121] sm:$0xff]
    %v4561 = vld [vmem:[%s1383 + $0x129] sm:$0xff]
    %v4562 = vld [vmem:[%s1383 + $0x139] sm:$0xff]
    %v4563 = vld [vmem:[%s1383 + $0x141] sm:$0xff]
    %v4564 = vld [vmem:[%s1383 + $0x151] sm:$0xff]
    %v4565 = vld [vmem:[%s1383 + $0x159] sm:$0xff]
    %v4566 = vld [vmem:[%s1383 + $0x169] sm:$0xff]
    %v4567 = vld [vmem:[%s1383 + $0x171] sm:$0xff]
    %v4568 = vld [vmem:[%s1383 + $0x1b1] sm:$0xff]
    %v4569 = vld [vmem:[%s1383 + $0x1b9] sm:$0xff]
    %v4570 = vld [vmem:[%s1383 + $0x1c9] sm:$0xff]
    %v4571 = vld [vmem:[%s1383 + $0x1d1] sm:$0xff]
    %v4572 = vld [vmem:[%s1383 + $0x1e1] sm:$0xff]
    %v4573 = vld [vmem:[%s1383 + $0x1e9] sm:$0xff]
    %v4574 = vld [vmem:[%s1383 + $0x1f9] sm:$0xff]
    %v4575 = vld [vmem:[%s1383 + $0x201] sm:$0xff]
    %v4576 = vld [vmem:[%s1383 + $0x211] sm:$0xff]
    %v4577 = vld [vmem:[%s1383 + $0x219] sm:$0xff]
    %v4578 = vld [vmem:[%s1383 + $0x229] sm:$0xff]
    %v4579 = vld [vmem:[%s1383 + $0x231] sm:$0xff]
    %v4580 = vld [vmem:[%s1383 + $0x241] sm:$0xff]
    %v4581 = vld [vmem:[%s1383 + $0x249] sm:$0xff]
    %v4582 = vld [vmem:[%s1383 + $0x259] sm:$0xff]
    %v4583 = vld [vmem:[%s1383 + $0x261] sm:$0xff]
    %v4584 = vld [vmem:[%s1383 + $0x271] sm:$0xff]
    %v4585 = vld [vmem:[%s1383 + $0x279] sm:$0xff]
    %v4586 = vld [vmem:[%s1383 + $0x289] sm:$0xff]
    %v4587 = vld [vmem:[%s1383 + $0x291] sm:$0xff]
    %v4588 = vld [vmem:[%s1383 + $0x2a1] sm:$0xff]
    %v4589 = vld [vmem:[%s1383 + $0x2a9] sm:$0xff]
    %v4590 = vld [vmem:[%s1383 + $0x2b9] sm:$0xff]
    %v4591 = vld [vmem:[%s1383 + $0x2c1] sm:$0xff]
    %v4592 = vld [vmem:[%s1383 + $0x2d1] sm:$0xff]
    %v4593 = vld [vmem:[%s1383 + $0x2d9] sm:$0xff]
    %v4594 = vld [vmem:[%s1383 + $0x2e9] sm:$0xff]
    %v4595 = vld [vmem:[%s1383 + $0x2f1] sm:$0xff]
    %v4596 = vld [vmem:[%s1383 + $0x301] sm:$0xff]
    %v4597 = vld [vmem:[%s1383 + $0x309] sm:$0xff]
    %v4598 = vld [vmem:[%s1383 + $0x319] sm:$0xff]
    %v4599 = vld [vmem:[%s1383 + $0x321] sm:$0xff]
    %v4600 = vlaneseq
    %v4601 = vshrl.u32 %v4600, 7
    %v4602 = vsub.s32 7, %v4601
    %v4603 = vrot.slane %v3226, %v4602
    %v4604 = vmul.f32 %v4536, %v4603
    %v4605 = vmul.f32 %v4537, %v4603
    %v4606 = vmul.f32 %v4538, %v4603
    %v4607 = vmul.f32 %v4539, %v4603
    %v4608 = vmul.f32 %v4540, %v4603
    %v4609 = vmul.f32 %v4541, %v4603
    %v4610 = vmul.f32 %v4542, %v4603
    %v4611 = vmul.f32 %v4543, %v4603
    %v4612 = vmul.f32 %v4544, %v4603
    %v4613 = vmul.f32 %v4545, %v4603
    %v4614 = vmul.f32 %v4546, %v4603
    %v4615 = vmul.f32 %v4547, %v4603
    %v4616 = vmul.f32 %v4548, %v4603
    %v4617 = vmul.f32 %v4549, %v4603
    %v4618 = vmul.f32 %v4550, %v4603
    %v4619 = vmul.f32 %v4551, %v4603
    %v4620 = vmul.f32 %v4552, %v4603
    %v4621 = vmul.f32 %v4553, %v4603
    %v4622 = vmul.f32 %v4554, %v4603
    %v4623 = vmul.f32 %v4555, %v4603
    %v4624 = vmul.f32 %v4556, %v4603
    %v4625 = vmul.f32 %v4557, %v4603
    %v4626 = vmul.f32 %v4558, %v4603
    %v4627 = vmul.f32 %v4559, %v4603
    %v4628 = vmul.f32 %v4560, %v4603
    %v4629 = vmul.f32 %v4561, %v4603
    %v4630 = vmul.f32 %v4562, %v4603
    %v4631 = vmul.f32 %v4563, %v4603
    %v4632 = vmul.f32 %v4564, %v4603
    %v4633 = vmul.f32 %v4565, %v4603
    %v4634 = vmul.f32 %v4566, %v4603
    %v4635 = vmul.f32 %v4567, %v4603
    %v4636 = vmul.f32 %v4568, %v4603
    %v4637 = vmul.f32 %v4569, %v4603
    %v4638 = vmul.f32 %v4570, %v4603
    %v4639 = vmul.f32 %v4571, %v4603
    %v4640 = vmul.f32 %v4572, %v4603
    %v4641 = vmul.f32 %v4573, %v4603
    %v4642 = vmul.f32 %v4574, %v4603
    %v4643 = vmul.f32 %v4575, %v4603
    %v4644 = vmul.f32 %v4576, %v4603
    %v4645 = vmul.f32 %v4577, %v4603
    %v4646 = vmul.f32 %v4578, %v4603
    %v4647 = vmul.f32 %v4579, %v4603
    %v4648 = vmul.f32 %v4580, %v4603
    %v4649 = vmul.f32 %v4581, %v4603
    %v4650 = vmul.f32 %v4582, %v4603
    %v4651 = vmul.f32 %v4583, %v4603
    %v4652 = vmul.f32 %v4584, %v4603
    %v4653 = vmul.f32 %v4585, %v4603
    %v4654 = vmul.f32 %v4586, %v4603
    %v4655 = vmul.f32 %v4587, %v4603
    %v4656 = vmul.f32 %v4588, %v4603
    %v4657 = vmul.f32 %v4589, %v4603
    %v4658 = vmul.f32 %v4590, %v4603
    %v4659 = vmul.f32 %v4591, %v4603
    %v4660 = vmul.f32 %v4592, %v4603
    %v4661 = vmul.f32 %v4593, %v4603
    %v4662 = vmul.f32 %v4594, %v4603
    %v4663 = vmul.f32 %v4595, %v4603
    %v4664 = vmul.f32 %v4596, %v4603
    %v4665 = vmul.f32 %v4597, %v4603
    %v4666 = vmul.f32 %v4598, %v4603
    %v4667 = vmul.f32 %v4599, %v4603
    %v4668 = vadd.f32 %v4472, %v4604
    %v4669 = vadd.f32 %v4473, %v4605
    %v4670 = vadd.f32 %v4474, %v4606
    %v4671 = vadd.f32 %v4475, %v4607
    %v4672 = vadd.f32 %v4476, %v4608
    %v4673 = vadd.f32 %v4477, %v4609
    %v4674 = vadd.f32 %v4478, %v4610
    %v4675 = vadd.f32 %v4479, %v4611
    %v4676 = vadd.f32 %v4480, %v4612
    %v4677 = vadd.f32 %v4481, %v4613
    %v4678 = vadd.f32 %v4482, %v4614
    %v4679 = vadd.f32 %v4483, %v4615
    %v4680 = vadd.f32 %v4484, %v4616
    %v4681 = vadd.f32 %v4485, %v4617
    %v4682 = vadd.f32 %v4486, %v4618
    %v4683 = vadd.f32 %v4487, %v4619
    %v4684 = vadd.f32 %v4488, %v4620
    %v4685 = vadd.f32 %v4489, %v4621
    %v4686 = vadd.f32 %v4490, %v4622
    %v4687 = vadd.f32 %v4491, %v4623
    %v4688 = vadd.f32 %v4492, %v4624
    %v4689 = vadd.f32 %v4493, %v4625
    %v4690 = vadd.f32 %v4494, %v4626
    %v4691 = vadd.f32 %v4495, %v4627
    %v4692 = vadd.f32 %v4496, %v4628
    %v4693 = vadd.f32 %v4497, %v4629
    %v4694 = vadd.f32 %v4498, %v4630
    %v4695 = vadd.f32 %v4499, %v4631
    %v4696 = vadd.f32 %v4500, %v4632
    %v4697 = vadd.f32 %v4501, %v4633
    %v4698 = vadd.f32 %v4502, %v4634
    %v4699 = vadd.f32 %v4503, %v4635
    %v4700 = vadd.f32 %v4504, %v4636
    %v4701 = vadd.f32 %v4505, %v4637
    %v4702 = vadd.f32 %v4506, %v4638
    %v4703 = vadd.f32 %v4507, %v4639
    %v4704 = vadd.f32 %v4508, %v4640
    %v4705 = vadd.f32 %v4509, %v4641
    %v4706 = vadd.f32 %v4510, %v4642
    %v4707 = vadd.f32 %v4511, %v4643
    %v4708 = vadd.f32 %v4512, %v4644
    %v4709 = vadd.f32 %v4513, %v4645
    %v4710 = vadd.f32 %v4514, %v4646
    %v4711 = vadd.f32 %v4515, %v4647
    %v4712 = vadd.f32 %v4516, %v4648
    %v4713 = vadd.f32 %v4517, %v4649
    %v4714 = vadd.f32 %v4518, %v4650
    %v4715 = vadd.f32 %v4519, %v4651
    %v4716 = vadd.f32 %v4520, %v4652
    %v4717 = vadd.f32 %v4521, %v4653
    %v4718 = vadd.f32 %v4522, %v4654
    %v4719 = vadd.f32 %v4523, %v4655
    %v4720 = vadd.f32 %v4524, %v4656
    %v4721 = vadd.f32 %v4525, %v4657
    %v4722 = vadd.f32 %v4526, %v4658
    %v4723 = vadd.f32 %v4527, %v4659
    %v4724 = vadd.f32 %v4528, %v4660
    %v4725 = vadd.f32 %v4529, %v4661
    %v4726 = vadd.f32 %v4530, %v4662
    %v4727 = vadd.f32 %v4531, %v4663
    %v4728 = vadd.f32 %v4532, %v4664
    %v4729 = vadd.f32 %v4533, %v4665
    %v4730 = vadd.f32 %v4534, %v4666
    %v4731 = vadd.f32 %v4535, %v4667
    %v4732 = vld [vmem:[%s1383 + $0x2] sm:$0xff]
    %v4733 = vld [vmem:[%s1383 + $0xa] sm:$0xff]
    %v4734 = vld [vmem:[%s1383 + $0x1a] sm:$0xff]
    %v4735 = vld [vmem:[%s1383 + $0x22] sm:$0xff]
    %v4736 = vld [vmem:[%s1383 + $0x32] sm:$0xff]
    %v4737 = vld [vmem:[%s1383 + $0x3a] sm:$0xff]
    %v4738 = vld [vmem:[%s1383 + $0x4a] sm:$0xff]
    %v4739 = vld [vmem:[%s1383 + $0x52] sm:$0xff]
    %v4740 = vld [vmem:[%s1383 + $0x62] sm:$0xff]
    %v4741 = vld [vmem:[%s1383 + $0x6a] sm:$0xff]
    %v4742 = vld [vmem:[%s1383 + $0x7a] sm:$0xff]
    %v4743 = vld [vmem:[%s1383 + $0x82] sm:$0xff]
    %v4744 = vld [vmem:[%s1383 + $0x92] sm:$0xff]
    %v4745 = vld [vmem:[%s1383 + $0x9a] sm:$0xff]
    %v4746 = vld [vmem:[%s1383 + $0xaa] sm:$0xff]
    %v4747 = vld [vmem:[%s1383 + $0xb2] sm:$0xff]
    %v4748 = vld [vmem:[%s1383 + $0xc2] sm:$0xff]
    %v4749 = vld [vmem:[%s1383 + $0xca] sm:$0xff]
    %v4750 = vld [vmem:[%s1383 + $0xda] sm:$0xff]
    %v4751 = vld [vmem:[%s1383 + $0xe2] sm:$0xff]
    %v4752 = vld [vmem:[%s1383 + $0xf2] sm:$0xff]
    %v4753 = vld [vmem:[%s1383 + $0xfa] sm:$0xff]
    %v4754 = vld [vmem:[%s1383 + $0x10a] sm:$0xff]
    %v4755 = vld [vmem:[%s1383 + $0x112] sm:$0xff]
    %v4756 = vld [vmem:[%s1383 + $0x122] sm:$0xff]
    %v4757 = vld [vmem:[%s1383 + $0x12a] sm:$0xff]
    %v4758 = vld [vmem:[%s1383 + $0x13a] sm:$0xff]
    %v4759 = vld [vmem:[%s1383 + $0x142] sm:$0xff]
    %v4760 = vld [vmem:[%s1383 + $0x152] sm:$0xff]
    %v4761 = vld [vmem:[%s1383 + $0x15a] sm:$0xff]
    %v4762 = vld [vmem:[%s1383 + $0x16a] sm:$0xff]
    %v4763 = vld [vmem:[%s1383 + $0x172] sm:$0xff]
    %v4764 = vld [vmem:[%s1383 + $0x1b2] sm:$0xff]
    %v4765 = vld [vmem:[%s1383 + $0x1ba] sm:$0xff]
    %v4766 = vld [vmem:[%s1383 + $0x1ca] sm:$0xff]
    %v4767 = vld [vmem:[%s1383 + $0x1d2] sm:$0xff]
    %v4768 = vld [vmem:[%s1383 + $0x1e2] sm:$0xff]
    %v4769 = vld [vmem:[%s1383 + $0x1ea] sm:$0xff]
    %v4770 = vld [vmem:[%s1383 + $0x1fa] sm:$0xff]
    %v4771 = vld [vmem:[%s1383 + $0x202] sm:$0xff]
    %v4772 = vld [vmem:[%s1383 + $0x212] sm:$0xff]
    %v4773 = vld [vmem:[%s1383 + $0x21a] sm:$0xff]
    %v4774 = vld [vmem:[%s1383 + $0x22a] sm:$0xff]
    %v4775 = vld [vmem:[%s1383 + $0x232] sm:$0xff]
    %v4776 = vld [vmem:[%s1383 + $0x242] sm:$0xff]
    %v4777 = vld [vmem:[%s1383 + $0x24a] sm:$0xff]
    %v4778 = vld [vmem:[%s1383 + $0x25a] sm:$0xff]
    %v4779 = vld [vmem:[%s1383 + $0x262] sm:$0xff]
    %v4780 = vld [vmem:[%s1383 + $0x272] sm:$0xff]
    %v4781 = vld [vmem:[%s1383 + $0x27a] sm:$0xff]
    %v4782 = vld [vmem:[%s1383 + $0x28a] sm:$0xff]
    %v4783 = vld [vmem:[%s1383 + $0x292] sm:$0xff]
    %v4784 = vld [vmem:[%s1383 + $0x2a2] sm:$0xff]
    %v4785 = vld [vmem:[%s1383 + $0x2aa] sm:$0xff]
    %v4786 = vld [vmem:[%s1383 + $0x2ba] sm:$0xff]
    %v4787 = vld [vmem:[%s1383 + $0x2c2] sm:$0xff]
    %v4788 = vld [vmem:[%s1383 + $0x2d2] sm:$0xff]
    %v4789 = vld [vmem:[%s1383 + $0x2da] sm:$0xff]
    %v4790 = vld [vmem:[%s1383 + $0x2ea] sm:$0xff]
    %v4791 = vld [vmem:[%s1383 + $0x2f2] sm:$0xff]
    %v4792 = vld [vmem:[%s1383 + $0x302] sm:$0xff]
    %v4793 = vld [vmem:[%s1383 + $0x30a] sm:$0xff]
    %v4794 = vld [vmem:[%s1383 + $0x31a] sm:$0xff]
    %v4795 = vld [vmem:[%s1383 + $0x322] sm:$0xff]
    %v4796 = vlaneseq
    %v4797 = vshrl.u32 %v4796, 7
    %v4798 = vsub.s32 0, %v4797
    %v4799 = vrot.slane %v3227, %v4798
    %v4800 = vmul.f32 %v4732, %v4799
    %v4801 = vmul.f32 %v4733, %v4799
    %v4802 = vmul.f32 %v4734, %v4799
    %v4803 = vmul.f32 %v4735, %v4799
    %v4804 = vmul.f32 %v4736, %v4799
    %v4805 = vmul.f32 %v4737, %v4799
    %v4806 = vmul.f32 %v4738, %v4799
    %v4807 = vmul.f32 %v4739, %v4799
    %v4808 = vmul.f32 %v4740, %v4799
    %v4809 = vmul.f32 %v4741, %v4799
    %v4810 = vmul.f32 %v4742, %v4799
    %v4811 = vmul.f32 %v4743, %v4799
    %v4812 = vmul.f32 %v4744, %v4799
    %v4813 = vmul.f32 %v4745, %v4799
    %v4814 = vmul.f32 %v4746, %v4799
    %v4815 = vmul.f32 %v4747, %v4799
    %v4816 = vmul.f32 %v4748, %v4799
    %v4817 = vmul.f32 %v4749, %v4799
    %v4818 = vmul.f32 %v4750, %v4799
    %v4819 = vmul.f32 %v4751, %v4799
    %v4820 = vmul.f32 %v4752, %v4799
    %v4821 = vmul.f32 %v4753, %v4799
    %v4822 = vmul.f32 %v4754, %v4799
    %v4823 = vmul.f32 %v4755, %v4799
    %v4824 = vmul.f32 %v4756, %v4799
    %v4825 = vmul.f32 %v4757, %v4799
    %v4826 = vmul.f32 %v4758, %v4799
    %v4827 = vmul.f32 %v4759, %v4799
    %v4828 = vmul.f32 %v4760, %v4799
    %v4829 = vmul.f32 %v4761, %v4799
    %v4830 = vmul.f32 %v4762, %v4799
    %v4831 = vmul.f32 %v4763, %v4799
    %v4832 = vmul.f32 %v4764, %v4799
    %v4833 = vmul.f32 %v4765, %v4799
    %v4834 = vmul.f32 %v4766, %v4799
    %v4835 = vmul.f32 %v4767, %v4799
    %v4836 = vmul.f32 %v4768, %v4799
    %v4837 = vmul.f32 %v4769, %v4799
    %v4838 = vmul.f32 %v4770, %v4799
    %v4839 = vmul.f32 %v4771, %v4799
    %v4840 = vmul.f32 %v4772, %v4799
    %v4841 = vmul.f32 %v4773, %v4799
    %v4842 = vmul.f32 %v4774, %v4799
    %v4843 = vmul.f32 %v4775, %v4799
    %v4844 = vmul.f32 %v4776, %v4799
    %v4845 = vmul.f32 %v4777, %v4799
    %v4846 = vmul.f32 %v4778, %v4799
    %v4847 = vmul.f32 %v4779, %v4799
    %v4848 = vmul.f32 %v4780, %v4799
    %v4849 = vmul.f32 %v4781, %v4799
    %v4850 = vmul.f32 %v4782, %v4799
    %v4851 = vmul.f32 %v4783, %v4799
    %v4852 = vmul.f32 %v4784, %v4799
    %v4853 = vmul.f32 %v4785, %v4799
    %v4854 = vmul.f32 %v4786, %v4799
    %v4855 = vmul.f32 %v4787, %v4799
    %v4856 = vmul.f32 %v4788, %v4799
    %v4857 = vmul.f32 %v4789, %v4799
    %v4858 = vmul.f32 %v4790, %v4799
    %v4859 = vmul.f32 %v4791, %v4799
    %v4860 = vmul.f32 %v4792, %v4799
    %v4861 = vmul.f32 %v4793, %v4799
    %v4862 = vmul.f32 %v4794, %v4799
    %v4863 = vmul.f32 %v4795, %v4799
    %v4864 = vadd.f32 %v4668, %v4800
    %v4865 = vadd.f32 %v4669, %v4801
    %v4866 = vadd.f32 %v4670, %v4802
    %v4867 = vadd.f32 %v4671, %v4803
    %v4868 = vadd.f32 %v4672, %v4804
    %v4869 = vadd.f32 %v4673, %v4805
    %v4870 = vadd.f32 %v4674, %v4806
    %v4871 = vadd.f32 %v4675, %v4807
    %v4872 = vadd.f32 %v4676, %v4808
    %v4873 = vadd.f32 %v4677, %v4809
    %v4874 = vadd.f32 %v4678, %v4810
    %v4875 = vadd.f32 %v4679, %v4811
    %v4876 = vadd.f32 %v4680, %v4812
    %v4877 = vadd.f32 %v4681, %v4813
    %v4878 = vadd.f32 %v4682, %v4814
    %v4879 = vadd.f32 %v4683, %v4815
    %v4880 = vadd.f32 %v4684, %v4816
    %v4881 = vadd.f32 %v4685, %v4817
    %v4882 = vadd.f32 %v4686, %v4818
    %v4883 = vadd.f32 %v4687, %v4819
    %v4884 = vadd.f32 %v4688, %v4820
    %v4885 = vadd.f32 %v4689, %v4821
    %v4886 = vadd.f32 %v4690, %v4822
    %v4887 = vadd.f32 %v4691, %v4823
    %v4888 = vadd.f32 %v4692, %v4824
    %v4889 = vadd.f32 %v4693, %v4825
    %v4890 = vadd.f32 %v4694, %v4826
    %v4891 = vadd.f32 %v4695, %v4827
    %v4892 = vadd.f32 %v4696, %v4828
    %v4893 = vadd.f32 %v4697, %v4829
    %v4894 = vadd.f32 %v4698, %v4830
    %v4895 = vadd.f32 %v4699, %v4831
    %v4896 = vadd.f32 %v4700, %v4832
    %v4897 = vadd.f32 %v4701, %v4833
    %v4898 = vadd.f32 %v4702, %v4834
    %v4899 = vadd.f32 %v4703, %v4835
    %v4900 = vadd.f32 %v4704, %v4836
    %v4901 = vadd.f32 %v4705, %v4837
    %v4902 = vadd.f32 %v4706, %v4838
    %v4903 = vadd.f32 %v4707, %v4839
    %v4904 = vadd.f32 %v4708, %v4840
    %v4905 = vadd.f32 %v4709, %v4841
    %v4906 = vadd.f32 %v4710, %v4842
    %v4907 = vadd.f32 %v4711, %v4843
    %v4908 = vadd.f32 %v4712, %v4844
    %v4909 = vadd.f32 %v4713, %v4845
    %v4910 = vadd.f32 %v4714, %v4846
    %v4911 = vadd.f32 %v4715, %v4847
    %v4912 = vadd.f32 %v4716, %v4848
    %v4913 = vadd.f32 %v4717, %v4849
    %v4914 = vadd.f32 %v4718, %v4850
    %v4915 = vadd.f32 %v4719, %v4851
    %v4916 = vadd.f32 %v4720, %v4852
    %v4917 = vadd.f32 %v4721, %v4853
    %v4918 = vadd.f32 %v4722, %v4854
    %v4919 = vadd.f32 %v4723, %v4855
    %v4920 = vadd.f32 %v4724, %v4856
    %v4921 = vadd.f32 %v4725, %v4857
    %v4922 = vadd.f32 %v4726, %v4858
    %v4923 = vadd.f32 %v4727, %v4859
    %v4924 = vadd.f32 %v4728, %v4860
    %v4925 = vadd.f32 %v4729, %v4861
    %v4926 = vadd.f32 %v4730, %v4862
    %v4927 = vadd.f32 %v4731, %v4863
    %v4928 = vld [vmem:[%s6] sm:$0xff]
    %v4930 = vsel %vm51, %v4864, 0
    %v4933 = vsel %vm51, %v4865, 0
    %v4936 = vsel %vm51, %v4866, 0
    %v4939 = vsel %vm51, %v4867, 0
    %v4942 = vsel %vm51, %v4868, 0
    %v4945 = vsel %vm51, %v4869, 0
    %v4948 = vsel %vm51, %v4870, 0
    %v4951 = vsel %vm51, %v4871, 0
    %v4954 = vsel %vm51, %v4872, 0
    %v4957 = vsel %vm51, %v4873, 0
    %v4960 = vsel %vm51, %v4874, 0
    %v4963 = vsel %vm51, %v4875, 0
    %v4966 = vsel %vm51, %v4876, 0
    %v4969 = vsel %vm51, %v4877, 0
    %v4972 = vsel %vm51, %v4878, 0
    %v4975 = vsel %vm51, %v4879, 0
    %v4978 = vsel %vm51, %v4880, 0
    %v4981 = vsel %vm51, %v4881, 0
    %v4984 = vsel %vm51, %v4882, 0
    %v4987 = vsel %vm51, %v4883, 0
    %v4990 = vsel %vm51, %v4884, 0
    %v4993 = vsel %vm51, %v4885, 0
    %v4996 = vsel %vm51, %v4886, 0
    %v4999 = vsel %vm51, %v4887, 0
    %v5002 = vsel %vm51, %v4888, 0
    %v5005 = vsel %vm51, %v4889, 0
    %v5008 = vsel %vm51, %v4890, 0
    %v5011 = vsel %vm51, %v4891, 0
    %v5014 = vsel %vm51, %v4892, 0
    %v5017 = vsel %vm51, %v4893, 0
    %v5020 = vsel %vm51, %v4894, 0
    %v5023 = vsel %vm51, %v4895, 0
    %v5026 = vsel %vm51, %v4896, 0
    %v5029 = vsel %vm51, %v4897, 0
    %v5032 = vsel %vm51, %v4898, 0
    %v5035 = vsel %vm51, %v4899, 0
    %v5038 = vsel %vm51, %v4900, 0
    %v5041 = vsel %vm51, %v4901, 0
    %v5044 = vsel %vm51, %v4902, 0
    %v5047 = vsel %vm51, %v4903, 0
    %v5050 = vsel %vm51, %v4904, 0
    %v5053 = vsel %vm51, %v4905, 0
    %v5056 = vsel %vm51, %v4906, 0
    %v5059 = vsel %vm51, %v4907, 0
    %v5062 = vsel %vm51, %v4908, 0
    %v5065 = vsel %vm51, %v4909, 0
    %v5068 = vsel %vm51, %v4910, 0
    %v5071 = vsel %vm51, %v4911, 0
    %v5074 = vsel %vm51, %v4912, 0
    %v5077 = vsel %vm51, %v4913, 0
    %v5080 = vsel %vm51, %v4914, 0
    %v5083 = vsel %vm51, %v4915, 0
    %v5086 = vsel %vm51, %v4916, 0
    %v5089 = vsel %vm51, %v4917, 0
    %v5092 = vsel %vm51, %v4918, 0
    %v5095 = vsel %vm51, %v4919, 0
    %v5098 = vsel %vm51, %v4920, 0
    %v5101 = vsel %vm51, %v4921, 0
    %v5104 = vsel %vm51, %v4922, 0
    %v5107 = vsel %vm51, %v4923, 0
    %v5110 = vsel %vm51, %v4924, 0
    %v5113 = vsel %vm51, %v4925, 0
    %v5116 = vsel %vm51, %v4926, 0
    %v5119 = vsel %vm51, %v4927, 0
    %5121 = vmatprep.subr.mxu0 0.0
    %5122 = vmatpush1.msra.mxu0 %v4928
    %5123 = vmatprep.subr.mxu0 0.0
    %5124 = vmatpush1.msra.mxu0 0.0
    %5125 = vmatprep.subr.mxu0 0.0
    %5126 = vmatpush1.msra.mxu0 0.0
    %5127 = vmatprep.subr.mxu0 0.0
    %5128 = vmatpush1.msra.mxu0 0.0
    %5129 = vmatprep.subr.mxu0 0.0
    %5130 = vmatpush1.msra.mxu0 0.0
    %5131 = vmatprep.subr.mxu0 0.0
    %5132 = vmatpush1.msra.mxu0 0.0
    %5133 = vmatprep.subr.mxu0 0.0
    %5134 = vmatpush1.msra.mxu0 0.0
    %5135 = vmatprep.subr.mxu0 0.0
    %5136 = vmatpush1.msra.mxu0 0.0
    %5137 = vmatprep.subr.mxu0 0.0
    %5138 = vmatpush1.msra.mxu0 0.0
    %5139 = vmatprep.subr.mxu0 0.0
    %5140 = vmatpush1.msra.mxu0 0.0
    %5141 = vmatprep.subr.mxu0 0.0
    %5142 = vmatpush1.msra.mxu0 0.0
    %5143 = vmatprep.subr.mxu0 0.0
    %5144 = vmatpush1.msra.mxu0 0.0
    %5145 = vmatprep.subr.mxu0 0.0
    %5146 = vmatpush1.msra.mxu0 0.0
    %5147 = vmatprep.subr.mxu0 0.0
    %5148 = vmatpush1.msra.mxu0 0.0
    %5149 = vmatprep.subr.mxu0 0.0
    %5150 = vmatpush1.msra.mxu0 0.0
    %5151 = vmatprep.subr.mxu0 0.0
    %5152 = vmatpush1.msra.mxu0 0.0
    %5153 = vmatprep.subr.mxu0 0.0
    %5154 = vmatpush1.msra.mxu0 0.0
    %5155 = vmatprep.subr.mxu0 0.0
    %5156 = vmatpush1.msra.mxu0 0.0
    %5157 = vmatprep.subr.mxu0 0.0
    %5158 = vmatpush1.msra.mxu0 0.0
    %5159 = vmatprep.subr.mxu0 0.0
    %5160 = vmatpush1.msra.mxu0 0.0
    %5161 = vmatprep.subr.mxu0 0.0
    %5162 = vmatpush1.msra.mxu0 0.0
    %5163 = vmatprep.subr.mxu0 0.0
    %5164 = vmatpush1.msra.mxu0 0.0
    %5165 = vmatprep.subr.mxu0 0.0
    %5166 = vmatpush1.msra.mxu0 0.0
    %5167 = vmatprep.subr.mxu0 0.0
    %5168 = vmatpush1.msra.mxu0 0.0
    %5169 = vmatprep.subr.mxu0 0.0
    %5170 = vmatpush1.msra.mxu0 0.0
    %5171 = vmatprep.subr.mxu0 0.0
    %5172 = vmatpush1.msra.mxu0 0.0
    %5173 = vmatprep.subr.mxu0 0.0
    %5174 = vmatpush1.msra.mxu0 0.0
    %5175 = vmatprep.subr.mxu0 0.0
    %5176 = vmatpush1.msra.mxu0 0.0
    %5177 = vmatprep.subr.mxu0 0.0
    %5178 = vmatpush1.msra.mxu0 0.0
    %5179 = vmatprep.subr.mxu0 0.0
    %5180 = vmatpush1.msra.mxu0 0.0
    %5181 = vmatprep.subr.mxu0 0.0
    %5182 = vmatpush1.msra.mxu0 0.0
    %5183 = vmatprep.subr.mxu0 0.0
    %5184 = vmatpush1.msra.mxu0 0.0
    %5185 = vmatprep.mubr.f32.mxu0 0.0
    %5186 = vmatmul.mubr.f32.gmra.mrb[0].mxu0 %v4930
    %v5187 = vpop.f32.mrb[0].mxu0
    %v5188 = vadd.f32 0.0, %v5187
    %v5189 = vpop.f32.mrb[0].mxu0
    %5190 = vmatprep.mubr.f32.mxu0 0.0
    %5191 = vmatmul.mubr.f32.gmra.mrb[0].mxu0 %v4933
    %v5192 = vpop.f32.mrb[0].mxu0
    %v5193 = vadd.f32 0.0, %v5192
    %v5194 = vpop.f32.mrb[0].mxu0
    %5195 = vmatprep.mubr.f32.mxu0 0.0
    %5196 = vmatmul.mubr.f32.gmra.mrb[0].mxu0 %v4936
    %v5197 = vpop.f32.mrb[0].mxu0
    %v5198 = vadd.f32 0.0, %v5197
    %v5199 = vpop.f32.mrb[0].mxu0
    %5200 = vmatprep.mubr.f32.mxu0 0.0
    %5201 = vmatmul.mubr.f32.gmra.mrb[0].mxu0 %v4939
    %v5202 = vpop.f32.mrb[0].mxu0
    %v5203 = vadd.f32 0.0, %v5202
    %v5204 = vpop.f32.mrb[0].mxu0
    %5205 = vmatprep.mubr.f32.mxu0 0.0
    %5206 = vmatmul.mubr.f32.gmra.mrb[0].mxu0 %v4942
    %v5207 = vpop.f32.mrb[0].mxu0
    %v5208 = vadd.f32 0.0, %v5207
    %v5209 = vpop.f32.mrb[0].mxu0
    %5210 = vmatprep.mubr.f32.mxu0 0.0
    %5211 = vmatmul.mubr.f32.gmra.mrb[0].mxu0 %v4945
    %v5212 = vpop.f32.mrb[0].mxu0
    %v5213 = vadd.f32 0.0, %v5212
    %v5214 = vpop.f32.mrb[0].mxu0
    %5215 = vmatprep.mubr.f32.mxu0 0.0
    %5216 = vmatmul.mubr.f32.gmra.mrb[0].mxu0 %v4948
    %v5217 = vpop.f32.mrb[0].mxu0
    %v5218 = vadd.f32 0.0, %v5217
    %v5219 = vpop.f32.mrb[0].mxu0
    %5220 = vmatprep.mubr.f32.mxu0 0.0
    %5221 = vmatmul.mubr.f32.gmra.mrb[0].mxu0 %v4951
    %v5222 = vpop.f32.mrb[0].mxu0
    %v5223 = vadd.f32 0.0, %v5222
    %v5224 = vpop.f32.mrb[0].mxu0
    %5225 = vmatprep.mubr.f32.mxu0 0.0
    %5226 = vmatmul.mubr.f32.gmra.mrb[0].mxu0 %v4954
    %v5227 = vpop.f32.mrb[0].mxu0
    %v5228 = vadd.f32 0.0, %v5227
    %v5229 = vpop.f32.mrb[0].mxu0
    %5230 = vmatprep.mubr.f32.mxu0 0.0
    %5231 = vmatmul.mubr.f32.gmra.mrb[0].mxu0 %v4957
    %v5232 = vpop.f32.mrb[0].mxu0
    %v5233 = vadd.f32 0.0, %v5232
    %v5234 = vpop.f32.mrb[0].mxu0
    %5235 = vmatprep.mubr.f32.mxu0 0.0
    %5236 = vmatmul.mubr.f32.gmra.mrb[0].mxu0 %v4960
    %v5237 = vpop.f32.mrb[0].mxu0
    %v5238 = vadd.f32 0.0, %v5237
    %v5239 = vpop.f32.mrb[0].mxu0
    %5240 = vmatprep.mubr.f32.mxu0 0.0
    %5241 = vmatmul.mubr.f32.gmra.mrb[0].mxu0 %v4963
    %v5242 = vpop.f32.mrb[0].mxu0
    %v5243 = vadd.f32 0.0, %v5242
    %v5244 = vpop.f32.mrb[0].mxu0
    %5245 = vmatprep.mubr.f32.mxu0 0.0
    %5246 = vmatmul.mubr.f32.gmra.mrb[0].mxu0 %v4966
    %v5247 = vpop.f32.mrb[0].mxu0
    %v5248 = vadd.f32 0.0, %v5247
    %v5249 = vpop.f32.mrb[0].mxu0
    %5250 = vmatprep.mubr.f32.mxu0 0.0
    %5251 = vmatmul.mubr.f32.gmra.mrb[0].mxu0 %v4969
    %v5252 = vpop.f32.mrb[0].mxu0
    %v5253 = vadd.f32 0.0, %v5252
    %v5254 = vpop.f32.mrb[0].mxu0
    %5255 = vmatprep.mubr.f32.mxu0 0.0
    %5256 = vmatmul.mubr.f32.gmra.mrb[0].mxu0 %v4972
    %v5257 = vpop.f32.mrb[0].mxu0
    %v5258 = vadd.f32 0.0, %v5257
    %v5259 = vpop.f32.mrb[0].mxu0
    %5260 = vmatprep.mubr.f32.mxu0 0.0
    %5261 = vmatmul.mubr.f32.gmra.mrb[0].mxu0 %v4975
    %v5262 = vpop.f32.mrb[0].mxu0
    %v5263 = vadd.f32 0.0, %v5262
    %v5264 = vpop.f32.mrb[0].mxu0
    %5265 = vmatprep.mubr.f32.mxu0 0.0
    %5266 = vmatmul.mubr.f32.gmra.mrb[0].mxu0 %v4978
    %v5267 = vpop.f32.mrb[0].mxu0
    %v5268 = vadd.f32 0.0, %v5267
    %v5269 = vpop.f32.mrb[0].mxu0
    %5270 = vmatprep.mubr.f32.mxu0 0.0
    %5271 = vmatmul.mubr.f32.gmra.mrb[0].mxu0 %v4981
    %v5272 = vpop.f32.mrb[0].mxu0
    %v5273 = vadd.f32 0.0, %v5272
    %v5274 = vpop.f32.mrb[0].mxu0
    %5275 = vmatprep.mubr.f32.mxu0 0.0
    %5276 = vmatmul.mubr.f32.gmra.mrb[0].mxu0 %v4984
    %v5277 = vpop.f32.mrb[0].mxu0
    %v5278 = vadd.f32 0.0, %v5277
    %v5279 = vpop.f32.mrb[0].mxu0
    %5280 = vmatprep.mubr.f32.mxu0 0.0
    %5281 = vmatmul.mubr.f32.gmra.mrb[0].mxu0 %v4987
    %v5282 = vpop.f32.mrb[0].mxu0
    %v5283 = vadd.f32 0.0, %v5282
    %v5284 = vpop.f32.mrb[0].mxu0
    %5285 = vmatprep.mubr.f32.mxu0 0.0
    %5286 = vmatmul.mubr.f32.gmra.mrb[0].mxu0 %v4990
    %v5287 = vpop.f32.mrb[0].mxu0
    %v5288 = vadd.f32 0.0, %v5287
    %v5289 = vpop.f32.mrb[0].mxu0
    %5290 = vmatprep.mubr.f32.mxu0 0.0
    %5291 = vmatmul.mubr.f32.gmra.mrb[0].mxu0 %v4993
    %v5292 = vpop.f32.mrb[0].mxu0
    %v5293 = vadd.f32 0.0, %v5292
    %v5294 = vpop.f32.mrb[0].mxu0
    %5295 = vmatprep.mubr.f32.mxu0 0.0
    %5296 = vmatmul.mubr.f32.gmra.mrb[0].mxu0 %v4996
    %v5297 = vpop.f32.mrb[0].mxu0
    %v5298 = vadd.f32 0.0, %v5297
    %v5299 = vpop.f32.mrb[0].mxu0
    %5300 = vmatprep.mubr.f32.mxu0 0.0
    %5301 = vmatmul.mubr.f32.gmra.mrb[0].mxu0 %v4999
    %v5302 = vpop.f32.mrb[0].mxu0
    %v5303 = vadd.f32 0.0, %v5302
    %v5304 = vpop.f32.mrb[0].mxu0
    %5305 = vmatprep.mubr.f32.mxu0 0.0
    %5306 = vmatmul.mubr.f32.gmra.mrb[0].mxu0 %v5002
    %v5307 = vpop.f32.mrb[0].mxu0
    %v5308 = vadd.f32 0.0, %v5307
    %v5309 = vpop.f32.mrb[0].mxu0
    %5310 = vmatprep.mubr.f32.mxu0 0.0
    %5311 = vmatmul.mubr.f32.gmra.mrb[0].mxu0 %v5005
    %v5312 = vpop.f32.mrb[0].mxu0
    %v5313 = vadd.f32 0.0, %v5312
    %v5314 = vpop.f32.mrb[0].mxu0
    %5315 = vmatprep.mubr.f32.mxu0 0.0
    %5316 = vmatmul.mubr.f32.gmra.mrb[0].mxu0 %v5008
    %v5317 = vpop.f32.mrb[0].mxu0
    %v5318 = vadd.f32 0.0, %v5317
    %v5319 = vpop.f32.mrb[0].mxu0
    %5320 = vmatprep.mubr.f32.mxu0 0.0
    %5321 = vmatmul.mubr.f32.gmra.mrb[0].mxu0 %v5011
    %v5322 = vpop.f32.mrb[0].mxu0
    %v5323 = vadd.f32 0.0, %v5322
    %v5324 = vpop.f32.mrb[0].mxu0
    %5325 = vmatprep.mubr.f32.mxu0 0.0
    %5326 = vmatmul.mubr.f32.gmra.mrb[0].mxu0 %v5014
    %v5327 = vpop.f32.mrb[0].mxu0
    %v5328 = vadd.f32 0.0, %v5327
    %v5329 = vpop.f32.mrb[0].mxu0
    %5330 = vmatprep.mubr.f32.mxu0 0.0
    %5331 = vmatmul.mubr.f32.gmra.mrb[0].mxu0 %v5017
    %v5332 = vpop.f32.mrb[0].mxu0
    %v5333 = vadd.f32 0.0, %v5332
    %v5334 = vpop.f32.mrb[0].mxu0
    %5335 = vmatprep.mubr.f32.mxu0 0.0
    %5336 = vmatmul.mubr.f32.gmra.mrb[0].mxu0 %v5020
    %v5337 = vpop.f32.mrb[0].mxu0
    %v5338 = vadd.f32 0.0, %v5337
    %v5339 = vpop.f32.mrb[0].mxu0
    %5340 = vmatprep.mubr.f32.mxu0 0.0
    %5341 = vmatmul.mubr.f32.gmra.mrb[0].mxu0 %v5023
    %v5342 = vpop.f32.mrb[0].mxu0
    %v5343 = vadd.f32 0.0, %v5342
    %v5344 = vpop.f32.mrb[0].mxu0
    %5345 = vmatprep.mubr.f32.mxu0 0.0
    %5346 = vmatmul.mubr.f32.gmra.mrb[0].mxu0 %v5026
    %v5347 = vpop.f32.mrb[0].mxu0
    %v5348 = vadd.f32 0.0, %v5347
    %v5349 = vpop.f32.mrb[0].mxu0
    %5350 = vmatprep.mubr.f32.mxu0 0.0
    %5351 = vmatmul.mubr.f32.gmra.mrb[0].mxu0 %v5029
    %v5352 = vpop.f32.mrb[0].mxu0
    %v5353 = vadd.f32 0.0, %v5352
    %v5354 = vpop.f32.mrb[0].mxu0
    %5355 = vmatprep.mubr.f32.mxu0 0.0
    %5356 = vmatmul.mubr.f32.gmra.mrb[0].mxu0 %v5032
    %v5357 = vpop.f32.mrb[0].mxu0
    %v5358 = vadd.f32 0.0, %v5357
    %v5359 = vpop.f32.mrb[0].mxu0
    %5360 = vmatprep.mubr.f32.mxu0 0.0
    %5361 = vmatmul.mubr.f32.gmra.mrb[0].mxu0 %v5035
    %v5362 = vpop.f32.mrb[0].mxu0
    %v5363 = vadd.f32 0.0, %v5362
    %v5364 = vpop.f32.mrb[0].mxu0
    %5365 = vmatprep.mubr.f32.mxu0 0.0
    %5366 = vmatmul.mubr.f32.gmra.mrb[0].mxu0 %v5038
    %v5367 = vpop.f32.mrb[0].mxu0
    %v5368 = vadd.f32 0.0, %v5367
    %v5369 = vpop.f32.mrb[0].mxu0
    %5370 = vmatprep.mubr.f32.mxu0 0.0
    %5371 = vmatmul.mubr.f32.gmra.mrb[0].mxu0 %v5041
    %v5372 = vpop.f32.mrb[0].mxu0
    %v5373 = vadd.f32 0.0, %v5372
    %v5374 = vpop.f32.mrb[0].mxu0
    %5375 = vmatprep.mubr.f32.mxu0 0.0
    %5376 = vmatmul.mubr.f32.gmra.mrb[0].mxu0 %v5044
    %v5377 = vpop.f32.mrb[0].mxu0
    %v5378 = vadd.f32 0.0, %v5377
    %v5379 = vpop.f32.mrb[0].mxu0
    %5380 = vmatprep.mubr.f32.mxu0 0.0
    %5381 = vmatmul.mubr.f32.gmra.mrb[0].mxu0 %v5047
    %v5382 = vpop.f32.mrb[0].mxu0
    %v5383 = vadd.f32 0.0, %v5382
    %v5384 = vpop.f32.mrb[0].mxu0
    %5385 = vmatprep.mubr.f32.mxu0 0.0
    %5386 = vmatmul.mubr.f32.gmra.mrb[0].mxu0 %v5050
    %v5387 = vpop.f32.mrb[0].mxu0
    %v5388 = vadd.f32 0.0, %v5387
    %v5389 = vpop.f32.mrb[0].mxu0
    %5390 = vmatprep.mubr.f32.mxu0 0.0
    %5391 = vmatmul.mubr.f32.gmra.mrb[0].mxu0 %v5053
    %v5392 = vpop.f32.mrb[0].mxu0
    %v5393 = vadd.f32 0.0, %v5392
    %v5394 = vpop.f32.mrb[0].mxu0
    %5395 = vmatprep.mubr.f32.mxu0 0.0
    %5396 = vmatmul.mubr.f32.gmra.mrb[0].mxu0 %v5056
    %v5397 = vpop.f32.mrb[0].mxu0
    %v5398 = vadd.f32 0.0, %v5397
    %v5399 = vpop.f32.mrb[0].mxu0
    %5400 = vmatprep.mubr.f32.mxu0 0.0
    %5401 = vmatmul.mubr.f32.gmra.mrb[0].mxu0 %v5059
    %v5402 = vpop.f32.mrb[0].mxu0
    %v5403 = vadd.f32 0.0, %v5402
    %v5404 = vpop.f32.mrb[0].mxu0
    %5405 = vmatprep.mubr.f32.mxu0 0.0
    %5406 = vmatmul.mubr.f32.gmra.mrb[0].mxu0 %v5062
    %v5407 = vpop.f32.mrb[0].mxu0
    %v5408 = vadd.f32 0.0, %v5407
    %v5409 = vpop.f32.mrb[0].mxu0
    %5410 = vmatprep.mubr.f32.mxu0 0.0
    %5411 = vmatmul.mubr.f32.gmra.mrb[0].mxu0 %v5065
    %v5412 = vpop.f32.mrb[0].mxu0
    %v5413 = vadd.f32 0.0, %v5412
    %v5414 = vpop.f32.mrb[0].mxu0
    %5415 = vmatprep.mubr.f32.mxu0 0.0
    %5416 = vmatmul.mubr.f32.gmra.mrb[0].mxu0 %v5068
    %v5417 = vpop.f32.mrb[0].mxu0
    %v5418 = vadd.f32 0.0, %v5417
    %v5419 = vpop.f32.mrb[0].mxu0
    %5420 = vmatprep.mubr.f32.mxu0 0.0
    %5421 = vmatmul.mubr.f32.gmra.mrb[0].mxu0 %v5071
    %v5422 = vpop.f32.mrb[0].mxu0
    %v5423 = vadd.f32 0.0, %v5422
    %v5424 = vpop.f32.mrb[0].mxu0
    %5425 = vmatprep.mubr.f32.mxu0 0.0
    %5426 = vmatmul.mubr.f32.gmra.mrb[0].mxu0 %v5074
    %v5427 = vpop.f32.mrb[0].mxu0
    %v5428 = vadd.f32 0.0, %v5427
    %v5429 = vpop.f32.mrb[0].mxu0
    %5430 = vmatprep.mubr.f32.mxu0 0.0
    %5431 = vmatmul.mubr.f32.gmra.mrb[0].mxu0 %v5077
    %v5432 = vpop.f32.mrb[0].mxu0
    %v5433 = vadd.f32 0.0, %v5432
    %v5434 = vpop.f32.mrb[0].mxu0
    %5435 = vmatprep.mubr.f32.mxu0 0.0
    %5436 = vmatmul.mubr.f32.gmra.mrb[0].mxu0 %v5080
    %v5437 = vpop.f32.mrb[0].mxu0
    %v5438 = vadd.f32 0.0, %v5437
    %v5439 = vpop.f32.mrb[0].mxu0
    %5440 = vmatprep.mubr.f32.mxu0 0.0
    %5441 = vmatmul.mubr.f32.gmra.mrb[0].mxu0 %v5083
    %v5442 = vpop.f32.mrb[0].mxu0
    %v5443 = vadd.f32 0.0, %v5442
    %v5444 = vpop.f32.mrb[0].mxu0
    %5445 = vmatprep.mubr.f32.mxu0 0.0
    %5446 = vmatmul.mubr.f32.gmra.mrb[0].mxu0 %v5086
    %v5447 = vpop.f32.mrb[0].mxu0
    %v5448 = vadd.f32 0.0, %v5447
    %v5449 = vpop.f32.mrb[0].mxu0
    %5450 = vmatprep.mubr.f32.mxu0 0.0
    %5451 = vmatmul.mubr.f32.gmra.mrb[0].mxu0 %v5089
    %v5452 = vpop.f32.mrb[0].mxu0
    %v5453 = vadd.f32 0.0, %v5452
    %v5454 = vpop.f32.mrb[0].mxu0
    %5455 = vmatprep.mubr.f32.mxu0 0.0
    %5456 = vmatmul.mubr.f32.gmra.mrb[0].mxu0 %v5092
    %v5457 = vpop.f32.mrb[0].mxu0
    %v5458 = vadd.f32 0.0, %v5457
    %v5459 = vpop.f32.mrb[0].mxu0
    %5460 = vmatprep.mubr.f32.mxu0 0.0
    %5461 = vmatmul.mubr.f32.gmra.mrb[0].mxu0 %v5095
    %v5462 = vpop.f32.mrb[0].mxu0
    %v5463 = vadd.f32 0.0, %v5462
    %v5464 = vpop.f32.mrb[0].mxu0
    %5465 = vmatprep.mubr.f32.mxu0 0.0
    %5466 = vmatmul.mubr.f32.gmra.mrb[0].mxu0 %v5098
    %v5467 = vpop.f32.mrb[0].mxu0
    %v5468 = vadd.f32 0.0, %v5467
    %v5469 = vpop.f32.mrb[0].mxu0
    %5470 = vmatprep.mubr.f32.mxu0 0.0
    %5471 = vmatmul.mubr.f32.gmra.mrb[0].mxu0 %v5101
    %v5472 = vpop.f32.mrb[0].mxu0
    %v5473 = vadd.f32 0.0, %v5472
    %v5474 = vpop.f32.mrb[0].mxu0
    %5475 = vmatprep.mubr.f32.mxu0 0.0
    %5476 = vmatmul.mubr.f32.gmra.mrb[0].mxu0 %v5104
    %v5477 = vpop.f32.mrb[0].mxu0
    %v5478 = vadd.f32 0.0, %v5477
    %v5479 = vpop.f32.mrb[0].mxu0
    %5480 = vmatprep.mubr.f32.mxu0 0.0
    %5481 = vmatmul.mubr.f32.gmra.mrb[0].mxu0 %v5107
    %v5482 = vpop.f32.mrb[0].mxu0
    %v5483 = vadd.f32 0.0, %v5482
    %v5484 = vpop.f32.mrb[0].mxu0
    %5485 = vmatprep.mubr.f32.mxu0 0.0
    %5486 = vmatmul.mubr.f32.gmra.mrb[0].mxu0 %v5110
    %v5487 = vpop.f32.mrb[0].mxu0
    %v5488 = vadd.f32 0.0, %v5487
    %v5489 = vpop.f32.mrb[0].mxu0
    %5490 = vmatprep.mubr.f32.mxu0 0.0
    %5491 = vmatmul.mubr.f32.gmra.mrb[0].mxu0 %v5113
    %v5492 = vpop.f32.mrb[0].mxu0
    %v5493 = vadd.f32 0.0, %v5492
    %v5494 = vpop.f32.mrb[0].mxu0
    %5495 = vmatprep.mubr.f32.mxu0 0.0
    %5496 = vmatmul.mubr.f32.gmra.mrb[0].mxu0 %v5116
    %v5497 = vpop.f32.mrb[0].mxu0
    %v5498 = vadd.f32 0.0, %v5497
    %v5499 = vpop.f32.mrb[0].mxu0
    %5500 = vmatprep.mubr.f32.mxu0 0.0
    %5501 = vmatmul.mubr.f32.gmra.mrb[0].mxu0 %v5119
    %v5502 = vpop.f32.mrb[0].mxu0
    %v5503 = vadd.f32 0.0, %v5502
    %v5504 = vpop.f32.mrb[0].mxu0
    %5505 = vdwg.mxu0
    %v5506 = vsel %vm51, %v5188, 0.0
    %v5507 = vsel %vm51, %v5193, 0.0
    %v5508 = vadd.f32 %v5506, %v5507
    %v5509 = vsel %vm51, %v5198, 0.0
    %v5510 = vadd.f32 %v5508, %v5509
    %v5511 = vsel %vm51, %v5203, 0.0
    %v5512 = vadd.f32 %v5510, %v5511
    %v5513 = vsel %vm51, %v5208, 0.0
    %v5514 = vadd.f32 %v5512, %v5513
    %v5515 = vsel %vm51, %v5213, 0.0
    %v5516 = vadd.f32 %v5514, %v5515
    %v5517 = vsel %vm51, %v5218, 0.0
    %v5518 = vadd.f32 %v5516, %v5517
    %v5519 = vsel %vm51, %v5223, 0.0
    %v5520 = vadd.f32 %v5518, %v5519
    %v5521 = vsel %vm51, %v5228, 0.0
    %v5522 = vadd.f32 %v5520, %v5521
    %v5523 = vsel %vm51, %v5233, 0.0
    %v5524 = vadd.f32 %v5522, %v5523
    %v5525 = vsel %vm51, %v5238, 0.0
    %v5526 = vadd.f32 %v5524, %v5525
    %v5527 = vsel %vm51, %v5243, 0.0
    %v5528 = vadd.f32 %v5526, %v5527
    %v5529 = vsel %vm51, %v5248, 0.0
    %v5530 = vadd.f32 %v5528, %v5529
    %v5531 = vsel %vm51, %v5253, 0.0
    %v5532 = vadd.f32 %v5530, %v5531
    %v5533 = vsel %vm51, %v5258, 0.0
    %v5534 = vadd.f32 %v5532, %v5533
    %v5535 = vsel %vm51, %v5263, 0.0
    %v5536 = vadd.f32 %v5534, %v5535
    %v5537 = vsel %vm51, %v5268, 0.0
    %v5538 = vadd.f32 %v5536, %v5537
    %v5539 = vsel %vm51, %v5273, 0.0
    %v5540 = vadd.f32 %v5538, %v5539
    %v5541 = vsel %vm51, %v5278, 0.0
    %v5542 = vadd.f32 %v5540, %v5541
    %v5543 = vsel %vm51, %v5283, 0.0
    %v5544 = vadd.f32 %v5542, %v5543
    %v5545 = vsel %vm51, %v5288, 0.0
    %v5546 = vadd.f32 %v5544, %v5545
    %v5547 = vsel %vm51, %v5293, 0.0
    %v5548 = vadd.f32 %v5546, %v5547
    %v5549 = vsel %vm51, %v5298, 0.0
    %v5550 = vadd.f32 %v5548, %v5549
    %v5551 = vsel %vm51, %v5303, 0.0
    %v5552 = vadd.f32 %v5550, %v5551
    %v5553 = vsel %vm51, %v5308, 0.0
    %v5554 = vadd.f32 %v5552, %v5553
    %v5555 = vsel %vm51, %v5313, 0.0
    %v5556 = vadd.f32 %v5554, %v5555
    %v5557 = vsel %vm51, %v5318, 0.0
    %v5558 = vadd.f32 %v5556, %v5557
    %v5559 = vsel %vm51, %v5323, 0.0
    %v5560 = vadd.f32 %v5558, %v5559
    %v5561 = vsel %vm51, %v5328, 0.0
    %v5562 = vadd.f32 %v5560, %v5561
    %v5563 = vsel %vm51, %v5333, 0.0
    %v5564 = vadd.f32 %v5562, %v5563
    %v5565 = vsel %vm51, %v5338, 0.0
    %v5566 = vadd.f32 %v5564, %v5565
    %v5567 = vsel %vm51, %v5343, 0.0
    %v5568 = vadd.f32 %v5566, %v5567
    %v5569 = vsel %vm51, %v5348, 0.0
    %v5570 = vadd.f32 %v5568, %v5569
    %v5571 = vsel %vm51, %v5353, 0.0
    %v5572 = vadd.f32 %v5570, %v5571
    %v5573 = vsel %vm51, %v5358, 0.0
    %v5574 = vadd.f32 %v5572, %v5573
    %v5575 = vsel %vm51, %v5363, 0.0
    %v5576 = vadd.f32 %v5574, %v5575
    %v5577 = vsel %vm51, %v5368, 0.0
    %v5578 = vadd.f32 %v5576, %v5577
    %v5579 = vsel %vm51, %v5373, 0.0
    %v5580 = vadd.f32 %v5578, %v5579
    %v5581 = vsel %vm51, %v5378, 0.0
    %v5582 = vadd.f32 %v5580, %v5581
    %v5583 = vsel %vm51, %v5383, 0.0
    %v5584 = vadd.f32 %v5582, %v5583
    %v5585 = vsel %vm51, %v5388, 0.0
    %v5586 = vadd.f32 %v5584, %v5585
    %v5587 = vsel %vm51, %v5393, 0.0
    %v5588 = vadd.f32 %v5586, %v5587
    %v5589 = vsel %vm51, %v5398, 0.0
    %v5590 = vadd.f32 %v5588, %v5589
    %v5591 = vsel %vm51, %v5403, 0.0
    %v5592 = vadd.f32 %v5590, %v5591
    %v5593 = vsel %vm51, %v5408, 0.0
    %v5594 = vadd.f32 %v5592, %v5593
    %v5595 = vsel %vm51, %v5413, 0.0
    %v5596 = vadd.f32 %v5594, %v5595
    %v5597 = vsel %vm51, %v5418, 0.0
    %v5598 = vadd.f32 %v5596, %v5597
    %v5599 = vsel %vm51, %v5423, 0.0
    %v5600 = vadd.f32 %v5598, %v5599
    %v5601 = vsel %vm51, %v5428, 0.0
    %v5602 = vadd.f32 %v5600, %v5601
    %v5603 = vsel %vm51, %v5433, 0.0
    %v5604 = vadd.f32 %v5602, %v5603
    %v5605 = vsel %vm51, %v5438, 0.0
    %v5606 = vadd.f32 %v5604, %v5605
    %v5607 = vsel %vm51, %v5443, 0.0
    %v5608 = vadd.f32 %v5606, %v5607
    %v5609 = vsel %vm51, %v5448, 0.0
    %v5610 = vadd.f32 %v5608, %v5609
    %v5611 = vsel %vm51, %v5453, 0.0
    %v5612 = vadd.f32 %v5610, %v5611
    %v5613 = vsel %vm51, %v5458, 0.0
    %v5614 = vadd.f32 %v5612, %v5613
    %v5615 = vsel %vm51, %v5463, 0.0
    %v5616 = vadd.f32 %v5614, %v5615
    %v5617 = vsel %vm51, %v5468, 0.0
    %v5618 = vadd.f32 %v5616, %v5617
    %v5619 = vsel %vm51, %v5473, 0.0
    %v5620 = vadd.f32 %v5618, %v5619
    %v5621 = vsel %vm51, %v5478, 0.0
    %v5622 = vadd.f32 %v5620, %v5621
    %v5623 = vsel %vm51, %v5483, 0.0
    %v5624 = vadd.f32 %v5622, %v5623
    %v5625 = vsel %vm51, %v5488, 0.0
    %v5626 = vadd.f32 %v5624, %v5625
    %v5627 = vsel %vm51, %v5493, 0.0
    %v5628 = vadd.f32 %v5626, %v5627
    %v5629 = vsel %vm51, %v5498, 0.0
    %v5630 = vadd.f32 %v5628, %v5629
    %v5631 = vsel %vm51, %v5503, 0.0
    %v5632 = vadd.f32 %v5630, %v5631
    %v5633 = vrot.slane %v5632, 4
    %v5634 = vadd.f32 %v5632, %v5633
    %v5635 = vrot.slane %v5634, 2
    %v5636 = vadd.f32 %v5634, %v5635
    %v5637 = vrot.slane %v5636, 1
    %v5638 = vadd.f32 %v5636, %v5637
    %v5639 = vmul.f32 %v5188, %v5188
    %v5640 = vmul.f32 %v5193, %v5193
    %v5641 = vmul.f32 %v5198, %v5198
    %v5642 = vmul.f32 %v5203, %v5203
    %v5643 = vmul.f32 %v5208, %v5208
    %v5644 = vmul.f32 %v5213, %v5213
    %v5645 = vmul.f32 %v5218, %v5218
    %v5646 = vmul.f32 %v5223, %v5223
    %v5647 = vmul.f32 %v5228, %v5228
    %v5648 = vmul.f32 %v5233, %v5233
    %v5649 = vmul.f32 %v5238, %v5238
    %v5650 = vmul.f32 %v5243, %v5243
    %v5651 = vmul.f32 %v5248, %v5248
    %v5652 = vmul.f32 %v5253, %v5253
    %v5653 = vmul.f32 %v5258, %v5258
    %v5654 = vmul.f32 %v5263, %v5263
    %v5655 = vmul.f32 %v5268, %v5268
    %v5656 = vmul.f32 %v5273, %v5273
    %v5657 = vmul.f32 %v5278, %v5278
    %v5658 = vmul.f32 %v5283, %v5283
    %v5659 = vmul.f32 %v5288, %v5288
    %v5660 = vmul.f32 %v5293, %v5293
    %v5661 = vmul.f32 %v5298, %v5298
    %v5662 = vmul.f32 %v5303, %v5303
    %v5663 = vmul.f32 %v5308, %v5308
    %v5664 = vmul.f32 %v5313, %v5313
    %v5665 = vmul.f32 %v5318, %v5318
    %v5666 = vmul.f32 %v5323, %v5323
    %v5667 = vmul.f32 %v5328, %v5328
    %v5668 = vmul.f32 %v5333, %v5333
    %v5669 = vmul.f32 %v5338, %v5338
    %v5670 = vmul.f32 %v5343, %v5343
    %v5671 = vmul.f32 %v5348, %v5348
    %v5672 = vmul.f32 %v5353, %v5353
    %v5673 = vmul.f32 %v5358, %v5358
    %v5674 = vmul.f32 %v5363, %v5363
    %v5675 = vmul.f32 %v5368, %v5368
    %v5676 = vmul.f32 %v5373, %v5373
    %v5677 = vmul.f32 %v5378, %v5378
    %v5678 = vmul.f32 %v5383, %v5383
    %v5679 = vmul.f32 %v5388, %v5388
    %v5680 = vmul.f32 %v5393, %v5393
    %v5681 = vmul.f32 %v5398, %v5398
    %v5682 = vmul.f32 %v5403, %v5403
    %v5683 = vmul.f32 %v5408, %v5408
    %v5684 = vmul.f32 %v5413, %v5413
    %v5685 = vmul.f32 %v5418, %v5418
    %v5686 = vmul.f32 %v5423, %v5423
    %v5687 = vmul.f32 %v5428, %v5428
    %v5688 = vmul.f32 %v5433, %v5433
    %v5689 = vmul.f32 %v5438, %v5438
    %v5690 = vmul.f32 %v5443, %v5443
    %v5691 = vmul.f32 %v5448, %v5448
    %v5692 = vmul.f32 %v5453, %v5453
    %v5693 = vmul.f32 %v5458, %v5458
    %v5694 = vmul.f32 %v5463, %v5463
    %v5695 = vmul.f32 %v5468, %v5468
    %v5696 = vmul.f32 %v5473, %v5473
    %v5697 = vmul.f32 %v5478, %v5478
    %v5698 = vmul.f32 %v5483, %v5483
    %v5699 = vmul.f32 %v5488, %v5488
    %v5700 = vmul.f32 %v5493, %v5493
    %v5701 = vmul.f32 %v5498, %v5498
    %v5702 = vmul.f32 %v5503, %v5503
    %v5703 = vsel %vm51, %v5639, 0.0
    %v5704 = vsel %vm51, %v5640, 0.0
    %v5705 = vadd.f32 %v5703, %v5704
    %v5706 = vsel %vm51, %v5641, 0.0
    %v5707 = vadd.f32 %v5705, %v5706
    %v5708 = vsel %vm51, %v5642, 0.0
    %v5709 = vadd.f32 %v5707, %v5708
    %v5710 = vsel %vm51, %v5643, 0.0
    %v5711 = vadd.f32 %v5709, %v5710
    %v5712 = vsel %vm51, %v5644, 0.0
    %v5713 = vadd.f32 %v5711, %v5712
    %v5714 = vsel %vm51, %v5645, 0.0
    %v5715 = vadd.f32 %v5713, %v5714
    %v5716 = vsel %vm51, %v5646, 0.0
    %v5717 = vadd.f32 %v5715, %v5716
    %v5718 = vsel %vm51, %v5647, 0.0
    %v5719 = vadd.f32 %v5717, %v5718
    %v5720 = vsel %vm51, %v5648, 0.0
    %v5721 = vadd.f32 %v5719, %v5720
    %v5722 = vsel %vm51, %v5649, 0.0
    %v5723 = vadd.f32 %v5721, %v5722
    %v5724 = vsel %vm51, %v5650, 0.0
    %v5725 = vadd.f32 %v5723, %v5724
    %v5726 = vsel %vm51, %v5651, 0.0
    %v5727 = vadd.f32 %v5725, %v5726
    %v5728 = vsel %vm51, %v5652, 0.0
    %v5729 = vadd.f32 %v5727, %v5728
    %v5730 = vsel %vm51, %v5653, 0.0
    %v5731 = vadd.f32 %v5729, %v5730
    %v5732 = vsel %vm51, %v5654, 0.0
    %v5733 = vadd.f32 %v5731, %v5732
    %v5734 = vsel %vm51, %v5655, 0.0
    %v5735 = vadd.f32 %v5733, %v5734
    %v5736 = vsel %vm51, %v5656, 0.0
    %v5737 = vadd.f32 %v5735, %v5736
    %v5738 = vsel %vm51, %v5657, 0.0
    %v5739 = vadd.f32 %v5737, %v5738
    %v5740 = vsel %vm51, %v5658, 0.0
    %v5741 = vadd.f32 %v5739, %v5740
    %v5742 = vsel %vm51, %v5659, 0.0
    %v5743 = vadd.f32 %v5741, %v5742
    %v5744 = vsel %vm51, %v5660, 0.0
    %v5745 = vadd.f32 %v5743, %v5744
    %v5746 = vsel %vm51, %v5661, 0.0
    %v5747 = vadd.f32 %v5745, %v5746
    %v5748 = vsel %vm51, %v5662, 0.0
    %v5749 = vadd.f32 %v5747, %v5748
    %v5750 = vsel %vm51, %v5663, 0.0
    %v5751 = vadd.f32 %v5749, %v5750
    %v5752 = vsel %vm51, %v5664, 0.0
    %v5753 = vadd.f32 %v5751, %v5752
    %v5754 = vsel %vm51, %v5665, 0.0
    %v5755 = vadd.f32 %v5753, %v5754
    %v5756 = vsel %vm51, %v5666, 0.0
    %v5757 = vadd.f32 %v5755, %v5756
    %v5758 = vsel %vm51, %v5667, 0.0
    %v5759 = vadd.f32 %v5757, %v5758
    %v5760 = vsel %vm51, %v5668, 0.0
    %v5761 = vadd.f32 %v5759, %v5760
    %v5762 = vsel %vm51, %v5669, 0.0
    %v5763 = vadd.f32 %v5761, %v5762
    %v5764 = vsel %vm51, %v5670, 0.0
    %v5765 = vadd.f32 %v5763, %v5764
    %v5766 = vsel %vm51, %v5671, 0.0
    %v5767 = vadd.f32 %v5765, %v5766
    %v5768 = vsel %vm51, %v5672, 0.0
    %v5769 = vadd.f32 %v5767, %v5768
    %v5770 = vsel %vm51, %v5673, 0.0
    %v5771 = vadd.f32 %v5769, %v5770
    %v5772 = vsel %vm51, %v5674, 0.0
    %v5773 = vadd.f32 %v5771, %v5772
    %v5774 = vsel %vm51, %v5675, 0.0
    %v5775 = vadd.f32 %v5773, %v5774
    %v5776 = vsel %vm51, %v5676, 0.0
    %v5777 = vadd.f32 %v5775, %v5776
    %v5778 = vsel %vm51, %v5677, 0.0
    %v5779 = vadd.f32 %v5777, %v5778
    %v5780 = vsel %vm51, %v5678, 0.0
    %v5781 = vadd.f32 %v5779, %v5780
    %v5782 = vsel %vm51, %v5679, 0.0
    %v5783 = vadd.f32 %v5781, %v5782
    %v5784 = vsel %vm51, %v5680, 0.0
    %v5785 = vadd.f32 %v5783, %v5784
    %v5786 = vsel %vm51, %v5681, 0.0
    %v5787 = vadd.f32 %v5785, %v5786
    %v5788 = vsel %vm51, %v5682, 0.0
    %v5789 = vadd.f32 %v5787, %v5788
    %v5790 = vsel %vm51, %v5683, 0.0
    %v5791 = vadd.f32 %v5789, %v5790
    %v5792 = vsel %vm51, %v5684, 0.0
    %v5793 = vadd.f32 %v5791, %v5792
    %v5794 = vsel %vm51, %v5685, 0.0
    %v5795 = vadd.f32 %v5793, %v5794
    %v5796 = vsel %vm51, %v5686, 0.0
    %v5797 = vadd.f32 %v5795, %v5796
    %v5798 = vsel %vm51, %v5687, 0.0
    %v5799 = vadd.f32 %v5797, %v5798
    %v5800 = vsel %vm51, %v5688, 0.0
    %v5801 = vadd.f32 %v5799, %v5800
    %v5802 = vsel %vm51, %v5689, 0.0
    %v5803 = vadd.f32 %v5801, %v5802
    %v5804 = vsel %vm51, %v5690, 0.0
    %v5805 = vadd.f32 %v5803, %v5804
    %v5806 = vsel %vm51, %v5691, 0.0
    %v5807 = vadd.f32 %v5805, %v5806
    %v5808 = vsel %vm51, %v5692, 0.0
    %v5809 = vadd.f32 %v5807, %v5808
    %v5810 = vsel %vm51, %v5693, 0.0
    %v5811 = vadd.f32 %v5809, %v5810
    %v5812 = vsel %vm51, %v5694, 0.0
    %v5813 = vadd.f32 %v5811, %v5812
    %v5814 = vsel %vm51, %v5695, 0.0
    %v5815 = vadd.f32 %v5813, %v5814
    %v5816 = vsel %vm51, %v5696, 0.0
    %v5817 = vadd.f32 %v5815, %v5816
    %v5818 = vsel %vm51, %v5697, 0.0
    %v5819 = vadd.f32 %v5817, %v5818
    %v5820 = vsel %vm51, %v5698, 0.0
    %v5821 = vadd.f32 %v5819, %v5820
    %v5822 = vsel %vm51, %v5699, 0.0
    %v5823 = vadd.f32 %v5821, %v5822
    %v5824 = vsel %vm51, %v5700, 0.0
    %v5825 = vadd.f32 %v5823, %v5824
    %v5826 = vsel %vm51, %v5701, 0.0
    %v5827 = vadd.f32 %v5825, %v5826
    %v5828 = vsel %vm51, %v5702, 0.0
    %v5829 = vadd.f32 %v5827, %v5828
    %v5830 = vrot.slane %v5829, 4
    %v5831 = vadd.f32 %v5829, %v5830
    %v5832 = vrot.slane %v5831, 2
    %v5833 = vadd.f32 %v5831, %v5832
    %v5834 = vrot.slane %v5833, 1
    %v5835 = vadd.f32 %v5833, %v5834
    %v5836 = vmul.f32 %v5638, 0.001953125
    %v5837 = vmul.f32 %v5835, 0.001953125
    %v5838 = vmul.f32 %v5836, %v5836
    %v5839 = vsub.f32 %v5837, %v5838
    %v5840 = vmax.f32 %v5839, 0.0
    %v5841 = vadd.f32 %v5840, 1e-05
    %v5842 = vrsqrt.pop %v5841
    %v5843 = vld [vmem:[%s7] sm:$0x1]
    %v5844 = vmul.f32 %v5842, %v5843
    %v5845 = vld [vmem:[%s8] sm:$0x1]
    %v5846 = vmul.f32 %v5836, %v5844
    %v5847 = vsub.f32 %v5845, %v5846
    %v5848 = vlaneseq
    %v5849 = vshrl.u32 %v5848, 7
    %v5850 = vsub.s32 0, %v5849
    %v5851 = vrot.slane %v5844, %v5850
    %v5852 = vmul.f32 %v5188, %v5851
    %v5853 = vmul.f32 %v5193, %v5851
    %v5854 = vmul.f32 %v5198, %v5851
    %v5855 = vmul.f32 %v5203, %v5851
    %v5856 = vmul.f32 %v5208, %v5851
    %v5857 = vmul.f32 %v5213, %v5851
    %v5858 = vmul.f32 %v5218, %v5851
    %v5859 = vmul.f32 %v5223, %v5851
    %v5860 = vmul.f32 %v5228, %v5851
    %v5861 = vmul.f32 %v5233, %v5851
    %v5862 = vmul.f32 %v5238, %v5851
    %v5863 = vmul.f32 %v5243, %v5851
    %v5864 = vmul.f32 %v5248, %v5851
    %v5865 = vmul.f32 %v5253, %v5851
    %v5866 = vmul.f32 %v5258, %v5851
    %v5867 = vmul.f32 %v5263, %v5851
    %v5868 = vmul.f32 %v5268, %v5851
    %v5869 = vmul.f32 %v5273, %v5851
    %v5870 = vmul.f32 %v5278, %v5851
    %v5871 = vmul.f32 %v5283, %v5851
    %v5872 = vmul.f32 %v5288, %v5851
    %v5873 = vmul.f32 %v5293, %v5851
    %v5874 = vmul.f32 %v5298, %v5851
    %v5875 = vmul.f32 %v5303, %v5851
    %v5876 = vmul.f32 %v5308, %v5851
    %v5877 = vmul.f32 %v5313, %v5851
    %v5878 = vmul.f32 %v5318, %v5851
    %v5879 = vmul.f32 %v5323, %v5851
    %v5880 = vmul.f32 %v5328, %v5851
    %v5881 = vmul.f32 %v5333, %v5851
    %v5882 = vmul.f32 %v5338, %v5851
    %v5883 = vmul.f32 %v5343, %v5851
    %v5884 = vmul.f32 %v5348, %v5851
    %v5885 = vmul.f32 %v5353, %v5851
    %v5886 = vmul.f32 %v5358, %v5851
    %v5887 = vmul.f32 %v5363, %v5851
    %v5888 = vmul.f32 %v5368, %v5851
    %v5889 = vmul.f32 %v5373, %v5851
    %v5890 = vmul.f32 %v5378, %v5851
    %v5891 = vmul.f32 %v5383, %v5851
    %v5892 = vmul.f32 %v5388, %v5851
    %v5893 = vmul.f32 %v5393, %v5851
    %v5894 = vmul.f32 %v5398, %v5851
    %v5895 = vmul.f32 %v5403, %v5851
    %v5896 = vmul.f32 %v5408, %v5851
    %v5897 = vmul.f32 %v5413, %v5851
    %v5898 = vmul.f32 %v5418, %v5851
    %v5899 = vmul.f32 %v5423, %v5851
    %v5900 = vmul.f32 %v5428, %v5851
    %v5901 = vmul.f32 %v5433, %v5851
    %v5902 = vmul.f32 %v5438, %v5851
    %v5903 = vmul.f32 %v5443, %v5851
    %v5904 = vmul.f32 %v5448, %v5851
    %v5905 = vmul.f32 %v5453, %v5851
    %v5906 = vmul.f32 %v5458, %v5851
    %v5907 = vmul.f32 %v5463, %v5851
    %v5908 = vmul.f32 %v5468, %v5851
    %v5909 = vmul.f32 %v5473, %v5851
    %v5910 = vmul.f32 %v5478, %v5851
    %v5911 = vmul.f32 %v5483, %v5851
    %v5912 = vmul.f32 %v5488, %v5851
    %v5913 = vmul.f32 %v5493, %v5851
    %v5914 = vmul.f32 %v5498, %v5851
    %v5915 = vmul.f32 %v5503, %v5851
    %v5917 = vlaneseq
    %v5918 = vshrl.u32 %v5917, 7
    %v5919 = vsub.s32 0, %v5918
    %v5920 = vrot.slane %v5847, %v5919
    %v5922 = vadd.f32 %v5852, %v5920
    %v5923 = vadd.f32 %v5853, %v5920
    %v5924 = vadd.f32 %v5854, %v5920
    %v5925 = vadd.f32 %v5855, %v5920
    %v5926 = vadd.f32 %v5856, %v5920
    %v5927 = vadd.f32 %v5857, %v5920
    %v5928 = vadd.f32 %v5858, %v5920
    %v5929 = vadd.f32 %v5859, %v5920
    %v5930 = vadd.f32 %v5860, %v5920
    %v5931 = vadd.f32 %v5861, %v5920
    %v5932 = vadd.f32 %v5862, %v5920
    %v5933 = vadd.f32 %v5863, %v5920
    %v5934 = vadd.f32 %v5864, %v5920
    %v5935 = vadd.f32 %v5865, %v5920
    %v5936 = vadd.f32 %v5866, %v5920
    %v5937 = vadd.f32 %v5867, %v5920
    %v5938 = vadd.f32 %v5868, %v5920
    %v5939 = vadd.f32 %v5869, %v5920
    %v5940 = vadd.f32 %v5870, %v5920
    %v5941 = vadd.f32 %v5871, %v5920
    %v5942 = vadd.f32 %v5872, %v5920
    %v5943 = vadd.f32 %v5873, %v5920
    %v5944 = vadd.f32 %v5874, %v5920
    %v5945 = vadd.f32 %v5875, %v5920
    %v5946 = vadd.f32 %v5876, %v5920
    %v5947 = vadd.f32 %v5877, %v5920
    %v5948 = vadd.f32 %v5878, %v5920
    %v5949 = vadd.f32 %v5879, %v5920
    %v5950 = vadd.f32 %v5880, %v5920
    %v5951 = vadd.f32 %v5881, %v5920
    %v5952 = vadd.f32 %v5882, %v5920
    %v5953 = vadd.f32 %v5883, %v5920
    %v5954 = vadd.f32 %v5884, %v5920
    %v5955 = vadd.f32 %v5885, %v5920
    %v5956 = vadd.f32 %v5886, %v5920
    %v5957 = vadd.f32 %v5887, %v5920
    %v5958 = vadd.f32 %v5888, %v5920
    %v5959 = vadd.f32 %v5889, %v5920
    %v5960 = vadd.f32 %v5890, %v5920
    %v5961 = vadd.f32 %v5891, %v5920
    %v5962 = vadd.f32 %v5892, %v5920
    %v5963 = vadd.f32 %v5893, %v5920
    %v5964 = vadd.f32 %v5894, %v5920
    %v5965 = vadd.f32 %v5895, %v5920
    %v5966 = vadd.f32 %v5896, %v5920
    %v5967 = vadd.f32 %v5897, %v5920
    %v5968 = vadd.f32 %v5898, %v5920
    %v5969 = vadd.f32 %v5899, %v5920
    %v5970 = vadd.f32 %v5900, %v5920
    %v5971 = vadd.f32 %v5901, %v5920
    %v5972 = vadd.f32 %v5902, %v5920
    %v5973 = vadd.f32 %v5903, %v5920
    %v5974 = vadd.f32 %v5904, %v5920
    %v5975 = vadd.f32 %v5905, %v5920
    %v5976 = vadd.f32 %v5906, %v5920
    %v5977 = vadd.f32 %v5907, %v5920
    %v5978 = vadd.f32 %v5908, %v5920
    %v5979 = vadd.f32 %v5909, %v5920
    %v5980 = vadd.f32 %v5910, %v5920
    %v5981 = vadd.f32 %v5911, %v5920
    %v5982 = vadd.f32 %v5912, %v5920
    %v5983 = vadd.f32 %v5913, %v5920
    %v5984 = vadd.f32 %v5914, %v5920
    %v5985 = vadd.f32 %v5915, %v5920
    %v5986 = vmax.f32 %v5922, 0.0
    %v5987 = vmax.f32 %v5923, 0.0
    %v5988 = vmax.f32 %v5924, 0.0
    %v5989 = vmax.f32 %v5925, 0.0
    %v5990 = vmax.f32 %v5926, 0.0
    %v5991 = vmax.f32 %v5927, 0.0
    %v5992 = vmax.f32 %v5928, 0.0
    %v5993 = vmax.f32 %v5929, 0.0
    %v5994 = vmax.f32 %v5930, 0.0
    %v5995 = vmax.f32 %v5931, 0.0
    %v5996 = vmax.f32 %v5932, 0.0
    %v5997 = vmax.f32 %v5933, 0.0
    %v5998 = vmax.f32 %v5934, 0.0
    %v5999 = vmax.f32 %v5935, 0.0
    %v6000 = vmax.f32 %v5936, 0.0
    %v6001 = vmax.f32 %v5937, 0.0
    %v6002 = vmax.f32 %v5938, 0.0
    %v6003 = vmax.f32 %v5939, 0.0
    %v6004 = vmax.f32 %v5940, 0.0
    %v6005 = vmax.f32 %v5941, 0.0
    %v6006 = vmax.f32 %v5942, 0.0
    %v6007 = vmax.f32 %v5943, 0.0
    %v6008 = vmax.f32 %v5944, 0.0
    %v6009 = vmax.f32 %v5945, 0.0
    %v6010 = vmax.f32 %v5946, 0.0
    %v6011 = vmax.f32 %v5947, 0.0
    %v6012 = vmax.f32 %v5948, 0.0
    %v6013 = vmax.f32 %v5949, 0.0
    %v6014 = vmax.f32 %v5950, 0.0
    %v6015 = vmax.f32 %v5951, 0.0
    %v6016 = vmax.f32 %v5952, 0.0
    %v6017 = vmax.f32 %v5953, 0.0
    %v6018 = vmax.f32 %v5954, 0.0
    %v6019 = vmax.f32 %v5955, 0.0
    %v6020 = vmax.f32 %v5956, 0.0
    %v6021 = vmax.f32 %v5957, 0.0
    %v6022 = vmax.f32 %v5958, 0.0
    %v6023 = vmax.f32 %v5959, 0.0
    %v6024 = vmax.f32 %v5960, 0.0
    %v6025 = vmax.f32 %v5961, 0.0
    %v6026 = vmax.f32 %v5962, 0.0
    %v6027 = vmax.f32 %v5963, 0.0
    %v6028 = vmax.f32 %v5964, 0.0
    %v6029 = vmax.f32 %v5965, 0.0
    %v6030 = vmax.f32 %v5966, 0.0
    %v6031 = vmax.f32 %v5967, 0.0
    %v6032 = vmax.f32 %v5968, 0.0
    %v6033 = vmax.f32 %v5969, 0.0
    %v6034 = vmax.f32 %v5970, 0.0
    %v6035 = vmax.f32 %v5971, 0.0
    %v6036 = vmax.f32 %v5972, 0.0
    %v6037 = vmax.f32 %v5973, 0.0
    %v6038 = vmax.f32 %v5974, 0.0
    %v6039 = vmax.f32 %v5975, 0.0
    %v6040 = vmax.f32 %v5976, 0.0
    %v6041 = vmax.f32 %v5977, 0.0
    %v6042 = vmax.f32 %v5978, 0.0
    %v6043 = vmax.f32 %v5979, 0.0
    %v6044 = vmax.f32 %v5980, 0.0
    %v6045 = vmax.f32 %v5981, 0.0
    %v6046 = vmax.f32 %v5982, 0.0
    %v6047 = vmax.f32 %v5983, 0.0
    %v6048 = vmax.f32 %v5984, 0.0
    %v6049 = vmax.f32 %v5985, 0.0
    %v6050 = vmin.f32 %v5986, 6.0
    %v6051 = vmin.f32 %v5987, 6.0
    %v6052 = vmin.f32 %v5988, 6.0
    %v6053 = vmin.f32 %v5989, 6.0
    %v6054 = vmin.f32 %v5990, 6.0
    %v6055 = vmin.f32 %v5991, 6.0
    %v6056 = vmin.f32 %v5992, 6.0
    %v6057 = vmin.f32 %v5993, 6.0
    %v6058 = vmin.f32 %v5994, 6.0
    %v6059 = vmin.f32 %v5995, 6.0
    %v6060 = vmin.f32 %v5996, 6.0
    %v6061 = vmin.f32 %v5997, 6.0
    %v6062 = vmin.f32 %v5998, 6.0
    %v6063 = vmin.f32 %v5999, 6.0
    %v6064 = vmin.f32 %v6000, 6.0
    %v6065 = vmin.f32 %v6001, 6.0
    %v6066 = vmin.f32 %v6002, 6.0
    %v6067 = vmin.f32 %v6003, 6.0
    %v6068 = vmin.f32 %v6004, 6.0
    %v6069 = vmin.f32 %v6005, 6.0
    %v6070 = vmin.f32 %v6006, 6.0
    %v6071 = vmin.f32 %v6007, 6.0
    %v6072 = vmin.f32 %v6008, 6.0
    %v6073 = vmin.f32 %v6009, 6.0
    %v6074 = vmin.f32 %v6010, 6.0
    %v6075 = vmin.f32 %v6011, 6.0
    %v6076 = vmin.f32 %v6012, 6.0
    %v6077 = vmin.f32 %v6013, 6.0
    %v6078 = vmin.f32 %v6014, 6.0
    %v6079 = vmin.f32 %v6015, 6.0
    %v6080 = vmin.f32 %v6016, 6.0
    %v6081 = vmin.f32 %v6017, 6.0
    %v6082 = vmin.f32 %v6018, 6.0
    %v6083 = vmin.f32 %v6019, 6.0
    %v6084 = vmin.f32 %v6020, 6.0
    %v6085 = vmin.f32 %v6021, 6.0
    %v6086 = vmin.f32 %v6022, 6.0
    %v6087 = vmin.f32 %v6023, 6.0
    %v6088 = vmin.f32 %v6024, 6.0
    %v6089 = vmin.f32 %v6025, 6.0
    %v6090 = vmin.f32 %v6026, 6.0
    %v6091 = vmin.f32 %v6027, 6.0
    %v6092 = vmin.f32 %v6028, 6.0
    %v6093 = vmin.f32 %v6029, 6.0
    %v6094 = vmin.f32 %v6030, 6.0
    %v6095 = vmin.f32 %v6031, 6.0
    %v6096 = vmin.f32 %v6032, 6.0
    %v6097 = vmin.f32 %v6033, 6.0
    %v6098 = vmin.f32 %v6034, 6.0
    %v6099 = vmin.f32 %v6035, 6.0
    %v6100 = vmin.f32 %v6036, 6.0
    %v6101 = vmin.f32 %v6037, 6.0
    %v6102 = vmin.f32 %v6038, 6.0
    %v6103 = vmin.f32 %v6039, 6.0
    %v6104 = vmin.f32 %v6040, 6.0
    %v6105 = vmin.f32 %v6041, 6.0
    %v6106 = vmin.f32 %v6042, 6.0
    %v6107 = vmin.f32 %v6043, 6.0
    %v6108 = vmin.f32 %v6044, 6.0
    %v6109 = vmin.f32 %v6045, 6.0
    %v6110 = vmin.f32 %v6046, 6.0
    %v6111 = vmin.f32 %v6047, 6.0
    %v6112 = vmin.f32 %v6048, 6.0
    %v6113 = vmin.f32 %v6049, 6.0
    %6114 = vst.msk [vmem:[%s203 + $0x1] sm:$0xff] %vm51, %v6050
    %6115 = vst.msk [vmem:[%s203 + $0x9] sm:$0xff] %vm51, %v6051
    %6116 = vst.msk [vmem:[%s203 + $0x19] sm:$0xff] %vm51, %v6052
    %6117 = vst.msk [vmem:[%s203 + $0x21] sm:$0xff] %vm51, %v6053
    %6118 = vst.msk [vmem:[%s203 + $0x31] sm:$0xff] %vm51, %v6054
    %6119 = vst.msk [vmem:[%s203 + $0x39] sm:$0xff] %vm51, %v6055
    %6120 = vst.msk [vmem:[%s203 + $0x49] sm:$0xff] %vm51, %v6056
    %6121 = vst.msk [vmem:[%s203 + $0x51] sm:$0xff] %vm51, %v6057
    %6122 = vst.msk [vmem:[%s203 + $0x61] sm:$0xff] %vm51, %v6058
    %6123 = vst.msk [vmem:[%s203 + $0x69] sm:$0xff] %vm51, %v6059
    %6124 = vst.msk [vmem:[%s203 + $0x79] sm:$0xff] %vm51, %v6060
    %6125 = vst.msk [vmem:[%s203 + $0x81] sm:$0xff] %vm51, %v6061
    %6126 = vst.msk [vmem:[%s203 + $0x91] sm:$0xff] %vm51, %v6062
    %6127 = vst.msk [vmem:[%s203 + $0x99] sm:$0xff] %vm51, %v6063
    %6128 = vst.msk [vmem:[%s203 + $0xa9] sm:$0xff] %vm51, %v6064
    %6129 = vst.msk [vmem:[%s203 + $0xb1] sm:$0xff] %vm51, %v6065
    %6130 = vst.msk [vmem:[%s203 + $0xc1] sm:$0xff] %vm51, %v6066
    %6131 = vst.msk [vmem:[%s203 + $0xc9] sm:$0xff] %vm51, %v6067
    %6132 = vst.msk [vmem:[%s203 + $0xd9] sm:$0xff] %vm51, %v6068
    %6133 = vst.msk [vmem:[%s203 + $0xe1] sm:$0xff] %vm51, %v6069
    %6134 = vst.msk [vmem:[%s203 + $0xf1] sm:$0xff] %vm51, %v6070
    %6135 = vst.msk [vmem:[%s203 + $0xf9] sm:$0xff] %vm51, %v6071
    %6136 = vst.msk [vmem:[%s203 + $0x109] sm:$0xff] %vm51, %v6072
    %6137 = vst.msk [vmem:[%s203 + $0x111] sm:$0xff] %vm51, %v6073
    %6138 = vst.msk [vmem:[%s203 + $0x121] sm:$0xff] %vm51, %v6074
    %6139 = vst.msk [vmem:[%s203 + $0x129] sm:$0xff] %vm51, %v6075
    %6140 = vst.msk [vmem:[%s203 + $0x139] sm:$0xff] %vm51, %v6076
    %6141 = vst.msk [vmem:[%s203 + $0x141] sm:$0xff] %vm51, %v6077
    %6142 = vst.msk [vmem:[%s203 + $0x151] sm:$0xff] %vm51, %v6078
    %6143 = vst.msk [vmem:[%s203 + $0x159] sm:$0xff] %vm51, %v6079
    %6144 = vst.msk [vmem:[%s203 + $0x169] sm:$0xff] %vm51, %v6080
    %6145 = vst.msk [vmem:[%s203 + $0x171] sm:$0xff] %vm51, %v6081
    %6146 = vst.msk [vmem:[%s203 + $0x1b1] sm:$0xff] %vm51, %v6082
    %6147 = vst.msk [vmem:[%s203 + $0x1b9] sm:$0xff] %vm51, %v6083
    %6148 = vst.msk [vmem:[%s203 + $0x1c9] sm:$0xff] %vm51, %v6084
    %6149 = vst.msk [vmem:[%s203 + $0x1d1] sm:$0xff] %vm51, %v6085
    %6150 = vst.msk [vmem:[%s203 + $0x1e1] sm:$0xff] %vm51, %v6086
    %6151 = vst.msk [vmem:[%s203 + $0x1e9] sm:$0xff] %vm51, %v6087
    %6152 = vst.msk [vmem:[%s203 + $0x1f9] sm:$0xff] %vm51, %v6088
    %6153 = vst.msk [vmem:[%s203 + $0x201] sm:$0xff] %vm51, %v6089
    %6154 = vst.msk [vmem:[%s203 + $0x211] sm:$0xff] %vm51, %v6090
    %6155 = vst.msk [vmem:[%s203 + $0x219] sm:$0xff] %vm51, %v6091
    %6156 = vst.msk [vmem:[%s203 + $0x229] sm:$0xff] %vm51, %v6092
    %6157 = vst.msk [vmem:[%s203 + $0x231] sm:$0xff] %vm51, %v6093
    %6158 = vst.msk [vmem:[%s203 + $0x241] sm:$0xff] %vm51, %v6094
    %6159 = vst.msk [vmem:[%s203 + $0x249] sm:$0xff] %vm51, %v6095
    %6160 = vst.msk [vmem:[%s203 + $0x259] sm:$0xff] %vm51, %v6096
    %6161 = vst.msk [vmem:[%s203 + $0x261] sm:$0xff] %vm51, %v6097
    %6162 = vst.msk [vmem:[%s203 + $0x271] sm:$0xff] %vm51, %v6098
    %6163 = vst.msk [vmem:[%s203 + $0x279] sm:$0xff] %vm51, %v6099
    %6164 = vst.msk [vmem:[%s203 + $0x289] sm:$0xff] %vm51, %v6100
    %6165 = vst.msk [vmem:[%s203 + $0x291] sm:$0xff] %vm51, %v6101
    %6166 = vst.msk [vmem:[%s203 + $0x2a1] sm:$0xff] %vm51, %v6102
    %6167 = vst.msk [vmem:[%s203 + $0x2a9] sm:$0xff] %vm51, %v6103
    %6168 = vst.msk [vmem:[%s203 + $0x2b9] sm:$0xff] %vm51, %v6104
    %6169 = vst.msk [vmem:[%s203 + $0x2c1] sm:$0xff] %vm51, %v6105
    %6170 = vst.msk [vmem:[%s203 + $0x2d1] sm:$0xff] %vm51, %v6106
    %6171 = vst.msk [vmem:[%s203 + $0x2d9] sm:$0xff] %vm51, %v6107
    %6172 = vst.msk [vmem:[%s203 + $0x2e9] sm:$0xff] %vm51, %v6108
    %6173 = vst.msk [vmem:[%s203 + $0x2f1] sm:$0xff] %vm51, %v6109
    %6174 = vst.msk [vmem:[%s203 + $0x301] sm:$0xff] %vm51, %v6110
    %6175 = vst.msk [vmem:[%s203 + $0x309] sm:$0xff] %vm51, %v6111
    %6176 = vst.msk [vmem:[%s203 + $0x319] sm:$0xff] %vm51, %v6112
    %6177 = vst.msk [vmem:[%s203 + $0x321] sm:$0xff] %vm51, %v6113
    %v6178 = vld [vmem:[%s9] sm:$0xff]
    %v6179 = vld [vmem:[%s9 + $0x8] sm:$0x1]
    %v6180 = vld [vmem:[#allocation2] ss:$2 sm:$0xff]
    %s6181 = scalar_lea.vmem [#allocation2], 48
    %v6182 = vld [vmem:[%s6181] ss:$2 sm:$0xff]
    %s6183 = scalar_lea.vmem [#allocation2], 96
    %v6184 = vld [vmem:[%s6183] ss:$2 sm:$0xff]
    %s6185 = scalar_lea.vmem [#allocation2], 144
    %v6186 = vld [vmem:[%s6185] ss:$2 sm:$0xff]
    %s6187 = scalar_lea.vmem [#allocation2], 192
    %v6188 = vld [vmem:[%s6187] ss:$2 sm:$0xff]
    %s6189 = scalar_lea.vmem [#allocation2], 240
    %v6190 = vld [vmem:[%s6189] ss:$2 sm:$0xff]
    %s6191 = scalar_lea.vmem [#allocation2], 288
    %v6192 = vld [vmem:[%s6191] ss:$2 sm:$0xff]
    %s6193 = scalar_lea.vmem [#allocation2], 336
    %v6194 = vld [vmem:[%s6193] ss:$2 sm:$0xff]
    %s6195 = scalar_lea.vmem [#allocation2], 432
    %v6196 = vld [vmem:[%s6195] ss:$2 sm:$0xff]
    %s6197 = scalar_lea.vmem [#allocation2], 480
    %v6198 = vld [vmem:[%s6197] ss:$2 sm:$0xff]
    %s6199 = scalar_lea.vmem [#allocation2], 528
    %v6200 = vld [vmem:[%s6199] ss:$2 sm:$0xff]
    %s6201 = scalar_lea.vmem [#allocation2], 576
    %v6202 = vld [vmem:[%s6201] ss:$2 sm:$0xff]
    %s6203 = scalar_lea.vmem [#allocation2], 624
    %v6204 = vld [vmem:[%s6203] ss:$2 sm:$0xff]
    %s6205 = scalar_lea.vmem [#allocation2], 672
    %v6206 = vld [vmem:[%s6205] ss:$2 sm:$0xff]
    %s6207 = scalar_lea.vmem [#allocation2], 720
    %v6208 = vld [vmem:[%s6207] ss:$2 sm:$0xff]
    %s6209 = scalar_lea.vmem [#allocation2], 768
    %v6210 = vld [vmem:[%s6209] ss:$2 sm:$0xff]
    %v6211 = vlaneseq
    %v6212 = vshrl.u32 %v6211, 7
    %v6213 = vsub.s32 0, %v6212
    %v6214 = vrot.slane %v6178, %v6213
    %v6215 = vmul.f32 %v6180, %v6214
    %v6216 = vmul.f32 %v6182, %v6214
    %v6217 = vmul.f32 %v6184, %v6214
    %v6218 = vmul.f32 %v6186, %v6214
    %v6219 = vmul.f32 %v6188, %v6214
    %v6220 = vmul.f32 %v6190, %v6214
    %v6221 = vmul.f32 %v6192, %v6214
    %v6222 = vmul.f32 %v6194, %v6214
    %v6223 = vmul.f32 %v6196, %v6214
    %v6224 = vmul.f32 %v6198, %v6214
    %v6225 = vmul.f32 %v6200, %v6214
    %v6226 = vmul.f32 %v6202, %v6214
    %v6227 = vmul.f32 %v6204, %v6214
    %v6228 = vmul.f32 %v6206, %v6214
    %v6229 = vmul.f32 %v6208, %v6214
    %v6230 = vmul.f32 %v6210, %v6214
    %s6231 = scalar_lea.vmem [#allocation2], 1
    %v6232 = vld [vmem:[%s6231] ss:$2 sm:$0xff]
    %s6233 = scalar_lea.vmem [#allocation2], 49
    %v6234 = vld [vmem:[%s6233] ss:$2 sm:$0xff]
    %s6235 = scalar_lea.vmem [#allocation2], 97
    %v6236 = vld [vmem:[%s6235] ss:$2 sm:$0xff]
    %s6237 = scalar_lea.vmem [#allocation2], 145
    %v6238 = vld [vmem:[%s6237] ss:$2 sm:$0xff]
    %s6239 = scalar_lea.vmem [#allocation2], 193
    %v6240 = vld [vmem:[%s6239] ss:$2 sm:$0xff]
    %s6241 = scalar_lea.vmem [#allocation2], 241
    %v6242 = vld [vmem:[%s6241] ss:$2 sm:$0xff]
    %s6243 = scalar_lea.vmem [#allocation2], 289
    %v6244 = vld [vmem:[%s6243] ss:$2 sm:$0xff]
    %s6245 = scalar_lea.vmem [#allocation2], 337
    %v6246 = vld [vmem:[%s6245] ss:$2 sm:$0xff]
    %s6247 = scalar_lea.vmem [#allocation2], 433
    %v6248 = vld [vmem:[%s6247] ss:$2 sm:$0xff]
    %s6249 = scalar_lea.vmem [#allocation2], 481
    %v6250 = vld [vmem:[%s6249] ss:$2 sm:$0xff]
    %s6251 = scalar_lea.vmem [#allocation2], 529
    %v6252 = vld [vmem:[%s6251] ss:$2 sm:$0xff]
    %s6253 = scalar_lea.vmem [#allocation2], 577
    %v6254 = vld [vmem:[%s6253] ss:$2 sm:$0xff]
    %s6255 = scalar_lea.vmem [#allocation2], 625
    %v6256 = vld [vmem:[%s6255] ss:$2 sm:$0xff]
    %s6257 = scalar_lea.vmem [#allocation2], 673
    %v6258 = vld [vmem:[%s6257] ss:$2 sm:$0xff]
    %s6259 = scalar_lea.vmem [#allocation2], 721
    %v6260 = vld [vmem:[%s6259] ss:$2 sm:$0xff]
    %s6261 = scalar_lea.vmem [#allocation2], 769
    %v6262 = vld [vmem:[%s6261] ss:$2 sm:$0xff]
    %v6263 = vlaneseq
    %v6264 = vshrl.u32 %v6263, 7
    %v6265 = vsub.s32 1, %v6264
    %v6266 = vrot.slane %v6178, %v6265
    %v6267 = vmul.f32 %v6232, %v6266
    %v6268 = vmul.f32 %v6234, %v6266
    %v6269 = vmul.f32 %v6236, %v6266
    %v6270 = vmul.f32 %v6238, %v6266
    %v6271 = vmul.f32 %v6240, %v6266
    %v6272 = vmul.f32 %v6242, %v6266
    %v6273 = vmul.f32 %v6244, %v6266
    %v6274 = vmul.f32 %v6246, %v6266
    %v6275 = vmul.f32 %v6248, %v6266
    %v6276 = vmul.f32 %v6250, %v6266
    %v6277 = vmul.f32 %v6252, %v6266
    %v6278 = vmul.f32 %v6254, %v6266
    %v6279 = vmul.f32 %v6256, %v6266
    %v6280 = vmul.f32 %v6258, %v6266
    %v6281 = vmul.f32 %v6260, %v6266
    %v6282 = vmul.f32 %v6262, %v6266
    %v6283 = vadd.f32 %v6215, %v6267
    %v6284 = vadd.f32 %v6216, %v6268
    %v6285 = vadd.f32 %v6217, %v6269
    %v6286 = vadd.f32 %v6218, %v6270
    %v6287 = vadd.f32 %v6219, %v6271
    %v6288 = vadd.f32 %v6220, %v6272
    %v6289 = vadd.f32 %v6221, %v6273
    %v6290 = vadd.f32 %v6222, %v6274
    %v6291 = vadd.f32 %v6223, %v6275
    %v6292 = vadd.f32 %v6224, %v6276
    %v6293 = vadd.f32 %v6225, %v6277
    %v6294 = vadd.f32 %v6226, %v6278
    %v6295 = vadd.f32 %v6227, %v6279
    %v6296 = vadd.f32 %v6228, %v6280
    %v6297 = vadd.f32 %v6229, %v6281
    %v6298 = vadd.f32 %v6230, %v6282
    %s6299 = scalar_lea.vmem [#allocation2], 2
    %v6300 = vld [vmem:[%s6299] ss:$2 sm:$0xff]
    %s6301 = scalar_lea.vmem [#allocation2], 50
    %v6302 = vld [vmem:[%s6301] ss:$2 sm:$0xff]
    %s6303 = scalar_lea.vmem [#allocation2], 98
    %v6304 = vld [vmem:[%s6303] ss:$2 sm:$0xff]
    %s6305 = scalar_lea.vmem [#allocation2], 146
    %v6306 = vld [vmem:[%s6305] ss:$2 sm:$0xff]
    %s6307 = scalar_lea.vmem [#allocation2], 194
    %v6308 = vld [vmem:[%s6307] ss:$2 sm:$0xff]
    %s6309 = scalar_lea.vmem [#allocation2], 242
    %v6310 = vld [vmem:[%s6309] ss:$2 sm:$0xff]
    %s6311 = scalar_lea.vmem [#allocation2], 290
    %v6312 = vld [vmem:[%s6311] ss:$2 sm:$0xff]
    %s6313 = scalar_lea.vmem [#allocation2], 338
    %v6314 = vld [vmem:[%s6313] ss:$2 sm:$0xff]
    %s6315 = scalar_lea.vmem [#allocation2], 434
    %v6316 = vld [vmem:[%s6315] ss:$2 sm:$0xff]
    %s6317 = scalar_lea.vmem [#allocation2], 482
    %v6318 = vld [vmem:[%s6317] ss:$2 sm:$0xff]
    %s6319 = scalar_lea.vmem [#allocation2], 530
    %v6320 = vld [vmem:[%s6319] ss:$2 sm:$0xff]
    %s6321 = scalar_lea.vmem [#allocation2], 578
    %v6322 = vld [vmem:[%s6321] ss:$2 sm:$0xff]
    %s6323 = scalar_lea.vmem [#allocation2], 626
    %v6324 = vld [vmem:[%s6323] ss:$2 sm:$0xff]
    %s6325 = scalar_lea.vmem [#allocation2], 674
    %v6326 = vld [vmem:[%s6325] ss:$2 sm:$0xff]
    %s6327 = scalar_lea.vmem [#allocation2], 722
    %v6328 = vld [vmem:[%s6327] ss:$2 sm:$0xff]
    %s6329 = scalar_lea.vmem [#allocation2], 770
    %v6330 = vld [vmem:[%s6329] ss:$2 sm:$0xff]
    %v6331 = vlaneseq
    %v6332 = vshrl.u32 %v6331, 7
    %v6333 = vsub.s32 2, %v6332
    %v6334 = vrot.slane %v6178, %v6333
    %v6335 = vmul.f32 %v6300, %v6334
    %v6336 = vmul.f32 %v6302, %v6334
    %v6337 = vmul.f32 %v6304, %v6334
    %v6338 = vmul.f32 %v6306, %v6334
    %v6339 = vmul.f32 %v6308, %v6334
    %v6340 = vmul.f32 %v6310, %v6334
    %v6341 = vmul.f32 %v6312, %v6334
    %v6342 = vmul.f32 %v6314, %v6334
    %v6343 = vmul.f32 %v6316, %v6334
    %v6344 = vmul.f32 %v6318, %v6334
    %v6345 = vmul.f32 %v6320, %v6334
    %v6346 = vmul.f32 %v6322, %v6334
    %v6347 = vmul.f32 %v6324, %v6334
    %v6348 = vmul.f32 %v6326, %v6334
    %v6349 = vmul.f32 %v6328, %v6334
    %v6350 = vmul.f32 %v6330, %v6334
    %v6351 = vadd.f32 %v6283, %v6335
    %v6352 = vadd.f32 %v6284, %v6336
    %v6353 = vadd.f32 %v6285, %v6337
    %v6354 = vadd.f32 %v6286, %v6338
    %v6355 = vadd.f32 %v6287, %v6339
    %v6356 = vadd.f32 %v6288, %v6340
    %v6357 = vadd.f32 %v6289, %v6341
    %v6358 = vadd.f32 %v6290, %v6342
    %v6359 = vadd.f32 %v6291, %v6343
    %v6360 = vadd.f32 %v6292, %v6344
    %v6361 = vadd.f32 %v6293, %v6345
    %v6362 = vadd.f32 %v6294, %v6346
    %v6363 = vadd.f32 %v6295, %v6347
    %v6364 = vadd.f32 %v6296, %v6348
    %v6365 = vadd.f32 %v6297, %v6349
    %v6366 = vadd.f32 %v6298, %v6350
    %v6367 = vld [vmem:[%s203] ss:$2 sm:$0xff]
    %s6368 = scalar_lea.vmem %s203, 48 [#allocation2]
    %v6369 = vld [vmem:[%s6368] ss:$2 sm:$0xff]
    %s6370 = scalar_lea.vmem %s203, 96 [#allocation2]
    %v6371 = vld [vmem:[%s6370] ss:$2 sm:$0xff]
    %s6372 = scalar_lea.vmem %s203, 144 [#allocation2]
    %v6373 = vld [vmem:[%s6372] ss:$2 sm:$0xff]
    %s6374 = scalar_lea.vmem %s203, 192 [#allocation2]
    %v6375 = vld [vmem:[%s6374] ss:$2 sm:$0xff]
    %s6376 = scalar_lea.vmem %s203, 240 [#allocation2]
    %v6377 = vld [vmem:[%s6376] ss:$2 sm:$0xff]
    %s6378 = scalar_lea.vmem %s203, 288 [#allocation2]
    %v6379 = vld [vmem:[%s6378] ss:$2 sm:$0xff]
    %s6380 = scalar_lea.vmem %s203, 336 [#allocation2]
    %v6381 = vld [vmem:[%s6380] ss:$2 sm:$0xff]
    %s6382 = scalar_lea.vmem %s203, 432 [#allocation2]
    %v6383 = vld [vmem:[%s6382] ss:$2 sm:$0xff]
    %s6384 = scalar_lea.vmem %s203, 480 [#allocation2]
    %v6385 = vld [vmem:[%s6384] ss:$2 sm:$0xff]
    %s6386 = scalar_lea.vmem %s203, 528 [#allocation2]
    %v6387 = vld [vmem:[%s6386] ss:$2 sm:$0xff]
    %s6388 = scalar_lea.vmem %s203, 576 [#allocation2]
    %v6389 = vld [vmem:[%s6388] ss:$2 sm:$0xff]
    %s6390 = scalar_lea.vmem %s203, 624 [#allocation2]
    %v6391 = vld [vmem:[%s6390] ss:$2 sm:$0xff]
    %s6392 = scalar_lea.vmem %s203, 672 [#allocation2]
    %v6393 = vld [vmem:[%s6392] ss:$2 sm:$0xff]
    %s6394 = scalar_lea.vmem %s203, 720 [#allocation2]
    %v6395 = vld [vmem:[%s6394] ss:$2 sm:$0xff]
    %s6396 = scalar_lea.vmem %s203, 768 [#allocation2]
    %v6397 = vld [vmem:[%s6396] ss:$2 sm:$0xff]
    %v6398 = vlaneseq
    %v6399 = vshrl.u32 %v6398, 7
    %v6400 = vsub.s32 3, %v6399
    %v6401 = vrot.slane %v6178, %v6400
    %v6402 = vmul.f32 %v6367, %v6401
    %v6403 = vmul.f32 %v6369, %v6401
    %v6404 = vmul.f32 %v6371, %v6401
    %v6405 = vmul.f32 %v6373, %v6401
    %v6406 = vmul.f32 %v6375, %v6401
    %v6407 = vmul.f32 %v6377, %v6401
    %v6408 = vmul.f32 %v6379, %v6401
    %v6409 = vmul.f32 %v6381, %v6401
    %v6410 = vmul.f32 %v6383, %v6401
    %v6411 = vmul.f32 %v6385, %v6401
    %v6412 = vmul.f32 %v6387, %v6401
    %v6413 = vmul.f32 %v6389, %v6401
    %v6414 = vmul.f32 %v6391, %v6401
    %v6415 = vmul.f32 %v6393, %v6401
    %v6416 = vmul.f32 %v6395, %v6401
    %v6417 = vmul.f32 %v6397, %v6401
    %v6418 = vadd.f32 %v6351, %v6402
    %v6419 = vadd.f32 %v6352, %v6403
    %v6420 = vadd.f32 %v6353, %v6404
    %v6421 = vadd.f32 %v6354, %v6405
    %v6422 = vadd.f32 %v6355, %v6406
    %v6423 = vadd.f32 %v6356, %v6407
    %v6424 = vadd.f32 %v6357, %v6408
    %v6425 = vadd.f32 %v6358, %v6409
    %v6426 = vadd.f32 %v6359, %v6410
    %v6427 = vadd.f32 %v6360, %v6411
    %v6428 = vadd.f32 %v6361, %v6412
    %v6429 = vadd.f32 %v6362, %v6413
    %v6430 = vadd.f32 %v6363, %v6414
    %v6431 = vadd.f32 %v6364, %v6415
    %v6432 = vadd.f32 %v6365, %v6416
    %v6433 = vadd.f32 %v6366, %v6417
    %s6434 = scalar_lea.vmem %s203, 1 [#allocation2]
    %v6435 = vld [vmem:[%s6434] ss:$2 sm:$0xff]
    %s6436 = scalar_lea.vmem %s203, 49 [#allocation2]
    %v6437 = vld [vmem:[%s6436] ss:$2 sm:$0xff]
    %s6438 = scalar_lea.vmem %s203, 97 [#allocation2]
    %v6439 = vld [vmem:[%s6438] ss:$2 sm:$0xff]
    %s6440 = scalar_lea.vmem %s203, 145 [#allocation2]
    %v6441 = vld [vmem:[%s6440] ss:$2 sm:$0xff]
    %s6442 = scalar_lea.vmem %s203, 193 [#allocation2]
    %v6443 = vld [vmem:[%s6442] ss:$2 sm:$0xff]
    %s6444 = scalar_lea.vmem %s203, 241 [#allocation2]
    %v6445 = vld [vmem:[%s6444] ss:$2 sm:$0xff]
    %s6446 = scalar_lea.vmem %s203, 289 [#allocation2]
    %v6447 = vld [vmem:[%s6446] ss:$2 sm:$0xff]
    %s6448 = scalar_lea.vmem %s203, 337 [#allocation2]
    %v6449 = vld [vmem:[%s6448] ss:$2 sm:$0xff]
    %s6450 = scalar_lea.vmem %s203, 433 [#allocation2]
    %v6451 = vld [vmem:[%s6450] ss:$2 sm:$0xff]
    %s6452 = scalar_lea.vmem %s203, 481 [#allocation2]
    %v6453 = vld [vmem:[%s6452] ss:$2 sm:$0xff]
    %s6454 = scalar_lea.vmem %s203, 529 [#allocation2]
    %v6455 = vld [vmem:[%s6454] ss:$2 sm:$0xff]
    %s6456 = scalar_lea.vmem %s203, 577 [#allocation2]
    %v6457 = vld [vmem:[%s6456] ss:$2 sm:$0xff]
    %s6458 = scalar_lea.vmem %s203, 625 [#allocation2]
    %v6459 = vld [vmem:[%s6458] ss:$2 sm:$0xff]
    %s6460 = scalar_lea.vmem %s203, 673 [#allocation2]
    %v6461 = vld [vmem:[%s6460] ss:$2 sm:$0xff]
    %s6462 = scalar_lea.vmem %s203, 721 [#allocation2]
    %v6463 = vld [vmem:[%s6462] ss:$2 sm:$0xff]
    %s6464 = scalar_lea.vmem %s203, 769 [#allocation2]
    %v6465 = vld [vmem:[%s6464] ss:$2 sm:$0xff]
    %v6466 = vlaneseq
    %v6467 = vshrl.u32 %v6466, 7
    %v6468 = vsub.s32 4, %v6467
    %v6469 = vrot.slane %v6178, %v6468
    %v6470 = vmul.f32 %v6435, %v6469
    %v6471 = vmul.f32 %v6437, %v6469
    %v6472 = vmul.f32 %v6439, %v6469
    %v6473 = vmul.f32 %v6441, %v6469
    %v6474 = vmul.f32 %v6443, %v6469
    %v6475 = vmul.f32 %v6445, %v6469
    %v6476 = vmul.f32 %v6447, %v6469
    %v6477 = vmul.f32 %v6449, %v6469
    %v6478 = vmul.f32 %v6451, %v6469
    %v6479 = vmul.f32 %v6453, %v6469
    %v6480 = vmul.f32 %v6455, %v6469
    %v6481 = vmul.f32 %v6457, %v6469
    %v6482 = vmul.f32 %v6459, %v6469
    %v6483 = vmul.f32 %v6461, %v6469
    %v6484 = vmul.f32 %v6463, %v6469
    %v6485 = vmul.f32 %v6465, %v6469
    %v6486 = vadd.f32 %v6418, %v6470
    %v6487 = vadd.f32 %v6419, %v6471
    %v6488 = vadd.f32 %v6420, %v6472
    %v6489 = vadd.f32 %v6421, %v6473
    %v6490 = vadd.f32 %v6422, %v6474
    %v6491 = vadd.f32 %v6423, %v6475
    %v6492 = vadd.f32 %v6424, %v6476
    %v6493 = vadd.f32 %v6425, %v6477
    %v6494 = vadd.f32 %v6426, %v6478
    %v6495 = vadd.f32 %v6427, %v6479
    %v6496 = vadd.f32 %v6428, %v6480
    %v6497 = vadd.f32 %v6429, %v6481
    %v6498 = vadd.f32 %v6430, %v6482
    %v6499 = vadd.f32 %v6431, %v6483
    %v6500 = vadd.f32 %v6432, %v6484
    %v6501 = vadd.f32 %v6433, %v6485
    %s6502 = scalar_lea.vmem %s203, 2 [#allocation2]
    %v6503 = vld [vmem:[%s6502] ss:$2 sm:$0xff]
    %s6504 = scalar_lea.vmem %s203, 50 [#allocation2]
    %v6505 = vld [vmem:[%s6504] ss:$2 sm:$0xff]
    %s6506 = scalar_lea.vmem %s203, 98 [#allocation2]
    %v6507 = vld [vmem:[%s6506] ss:$2 sm:$0xff]
    %s6508 = scalar_lea.vmem %s203, 146 [#allocation2]
    %v6509 = vld [vmem:[%s6508] ss:$2 sm:$0xff]
    %s6510 = scalar_lea.vmem %s203, 194 [#allocation2]
    %v6511 = vld [vmem:[%s6510] ss:$2 sm:$0xff]
    %s6512 = scalar_lea.vmem %s203, 242 [#allocation2]
    %v6513 = vld [vmem:[%s6512] ss:$2 sm:$0xff]
    %s6514 = scalar_lea.vmem %s203, 290 [#allocation2]
    %v6515 = vld [vmem:[%s6514] ss:$2 sm:$0xff]
    %s6516 = scalar_lea.vmem %s203, 338 [#allocation2]
    %v6517 = vld [vmem:[%s6516] ss:$2 sm:$0xff]
    %s6518 = scalar_lea.vmem %s203, 434 [#allocation2]
    %v6519 = vld [vmem:[%s6518] ss:$2 sm:$0xff]
    %s6520 = scalar_lea.vmem %s203, 482 [#allocation2]
    %v6521 = vld [vmem:[%s6520] ss:$2 sm:$0xff]
    %s6522 = scalar_lea.vmem %s203, 530 [#allocation2]
    %v6523 = vld [vmem:[%s6522] ss:$2 sm:$0xff]
    %s6524 = scalar_lea.vmem %s203, 578 [#allocation2]
    %v6525 = vld [vmem:[%s6524] ss:$2 sm:$0xff]
    %s6526 = scalar_lea.vmem %s203, 626 [#allocation2]
    %v6527 = vld [vmem:[%s6526] ss:$2 sm:$0xff]
    %s6528 = scalar_lea.vmem %s203, 674 [#allocation2]
    %v6529 = vld [vmem:[%s6528] ss:$2 sm:$0xff]
    %s6530 = scalar_lea.vmem %s203, 722 [#allocation2]
    %v6531 = vld [vmem:[%s6530] ss:$2 sm:$0xff]
    %s6532 = scalar_lea.vmem %s203, 770 [#allocation2]
    %v6533 = vld [vmem:[%s6532] ss:$2 sm:$0xff]
    %v6534 = vlaneseq
    %v6535 = vshrl.u32 %v6534, 7
    %v6536 = vsub.s32 5, %v6535
    %v6537 = vrot.slane %v6178, %v6536
    %v6538 = vmul.f32 %v6503, %v6537
    %v6539 = vmul.f32 %v6505, %v6537
    %v6540 = vmul.f32 %v6507, %v6537
    %v6541 = vmul.f32 %v6509, %v6537
    %v6542 = vmul.f32 %v6511, %v6537
    %v6543 = vmul.f32 %v6513, %v6537
    %v6544 = vmul.f32 %v6515, %v6537
    %v6545 = vmul.f32 %v6517, %v6537
    %v6546 = vmul.f32 %v6519, %v6537
    %v6547 = vmul.f32 %v6521, %v6537
    %v6548 = vmul.f32 %v6523, %v6537
    %v6549 = vmul.f32 %v6525, %v6537
    %v6550 = vmul.f32 %v6527, %v6537
    %v6551 = vmul.f32 %v6529, %v6537
    %v6552 = vmul.f32 %v6531, %v6537
    %v6553 = vmul.f32 %v6533, %v6537
    %v6554 = vadd.f32 %v6486, %v6538
    %v6555 = vadd.f32 %v6487, %v6539
    %v6556 = vadd.f32 %v6488, %v6540
    %v6557 = vadd.f32 %v6489, %v6541
    %v6558 = vadd.f32 %v6490, %v6542
    %v6559 = vadd.f32 %v6491, %v6543
    %v6560 = vadd.f32 %v6492, %v6544
    %v6561 = vadd.f32 %v6493, %v6545
    %v6562 = vadd.f32 %v6494, %v6546
    %v6563 = vadd.f32 %v6495, %v6547
    %v6564 = vadd.f32 %v6496, %v6548
    %v6565 = vadd.f32 %v6497, %v6549
    %v6566 = vadd.f32 %v6498, %v6550
    %v6567 = vadd.f32 %v6499, %v6551
    %v6568 = vadd.f32 %v6500, %v6552
    %v6569 = vadd.f32 %v6501, %v6553
    %v6570 = vld [vmem:[%s1383] ss:$2 sm:$0xff]
    %s6571 = scalar_lea.vmem %s1383, 48 [#allocation2]
    %v6572 = vld [vmem:[%s6571] ss:$2 sm:$0xff]
    %s6573 = scalar_lea.vmem %s1383, 96 [#allocation2]
    %v6574 = vld [vmem:[%s6573] ss:$2 sm:$0xff]
    %s6575 = scalar_lea.vmem %s1383, 144 [#allocation2]
    %v6576 = vld [vmem:[%s6575] ss:$2 sm:$0xff]
    %s6577 = scalar_lea.vmem %s1383, 192 [#allocation2]
    %v6578 = vld [vmem:[%s6577] ss:$2 sm:$0xff]
    %s6579 = scalar_lea.vmem %s1383, 240 [#allocation2]
    %v6580 = vld [vmem:[%s6579] ss:$2 sm:$0xff]
    %s6581 = scalar_lea.vmem %s1383, 288 [#allocation2]
    %v6582 = vld [vmem:[%s6581] ss:$2 sm:$0xff]
    %s6583 = scalar_lea.vmem %s1383, 336 [#allocation2]
    %v6584 = vld [vmem:[%s6583] ss:$2 sm:$0xff]
    %s6585 = scalar_lea.vmem %s1383, 432 [#allocation2]
    %v6586 = vld [vmem:[%s6585] ss:$2 sm:$0xff]
    %s6587 = scalar_lea.vmem %s1383, 480 [#allocation2]
    %v6588 = vld [vmem:[%s6587] ss:$2 sm:$0xff]
    %s6589 = scalar_lea.vmem %s1383, 528 [#allocation2]
    %v6590 = vld [vmem:[%s6589] ss:$2 sm:$0xff]
    %s6591 = scalar_lea.vmem %s1383, 576 [#allocation2]
    %v6592 = vld [vmem:[%s6591] ss:$2 sm:$0xff]
    %s6593 = scalar_lea.vmem %s1383, 624 [#allocation2]
    %v6594 = vld [vmem:[%s6593] ss:$2 sm:$0xff]
    %s6595 = scalar_lea.vmem %s1383, 672 [#allocation2]
    %v6596 = vld [vmem:[%s6595] ss:$2 sm:$0xff]
    %s6597 = scalar_lea.vmem %s1383, 720 [#allocation2]
    %v6598 = vld [vmem:[%s6597] ss:$2 sm:$0xff]
    %s6599 = scalar_lea.vmem %s1383, 768 [#allocation2]
    %v6600 = vld [vmem:[%s6599] ss:$2 sm:$0xff]
    %v6601 = vlaneseq
    %v6602 = vshrl.u32 %v6601, 7
    %v6603 = vsub.s32 6, %v6602
    %v6604 = vrot.slane %v6178, %v6603
    %v6605 = vmul.f32 %v6570, %v6604
    %v6606 = vmul.f32 %v6572, %v6604
    %v6607 = vmul.f32 %v6574, %v6604
    %v6608 = vmul.f32 %v6576, %v6604
    %v6609 = vmul.f32 %v6578, %v6604
    %v6610 = vmul.f32 %v6580, %v6604
    %v6611 = vmul.f32 %v6582, %v6604
    %v6612 = vmul.f32 %v6584, %v6604
    %v6613 = vmul.f32 %v6586, %v6604
    %v6614 = vmul.f32 %v6588, %v6604
    %v6615 = vmul.f32 %v6590, %v6604
    %v6616 = vmul.f32 %v6592, %v6604
    %v6617 = vmul.f32 %v6594, %v6604
    %v6618 = vmul.f32 %v6596, %v6604
    %v6619 = vmul.f32 %v6598, %v6604
    %v6620 = vmul.f32 %v6600, %v6604
    %v6621 = vadd.f32 %v6554, %v6605
    %v6622 = vadd.f32 %v6555, %v6606
    %v6623 = vadd.f32 %v6556, %v6607
    %v6624 = vadd.f32 %v6557, %v6608
    %v6625 = vadd.f32 %v6558, %v6609
    %v6626 = vadd.f32 %v6559, %v6610
    %v6627 = vadd.f32 %v6560, %v6611
    %v6628 = vadd.f32 %v6561, %v6612
    %v6629 = vadd.f32 %v6562, %v6613
    %v6630 = vadd.f32 %v6563, %v6614
    %v6631 = vadd.f32 %v6564, %v6615
    %v6632 = vadd.f32 %v6565, %v6616
    %v6633 = vadd.f32 %v6566, %v6617
    %v6634 = vadd.f32 %v6567, %v6618
    %v6635 = vadd.f32 %v6568, %v6619
    %v6636 = vadd.f32 %v6569, %v6620
    %s6637 = scalar_lea.vmem %s1383, 1 [#allocation2]
    %v6638 = vld [vmem:[%s6637] ss:$2 sm:$0xff]
    %s6639 = scalar_lea.vmem %s1383, 49 [#allocation2]
    %v6640 = vld [vmem:[%s6639] ss:$2 sm:$0xff]
    %s6641 = scalar_lea.vmem %s1383, 97 [#allocation2]
    %v6642 = vld [vmem:[%s6641] ss:$2 sm:$0xff]
    %s6643 = scalar_lea.vmem %s1383, 145 [#allocation2]
    %v6644 = vld [vmem:[%s6643] ss:$2 sm:$0xff]
    %s6645 = scalar_lea.vmem %s1383, 193 [#allocation2]
    %v6646 = vld [vmem:[%s6645] ss:$2 sm:$0xff]
    %s6647 = scalar_lea.vmem %s1383, 241 [#allocation2]
    %v6648 = vld [vmem:[%s6647] ss:$2 sm:$0xff]
    %s6649 = scalar_lea.vmem %s1383, 289 [#allocation2]
    %v6650 = vld [vmem:[%s6649] ss:$2 sm:$0xff]
    %s6651 = scalar_lea.vmem %s1383, 337 [#allocation2]
    %v6652 = vld [vmem:[%s6651] ss:$2 sm:$0xff]
    %s6653 = scalar_lea.vmem %s1383, 433 [#allocation2]
    %v6654 = vld [vmem:[%s6653] ss:$2 sm:$0xff]
    %s6655 = scalar_lea.vmem %s1383, 481 [#allocation2]
    %v6656 = vld [vmem:[%s6655] ss:$2 sm:$0xff]
    %s6657 = scalar_lea.vmem %s1383, 529 [#allocation2]
    %v6658 = vld [vmem:[%s6657] ss:$2 sm:$0xff]
    %s6659 = scalar_lea.vmem %s1383, 577 [#allocation2]
    %v6660 = vld [vmem:[%s6659] ss:$2 sm:$0xff]
    %s6661 = scalar_lea.vmem %s1383, 625 [#allocation2]
    %v6662 = vld [vmem:[%s6661] ss:$2 sm:$0xff]
    %s6663 = scalar_lea.vmem %s1383, 673 [#allocation2]
    %v6664 = vld [vmem:[%s6663] ss:$2 sm:$0xff]
    %s6665 = scalar_lea.vmem %s1383, 721 [#allocation2]
    %v6666 = vld [vmem:[%s6665] ss:$2 sm:$0xff]
    %s6667 = scalar_lea.vmem %s1383, 769 [#allocation2]
    %v6668 = vld [vmem:[%s6667] ss:$2 sm:$0xff]
    %v6669 = vlaneseq
    %v6670 = vshrl.u32 %v6669, 7
    %v6671 = vsub.s32 7, %v6670
    %v6672 = vrot.slane %v6178, %v6671
    %v6673 = vmul.f32 %v6638, %v6672
    %v6674 = vmul.f32 %v6640, %v6672
    %v6675 = vmul.f32 %v6642, %v6672
    %v6676 = vmul.f32 %v6644, %v6672
    %v6677 = vmul.f32 %v6646, %v6672
    %v6678 = vmul.f32 %v6648, %v6672
    %v6679 = vmul.f32 %v6650, %v6672
    %v6680 = vmul.f32 %v6652, %v6672
    %v6681 = vmul.f32 %v6654, %v6672
    %v6682 = vmul.f32 %v6656, %v6672
    %v6683 = vmul.f32 %v6658, %v6672
    %v6684 = vmul.f32 %v6660, %v6672
    %v6685 = vmul.f32 %v6662, %v6672
    %v6686 = vmul.f32 %v6664, %v6672
    %v6687 = vmul.f32 %v6666, %v6672
    %v6688 = vmul.f32 %v6668, %v6672
    %v6689 = vadd.f32 %v6621, %v6673
    %v6690 = vadd.f32 %v6622, %v6674
    %v6691 = vadd.f32 %v6623, %v6675
    %v6692 = vadd.f32 %v6624, %v6676
    %v6693 = vadd.f32 %v6625, %v6677
    %v6694 = vadd.f32 %v6626, %v6678
    %v6695 = vadd.f32 %v6627, %v6679
    %v6696 = vadd.f32 %v6628, %v6680
    %v6697 = vadd.f32 %v6629, %v6681
    %v6698 = vadd.f32 %v6630, %v6682
    %v6699 = vadd.f32 %v6631, %v6683
    %v6700 = vadd.f32 %v6632, %v6684
    %v6701 = vadd.f32 %v6633, %v6685
    %v6702 = vadd.f32 %v6634, %v6686
    %v6703 = vadd.f32 %v6635, %v6687
    %v6704 = vadd.f32 %v6636, %v6688
    %s6705 = scalar_lea.vmem %s1383, 2 [#allocation2]
    %v6706 = vld [vmem:[%s6705] ss:$2 sm:$0xff]
    %s6707 = scalar_lea.vmem %s1383, 50 [#allocation2]
    %v6708 = vld [vmem:[%s6707] ss:$2 sm:$0xff]
    %s6709 = scalar_lea.vmem %s1383, 98 [#allocation2]
    %v6710 = vld [vmem:[%s6709] ss:$2 sm:$0xff]
    %s6711 = scalar_lea.vmem %s1383, 146 [#allocation2]
    %v6712 = vld [vmem:[%s6711] ss:$2 sm:$0xff]
    %s6713 = scalar_lea.vmem %s1383, 194 [#allocation2]
    %v6714 = vld [vmem:[%s6713] ss:$2 sm:$0xff]
    %s6715 = scalar_lea.vmem %s1383, 242 [#allocation2]
    %v6716 = vld [vmem:[%s6715] ss:$2 sm:$0xff]
    %s6717 = scalar_lea.vmem %s1383, 290 [#allocation2]
    %v6718 = vld [vmem:[%s6717] ss:$2 sm:$0xff]
    %s6719 = scalar_lea.vmem %s1383, 338 [#allocation2]
    %v6720 = vld [vmem:[%s6719] ss:$2 sm:$0xff]
    %s6721 = scalar_lea.vmem %s1383, 434 [#allocation2]
    %v6722 = vld [vmem:[%s6721] ss:$2 sm:$0xff]
    %s6723 = scalar_lea.vmem %s1383, 482 [#allocation2]
    %v6724 = vld [vmem:[%s6723] ss:$2 sm:$0xff]
    %s6725 = scalar_lea.vmem %s1383, 530 [#allocation2]
    %v6726 = vld [vmem:[%s6725] ss:$2 sm:$0xff]
    %s6727 = scalar_lea.vmem %s1383, 578 [#allocation2]
    %v6728 = vld [vmem:[%s6727] ss:$2 sm:$0xff]
    %s6729 = scalar_lea.vmem %s1383, 626 [#allocation2]
    %v6730 = vld [vmem:[%s6729] ss:$2 sm:$0xff]
    %s6731 = scalar_lea.vmem %s1383, 674 [#allocation2]
    %v6732 = vld [vmem:[%s6731] ss:$2 sm:$0xff]
    %s6733 = scalar_lea.vmem %s1383, 722 [#allocation2]
    %v6734 = vld [vmem:[%s6733] ss:$2 sm:$0xff]
    %s6735 = scalar_lea.vmem %s1383, 770 [#allocation2]
    %v6736 = vld [vmem:[%s6735] ss:$2 sm:$0xff]
    %v6737 = vlaneseq
    %v6738 = vshrl.u32 %v6737, 7
    %v6739 = vsub.s32 0, %v6738
    %v6740 = vrot.slane %v6179, %v6739
    %v6741 = vmul.f32 %v6706, %v6740
    %v6742 = vmul.f32 %v6708, %v6740
    %v6743 = vmul.f32 %v6710, %v6740
    %v6744 = vmul.f32 %v6712, %v6740
    %v6745 = vmul.f32 %v6714, %v6740
    %v6746 = vmul.f32 %v6716, %v6740
    %v6747 = vmul.f32 %v6718, %v6740
    %v6748 = vmul.f32 %v6720, %v6740
    %v6749 = vmul.f32 %v6722, %v6740
    %v6750 = vmul.f32 %v6724, %v6740
    %v6751 = vmul.f32 %v6726, %v6740
    %v6752 = vmul.f32 %v6728, %v6740
    %v6753 = vmul.f32 %v6730, %v6740
    %v6754 = vmul.f32 %v6732, %v6740
    %v6755 = vmul.f32 %v6734, %v6740
    %v6756 = vmul.f32 %v6736, %v6740
    %v6757 = vadd.f32 %v6689, %v6741
    %v6758 = vadd.f32 %v6690, %v6742
    %v6759 = vadd.f32 %v6691, %v6743
    %v6760 = vadd.f32 %v6692, %v6744
    %v6761 = vadd.f32 %v6693, %v6745
    %v6762 = vadd.f32 %v6694, %v6746
    %v6763 = vadd.f32 %v6695, %v6747
    %v6764 = vadd.f32 %v6696, %v6748
    %v6765 = vadd.f32 %v6697, %v6749
    %v6766 = vadd.f32 %v6698, %v6750
    %v6767 = vadd.f32 %v6699, %v6751
    %v6768 = vadd.f32 %v6700, %v6752
    %v6769 = vadd.f32 %v6701, %v6753
    %v6770 = vadd.f32 %v6702, %v6754
    %v6771 = vadd.f32 %v6703, %v6755
    %v6772 = vadd.f32 %v6704, %v6756
    %v6773 = vld [vmem:[%s10] sm:$0xff]
    %v6775 = vsel %vm51, %v6757, 0
    %v6778 = vsel %vm51, %v6758, 0
    %v6781 = vsel %vm51, %v6759, 0
    %v6784 = vsel %vm51, %v6760, 0
    %v6787 = vsel %vm51, %v6761, 0
    %v6790 = vsel %vm51, %v6762, 0
    %v6793 = vsel %vm51, %v6763, 0
    %v6796 = vsel %vm51, %v6764, 0
    %v6799 = vsel %vm51, %v6765, 0
    %v6802 = vsel %vm51, %v6766, 0
    %v6805 = vsel %vm51, %v6767, 0
    %v6808 = vsel %vm51, %v6768, 0
    %v6811 = vsel %vm51, %v6769, 0
    %v6814 = vsel %vm51, %v6770, 0
    %v6817 = vsel %vm51, %v6771, 0
    %v6820 = vsel %vm51, %v6772, 0
    %6822 = vmatprep.subr.mxu0 0.0
    %6823 = vmatpush1.msra.mxu0 %v6773
    %6824 = vmatprep.subr.mxu0 0.0
    %6825 = vmatpush1.msra.mxu0 0.0
    %6826 = vmatprep.subr.mxu0 0.0
    %6827 = vmatpush1.msra.mxu0 0.0
    %6828 = vmatprep.subr.mxu0 0.0
    %6829 = vmatpush1.msra.mxu0 0.0
    %6830 = vmatprep.subr.mxu0 0.0
    %6831 = vmatpush1.msra.mxu0 0.0
    %6832 = vmatprep.subr.mxu0 0.0
    %6833 = vmatpush1.msra.mxu0 0.0
    %6834 = vmatprep.subr.mxu0 0.0
    %6835 = vmatpush1.msra.mxu0 0.0
    %6836 = vmatprep.subr.mxu0 0.0
    %6837 = vmatpush1.msra.mxu0 0.0
    %6838 = vmatprep.subr.mxu0 0.0
    %6839 = vmatpush1.msra.mxu0 0.0
    %6840 = vmatprep.subr.mxu0 0.0
    %6841 = vmatpush1.msra.mxu0 0.0
    %6842 = vmatprep.subr.mxu0 0.0
    %6843 = vmatpush1.msra.mxu0 0.0
    %6844 = vmatprep.subr.mxu0 0.0
    %6845 = vmatpush1.msra.mxu0 0.0
    %6846 = vmatprep.subr.mxu0 0.0
    %6847 = vmatpush1.msra.mxu0 0.0
    %6848 = vmatprep.subr.mxu0 0.0
    %6849 = vmatpush1.msra.mxu0 0.0
    %6850 = vmatprep.subr.mxu0 0.0
    %6851 = vmatpush1.msra.mxu0 0.0
    %6852 = vmatprep.subr.mxu0 0.0
    %6853 = vmatpush1.msra.mxu0 0.0
    %6854 = vmatprep.subr.mxu0 0.0
    %6855 = vmatpush1.msra.mxu0 0.0
    %6856 = vmatprep.subr.mxu0 0.0
    %6857 = vmatpush1.msra.mxu0 0.0
    %6858 = vmatprep.subr.mxu0 0.0
    %6859 = vmatpush1.msra.mxu0 0.0
    %6860 = vmatprep.subr.mxu0 0.0
    %6861 = vmatpush1.msra.mxu0 0.0
    %6862 = vmatprep.subr.mxu0 0.0
    %6863 = vmatpush1.msra.mxu0 0.0
    %6864 = vmatprep.subr.mxu0 0.0
    %6865 = vmatpush1.msra.mxu0 0.0
    %6866 = vmatprep.subr.mxu0 0.0
    %6867 = vmatpush1.msra.mxu0 0.0
    %6868 = vmatprep.subr.mxu0 0.0
    %6869 = vmatpush1.msra.mxu0 0.0
    %6870 = vmatprep.subr.mxu0 0.0
    %6871 = vmatpush1.msra.mxu0 0.0
    %6872 = vmatprep.subr.mxu0 0.0
    %6873 = vmatpush1.msra.mxu0 0.0
    %6874 = vmatprep.subr.mxu0 0.0
    %6875 = vmatpush1.msra.mxu0 0.0
    %6876 = vmatprep.subr.mxu0 0.0
    %6877 = vmatpush1.msra.mxu0 0.0
    %6878 = vmatprep.subr.mxu0 0.0
    %6879 = vmatpush1.msra.mxu0 0.0
    %6880 = vmatprep.subr.mxu0 0.0
    %6881 = vmatpush1.msra.mxu0 0.0
    %6882 = vmatprep.subr.mxu0 0.0
    %6883 = vmatpush1.msra.mxu0 0.0
    %6884 = vmatprep.subr.mxu0 0.0
    %6885 = vmatpush1.msra.mxu0 0.0
    %6886 = vmatprep.mubr.f32.mxu0 0.0
    %6887 = vmatmul.mubr.f32.gmra.mrb[0].mxu0 %v6775
    %v6888 = vpop.f32.mrb[0].mxu0
    %v6889 = vadd.f32 0.0, %v6888
    %v6890 = vpop.f32.mrb[0].mxu0
    %6891 = vmatprep.mubr.f32.mxu0 0.0
    %6892 = vmatmul.mubr.f32.gmra.mrb[0].mxu0 %v6778
    %v6893 = vpop.f32.mrb[0].mxu0
    %v6894 = vadd.f32 0.0, %v6893
    %v6895 = vpop.f32.mrb[0].mxu0
    %6896 = vmatprep.mubr.f32.mxu0 0.0
    %6897 = vmatmul.mubr.f32.gmra.mrb[0].mxu0 %v6781
    %v6898 = vpop.f32.mrb[0].mxu0
    %v6899 = vadd.f32 0.0, %v6898
    %v6900 = vpop.f32.mrb[0].mxu0
    %6901 = vmatprep.mubr.f32.mxu0 0.0
    %6902 = vmatmul.mubr.f32.gmra.mrb[0].mxu0 %v6784
    %v6903 = vpop.f32.mrb[0].mxu0
    %v6904 = vadd.f32 0.0, %v6903
    %v6905 = vpop.f32.mrb[0].mxu0
    %6906 = vmatprep.mubr.f32.mxu0 0.0
    %6907 = vmatmul.mubr.f32.gmra.mrb[0].mxu0 %v6787
    %v6908 = vpop.f32.mrb[0].mxu0
    %v6909 = vadd.f32 0.0, %v6908
    %v6910 = vpop.f32.mrb[0].mxu0
    %6911 = vmatprep.mubr.f32.mxu0 0.0
    %6912 = vmatmul.mubr.f32.gmra.mrb[0].mxu0 %v6790
    %v6913 = vpop.f32.mrb[0].mxu0
    %v6914 = vadd.f32 0.0, %v6913
    %v6915 = vpop.f32.mrb[0].mxu0
    %6916 = vmatprep.mubr.f32.mxu0 0.0
    %6917 = vmatmul.mubr.f32.gmra.mrb[0].mxu0 %v6793
    %v6918 = vpop.f32.mrb[0].mxu0
    %v6919 = vadd.f32 0.0, %v6918
    %v6920 = vpop.f32.mrb[0].mxu0
    %6921 = vmatprep.mubr.f32.mxu0 0.0
    %6922 = vmatmul.mubr.f32.gmra.mrb[0].mxu0 %v6796
    %v6923 = vpop.f32.mrb[0].mxu0
    %v6924 = vadd.f32 0.0, %v6923
    %v6925 = vpop.f32.mrb[0].mxu0
    %6926 = vmatprep.mubr.f32.mxu0 0.0
    %6927 = vmatmul.mubr.f32.gmra.mrb[0].mxu0 %v6799
    %v6928 = vpop.f32.mrb[0].mxu0
    %v6929 = vadd.f32 0.0, %v6928
    %v6930 = vpop.f32.mrb[0].mxu0
    %6931 = vmatprep.mubr.f32.mxu0 0.0
    %6932 = vmatmul.mubr.f32.gmra.mrb[0].mxu0 %v6802
    %v6933 = vpop.f32.mrb[0].mxu0
    %v6934 = vadd.f32 0.0, %v6933
    %v6935 = vpop.f32.mrb[0].mxu0
    %6936 = vmatprep.mubr.f32.mxu0 0.0
    %6937 = vmatmul.mubr.f32.gmra.mrb[0].mxu0 %v6805
    %v6938 = vpop.f32.mrb[0].mxu0
    %v6939 = vadd.f32 0.0, %v6938
    %v6940 = vpop.f32.mrb[0].mxu0
    %6941 = vmatprep.mubr.f32.mxu0 0.0
    %6942 = vmatmul.mubr.f32.gmra.mrb[0].mxu0 %v6808
    %v6943 = vpop.f32.mrb[0].mxu0
    %v6944 = vadd.f32 0.0, %v6943
    %v6945 = vpop.f32.mrb[0].mxu0
    %6946 = vmatprep.mubr.f32.mxu0 0.0
    %6947 = vmatmul.mubr.f32.gmra.mrb[0].mxu0 %v6811
    %v6948 = vpop.f32.mrb[0].mxu0
    %v6949 = vadd.f32 0.0, %v6948
    %v6950 = vpop.f32.mrb[0].mxu0
    %6951 = vmatprep.mubr.f32.mxu0 0.0
    %6952 = vmatmul.mubr.f32.gmra.mrb[0].mxu0 %v6814
    %v6953 = vpop.f32.mrb[0].mxu0
    %v6954 = vadd.f32 0.0, %v6953
    %v6955 = vpop.f32.mrb[0].mxu0
    %6956 = vmatprep.mubr.f32.mxu0 0.0
    %6957 = vmatmul.mubr.f32.gmra.mrb[0].mxu0 %v6817
    %v6958 = vpop.f32.mrb[0].mxu0
    %v6959 = vadd.f32 0.0, %v6958
    %v6960 = vpop.f32.mrb[0].mxu0
    %6961 = vmatprep.mubr.f32.mxu0 0.0
    %6962 = vmatmul.mubr.f32.gmra.mrb[0].mxu0 %v6820
    %v6963 = vpop.f32.mrb[0].mxu0
    %v6964 = vadd.f32 0.0, %v6963
    %v6965 = vpop.f32.mrb[0].mxu0
    %6966 = vdwg.mxu0
    %v6967 = vsel %vm51, %v6889, 0.0
    %v6968 = vsel %vm51, %v6894, 0.0
    %v6969 = vadd.f32 %v6967, %v6968
    %v6970 = vsel %vm51, %v6899, 0.0
    %v6971 = vadd.f32 %v6969, %v6970
    %v6972 = vsel %vm51, %v6904, 0.0
    %v6973 = vadd.f32 %v6971, %v6972
    %v6974 = vsel %vm51, %v6909, 0.0
    %v6975 = vadd.f32 %v6973, %v6974
    %v6976 = vsel %vm51, %v6914, 0.0
    %v6977 = vadd.f32 %v6975, %v6976
    %v6978 = vsel %vm51, %v6919, 0.0
    %v6979 = vadd.f32 %v6977, %v6978
    %v6980 = vsel %vm51, %v6924, 0.0
    %v6981 = vadd.f32 %v6979, %v6980
    %v6982 = vsel %vm51, %v6929, 0.0
    %v6983 = vadd.f32 %v6981, %v6982
    %v6984 = vsel %vm51, %v6934, 0.0
    %v6985 = vadd.f32 %v6983, %v6984
    %v6986 = vsel %vm51, %v6939, 0.0
    %v6987 = vadd.f32 %v6985, %v6986
    %v6988 = vsel %vm51, %v6944, 0.0
    %v6989 = vadd.f32 %v6987, %v6988
    %v6990 = vsel %vm51, %v6949, 0.0
    %v6991 = vadd.f32 %v6989, %v6990
    %v6992 = vsel %vm51, %v6954, 0.0
    %v6993 = vadd.f32 %v6991, %v6992
    %v6994 = vsel %vm51, %v6959, 0.0
    %v6995 = vadd.f32 %v6993, %v6994
    %v6996 = vsel %vm51, %v6964, 0.0
    %v6997 = vadd.f32 %v6995, %v6996
    %v6998 = vrot.slane %v6997, 4
    %v6999 = vadd.f32 %v6997, %v6998
    %v7000 = vrot.slane %v6999, 2
    %v7001 = vadd.f32 %v6999, %v7000
    %v7002 = vrot.slane %v7001, 1
    %v7003 = vadd.f32 %v7001, %v7002
    %v7004 = vmul.f32 %v6889, %v6889
    %v7005 = vmul.f32 %v6894, %v6894
    %v7006 = vmul.f32 %v6899, %v6899
    %v7007 = vmul.f32 %v6904, %v6904
    %v7008 = vmul.f32 %v6909, %v6909
    %v7009 = vmul.f32 %v6914, %v6914
    %v7010 = vmul.f32 %v6919, %v6919
    %v7011 = vmul.f32 %v6924, %v6924
    %v7012 = vmul.f32 %v6929, %v6929
    %v7013 = vmul.f32 %v6934, %v6934
    %v7014 = vmul.f32 %v6939, %v6939
    %v7015 = vmul.f32 %v6944, %v6944
    %v7016 = vmul.f32 %v6949, %v6949
    %v7017 = vmul.f32 %v6954, %v6954
    %v7018 = vmul.f32 %v6959, %v6959
    %v7019 = vmul.f32 %v6964, %v6964
    %v7020 = vsel %vm51, %v7004, 0.0
    %v7021 = vsel %vm51, %v7005, 0.0
    %v7022 = vadd.f32 %v7020, %v7021
    %v7023 = vsel %vm51, %v7006, 0.0
    %v7024 = vadd.f32 %v7022, %v7023
    %v7025 = vsel %vm51, %v7007, 0.0
    %v7026 = vadd.f32 %v7024, %v7025
    %v7027 = vsel %vm51, %v7008, 0.0
    %v7028 = vadd.f32 %v7026, %v7027
    %v7029 = vsel %vm51, %v7009, 0.0
    %v7030 = vadd.f32 %v7028, %v7029
    %v7031 = vsel %vm51, %v7010, 0.0
    %v7032 = vadd.f32 %v7030, %v7031
    %v7033 = vsel %vm51, %v7011, 0.0
    %v7034 = vadd.f32 %v7032, %v7033
    %v7035 = vsel %vm51, %v7012, 0.0
    %v7036 = vadd.f32 %v7034, %v7035
    %v7037 = vsel %vm51, %v7013, 0.0
    %v7038 = vadd.f32 %v7036, %v7037
    %v7039 = vsel %vm51, %v7014, 0.0
    %v7040 = vadd.f32 %v7038, %v7039
    %v7041 = vsel %vm51, %v7015, 0.0
    %v7042 = vadd.f32 %v7040, %v7041
    %v7043 = vsel %vm51, %v7016, 0.0
    %v7044 = vadd.f32 %v7042, %v7043
    %v7045 = vsel %vm51, %v7017, 0.0
    %v7046 = vadd.f32 %v7044, %v7045
    %v7047 = vsel %vm51, %v7018, 0.0
    %v7048 = vadd.f32 %v7046, %v7047
    %v7049 = vsel %vm51, %v7019, 0.0
    %v7050 = vadd.f32 %v7048, %v7049
    %v7051 = vrot.slane %v7050, 4
    %v7052 = vadd.f32 %v7050, %v7051
    %v7053 = vrot.slane %v7052, 2
    %v7054 = vadd.f32 %v7052, %v7053
    %v7055 = vrot.slane %v7054, 1
    %v7056 = vadd.f32 %v7054, %v7055
    %v7057 = vmul.f32 %v7003, 0.0078125
    %v7058 = vmul.f32 %v7056, 0.0078125
    %v7059 = vmul.f32 %v7057, %v7057
    %v7060 = vsub.f32 %v7058, %v7059
    %v7061 = vmax.f32 %v7060, 0.0
    %v7062 = vadd.f32 %v7061, 1e-05
    %v7063 = vrsqrt.pop %v7062
    %v7064 = vld [vmem:[%s11] sm:$0x1]
    %v7065 = vmul.f32 %v7063, %v7064
    %v7066 = vld [vmem:[%s12] sm:$0x1]
    %v7067 = vmul.f32 %v7057, %v7065
    %v7068 = vsub.f32 %v7066, %v7067
    %v7069 = vlaneseq
    %v7070 = vshrl.u32 %v7069, 7
    %v7071 = vsub.s32 0, %v7070
    %v7072 = vrot.slane %v7065, %v7071
    %v7073 = vmul.f32 %v6889, %v7072
    %v7074 = vmul.f32 %v6894, %v7072
    %v7075 = vmul.f32 %v6899, %v7072
    %v7076 = vmul.f32 %v6904, %v7072
    %v7077 = vmul.f32 %v6909, %v7072
    %v7078 = vmul.f32 %v6914, %v7072
    %v7079 = vmul.f32 %v6919, %v7072
    %v7080 = vmul.f32 %v6924, %v7072
    %v7081 = vmul.f32 %v6929, %v7072
    %v7082 = vmul.f32 %v6934, %v7072
    %v7083 = vmul.f32 %v6939, %v7072
    %v7084 = vmul.f32 %v6944, %v7072
    %v7085 = vmul.f32 %v6949, %v7072
    %v7086 = vmul.f32 %v6954, %v7072
    %v7087 = vmul.f32 %v6959, %v7072
    %v7088 = vmul.f32 %v6964, %v7072
    %v7090 = vlaneseq
    %v7091 = vshrl.u32 %v7090, 7
    %v7092 = vsub.s32 0, %v7091
    %v7093 = vrot.slane %v7068, %v7092
    %v7095 = vadd.f32 %v7073, %v7093
    %v7096 = vadd.f32 %v7074, %v7093
    %v7097 = vadd.f32 %v7075, %v7093
    %v7098 = vadd.f32 %v7076, %v7093
    %v7099 = vadd.f32 %v7077, %v7093
    %v7100 = vadd.f32 %v7078, %v7093
    %v7101 = vadd.f32 %v7079, %v7093
    %v7102 = vadd.f32 %v7080, %v7093
    %v7103 = vadd.f32 %v7081, %v7093
    %v7104 = vadd.f32 %v7082, %v7093
    %v7105 = vadd.f32 %v7083, %v7093
    %v7106 = vadd.f32 %v7084, %v7093
    %v7107 = vadd.f32 %v7085, %v7093
    %v7108 = vadd.f32 %v7086, %v7093
    %v7109 = vadd.f32 %v7087, %v7093
    %v7110 = vadd.f32 %v7088, %v7093
    %v7111 = vmax.f32 %v7095, 0.0
    %v7112 = vmax.f32 %v7096, 0.0
    %v7113 = vmax.f32 %v7097, 0.0
    %v7114 = vmax.f32 %v7098, 0.0
    %v7115 = vmax.f32 %v7099, 0.0
    %v7116 = vmax.f32 %v7100, 0.0
    %v7117 = vmax.f32 %v7101, 0.0
    %v7118 = vmax.f32 %v7102, 0.0
    %v7119 = vmax.f32 %v7103, 0.0
    %v7120 = vmax.f32 %v7104, 0.0
    %v7121 = vmax.f32 %v7105, 0.0
    %v7122 = vmax.f32 %v7106, 0.0
    %v7123 = vmax.f32 %v7107, 0.0
    %v7124 = vmax.f32 %v7108, 0.0
    %v7125 = vmax.f32 %v7109, 0.0
    %v7126 = vmax.f32 %v7110, 0.0
    %v7127 = vmin.f32 %v7111, 6.0
    %v7128 = vmin.f32 %v7112, 6.0
    %v7129 = vmin.f32 %v7113, 6.0
    %v7130 = vmin.f32 %v7114, 6.0
    %v7131 = vmin.f32 %v7115, 6.0
    %v7132 = vmin.f32 %v7116, 6.0
    %v7133 = vmin.f32 %v7117, 6.0
    %v7134 = vmin.f32 %v7118, 6.0
    %v7135 = vmin.f32 %v7119, 6.0
    %v7136 = vmin.f32 %v7120, 6.0
    %v7137 = vmin.f32 %v7121, 6.0
    %v7138 = vmin.f32 %v7122, 6.0
    %v7139 = vmin.f32 %v7123, 6.0
    %v7140 = vmin.f32 %v7124, 6.0
    %v7141 = vmin.f32 %v7125, 6.0
    %v7142 = vmin.f32 %v7126, 6.0
    %v7143 = vld [vmem:[%s0] ss:$2 sm:$0xff]
    %s7144 = scalar_lea.vmem %s0, 32
    %v7145 = vld [vmem:[%s7144] ss:$2 sm:$0xff]
    %s7146 = scalar_lea.vmem %s0, 64
    %v7147 = vld [vmem:[%s7146] ss:$2 sm:$0xff]
    %s7148 = scalar_lea.vmem %s0, 96
    %v7149 = vld [vmem:[%s7148] ss:$2 sm:$0xff]
    %s7150 = scalar_lea.vmem %s0, 128
    %v7151 = vld [vmem:[%s7150] ss:$2 sm:$0xff]
    %s7152 = scalar_lea.vmem %s0, 160
    %v7153 = vld [vmem:[%s7152] ss:$2 sm:$0xff]
    %s7154 = scalar_lea.vmem %s0, 192
    %v7155 = vld [vmem:[%s7154] ss:$2 sm:$0xff]
    %s7156 = scalar_lea.vmem %s0, 224
    %v7157 = vld [vmem:[%s7156] ss:$2 sm:$0xff]
    %s7158 = scalar_lea.vmem %s0, 256
    %v7159 = vld [vmem:[%s7158] ss:$2 sm:$0xff]
    %s7160 = scalar_lea.vmem %s0, 288
    %v7161 = vld [vmem:[%s7160] ss:$2 sm:$0xff]
    %s7162 = scalar_lea.vmem %s0, 320
    %v7163 = vld [vmem:[%s7162] ss:$2 sm:$0xff]
    %s7164 = scalar_lea.vmem %s0, 352
    %v7165 = vld [vmem:[%s7164] ss:$2 sm:$0xff]
    %s7166 = scalar_lea.vmem %s0, 384
    %v7167 = vld [vmem:[%s7166] ss:$2 sm:$0xff]
    %s7168 = scalar_lea.vmem %s0, 416
    %v7169 = vld [vmem:[%s7168] ss:$2 sm:$0xff]
    %s7170 = scalar_lea.vmem %s0, 448
    %v7171 = vld [vmem:[%s7170] ss:$2 sm:$0xff]
    %s7172 = scalar_lea.vmem %s0, 480
    %v7173 = vld [vmem:[%s7172] ss:$2 sm:$0xff]
    %v7174 = vld [vmem:[%s13] sm:$0xf]
    %v7175 = vld [vmem:[%s14] sm:$0x1]
    %v7177 = vlaneseq
    %v7178 = vshrl.u32 %v7177, 7
    %v7179 = vsub.s32 0, %v7178
    %v7180 = vrot.slane %v7175, %v7179
    %v7183 = vsel %vm204, %v7143, 0
    %v7186 = vsel %vm204, %v7145, 0
    %v7189 = vsel %vm204, %v7147, 0
    %v7192 = vsel %vm204, %v7149, 0
    %v7195 = vsel %vm204, %v7151, 0
    %v7198 = vsel %vm204, %v7153, 0
    %v7201 = vsel %vm204, %v7155, 0
    %v7204 = vsel %vm204, %v7157, 0
    %v7207 = vsel %vm204, %v7159, 0
    %v7210 = vsel %vm204, %v7161, 0
    %v7213 = vsel %vm204, %v7163, 0
    %v7216 = vsel %vm204, %v7165, 0
    %v7219 = vsel %vm204, %v7167, 0
    %v7222 = vsel %vm204, %v7169, 0
    %v7225 = vsel %vm204, %v7171, 0
    %v7228 = vsel %vm204, %v7173, 0
    %v7231 = vsel %vm2165, %v7174, 0
    %7233 = vmatprep.subr.mxu0 0.0
    %7234 = vmatpush1.msra.mxu0 %v7231
    %7235 = vmatprep.subr.mxu0 0.0
    %7236 = vmatpush1.msra.mxu0 0.0
    %7237 = vmatprep.subr.mxu0 0.0
    %7238 = vmatpush1.msra.mxu0 0.0
    %7239 = vmatprep.subr.mxu0 0.0
    %7240 = vmatpush1.msra.mxu0 0.0
    %7241 = vmatprep.subr.mxu0 0.0
    %7242 = vmatpush1.msra.mxu0 0.0
    %7243 = vmatprep.subr.mxu0 0.0
    %7244 = vmatpush1.msra.mxu0 0.0
    %7245 = vmatprep.subr.mxu0 0.0
    %7246 = vmatpush1.msra.mxu0 0.0
    %7247 = vmatprep.subr.mxu0 0.0
    %7248 = vmatpush1.msra.mxu0 0.0
    %7249 = vmatprep.subr.mxu0 0.0
    %7250 = vmatpush1.msra.mxu0 0.0
    %7251 = vmatprep.subr.mxu0 0.0
    %7252 = vmatpush1.msra.mxu0 0.0
    %7253 = vmatprep.subr.mxu0 0.0
    %7254 = vmatpush1.msra.mxu0 0.0
    %7255 = vmatprep.subr.mxu0 0.0
    %7256 = vmatpush1.msra.mxu0 0.0
    %7257 = vmatprep.subr.mxu0 0.0
    %7258 = vmatpush1.msra.mxu0 0.0
    %7259 = vmatprep.subr.mxu0 0.0
    %7260 = vmatpush1.msra.mxu0 0.0
    %7261 = vmatprep.subr.mxu0 0.0
    %7262 = vmatpush1.msra.mxu0 0.0
    %7263 = vmatprep.subr.mxu0 0.0
    %7264 = vmatpush1.msra.mxu0 0.0
    %7265 = vmatprep.subr.mxu0 0.0
    %7266 = vmatpush1.msra.mxu0 0.0
    %7267 = vmatprep.subr.mxu0 0.0
    %7268 = vmatpush1.msra.mxu0 0.0
    %7269 = vmatprep.subr.mxu0 0.0
    %7270 = vmatpush1.msra.mxu0 0.0
    %7271 = vmatprep.subr.mxu0 0.0
    %7272 = vmatpush1.msra.mxu0 0.0
    %7273 = vmatprep.subr.mxu0 0.0
    %7274 = vmatpush1.msra.mxu0 0.0
    %7275 = vmatprep.subr.mxu0 0.0
    %7276 = vmatpush1.msra.mxu0 0.0
    %7277 = vmatprep.subr.mxu0 0.0
    %7278 = vmatpush1.msra.mxu0 0.0
    %7279 = vmatprep.subr.mxu0 0.0
    %7280 = vmatpush1.msra.mxu0 0.0
    %7281 = vmatprep.subr.mxu0 0.0
    %7282 = vmatpush1.msra.mxu0 0.0
    %7283 = vmatprep.subr.mxu0 0.0
    %7284 = vmatpush1.msra.mxu0 0.0
    %7285 = vmatprep.subr.mxu0 0.0
    %7286 = vmatpush1.msra.mxu0 0.0
    %7287 = vmatprep.subr.mxu0 0.0
    %7288 = vmatpush1.msra.mxu0 0.0
    %7289 = vmatprep.subr.mxu0 0.0
    %7290 = vmatpush1.msra.mxu0 0.0
    %7291 = vmatprep.subr.mxu0 0.0
    %7292 = vmatpush1.msra.mxu0 0.0
    %7293 = vmatprep.subr.mxu0 0.0
    %7294 = vmatpush1.msra.mxu0 0.0
    %7295 = vmatprep.subr.mxu0 0.0
    %7296 = vmatpush1.msra.mxu0 0.0
    %7297 = vmatprep.mubr.f32.mxu0 0.0
    %7298 = vmatmul.mubr.f32.gmra.mrb[0].mxu0 %v7183
    %v7299 = vpop.f32.mrb[0].mxu0
    %v7300 = vadd.f32 %v7180, %v7299
    %v7301 = vpop.f32.mrb[0].mxu0
    %7302 = vmatprep.mubr.f32.mxu0 0.0
    %7303 = vmatmul.mubr.f32.gmra.mrb[0].mxu0 %v7186
    %v7304 = vpop.f32.mrb[0].mxu0
    %v7305 = vadd.f32 %v7180, %v7304
    %v7306 = vpop.f32.mrb[0].mxu0
    %7307 = vmatprep.mubr.f32.mxu0 0.0
    %7308 = vmatmul.mubr.f32.gmra.mrb[0].mxu0 %v7189
    %v7309 = vpop.f32.mrb[0].mxu0
    %v7310 = vadd.f32 %v7180, %v7309
    %v7311 = vpop.f32.mrb[0].mxu0
    %7312 = vmatprep.mubr.f32.mxu0 0.0
    %7313 = vmatmul.mubr.f32.gmra.mrb[0].mxu0 %v7192
    %v7314 = vpop.f32.mrb[0].mxu0
    %v7315 = vadd.f32 %v7180, %v7314
    %v7316 = vpop.f32.mrb[0].mxu0
    %7317 = vmatprep.mubr.f32.mxu0 0.0
    %7318 = vmatmul.mubr.f32.gmra.mrb[0].mxu0 %v7195
    %v7319 = vpop.f32.mrb[0].mxu0
    %v7320 = vadd.f32 %v7180, %v7319
    %v7321 = vpop.f32.mrb[0].mxu0
    %7322 = vmatprep.mubr.f32.mxu0 0.0
    %7323 = vmatmul.mubr.f32.gmra.mrb[0].mxu0 %v7198
    %v7324 = vpop.f32.mrb[0].mxu0
    %v7325 = vadd.f32 %v7180, %v7324
    %v7326 = vpop.f32.mrb[0].mxu0
    %7327 = vmatprep.mubr.f32.mxu0 0.0
    %7328 = vmatmul.mubr.f32.gmra.mrb[0].mxu0 %v7201
    %v7329 = vpop.f32.mrb[0].mxu0
    %v7330 = vadd.f32 %v7180, %v7329
    %v7331 = vpop.f32.mrb[0].mxu0
    %7332 = vmatprep.mubr.f32.mxu0 0.0
    %7333 = vmatmul.mubr.f32.gmra.mrb[0].mxu0 %v7204
    %v7334 = vpop.f32.mrb[0].mxu0
    %v7335 = vadd.f32 %v7180, %v7334
    %v7336 = vpop.f32.mrb[0].mxu0
    %7337 = vmatprep.mubr.f32.mxu0 0.0
    %7338 = vmatmul.mubr.f32.gmra.mrb[0].mxu0 %v7207
    %v7339 = vpop.f32.mrb[0].mxu0
    %v7340 = vadd.f32 %v7180, %v7339
    %v7341 = vpop.f32.mrb[0].mxu0
    %7342 = vmatprep.mubr.f32.mxu0 0.0
    %7343 = vmatmul.mubr.f32.gmra.mrb[0].mxu0 %v7210
    %v7344 = vpop.f32.mrb[0].mxu0
    %v7345 = vadd.f32 %v7180, %v7344
    %v7346 = vpop.f32.mrb[0].mxu0
    %7347 = vmatprep.mubr.f32.mxu0 0.0
    %7348 = vmatmul.mubr.f32.gmra.mrb[0].mxu0 %v7213
    %v7349 = vpop.f32.mrb[0].mxu0
    %v7350 = vadd.f32 %v7180, %v7349
    %v7351 = vpop.f32.mrb[0].mxu0
    %7352 = vmatprep.mubr.f32.mxu0 0.0
    %7353 = vmatmul.mubr.f32.gmra.mrb[0].mxu0 %v7216
    %v7354 = vpop.f32.mrb[0].mxu0
    %v7355 = vadd.f32 %v7180, %v7354
    %v7356 = vpop.f32.mrb[0].mxu0
    %7357 = vmatprep.mubr.f32.mxu0 0.0
    %7358 = vmatmul.mubr.f32.gmra.mrb[0].mxu0 %v7219
    %v7359 = vpop.f32.mrb[0].mxu0
    %v7360 = vadd.f32 %v7180, %v7359
    %v7361 = vpop.f32.mrb[0].mxu0
    %7362 = vmatprep.mubr.f32.mxu0 0.0
    %7363 = vmatmul.mubr.f32.gmra.mrb[0].mxu0 %v7222
    %v7364 = vpop.f32.mrb[0].mxu0
    %v7365 = vadd.f32 %v7180, %v7364
    %v7366 = vpop.f32.mrb[0].mxu0
    %7367 = vmatprep.mubr.f32.mxu0 0.0
    %7368 = vmatmul.mubr.f32.gmra.mrb[0].mxu0 %v7225
    %v7369 = vpop.f32.mrb[0].mxu0
    %v7370 = vadd.f32 %v7180, %v7369
    %v7371 = vpop.f32.mrb[0].mxu0
    %7372 = vmatprep.mubr.f32.mxu0 0.0
    %7373 = vmatmul.mubr.f32.gmra.mrb[0].mxu0 %v7228
    %v7374 = vpop.f32.mrb[0].mxu0
    %v7375 = vadd.f32 %v7180, %v7374
    %v7376 = vpop.f32.mrb[0].mxu0
    %7377 = vdwg.mxu0
    %v7378 = vadd.f32 %v7127, %v7300
    %v7379 = vadd.f32 %v7128, %v7305
    %v7380 = vadd.f32 %v7129, %v7310
    %v7381 = vadd.f32 %v7130, %v7315
    %v7382 = vadd.f32 %v7131, %v7320
    %v7383 = vadd.f32 %v7132, %v7325
    %v7384 = vadd.f32 %v7133, %v7330
    %v7385 = vadd.f32 %v7134, %v7335
    %v7386 = vadd.f32 %v7135, %v7340
    %v7387 = vadd.f32 %v7136, %v7345
    %v7388 = vadd.f32 %v7137, %v7350
    %v7389 = vadd.f32 %v7138, %v7355
    %v7390 = vadd.f32 %v7139, %v7360
    %v7391 = vadd.f32 %v7140, %v7365
    %v7392 = vadd.f32 %v7141, %v7370
    %v7393 = vadd.f32 %v7142, %v7375
    %7394 = vst.msk [vmem:[#allocation3] sm:$0xff] %vm51, %v7378
    %7395 = vst.msk [vmem:[#allocation3 + $0x8] sm:$0xff] %vm51, %v7379
    %7396 = vst.msk [vmem:[#allocation3 + $0x10] sm:$0xff] %vm51, %v7380
    %7397 = vst.msk [vmem:[#allocation3 + $0x18] sm:$0xff] %vm51, %v7381
    %7398 = vst.msk [vmem:[#allocation3 + $0x20] sm:$0xff] %vm51, %v7382
    %7399 = vst.msk [vmem:[#allocation3 + $0x28] sm:$0xff] %vm51, %v7383
    %7400 = vst.msk [vmem:[#allocation3 + $0x30] sm:$0xff] %vm51, %v7384
    %7401 = vst.msk [vmem:[#allocation3 + $0x38] sm:$0xff] %vm51, %v7385
    %7402 = vst.msk [vmem:[#allocation3 + $0x40] sm:$0xff] %vm51, %v7386
    %7403 = vst.msk [vmem:[#allocation3 + $0x48] sm:$0xff] %vm51, %v7387
    %7404 = vst.msk [vmem:[#allocation3 + $0x50] sm:$0xff] %vm51, %v7388
    %7405 = vst.msk [vmem:[#allocation3 + $0x58] sm:$0xff] %vm51, %v7389
    %7406 = vst.msk [vmem:[#allocation3 + $0x60] sm:$0xff] %vm51, %v7390
    %7407 = vst.msk [vmem:[#allocation3 + $0x68] sm:$0xff] %vm51, %v7391
    %7408 = vst.msk [vmem:[#allocation3 + $0x70] sm:$0xff] %vm51, %v7392
    %7409 = vst.msk [vmem:[#allocation3 + $0x78] sm:$0xff] %vm51, %v7393
    // Predicated region
    $region62: #{tpu_custom_call.1} parent=1 // pred_check
      _
    $region63: #{tpu_custom_call.1} parent=1 // pred_check_branch
      %7411 = sbr.rel (0) target = $region65
    $region64: #{tpu_custom_call.1} parent=1 // pred_region
      %s7413 = ssub.s32 2048, 2048
      %7414 = vsyncadd [#allocation4], %s7413
      %s7415 = sshll.u32 [#allocation3], 4
      %s7416 = int_to_ptr.vmem [resolvable:$true] %s7415
      %7421 = dma.vmem_to_hbm [thread:$0]  %s7416, 2048, %s15, [#allocation4], 128, 128, 8
    $region65: #{tpu_custom_call.1} parent=1 // pred_fallthru
      _
    // Predicated region
    $region66: #{tpu_custom_call.1} parent=1 // pred_check
      _
    $region67: #{tpu_custom_call.1} parent=1 // pred_check_branch
      %7423 = sbr.rel (0) target = $region69
    $region68: #{tpu_custom_call.1} parent=1 // pred_region
      %7424 = dma.done [#allocation4], 2048
    $region69: #{tpu_custom_call.1} parent=1 // pred_fallthru
      _
    %7425 = vsyncpa [#allocation4], 1

</llo_original>
